<compile_context>
chip_gen: v6e
topology: v6e:2x2x1
jax: 0.10.0
libtpu: 0.0.40
codegen_flags: <defaults>
</compile_context>

<pallas_src>
import math

import jax
import jax.numpy as jnp
from jax.experimental import pallas as pl
from jax.experimental.pallas import tpu as pltpu  # noqa: F401

# ----------------------------- small config ---------------------------------
B = 2                 # batch
PREV_DIM = 4          # prev_dim / in_chans of WaveEmbed
H = W = 16            # input spatial
PATCH = 2             # patch_size == stride, pad = 0
EMBED_DIM = 32
NUM_HEADS = 4
HEAD_DIM = EMBED_DIM // NUM_HEADS
MLP_RATIO = 4
HIDDEN = EMBED_DIM * MLP_RATIO
DEPTH = 2
SEQ_LEN = (H // 2 // PATCH) * (W // 2 // PATCH)   # 4*4 = 16 tokens
BN = B * SEQ_LEN                                   # batch folded into matmul M
SCALE = HEAD_DIM ** (-0.5)
LN_EPS = 1e-5         # nn.LayerNorm default
NEG_INF = -1e30


# ----------------------------- in-kernel helpers -----------------------------
def _gelu_tanh(x):
    # tanh-approximation GELU: one EUP transcendental instead of ~10 VALU ops.
    c = math.sqrt(2.0 / math.pi)
    return 0.5 * x * (1.0 + jnp.tanh(c * (x + 0.044715 * x * x * x)))


def _layernorm(x, g, b):
    mu = jnp.mean(x, axis=-1, keepdims=True)
    var = jnp.mean((x - mu) ** 2, axis=-1, keepdims=True)
    return (x - mu) * jax.lax.rsqrt(var + LN_EPS) * g + b


# ----------------------------- fused Pallas kernel ----------------------------
def wstage_kernel(patches_ref, wp_ref, embv_ref, pos_ref, bias_ref, vecs_ref,
                  wqkv_ref, bqkv_ref, wproj_ref, w1_ref, b1_ref, w2_ref, o_ref):
    # patches_ref : (B*N, P)          wp_ref   : (P, D)
    # embv_ref    : (3, D)  [conv_b, embed_ln_g, embed_ln_b]
    # pos_ref     : (B*N, D)          bias_ref : (B*N, B*N) block-diag attn bias
    # vecs_ref    : (DEPTH, 6, D) [ln1_g, ln1_b, ln2_g, ln2_b, bproj, b2]
    # wqkv_ref    : (DEPTH*3*H, D, Hd)   bqkv_ref : (DEPTH*3*H, 1, Hd)
    # wproj_ref   : (DEPTH*H, Hd, D)
    # w1_ref      : (DEPTH, D, HIDDEN)   b1_ref : (DEPTH, 1, HIDDEN)
    # w2_ref      : (DEPTH, HIDDEN, D)
    Hh = NUM_HEADS

    # ---- wave-embed projection + LayerNorm + positional embedding ----
    emb = embv_ref[...]                                               # (3, D)
    x = jnp.dot(patches_ref[...], wp_ref[...],
                preferred_element_type=jnp.float32) + emb[0:1]
    x = _layernorm(x, emb[1:2], emb[2:3])
    x = x + pos_ref[...]

    attn_bias = bias_ref[...]                                         # (BN, BN)

    for d in range(DEPTH):
        vec = vecs_ref[d]                                             # (6, D)

        # ---- attention branch: x + sum_h softmax(q_h k_h^T * scale) v_h @ Wp_h ----
        h1 = _layernorm(x, vec[0:1], vec[1:2])
        a = jnp.zeros((BN, EMBED_DIM), jnp.float32)
        for hh in range(Hh):
            iq = (d * 3 + 0) * Hh + hh
            ik = (d * 3 + 1) * Hh + hh
            iv = (d * 3 + 2) * Hh + hh
            q = jnp.dot(h1, wqkv_ref[iq], preferred_element_type=jnp.float32) + bqkv_ref[iq]
            k = jnp.dot(h1, wqkv_ref[ik], preferred_element_type=jnp.float32) + bqkv_ref[ik]
            v = jnp.dot(h1, wqkv_ref[iv], preferred_element_type=jnp.float32) + bqkv_ref[iv]
            s = jax.lax.dot_general(q, k, (((1,), (1,)), ((), ())),
                                    preferred_element_type=jnp.float32) * SCALE
            s = s + attn_bias                     # -inf off the per-batch diagonal blocks
            s = s - jnp.max(s, axis=-1, keepdims=True)
            p = jnp.exp(s)
            p = p * pl.reciprocal(jnp.sum(p, axis=-1, keepdims=True), approx=True)
            oh = jnp.dot(p, v, preferred_element_type=jnp.float32)    # (BN, Hd)
            a = a + jnp.dot(oh, wproj_ref[d * Hh + hh],
                            preferred_element_type=jnp.float32)
        x = x + a + vec[4:5]                                          # + proj bias

        # ---- MLP branch: x + fc2(gelu(fc1(ln2(x)))) ----
        h2 = _layernorm(x, vec[2:3], vec[3:4])
        m = jnp.dot(h2, w1_ref[d], preferred_element_type=jnp.float32) + b1_ref[d]
        m = _gelu_tanh(m)
        m = jnp.dot(m, w2_ref[d], preferred_element_type=jnp.float32) + vec[5:6]
        x = x + m

    o_ref[...] = x


# ----------------------------- host-side glue (plain JAX, under jit) ----------
def haar_dwt(x):
    # Level-1 Haar DWT (deterministic stand-in for the external embed_layer):
    # returns LL and [LH, HL, HH], each (B, C, H/2, W/2).
    a = x[:, :, 0::2, 0::2]
    b_ = x[:, :, 0::2, 1::2]
    c = x[:, :, 1::2, 0::2]
    d = x[:, :, 1::2, 1::2]
    ll = (a + b_ + c + d) * 0.5
    lh = (a - b_ + c - d) * 0.5
    hl = (a + b_ - c - d) * 0.5
    hh = (a - b_ - c + d) * 0.5
    return ll, lh, hl, hh


def patchify(xw):
    # Conv2d(kernel=stride=PATCH, pad=0) == matmul over (C, kh, kw)-flattened patches.
    Bsz, C4, Hh, Wh = xw.shape
    hp, wp = Hh // PATCH, Wh // PATCH
    x = xw.reshape(Bsz, C4, hp, PATCH, wp, PATCH)
    x = jnp.transpose(x, (0, 2, 4, 1, 3, 5))            # (B, hp, wp, C4, kh, kw)
    return x.reshape(Bsz, hp * wp, C4 * PATCH * PATCH)


def wave_stage_inputs(x, params):
    ll, lh, hl, hh = haar_dwt(x)
    xw = jnp.stack([ll, lh, hl, hh], axis=2)             # (B, C, 4, H/2, W/2)
    Bsz, C = x.shape[0], x.shape[1]
    xw = xw.reshape(Bsz, C * 4, H // 2, W // 2)          # cat + reshape (B, 4C, h, w)
    patches = patchify(xw)                               # (B, N, P)
    wp = params["conv_w"].reshape(EMBED_DIM, -1).T       # (P, D), matches (C,kh,kw) order
    return patches, wp


def pack_params(params):
    """Pack per-block params into a few DEPTH-stacked slabs with head-major weights."""
    D, Hd, Hh = EMBED_DIM, HEAD_DIM, NUM_HEADS
    wqkv_h, bqkv_h, wproj_h, vecs, w1, b1, w2 = [], [], [], [], [], [], []
    for blk in params["blocks"]:
        wqkv_h.append(blk["wqkv"].reshape(D, 3, Hh, Hd).transpose(1, 2, 0, 3))  # (3,H,D,Hd)
        bqkv_h.append(blk["bqkv"].reshape(3, Hh, 1, Hd))                         # (3,H,1,Hd)
        wproj_h.append(blk["wproj"].reshape(Hh, Hd, D))                          # (H,Hd,D)
        vecs.append(jnp.stack([blk["ln1_g"], blk["ln1_b"], blk["ln2_g"],
                               blk["ln2_b"], blk["bproj"], blk["b2"]]))          # (6,D)
        w1.append(blk["w1"])
        b1.append(blk["b1"].reshape(1, -1))
        w2.append(blk["w2"])
    return dict(
        wqkv_h=jnp.stack(wqkv_h).reshape(DEPTH * 3 * Hh, D, Hd),
        bqkv_h=jnp.stack(bqkv_h).reshape(DEPTH * 3 * Hh, 1, Hd),
        wproj_h=jnp.stack(wproj_h).reshape(DEPTH * Hh, Hd, D),
        vecs=jnp.stack(vecs),                     # (DEPTH, 6, D)
        w1=jnp.stack(w1),                         # (DEPTH, D, HIDDEN)
        b1=jnp.stack(b1),                         # (DEPTH, 1, HIDDEN)
        w2=jnp.stack(w2),                         # (DEPTH, HIDDEN, D)
        emb_vecs=jnp.stack([params["conv_b"], params["embed_ln_g"],
                            params["embed_ln_b"]]),        # (3, D)
        pos_bn=jnp.tile(params["pos"], (B, 1)),            # (B*N, D)
    )


def make_attn_bias():
    # Block-diagonal additive bias: tokens only attend within their own batch element.
    r = jnp.arange(BN)[:, None] // SEQ_LEN
    c = jnp.arange(BN)[None, :] // SEQ_LEN
    return jnp.where(r == c, 0.0, NEG_INF).astype(jnp.float32)


@jax.jit
def wstage_forward(x, params):
    patches, wp = wave_stage_inputs(x, params)
    patches = patches.reshape(BN, -1)                      # (B*N, P)
    packed = pack_params(params)
    attn_bias = make_attn_bias()

    y = pl.pallas_call(
        wstage_kernel,
        out_shape=jax.ShapeDtypeStruct((BN, EMBED_DIM), jnp.float32),
    )(patches, wp, packed["emb_vecs"], packed["pos_bn"], attn_bias,
      packed["vecs"], packed["wqkv_h"], packed["bqkv_h"], packed["wproj_h"],
      packed["w1"], packed["b1"], packed["w2"])

    h_sp = w_sp = int(SEQ_LEN ** 0.5)
    y = y.reshape(B, SEQ_LEN, EMBED_DIM)
    # rearrange 'b (h w) c -> b c h w'
    return jnp.transpose(y, (0, 2, 1)).reshape(B, EMBED_DIM, h_sp, w_sp)


# ----------------------------- pure-JAX reference -----------------------------
def _ref_ln(x, g, b):
    mu = x.mean(-1, keepdims=True)
    var = ((x - mu) ** 2).mean(-1, keepdims=True)
    return (x - mu) / jnp.sqrt(var + LN_EPS) * g + b


def ref_forward(x, params):
    patches, wp = wave_stage_inputs(x, params)
    y = patches @ wp + params["conv_b"]
    y = _ref_ln(y, params["embed_ln_g"], params["embed_ln_b"])
    y = y + params["pos"]
    for blk in params["blocks"]:
        h1 = _ref_ln(y, blk["ln1_g"], blk["ln1_b"])
        qkv = h1 @ blk["wqkv"] + blk["bqkv"]
        q, k, v = jnp.split(qkv, 3, axis=-1)

        def heads(t):
            return t.reshape(B, SEQ_LEN, NUM_HEADS, HEAD_DIM).transpose(0, 2, 1, 3)

        qh, kh, vh = heads(q), heads(k), heads(v)
        attn = jnp.einsum("bhqd,bhkd->bhqk", qh, kh) * SCALE
        attn = jax.nn.softmax(attn, axis=-1)
        o = jnp.einsum("bhqk,bhkd->bhqd", attn, vh)
        o = o.transpose(0, 2, 1, 3).reshape(B, SEQ_LEN, EMBED_DIM)
        y = y + (o @ blk["wproj"] + blk["bproj"])
        h2 = _ref_ln(y, blk["ln2_g"], blk["ln2_b"])
        m = jax.nn.gelu(h2 @ blk["w1"] + blk["b1"], approximate=False)
        y = y + (m @ blk["w2"] + blk["b2"])
    h_sp = w_sp = int(SEQ_LEN ** 0.5)
    return jnp.transpose(y, (0, 2, 1)).reshape(x.shape[0], EMBED_DIM, h_sp, w_sp)


# ----------------------------- deterministic params ---------------------------
def init_params(key):
    C4 = PREV_DIM * 4
    keys = jax.random.split(key, 3 + DEPTH)
    params = {
        "conv_w": jax.random.normal(keys[0], (EMBED_DIM, C4, PATCH, PATCH), jnp.float32) * 0.05,
        "conv_b": jax.random.normal(keys[1], (EMBED_DIM,), jnp.float32) * 0.02,
        "embed_ln_g": jnp.ones((EMBED_DIM,), jnp.float32),
        "embed_ln_b": jnp.zeros((EMBED_DIM,), jnp.float32),
        "pos": jax.random.normal(keys[2], (SEQ_LEN, EMBED_DIM), jnp.float32) * 0.02,
        "blocks": [],
    }
    for i in range(DEPTH):
        bk = jax.random.split(keys[3 + i], 8)
        params["blocks"].append(dict(
            ln1_g=jnp.ones((EMBED_DIM,), jnp.float32),
            ln1_b=jnp.zeros((EMBED_DIM,), jnp.float32),
            wqkv=jax.random.normal(bk[0], (EMBED_DIM, 3 * EMBED_DIM), jnp.float32) * 0.05,
            bqkv=jax.random.normal(bk[1], (3 * EMBED_DIM,), jnp.float32) * 0.02,
            wproj=jax.random.normal(bk[2], (EMBED_DIM, EMBED_DIM), jnp.float32) * 0.05,
            bproj=jax.random.normal(bk[3], (EMBED_DIM,), jnp.float32) * 0.02,
            ln2_g=jnp.ones((EMBED_DIM,), jnp.float32),
            ln2_b=jnp.zeros((EMBED_DIM,), jnp.float32),
            w1=jax.random.normal(bk[4], (EMBED_DIM, HIDDEN), jnp.float32) * 0.05,
            b1=jax.random.normal(bk[5], (HIDDEN,), jnp.float32) * 0.02,
            w2=jax.random.normal(bk[6], (HIDDEN, EMBED_DIM), jnp.float32) * 0.05,
            b2=jax.random.normal(bk[7], (EMBED_DIM,), jnp.float32) * 0.02,
        ))
    return params


# ----------------------------------- main -------------------------------------
if __name__ == "__main__":
    key = jax.random.PRNGKey(0)
    kx, kp = jax.random.split(key)
    x = jax.random.normal(kx, (B, PREV_DIM, H, W), jnp.float32)
    params = init_params(kp)

    out = wstage_forward(x, params)
    out = jax.block_until_ready(out)
    assert out.shape == (B, EMBED_DIM, int(SEQ_LEN ** 0.5), int(SEQ_LEN ** 0.5)), out.shape

    ref = jax.block_until_ready(ref_forward(x, params))
    assert jnp.allclose(out, ref, atol=3e-2, rtol=3e-2), float(jnp.max(jnp.abs(out - ref)))

    print("KERNEL_OK")
</pallas_src>

<mosaic_0001>
module attributes {stable_mosaic.version = 11 : i64} {
  func.func @wstage_kernel(%arg0: memref<32x64xf32, #tpu.memory_space<vmem>>, %arg1: memref<64x32xf32, #tpu.memory_space<vmem>>, %arg2: memref<3x32xf32, #tpu.memory_space<vmem>>, %arg3: memref<32x32xf32, #tpu.memory_space<vmem>>, %arg4: memref<32x32xf32, #tpu.memory_space<vmem>>, %arg5: memref<2x6x32xf32, #tpu.memory_space<vmem>>, %arg6: memref<24x32x8xf32, #tpu.memory_space<vmem>>, %arg7: memref<24x1x8xf32, #tpu.memory_space<vmem>>, %arg8: memref<8x8x32xf32, #tpu.memory_space<vmem>>, %arg9: memref<2x32x128xf32, #tpu.memory_space<vmem>>, %arg10: memref<2x1x128xf32, #tpu.memory_space<vmem>>, %arg11: memref<2x128x32xf32, #tpu.memory_space<vmem>>, %arg12: memref<32x32xf32, #tpu.memory_space<vmem>>) attributes {dimension_semantics = [], scalar_prefetch = 0 : i64, scratch_operands = 0 : i64, tpu.core_type = #tpu.core_type<tc>} {
    %c0 = arith.constant 0 : index
    %c0_0 = arith.constant 0 : index
    %0 = vector.load %arg2[%c0, %c0_0] : memref<3x32xf32, #tpu.memory_space<vmem>>, vector<3x32xf32>
    %c0_1 = arith.constant 0 : index
    %c0_2 = arith.constant 0 : index
    %1 = vector.load %arg0[%c0_1, %c0_2] : memref<32x64xf32, #tpu.memory_space<vmem>>, vector<32x64xf32>
    %c0_3 = arith.constant 0 : index
    %c0_4 = arith.constant 0 : index
    %2 = vector.load %arg1[%c0_3, %c0_4] : memref<64x32xf32, #tpu.memory_space<vmem>>, vector<64x32xf32>
    %cst = arith.constant dense<0.000000e+00> : vector<32x32xf32>
    %3 = tpu.matmul %1, %2, %cst {dimension_numbers = #tpu.dot_dimension_numbers<[1], [0], [0], [1], [0, 0, 1, 1], [], []>} : vector<32x64xf32>, vector<64x32xf32>, vector<32x32xf32> -> vector<32x32xf32>
    %4 = vector.extract_strided_slice %0 {offsets = [0, 0], sizes = [1, 32], strides = [1, 1]} : vector<3x32xf32> to vector<1x32xf32>
    %5 = vector.broadcast %4 : vector<1x32xf32> to vector<32x32xf32>
    %6 = arith.addf %3, %5 : vector<32x32xf32>
    %7 = vector.extract_strided_slice %0 {offsets = [1, 0], sizes = [1, 32], strides = [1, 1]} : vector<3x32xf32> to vector<1x32xf32>
    %8 = vector.extract_strided_slice %0 {offsets = [2, 0], sizes = [1, 32], strides = [1, 1]} : vector<3x32xf32> to vector<1x32xf32>
    %cst_5 = arith.constant dense<0.000000e+00> : vector<32xf32>
    %9 = vector.multi_reduction <add>, %6, %cst_5 [1] : vector<32x32xf32> to vector<32xf32>
    %10 = vector.shape_cast %9 : vector<32xf32> to vector<32x1xf32>
    %cst_6 = arith.constant 3.200000e+01 : f32
    %11 = vector.broadcast %cst_6 : f32 to vector<32x1xf32>
    %12 = arith.divf %10, %11 : vector<32x1xf32>
    %13 = vector.broadcast %12 : vector<32x1xf32> to vector<32x32xf32>
    %14 = arith.subf %6, %13 : vector<32x32xf32>
    %15 = arith.mulf %14, %14 : vector<32x32xf32>
    %cst_7 = arith.constant dense<0.000000e+00> : vector<32xf32>
    %16 = vector.multi_reduction <add>, %15, %cst_7 [1] : vector<32x32xf32> to vector<32xf32>
    %17 = vector.shape_cast %16 : vector<32xf32> to vector<32x1xf32>
    %cst_8 = arith.constant 3.200000e+01 : f32
    %18 = vector.broadcast %cst_8 : f32 to vector<32x1xf32>
    %19 = arith.divf %17, %18 : vector<32x1xf32>
    %20 = vector.broadcast %12 : vector<32x1xf32> to vector<32x32xf32>
    %21 = arith.subf %6, %20 : vector<32x32xf32>
    %cst_9 = arith.constant 9.99999974E-6 : f32
    %22 = vector.broadcast %cst_9 : f32 to vector<32x1xf32>
    %23 = arith.addf %19, %22 : vector<32x1xf32>
    %24 = math.rsqrt %23 : vector<32x1xf32>
    %25 = vector.broadcast %24 : vector<32x1xf32> to vector<32x32xf32>
    %26 = arith.mulf %21, %25 : vector<32x32xf32>
    %27 = vector.broadcast %7 : vector<1x32xf32> to vector<32x32xf32>
    %28 = arith.mulf %26, %27 : vector<32x32xf32>
    %29 = vector.broadcast %8 : vector<1x32xf32> to vector<32x32xf32>
    %30 = arith.addf %28, %29 : vector<32x32xf32>
    %c0_10 = arith.constant 0 : index
    %c0_11 = arith.constant 0 : index
    %31 = vector.load %arg3[%c0_10, %c0_11] : memref<32x32xf32, #tpu.memory_space<vmem>>, vector<32x32xf32>
    %32 = arith.addf %30, %31 : vector<32x32xf32>
    %c0_12 = arith.constant 0 : index
    %c0_13 = arith.constant 0 : index
    %33 = vector.load %arg4[%c0_12, %c0_13] : memref<32x32xf32, #tpu.memory_space<vmem>>, vector<32x32xf32>
    %c0_14 = arith.constant 0 : index
    %c0_15 = arith.constant 0 : index
    %c0_16 = arith.constant 0 : index
    %34 = vector.load %arg5[%c0_14, %c0_15, %c0_16] : memref<2x6x32xf32, #tpu.memory_space<vmem>>, vector<1x6x32xf32>
    %35 = vector.shape_cast %34 : vector<1x6x32xf32> to vector<6x32xf32>
    %36 = vector.extract_strided_slice %35 {offsets = [0, 0], sizes = [1, 32], strides = [1, 1]} : vector<6x32xf32> to vector<1x32xf32>
    %37 = vector.extract_strided_slice %35 {offsets = [1, 0], sizes = [1, 32], strides = [1, 1]} : vector<6x32xf32> to vector<1x32xf32>
    %cst_17 = arith.constant dense<0.000000e+00> : vector<32xf32>
    %38 = vector.multi_reduction <add>, %32, %cst_17 [1] : vector<32x32xf32> to vector<32xf32>
    %39 = vector.shape_cast %38 : vector<32xf32> to vector<32x1xf32>
    %cst_18 = arith.constant 3.200000e+01 : f32
    %40 = vector.broadcast %cst_18 : f32 to vector<32x1xf32>
    %41 = arith.divf %39, %40 : vector<32x1xf32>
    %42 = vector.broadcast %41 : vector<32x1xf32> to vector<32x32xf32>
    %43 = arith.subf %32, %42 : vector<32x32xf32>
    %44 = arith.mulf %43, %43 : vector<32x32xf32>
    %cst_19 = arith.constant dense<0.000000e+00> : vector<32xf32>
    %45 = vector.multi_reduction <add>, %44, %cst_19 [1] : vector<32x32xf32> to vector<32xf32>
    %46 = vector.shape_cast %45 : vector<32xf32> to vector<32x1xf32>
    %cst_20 = arith.constant 3.200000e+01 : f32
    %47 = vector.broadcast %cst_20 : f32 to vector<32x1xf32>
    %48 = arith.divf %46, %47 : vector<32x1xf32>
    %49 = vector.broadcast %41 : vector<32x1xf32> to vector<32x32xf32>
    %50 = arith.subf %32, %49 : vector<32x32xf32>
    %cst_21 = arith.constant 9.99999974E-6 : f32
    %51 = vector.broadcast %cst_21 : f32 to vector<32x1xf32>
    %52 = arith.addf %48, %51 : vector<32x1xf32>
    %53 = math.rsqrt %52 : vector<32x1xf32>
    %54 = vector.broadcast %53 : vector<32x1xf32> to vector<32x32xf32>
    %55 = arith.mulf %50, %54 : vector<32x32xf32>
    %56 = vector.broadcast %36 : vector<1x32xf32> to vector<32x32xf32>
    %57 = arith.mulf %55, %56 : vector<32x32xf32>
    %58 = vector.broadcast %37 : vector<1x32xf32> to vector<32x32xf32>
    %59 = arith.addf %57, %58 : vector<32x32xf32>
    %cst_22 = arith.constant 0.000000e+00 : f32
    %60 = vector.broadcast %cst_22 : f32 to vector<32x32xf32>
    %c0_23 = arith.constant 0 : index
    %c0_24 = arith.constant 0 : index
    %c0_25 = arith.constant 0 : index
    %61 = vector.load %arg6[%c0_23, %c0_24, %c0_25] : memref<24x32x8xf32, #tpu.memory_space<vmem>>, vector<1x32x8xf32>
    %62 = vector.shape_cast %61 : vector<1x32x8xf32> to vector<32x8xf32>
    %cst_26 = arith.constant dense<0.000000e+00> : vector<32x8xf32>
    %63 = tpu.matmul %59, %62, %cst_26 {dimension_numbers = #tpu.dot_dimension_numbers<[1], [0], [0], [1], [0, 0, 1, 1], [], []>} : vector<32x32xf32>, vector<32x8xf32>, vector<32x8xf32> -> vector<32x8xf32>
    %c0_27 = arith.constant 0 : index
    %c0_28 = arith.constant 0 : index
    %c0_29 = arith.constant 0 : index
    %64 = vector.load %arg7[%c0_27, %c0_28, %c0_29] : memref<24x1x8xf32, #tpu.memory_space<vmem>>, vector<1x1x8xf32>
    %65 = vector.shape_cast %64 : vector<1x1x8xf32> to vector<1x8xf32>
    %66 = vector.broadcast %65 : vector<1x8xf32> to vector<32x8xf32>
    %67 = arith.addf %63, %66 : vector<32x8xf32>
    %c4 = arith.constant 4 : index
    %c0_30 = arith.constant 0 : index
    %c0_31 = arith.constant 0 : index
    %68 = vector.load %arg6[%c4, %c0_30, %c0_31] : memref<24x32x8xf32, #tpu.memory_space<vmem>>, vector<1x32x8xf32>
    %69 = vector.shape_cast %68 : vector<1x32x8xf32> to vector<32x8xf32>
    %cst_32 = arith.constant dense<0.000000e+00> : vector<32x8xf32>
    %70 = tpu.matmul %59, %69, %cst_32 {dimension_numbers = #tpu.dot_dimension_numbers<[1], [0], [0], [1], [0, 0, 1, 1], [], []>} : vector<32x32xf32>, vector<32x8xf32>, vector<32x8xf32> -> vector<32x8xf32>
    %c4_33 = arith.constant 4 : index
    %c0_34 = arith.constant 0 : index
    %c0_35 = arith.constant 0 : index
    %71 = vector.load %arg7[%c4_33, %c0_34, %c0_35] : memref<24x1x8xf32, #tpu.memory_space<vmem>>, vector<1x1x8xf32>
    %72 = vector.shape_cast %71 : vector<1x1x8xf32> to vector<1x8xf32>
    %73 = vector.broadcast %72 : vector<1x8xf32> to vector<32x8xf32>
    %74 = arith.addf %70, %73 : vector<32x8xf32>
    %c8 = arith.constant 8 : index
    %c0_36 = arith.constant 0 : index
    %c0_37 = arith.constant 0 : index
    %75 = vector.load %arg6[%c8, %c0_36, %c0_37] : memref<24x32x8xf32, #tpu.memory_space<vmem>>, vector<1x32x8xf32>
    %76 = vector.shape_cast %75 : vector<1x32x8xf32> to vector<32x8xf32>
    %cst_38 = arith.constant dense<0.000000e+00> : vector<32x8xf32>
    %77 = tpu.matmul %59, %76, %cst_38 {dimension_numbers = #tpu.dot_dimension_numbers<[1], [0], [0], [1], [0, 0, 1, 1], [], []>} : vector<32x32xf32>, vector<32x8xf32>, vector<32x8xf32> -> vector<32x8xf32>
    %c8_39 = arith.constant 8 : index
    %c0_40 = arith.constant 0 : index
    %c0_41 = arith.constant 0 : index
    %78 = vector.load %arg7[%c8_39, %c0_40, %c0_41] : memref<24x1x8xf32, #tpu.memory_space<vmem>>, vector<1x1x8xf32>
    %79 = vector.shape_cast %78 : vector<1x1x8xf32> to vector<1x8xf32>
    %80 = vector.broadcast %79 : vector<1x8xf32> to vector<32x8xf32>
    %81 = arith.addf %77, %80 : vector<32x8xf32>
    %cst_42 = arith.constant dense<0.000000e+00> : vector<32x32xf32>
    %82 = tpu.matmul %67, %74, %cst_42 {dimension_numbers = #tpu.dot_dimension_numbers<[1], [1], [0], [0], [0, 0, 1, 0], [], []>} : vector<32x8xf32>, vector<32x8xf32>, vector<32x32xf32> -> vector<32x32xf32>
    %cst_43 = arith.constant 0.353553385 : f32
    %83 = vector.broadcast %cst_43 : f32 to vector<32x32xf32>
    %84 = arith.mulf %82, %83 : vector<32x32xf32>
    %85 = arith.addf %84, %33 : vector<32x32xf32>
    %cst_44 = arith.constant dense<0xFF800000> : vector<32xf32>
    %86 = vector.multi_reduction <maximumf>, %85, %cst_44 [1] : vector<32x32xf32> to vector<32xf32>
    %87 = vector.shape_cast %86 : vector<32xf32> to vector<32x1xf32>
    %88 = vector.broadcast %87 : vector<32x1xf32> to vector<32x32xf32>
    %89 = arith.subf %85, %88 : vector<32x32xf32>
    %90 = math.exp %89 : vector<32x32xf32>
    %cst_45 = arith.constant dense<0.000000e+00> : vector<32xf32>
    %91 = vector.multi_reduction <add>, %90, %cst_45 [1] : vector<32x32xf32> to vector<32xf32>
    %92 = vector.shape_cast %91 : vector<32xf32> to vector<32x1xf32>
    %93 = tpu.reciprocal %92 {approx = true} : vector<32x1xf32> -> vector<32x1xf32>
    %94 = vector.broadcast %93 : vector<32x1xf32> to vector<32x32xf32>
    %95 = arith.mulf %90, %94 : vector<32x32xf32>
    %cst_46 = arith.constant dense<0.000000e+00> : vector<32x8xf32>
    %96 = tpu.matmul %95, %81, %cst_46 {dimension_numbers = #tpu.dot_dimension_numbers<[1], [0], [0], [1], [0, 0, 1, 1], [], []>} : vector<32x32xf32>, vector<32x8xf32>, vector<32x8xf32> -> vector<32x8xf32>
    %c0_47 = arith.constant 0 : index
    %c0_48 = arith.constant 0 : index
    %c0_49 = arith.constant 0 : index
    %97 = vector.load %arg8[%c0_47, %c0_48, %c0_49] : memref<8x8x32xf32, #tpu.memory_space<vmem>>, vector<1x8x32xf32>
    %98 = vector.shape_cast %97 : vector<1x8x32xf32> to vector<8x32xf32>
    %cst_50 = arith.constant dense<0.000000e+00> : vector<32x32xf32>
    %99 = tpu.matmul %96, %98, %cst_50 {dimension_numbers = #tpu.dot_dimension_numbers<[1], [0], [0], [1], [0, 0, 1, 1], [], []>} : vector<32x8xf32>, vector<8x32xf32>, vector<32x32xf32> -> vector<32x32xf32>
    %100 = arith.addf %60, %99 : vector<32x32xf32>
    %c1 = arith.constant 1 : index
    %c0_51 = arith.constant 0 : index
    %c0_52 = arith.constant 0 : index
    %101 = vector.load %arg6[%c1, %c0_51, %c0_52] : memref<24x32x8xf32, #tpu.memory_space<vmem>>, vector<1x32x8xf32>
    %102 = vector.shape_cast %101 : vector<1x32x8xf32> to vector<32x8xf32>
    %cst_53 = arith.constant dense<0.000000e+00> : vector<32x8xf32>
    %103 = tpu.matmul %59, %102, %cst_53 {dimension_numbers = #tpu.dot_dimension_numbers<[1], [0], [0], [1], [0, 0, 1, 1], [], []>} : vector<32x32xf32>, vector<32x8xf32>, vector<32x8xf32> -> vector<32x8xf32>
    %c1_54 = arith.constant 1 : index
    %c0_55 = arith.constant 0 : index
    %c0_56 = arith.constant 0 : index
    %104 = vector.load %arg7[%c1_54, %c0_55, %c0_56] : memref<24x1x8xf32, #tpu.memory_space<vmem>>, vector<1x1x8xf32>
    %105 = vector.shape_cast %104 : vector<1x1x8xf32> to vector<1x8xf32>
    %106 = vector.broadcast %105 : vector<1x8xf32> to vector<32x8xf32>
    %107 = arith.addf %103, %106 : vector<32x8xf32>
    %c5 = arith.constant 5 : index
    %c0_57 = arith.constant 0 : index
    %c0_58 = arith.constant 0 : index
    %108 = vector.load %arg6[%c5, %c0_57, %c0_58] : memref<24x32x8xf32, #tpu.memory_space<vmem>>, vector<1x32x8xf32>
    %109 = vector.shape_cast %108 : vector<1x32x8xf32> to vector<32x8xf32>
    %cst_59 = arith.constant dense<0.000000e+00> : vector<32x8xf32>
    %110 = tpu.matmul %59, %109, %cst_59 {dimension_numbers = #tpu.dot_dimension_numbers<[1], [0], [0], [1], [0, 0, 1, 1], [], []>} : vector<32x32xf32>, vector<32x8xf32>, vector<32x8xf32> -> vector<32x8xf32>
    %c5_60 = arith.constant 5 : index
    %c0_61 = arith.constant 0 : index
    %c0_62 = arith.constant 0 : index
    %111 = vector.load %arg7[%c5_60, %c0_61, %c0_62] : memref<24x1x8xf32, #tpu.memory_space<vmem>>, vector<1x1x8xf32>
    %112 = vector.shape_cast %111 : vector<1x1x8xf32> to vector<1x8xf32>
    %113 = vector.broadcast %112 : vector<1x8xf32> to vector<32x8xf32>
    %114 = arith.addf %110, %113 : vector<32x8xf32>
    %c9 = arith.constant 9 : index
    %c0_63 = arith.constant 0 : index
    %c0_64 = arith.constant 0 : index
    %115 = vector.load %arg6[%c9, %c0_63, %c0_64] : memref<24x32x8xf32, #tpu.memory_space<vmem>>, vector<1x32x8xf32>
    %116 = vector.shape_cast %115 : vector<1x32x8xf32> to vector<32x8xf32>
    %cst_65 = arith.constant dense<0.000000e+00> : vector<32x8xf32>
    %117 = tpu.matmul %59, %116, %cst_65 {dimension_numbers = #tpu.dot_dimension_numbers<[1], [0], [0], [1], [0, 0, 1, 1], [], []>} : vector<32x32xf32>, vector<32x8xf32>, vector<32x8xf32> -> vector<32x8xf32>
    %c9_66 = arith.constant 9 : index
    %c0_67 = arith.constant 0 : index
    %c0_68 = arith.constant 0 : index
    %118 = vector.load %arg7[%c9_66, %c0_67, %c0_68] : memref<24x1x8xf32, #tpu.memory_space<vmem>>, vector<1x1x8xf32>
    %119 = vector.shape_cast %118 : vector<1x1x8xf32> to vector<1x8xf32>
    %120 = vector.broadcast %119 : vector<1x8xf32> to vector<32x8xf32>
    %121 = arith.addf %117, %120 : vector<32x8xf32>
    %cst_69 = arith.constant dense<0.000000e+00> : vector<32x32xf32>
    %122 = tpu.matmul %107, %114, %cst_69 {dimension_numbers = #tpu.dot_dimension_numbers<[1], [1], [0], [0], [0, 0, 1, 0], [], []>} : vector<32x8xf32>, vector<32x8xf32>, vector<32x32xf32> -> vector<32x32xf32>
    %cst_70 = arith.constant 0.353553385 : f32
    %123 = vector.broadcast %cst_70 : f32 to vector<32x32xf32>
    %124 = arith.mulf %122, %123 : vector<32x32xf32>
    %125 = arith.addf %124, %33 : vector<32x32xf32>
    %cst_71 = arith.constant dense<0xFF800000> : vector<32xf32>
    %126 = vector.multi_reduction <maximumf>, %125, %cst_71 [1] : vector<32x32xf32> to vector<32xf32>
    %127 = vector.shape_cast %126 : vector<32xf32> to vector<32x1xf32>
    %128 = vector.broadcast %127 : vector<32x1xf32> to vector<32x32xf32>
    %129 = arith.subf %125, %128 : vector<32x32xf32>
    %130 = math.exp %129 : vector<32x32xf32>
    %cst_72 = arith.constant dense<0.000000e+00> : vector<32xf32>
    %131 = vector.multi_reduction <add>, %130, %cst_72 [1] : vector<32x32xf32> to vector<32xf32>
    %132 = vector.shape_cast %131 : vector<32xf32> to vector<32x1xf32>
    %133 = tpu.reciprocal %132 {approx = true} : vector<32x1xf32> -> vector<32x1xf32>
    %134 = vector.broadcast %133 : vector<32x1xf32> to vector<32x32xf32>
    %135 = arith.mulf %130, %134 : vector<32x32xf32>
    %cst_73 = arith.constant dense<0.000000e+00> : vector<32x8xf32>
    %136 = tpu.matmul %135, %121, %cst_73 {dimension_numbers = #tpu.dot_dimension_numbers<[1], [0], [0], [1], [0, 0, 1, 1], [], []>} : vector<32x32xf32>, vector<32x8xf32>, vector<32x8xf32> -> vector<32x8xf32>
    %c1_74 = arith.constant 1 : index
    %c0_75 = arith.constant 0 : index
    %c0_76 = arith.constant 0 : index
    %137 = vector.load %arg8[%c1_74, %c0_75, %c0_76] : memref<8x8x32xf32, #tpu.memory_space<vmem>>, vector<1x8x32xf32>
    %138 = vector.shape_cast %137 : vector<1x8x32xf32> to vector<8x32xf32>
    %cst_77 = arith.constant dense<0.000000e+00> : vector<32x32xf32>
    %139 = tpu.matmul %136, %138, %cst_77 {dimension_numbers = #tpu.dot_dimension_numbers<[1], [0], [0], [1], [0, 0, 1, 1], [], []>} : vector<32x8xf32>, vector<8x32xf32>, vector<32x32xf32> -> vector<32x32xf32>
    %140 = arith.addf %100, %139 : vector<32x32xf32>
    %c2 = arith.constant 2 : index
    %c0_78 = arith.constant 0 : index
    %c0_79 = arith.constant 0 : index
    %141 = vector.load %arg6[%c2, %c0_78, %c0_79] : memref<24x32x8xf32, #tpu.memory_space<vmem>>, vector<1x32x8xf32>
    %142 = vector.shape_cast %141 : vector<1x32x8xf32> to vector<32x8xf32>
    %cst_80 = arith.constant dense<0.000000e+00> : vector<32x8xf32>
    %143 = tpu.matmul %59, %142, %cst_80 {dimension_numbers = #tpu.dot_dimension_numbers<[1], [0], [0], [1], [0, 0, 1, 1], [], []>} : vector<32x32xf32>, vector<32x8xf32>, vector<32x8xf32> -> vector<32x8xf32>
    %c2_81 = arith.constant 2 : index
    %c0_82 = arith.constant 0 : index
    %c0_83 = arith.constant 0 : index
    %144 = vector.load %arg7[%c2_81, %c0_82, %c0_83] : memref<24x1x8xf32, #tpu.memory_space<vmem>>, vector<1x1x8xf32>
    %145 = vector.shape_cast %144 : vector<1x1x8xf32> to vector<1x8xf32>
    %146 = vector.broadcast %145 : vector<1x8xf32> to vector<32x8xf32>
    %147 = arith.addf %143, %146 : vector<32x8xf32>
    %c6 = arith.constant 6 : index
    %c0_84 = arith.constant 0 : index
    %c0_85 = arith.constant 0 : index
    %148 = vector.load %arg6[%c6, %c0_84, %c0_85] : memref<24x32x8xf32, #tpu.memory_space<vmem>>, vector<1x32x8xf32>
    %149 = vector.shape_cast %148 : vector<1x32x8xf32> to vector<32x8xf32>
    %cst_86 = arith.constant dense<0.000000e+00> : vector<32x8xf32>
    %150 = tpu.matmul %59, %149, %cst_86 {dimension_numbers = #tpu.dot_dimension_numbers<[1], [0], [0], [1], [0, 0, 1, 1], [], []>} : vector<32x32xf32>, vector<32x8xf32>, vector<32x8xf32> -> vector<32x8xf32>
    %c6_87 = arith.constant 6 : index
    %c0_88 = arith.constant 0 : index
    %c0_89 = arith.constant 0 : index
    %151 = vector.load %arg7[%c6_87, %c0_88, %c0_89] : memref<24x1x8xf32, #tpu.memory_space<vmem>>, vector<1x1x8xf32>
    %152 = vector.shape_cast %151 : vector<1x1x8xf32> to vector<1x8xf32>
    %153 = vector.broadcast %152 : vector<1x8xf32> to vector<32x8xf32>
    %154 = arith.addf %150, %153 : vector<32x8xf32>
    %c10 = arith.constant 10 : index
    %c0_90 = arith.constant 0 : index
    %c0_91 = arith.constant 0 : index
    %155 = vector.load %arg6[%c10, %c0_90, %c0_91] : memref<24x32x8xf32, #tpu.memory_space<vmem>>, vector<1x32x8xf32>
    %156 = vector.shape_cast %155 : vector<1x32x8xf32> to vector<32x8xf32>
    %cst_92 = arith.constant dense<0.000000e+00> : vector<32x8xf32>
    %157 = tpu.matmul %59, %156, %cst_92 {dimension_numbers = #tpu.dot_dimension_numbers<[1], [0], [0], [1], [0, 0, 1, 1], [], []>} : vector<32x32xf32>, vector<32x8xf32>, vector<32x8xf32> -> vector<32x8xf32>
    %c10_93 = arith.constant 10 : index
    %c0_94 = arith.constant 0 : index
    %c0_95 = arith.constant 0 : index
    %158 = vector.load %arg7[%c10_93, %c0_94, %c0_95] : memref<24x1x8xf32, #tpu.memory_space<vmem>>, vector<1x1x8xf32>
    %159 = vector.shape_cast %158 : vector<1x1x8xf32> to vector<1x8xf32>
    %160 = vector.broadcast %159 : vector<1x8xf32> to vector<32x8xf32>
    %161 = arith.addf %157, %160 : vector<32x8xf32>
    %cst_96 = arith.constant dense<0.000000e+00> : vector<32x32xf32>
    %162 = tpu.matmul %147, %154, %cst_96 {dimension_numbers = #tpu.dot_dimension_numbers<[1], [1], [0], [0], [0, 0, 1, 0], [], []>} : vector<32x8xf32>, vector<32x8xf32>, vector<32x32xf32> -> vector<32x32xf32>
    %cst_97 = arith.constant 0.353553385 : f32
    %163 = vector.broadcast %cst_97 : f32 to vector<32x32xf32>
    %164 = arith.mulf %162, %163 : vector<32x32xf32>
    %165 = arith.addf %164, %33 : vector<32x32xf32>
    %cst_98 = arith.constant dense<0xFF800000> : vector<32xf32>
    %166 = vector.multi_reduction <maximumf>, %165, %cst_98 [1] : vector<32x32xf32> to vector<32xf32>
    %167 = vector.shape_cast %166 : vector<32xf32> to vector<32x1xf32>
    %168 = vector.broadcast %167 : vector<32x1xf32> to vector<32x32xf32>
    %169 = arith.subf %165, %168 : vector<32x32xf32>
    %170 = math.exp %169 : vector<32x32xf32>
    %cst_99 = arith.constant dense<0.000000e+00> : vector<32xf32>
    %171 = vector.multi_reduction <add>, %170, %cst_99 [1] : vector<32x32xf32> to vector<32xf32>
    %172 = vector.shape_cast %171 : vector<32xf32> to vector<32x1xf32>
    %173 = tpu.reciprocal %172 {approx = true} : vector<32x1xf32> -> vector<32x1xf32>
    %174 = vector.broadcast %173 : vector<32x1xf32> to vector<32x32xf32>
    %175 = arith.mulf %170, %174 : vector<32x32xf32>
    %cst_100 = arith.constant dense<0.000000e+00> : vector<32x8xf32>
    %176 = tpu.matmul %175, %161, %cst_100 {dimension_numbers = #tpu.dot_dimension_numbers<[1], [0], [0], [1], [0, 0, 1, 1], [], []>} : vector<32x32xf32>, vector<32x8xf32>, vector<32x8xf32> -> vector<32x8xf32>
    %c2_101 = arith.constant 2 : index
    %c0_102 = arith.constant 0 : index
    %c0_103 = arith.constant 0 : index
    %177 = vector.load %arg8[%c2_101, %c0_102, %c0_103] : memref<8x8x32xf32, #tpu.memory_space<vmem>>, vector<1x8x32xf32>
    %178 = vector.shape_cast %177 : vector<1x8x32xf32> to vector<8x32xf32>
    %cst_104 = arith.constant dense<0.000000e+00> : vector<32x32xf32>
    %179 = tpu.matmul %176, %178, %cst_104 {dimension_numbers = #tpu.dot_dimension_numbers<[1], [0], [0], [1], [0, 0, 1, 1], [], []>} : vector<32x8xf32>, vector<8x32xf32>, vector<32x32xf32> -> vector<32x32xf32>
    %180 = arith.addf %140, %179 : vector<32x32xf32>
    %c3 = arith.constant 3 : index
    %c0_105 = arith.constant 0 : index
    %c0_106 = arith.constant 0 : index
    %181 = vector.load %arg6[%c3, %c0_105, %c0_106] : memref<24x32x8xf32, #tpu.memory_space<vmem>>, vector<1x32x8xf32>
    %182 = vector.shape_cast %181 : vector<1x32x8xf32> to vector<32x8xf32>
    %cst_107 = arith.constant dense<0.000000e+00> : vector<32x8xf32>
    %183 = tpu.matmul %59, %182, %cst_107 {dimension_numbers = #tpu.dot_dimension_numbers<[1], [0], [0], [1], [0, 0, 1, 1], [], []>} : vector<32x32xf32>, vector<32x8xf32>, vector<32x8xf32> -> vector<32x8xf32>
    %c3_108 = arith.constant 3 : index
    %c0_109 = arith.constant 0 : index
    %c0_110 = arith.constant 0 : index
    %184 = vector.load %arg7[%c3_108, %c0_109, %c0_110] : memref<24x1x8xf32, #tpu.memory_space<vmem>>, vector<1x1x8xf32>
    %185 = vector.shape_cast %184 : vector<1x1x8xf32> to vector<1x8xf32>
    %186 = vector.broadcast %185 : vector<1x8xf32> to vector<32x8xf32>
    %187 = arith.addf %183, %186 : vector<32x8xf32>
    %c7 = arith.constant 7 : index
    %c0_111 = arith.constant 0 : index
    %c0_112 = arith.constant 0 : index
    %188 = vector.load %arg6[%c7, %c0_111, %c0_112] : memref<24x32x8xf32, #tpu.memory_space<vmem>>, vector<1x32x8xf32>
    %189 = vector.shape_cast %188 : vector<1x32x8xf32> to vector<32x8xf32>
    %cst_113 = arith.constant dense<0.000000e+00> : vector<32x8xf32>
    %190 = tpu.matmul %59, %189, %cst_113 {dimension_numbers = #tpu.dot_dimension_numbers<[1], [0], [0], [1], [0, 0, 1, 1], [], []>} : vector<32x32xf32>, vector<32x8xf32>, vector<32x8xf32> -> vector<32x8xf32>
    %c7_114 = arith.constant 7 : index
    %c0_115 = arith.constant 0 : index
    %c0_116 = arith.constant 0 : index
    %191 = vector.load %arg7[%c7_114, %c0_115, %c0_116] : memref<24x1x8xf32, #tpu.memory_space<vmem>>, vector<1x1x8xf32>
    %192 = vector.shape_cast %191 : vector<1x1x8xf32> to vector<1x8xf32>
    %193 = vector.broadcast %192 : vector<1x8xf32> to vector<32x8xf32>
    %194 = arith.addf %190, %193 : vector<32x8xf32>
    %c11 = arith.constant 11 : index
    %c0_117 = arith.constant 0 : index
    %c0_118 = arith.constant 0 : index
    %195 = vector.load %arg6[%c11, %c0_117, %c0_118] : memref<24x32x8xf32, #tpu.memory_space<vmem>>, vector<1x32x8xf32>
    %196 = vector.shape_cast %195 : vector<1x32x8xf32> to vector<32x8xf32>
    %cst_119 = arith.constant dense<0.000000e+00> : vector<32x8xf32>
    %197 = tpu.matmul %59, %196, %cst_119 {dimension_numbers = #tpu.dot_dimension_numbers<[1], [0], [0], [1], [0, 0, 1, 1], [], []>} : vector<32x32xf32>, vector<32x8xf32>, vector<32x8xf32> -> vector<32x8xf32>
    %c11_120 = arith.constant 11 : index
    %c0_121 = arith.constant 0 : index
    %c0_122 = arith.constant 0 : index
    %198 = vector.load %arg7[%c11_120, %c0_121, %c0_122] : memref<24x1x8xf32, #tpu.memory_space<vmem>>, vector<1x1x8xf32>
    %199 = vector.shape_cast %198 : vector<1x1x8xf32> to vector<1x8xf32>
    %200 = vector.broadcast %199 : vector<1x8xf32> to vector<32x8xf32>
    %201 = arith.addf %197, %200 : vector<32x8xf32>
    %cst_123 = arith.constant dense<0.000000e+00> : vector<32x32xf32>
    %202 = tpu.matmul %187, %194, %cst_123 {dimension_numbers = #tpu.dot_dimension_numbers<[1], [1], [0], [0], [0, 0, 1, 0], [], []>} : vector<32x8xf32>, vector<32x8xf32>, vector<32x32xf32> -> vector<32x32xf32>
    %cst_124 = arith.constant 0.353553385 : f32
    %203 = vector.broadcast %cst_124 : f32 to vector<32x32xf32>
    %204 = arith.mulf %202, %203 : vector<32x32xf32>
    %205 = arith.addf %204, %33 : vector<32x32xf32>
    %cst_125 = arith.constant dense<0xFF800000> : vector<32xf32>
    %206 = vector.multi_reduction <maximumf>, %205, %cst_125 [1] : vector<32x32xf32> to vector<32xf32>
    %207 = vector.shape_cast %206 : vector<32xf32> to vector<32x1xf32>
    %208 = vector.broadcast %207 : vector<32x1xf32> to vector<32x32xf32>
    %209 = arith.subf %205, %208 : vector<32x32xf32>
    %210 = math.exp %209 : vector<32x32xf32>
    %cst_126 = arith.constant dense<0.000000e+00> : vector<32xf32>
    %211 = vector.multi_reduction <add>, %210, %cst_126 [1] : vector<32x32xf32> to vector<32xf32>
    %212 = vector.shape_cast %211 : vector<32xf32> to vector<32x1xf32>
    %213 = tpu.reciprocal %212 {approx = true} : vector<32x1xf32> -> vector<32x1xf32>
    %214 = vector.broadcast %213 : vector<32x1xf32> to vector<32x32xf32>
    %215 = arith.mulf %210, %214 : vector<32x32xf32>
    %cst_127 = arith.constant dense<0.000000e+00> : vector<32x8xf32>
    %216 = tpu.matmul %215, %201, %cst_127 {dimension_numbers = #tpu.dot_dimension_numbers<[1], [0], [0], [1], [0, 0, 1, 1], [], []>} : vector<32x32xf32>, vector<32x8xf32>, vector<32x8xf32> -> vector<32x8xf32>
    %c3_128 = arith.constant 3 : index
    %c0_129 = arith.constant 0 : index
    %c0_130 = arith.constant 0 : index
    %217 = vector.load %arg8[%c3_128, %c0_129, %c0_130] : memref<8x8x32xf32, #tpu.memory_space<vmem>>, vector<1x8x32xf32>
    %218 = vector.shape_cast %217 : vector<1x8x32xf32> to vector<8x32xf32>
    %cst_131 = arith.constant dense<0.000000e+00> : vector<32x32xf32>
    %219 = tpu.matmul %216, %218, %cst_131 {dimension_numbers = #tpu.dot_dimension_numbers<[1], [0], [0], [1], [0, 0, 1, 1], [], []>} : vector<32x8xf32>, vector<8x32xf32>, vector<32x32xf32> -> vector<32x32xf32>
    %220 = arith.addf %180, %219 : vector<32x32xf32>
    %221 = arith.addf %32, %220 : vector<32x32xf32>
    %222 = vector.extract_strided_slice %35 {offsets = [4, 0], sizes = [1, 32], strides = [1, 1]} : vector<6x32xf32> to vector<1x32xf32>
    %223 = vector.broadcast %222 : vector<1x32xf32> to vector<32x32xf32>
    %224 = arith.addf %221, %223 : vector<32x32xf32>
    %225 = vector.extract_strided_slice %35 {offsets = [2, 0], sizes = [1, 32], strides = [1, 1]} : vector<6x32xf32> to vector<1x32xf32>
    %226 = vector.extract_strided_slice %35 {offsets = [3, 0], sizes = [1, 32], strides = [1, 1]} : vector<6x32xf32> to vector<1x32xf32>
    %cst_132 = arith.constant dense<0.000000e+00> : vector<32xf32>
    %227 = vector.multi_reduction <add>, %224, %cst_132 [1] : vector<32x32xf32> to vector<32xf32>
    %228 = vector.shape_cast %227 : vector<32xf32> to vector<32x1xf32>
    %cst_133 = arith.constant 3.200000e+01 : f32
    %229 = vector.broadcast %cst_133 : f32 to vector<32x1xf32>
    %230 = arith.divf %228, %229 : vector<32x1xf32>
    %231 = vector.broadcast %230 : vector<32x1xf32> to vector<32x32xf32>
    %232 = arith.subf %224, %231 : vector<32x32xf32>
    %233 = arith.mulf %232, %232 : vector<32x32xf32>
    %cst_134 = arith.constant dense<0.000000e+00> : vector<32xf32>
    %234 = vector.multi_reduction <add>, %233, %cst_134 [1] : vector<32x32xf32> to vector<32xf32>
    %235 = vector.shape_cast %234 : vector<32xf32> to vector<32x1xf32>
    %cst_135 = arith.constant 3.200000e+01 : f32
    %236 = vector.broadcast %cst_135 : f32 to vector<32x1xf32>
    %237 = arith.divf %235, %236 : vector<32x1xf32>
    %238 = vector.broadcast %230 : vector<32x1xf32> to vector<32x32xf32>
    %239 = arith.subf %224, %238 : vector<32x32xf32>
    %cst_136 = arith.constant 9.99999974E-6 : f32
    %240 = vector.broadcast %cst_136 : f32 to vector<32x1xf32>
    %241 = arith.addf %237, %240 : vector<32x1xf32>
    %242 = math.rsqrt %241 : vector<32x1xf32>
    %243 = vector.broadcast %242 : vector<32x1xf32> to vector<32x32xf32>
    %244 = arith.mulf %239, %243 : vector<32x32xf32>
    %245 = vector.broadcast %225 : vector<1x32xf32> to vector<32x32xf32>
    %246 = arith.mulf %244, %245 : vector<32x32xf32>
    %247 = vector.broadcast %226 : vector<1x32xf32> to vector<32x32xf32>
    %248 = arith.addf %246, %247 : vector<32x32xf32>
    %c0_137 = arith.constant 0 : index
    %c0_138 = arith.constant 0 : index
    %c0_139 = arith.constant 0 : index
    %249 = vector.load %arg9[%c0_137, %c0_138, %c0_139] : memref<2x32x128xf32, #tpu.memory_space<vmem>>, vector<1x32x128xf32>
    %250 = vector.shape_cast %249 : vector<1x32x128xf32> to vector<32x128xf32>
    %cst_140 = arith.constant dense<0.000000e+00> : vector<32x128xf32>
    %251 = tpu.matmul %248, %250, %cst_140 {dimension_numbers = #tpu.dot_dimension_numbers<[1], [0], [0], [1], [0, 0, 1, 1], [], []>} : vector<32x32xf32>, vector<32x128xf32>, vector<32x128xf32> -> vector<32x128xf32>
    %c0_141 = arith.constant 0 : index
    %c0_142 = arith.constant 0 : index
    %c0_143 = arith.constant 0 : index
    %252 = vector.load %arg10[%c0_141, %c0_142, %c0_143] : memref<2x1x128xf32, #tpu.memory_space<vmem>>, vector<1x1x128xf32>
    %253 = vector.shape_cast %252 : vector<1x1x128xf32> to vector<1x128xf32>
    %254 = vector.broadcast %253 : vector<1x128xf32> to vector<32x128xf32>
    %255 = arith.addf %251, %254 : vector<32x128xf32>
    %cst_144 = arith.constant 5.000000e-01 : f32
    %256 = vector.broadcast %cst_144 : f32 to vector<32x128xf32>
    %257 = arith.mulf %256, %255 : vector<32x128xf32>
    %cst_145 = arith.constant 4.471500e-02 : f32
    %258 = vector.broadcast %cst_145 : f32 to vector<32x128xf32>
    %259 = arith.mulf %258, %255 : vector<32x128xf32>
    %260 = arith.mulf %259, %255 : vector<32x128xf32>
    %261 = arith.mulf %260, %255 : vector<32x128xf32>
    %262 = arith.addf %255, %261 : vector<32x128xf32>
    %cst_146 = arith.constant 0.797884583 : f32
    %263 = vector.broadcast %cst_146 : f32 to vector<32x128xf32>
    %264 = arith.mulf %263, %262 : vector<32x128xf32>
    %265 = math.tanh %264 : vector<32x128xf32>
    %cst_147 = arith.constant 1.000000e+00 : f32
    %266 = vector.broadcast %cst_147 : f32 to vector<32x128xf32>
    %267 = arith.addf %266, %265 : vector<32x128xf32>
    %268 = arith.mulf %257, %267 : vector<32x128xf32>
    %c0_148 = arith.constant 0 : index
    %c0_149 = arith.constant 0 : index
    %c0_150 = arith.constant 0 : index
    %269 = vector.load %arg11[%c0_148, %c0_149, %c0_150] : memref<2x128x32xf32, #tpu.memory_space<vmem>>, vector<1x128x32xf32>
    %270 = vector.shape_cast %269 : vector<1x128x32xf32> to vector<128x32xf32>
    %cst_151 = arith.constant dense<0.000000e+00> : vector<32x32xf32>
    %271 = tpu.matmul %268, %270, %cst_151 {dimension_numbers = #tpu.dot_dimension_numbers<[1], [0], [0], [1], [0, 0, 1, 1], [], []>} : vector<32x128xf32>, vector<128x32xf32>, vector<32x32xf32> -> vector<32x32xf32>
    %272 = vector.extract_strided_slice %35 {offsets = [5, 0], sizes = [1, 32], strides = [1, 1]} : vector<6x32xf32> to vector<1x32xf32>
    %273 = vector.broadcast %272 : vector<1x32xf32> to vector<32x32xf32>
    %274 = arith.addf %271, %273 : vector<32x32xf32>
    %275 = arith.addf %224, %274 : vector<32x32xf32>
    %c1_152 = arith.constant 1 : index
    %c0_153 = arith.constant 0 : index
    %c0_154 = arith.constant 0 : index
    %276 = vector.load %arg5[%c1_152, %c0_153, %c0_154] : memref<2x6x32xf32, #tpu.memory_space<vmem>>, vector<1x6x32xf32>
    %277 = vector.shape_cast %276 : vector<1x6x32xf32> to vector<6x32xf32>
    %278 = vector.extract_strided_slice %277 {offsets = [0, 0], sizes = [1, 32], strides = [1, 1]} : vector<6x32xf32> to vector<1x32xf32>
    %279 = vector.extract_strided_slice %277 {offsets = [1, 0], sizes = [1, 32], strides = [1, 1]} : vector<6x32xf32> to vector<1x32xf32>
    %cst_155 = arith.constant dense<0.000000e+00> : vector<32xf32>
    %280 = vector.multi_reduction <add>, %275, %cst_155 [1] : vector<32x32xf32> to vector<32xf32>
    %281 = vector.shape_cast %280 : vector<32xf32> to vector<32x1xf32>
    %cst_156 = arith.constant 3.200000e+01 : f32
    %282 = vector.broadcast %cst_156 : f32 to vector<32x1xf32>
    %283 = arith.divf %281, %282 : vector<32x1xf32>
    %284 = vector.broadcast %283 : vector<32x1xf32> to vector<32x32xf32>
    %285 = arith.subf %275, %284 : vector<32x32xf32>
    %286 = arith.mulf %285, %285 : vector<32x32xf32>
    %cst_157 = arith.constant dense<0.000000e+00> : vector<32xf32>
    %287 = vector.multi_reduction <add>, %286, %cst_157 [1] : vector<32x32xf32> to vector<32xf32>
    %288 = vector.shape_cast %287 : vector<32xf32> to vector<32x1xf32>
    %cst_158 = arith.constant 3.200000e+01 : f32
    %289 = vector.broadcast %cst_158 : f32 to vector<32x1xf32>
    %290 = arith.divf %288, %289 : vector<32x1xf32>
    %291 = vector.broadcast %283 : vector<32x1xf32> to vector<32x32xf32>
    %292 = arith.subf %275, %291 : vector<32x32xf32>
    %cst_159 = arith.constant 9.99999974E-6 : f32
    %293 = vector.broadcast %cst_159 : f32 to vector<32x1xf32>
    %294 = arith.addf %290, %293 : vector<32x1xf32>
    %295 = math.rsqrt %294 : vector<32x1xf32>
    %296 = vector.broadcast %295 : vector<32x1xf32> to vector<32x32xf32>
    %297 = arith.mulf %292, %296 : vector<32x32xf32>
    %298 = vector.broadcast %278 : vector<1x32xf32> to vector<32x32xf32>
    %299 = arith.mulf %297, %298 : vector<32x32xf32>
    %300 = vector.broadcast %279 : vector<1x32xf32> to vector<32x32xf32>
    %301 = arith.addf %299, %300 : vector<32x32xf32>
    %cst_160 = arith.constant 0.000000e+00 : f32
    %302 = vector.broadcast %cst_160 : f32 to vector<32x32xf32>
    %c12 = arith.constant 12 : index
    %c0_161 = arith.constant 0 : index
    %c0_162 = arith.constant 0 : index
    %303 = vector.load %arg6[%c12, %c0_161, %c0_162] : memref<24x32x8xf32, #tpu.memory_space<vmem>>, vector<1x32x8xf32>
    %304 = vector.shape_cast %303 : vector<1x32x8xf32> to vector<32x8xf32>
    %cst_163 = arith.constant dense<0.000000e+00> : vector<32x8xf32>
    %305 = tpu.matmul %301, %304, %cst_163 {dimension_numbers = #tpu.dot_dimension_numbers<[1], [0], [0], [1], [0, 0, 1, 1], [], []>} : vector<32x32xf32>, vector<32x8xf32>, vector<32x8xf32> -> vector<32x8xf32>
    %c12_164 = arith.constant 12 : index
    %c0_165 = arith.constant 0 : index
    %c0_166 = arith.constant 0 : index
    %306 = vector.load %arg7[%c12_164, %c0_165, %c0_166] : memref<24x1x8xf32, #tpu.memory_space<vmem>>, vector<1x1x8xf32>
    %307 = vector.shape_cast %306 : vector<1x1x8xf32> to vector<1x8xf32>
    %308 = vector.broadcast %307 : vector<1x8xf32> to vector<32x8xf32>
    %309 = arith.addf %305, %308 : vector<32x8xf32>
    %c16 = arith.constant 16 : index
    %c0_167 = arith.constant 0 : index
    %c0_168 = arith.constant 0 : index
    %310 = vector.load %arg6[%c16, %c0_167, %c0_168] : memref<24x32x8xf32, #tpu.memory_space<vmem>>, vector<1x32x8xf32>
    %311 = vector.shape_cast %310 : vector<1x32x8xf32> to vector<32x8xf32>
    %cst_169 = arith.constant dense<0.000000e+00> : vector<32x8xf32>
    %312 = tpu.matmul %301, %311, %cst_169 {dimension_numbers = #tpu.dot_dimension_numbers<[1], [0], [0], [1], [0, 0, 1, 1], [], []>} : vector<32x32xf32>, vector<32x8xf32>, vector<32x8xf32> -> vector<32x8xf32>
    %c16_170 = arith.constant 16 : index
    %c0_171 = arith.constant 0 : index
    %c0_172 = arith.constant 0 : index
    %313 = vector.load %arg7[%c16_170, %c0_171, %c0_172] : memref<24x1x8xf32, #tpu.memory_space<vmem>>, vector<1x1x8xf32>
    %314 = vector.shape_cast %313 : vector<1x1x8xf32> to vector<1x8xf32>
    %315 = vector.broadcast %314 : vector<1x8xf32> to vector<32x8xf32>
    %316 = arith.addf %312, %315 : vector<32x8xf32>
    %c20 = arith.constant 20 : index
    %c0_173 = arith.constant 0 : index
    %c0_174 = arith.constant 0 : index
    %317 = vector.load %arg6[%c20, %c0_173, %c0_174] : memref<24x32x8xf32, #tpu.memory_space<vmem>>, vector<1x32x8xf32>
    %318 = vector.shape_cast %317 : vector<1x32x8xf32> to vector<32x8xf32>
    %cst_175 = arith.constant dense<0.000000e+00> : vector<32x8xf32>
    %319 = tpu.matmul %301, %318, %cst_175 {dimension_numbers = #tpu.dot_dimension_numbers<[1], [0], [0], [1], [0, 0, 1, 1], [], []>} : vector<32x32xf32>, vector<32x8xf32>, vector<32x8xf32> -> vector<32x8xf32>
    %c20_176 = arith.constant 20 : index
    %c0_177 = arith.constant 0 : index
    %c0_178 = arith.constant 0 : index
    %320 = vector.load %arg7[%c20_176, %c0_177, %c0_178] : memref<24x1x8xf32, #tpu.memory_space<vmem>>, vector<1x1x8xf32>
    %321 = vector.shape_cast %320 : vector<1x1x8xf32> to vector<1x8xf32>
    %322 = vector.broadcast %321 : vector<1x8xf32> to vector<32x8xf32>
    %323 = arith.addf %319, %322 : vector<32x8xf32>
    %cst_179 = arith.constant dense<0.000000e+00> : vector<32x32xf32>
    %324 = tpu.matmul %309, %316, %cst_179 {dimension_numbers = #tpu.dot_dimension_numbers<[1], [1], [0], [0], [0, 0, 1, 0], [], []>} : vector<32x8xf32>, vector<32x8xf32>, vector<32x32xf32> -> vector<32x32xf32>
    %cst_180 = arith.constant 0.353553385 : f32
    %325 = vector.broadcast %cst_180 : f32 to vector<32x32xf32>
    %326 = arith.mulf %324, %325 : vector<32x32xf32>
    %327 = arith.addf %326, %33 : vector<32x32xf32>
    %cst_181 = arith.constant dense<0xFF800000> : vector<32xf32>
    %328 = vector.multi_reduction <maximumf>, %327, %cst_181 [1] : vector<32x32xf32> to vector<32xf32>
    %329 = vector.shape_cast %328 : vector<32xf32> to vector<32x1xf32>
    %330 = vector.broadcast %329 : vector<32x1xf32> to vector<32x32xf32>
    %331 = arith.subf %327, %330 : vector<32x32xf32>
    %332 = math.exp %331 : vector<32x32xf32>
    %cst_182 = arith.constant dense<0.000000e+00> : vector<32xf32>
    %333 = vector.multi_reduction <add>, %332, %cst_182 [1] : vector<32x32xf32> to vector<32xf32>
    %334 = vector.shape_cast %333 : vector<32xf32> to vector<32x1xf32>
    %335 = tpu.reciprocal %334 {approx = true} : vector<32x1xf32> -> vector<32x1xf32>
    %336 = vector.broadcast %335 : vector<32x1xf32> to vector<32x32xf32>
    %337 = arith.mulf %332, %336 : vector<32x32xf32>
    %cst_183 = arith.constant dense<0.000000e+00> : vector<32x8xf32>
    %338 = tpu.matmul %337, %323, %cst_183 {dimension_numbers = #tpu.dot_dimension_numbers<[1], [0], [0], [1], [0, 0, 1, 1], [], []>} : vector<32x32xf32>, vector<32x8xf32>, vector<32x8xf32> -> vector<32x8xf32>
    %c4_184 = arith.constant 4 : index
    %c0_185 = arith.constant 0 : index
    %c0_186 = arith.constant 0 : index
    %339 = vector.load %arg8[%c4_184, %c0_185, %c0_186] : memref<8x8x32xf32, #tpu.memory_space<vmem>>, vector<1x8x32xf32>
    %340 = vector.shape_cast %339 : vector<1x8x32xf32> to vector<8x32xf32>
    %cst_187 = arith.constant dense<0.000000e+00> : vector<32x32xf32>
    %341 = tpu.matmul %338, %340, %cst_187 {dimension_numbers = #tpu.dot_dimension_numbers<[1], [0], [0], [1], [0, 0, 1, 1], [], []>} : vector<32x8xf32>, vector<8x32xf32>, vector<32x32xf32> -> vector<32x32xf32>
    %342 = arith.addf %302, %341 : vector<32x32xf32>
    %c13 = arith.constant 13 : index
    %c0_188 = arith.constant 0 : index
    %c0_189 = arith.constant 0 : index
    %343 = vector.load %arg6[%c13, %c0_188, %c0_189] : memref<24x32x8xf32, #tpu.memory_space<vmem>>, vector<1x32x8xf32>
    %344 = vector.shape_cast %343 : vector<1x32x8xf32> to vector<32x8xf32>
    %cst_190 = arith.constant dense<0.000000e+00> : vector<32x8xf32>
    %345 = tpu.matmul %301, %344, %cst_190 {dimension_numbers = #tpu.dot_dimension_numbers<[1], [0], [0], [1], [0, 0, 1, 1], [], []>} : vector<32x32xf32>, vector<32x8xf32>, vector<32x8xf32> -> vector<32x8xf32>
    %c13_191 = arith.constant 13 : index
    %c0_192 = arith.constant 0 : index
    %c0_193 = arith.constant 0 : index
    %346 = vector.load %arg7[%c13_191, %c0_192, %c0_193] : memref<24x1x8xf32, #tpu.memory_space<vmem>>, vector<1x1x8xf32>
    %347 = vector.shape_cast %346 : vector<1x1x8xf32> to vector<1x8xf32>
    %348 = vector.broadcast %347 : vector<1x8xf32> to vector<32x8xf32>
    %349 = arith.addf %345, %348 : vector<32x8xf32>
    %c17 = arith.constant 17 : index
    %c0_194 = arith.constant 0 : index
    %c0_195 = arith.constant 0 : index
    %350 = vector.load %arg6[%c17, %c0_194, %c0_195] : memref<24x32x8xf32, #tpu.memory_space<vmem>>, vector<1x32x8xf32>
    %351 = vector.shape_cast %350 : vector<1x32x8xf32> to vector<32x8xf32>
    %cst_196 = arith.constant dense<0.000000e+00> : vector<32x8xf32>
    %352 = tpu.matmul %301, %351, %cst_196 {dimension_numbers = #tpu.dot_dimension_numbers<[1], [0], [0], [1], [0, 0, 1, 1], [], []>} : vector<32x32xf32>, vector<32x8xf32>, vector<32x8xf32> -> vector<32x8xf32>
    %c17_197 = arith.constant 17 : index
    %c0_198 = arith.constant 0 : index
    %c0_199 = arith.constant 0 : index
    %353 = vector.load %arg7[%c17_197, %c0_198, %c0_199] : memref<24x1x8xf32, #tpu.memory_space<vmem>>, vector<1x1x8xf32>
    %354 = vector.shape_cast %353 : vector<1x1x8xf32> to vector<1x8xf32>
    %355 = vector.broadcast %354 : vector<1x8xf32> to vector<32x8xf32>
    %356 = arith.addf %352, %355 : vector<32x8xf32>
    %c21 = arith.constant 21 : index
    %c0_200 = arith.constant 0 : index
    %c0_201 = arith.constant 0 : index
    %357 = vector.load %arg6[%c21, %c0_200, %c0_201] : memref<24x32x8xf32, #tpu.memory_space<vmem>>, vector<1x32x8xf32>
    %358 = vector.shape_cast %357 : vector<1x32x8xf32> to vector<32x8xf32>
    %cst_202 = arith.constant dense<0.000000e+00> : vector<32x8xf32>
    %359 = tpu.matmul %301, %358, %cst_202 {dimension_numbers = #tpu.dot_dimension_numbers<[1], [0], [0], [1], [0, 0, 1, 1], [], []>} : vector<32x32xf32>, vector<32x8xf32>, vector<32x8xf32> -> vector<32x8xf32>
    %c21_203 = arith.constant 21 : index
    %c0_204 = arith.constant 0 : index
    %c0_205 = arith.constant 0 : index
    %360 = vector.load %arg7[%c21_203, %c0_204, %c0_205] : memref<24x1x8xf32, #tpu.memory_space<vmem>>, vector<1x1x8xf32>
    %361 = vector.shape_cast %360 : vector<1x1x8xf32> to vector<1x8xf32>
    %362 = vector.broadcast %361 : vector<1x8xf32> to vector<32x8xf32>
    %363 = arith.addf %359, %362 : vector<32x8xf32>
    %cst_206 = arith.constant dense<0.000000e+00> : vector<32x32xf32>
    %364 = tpu.matmul %349, %356, %cst_206 {dimension_numbers = #tpu.dot_dimension_numbers<[1], [1], [0], [0], [0, 0, 1, 0], [], []>} : vector<32x8xf32>, vector<32x8xf32>, vector<32x32xf32> -> vector<32x32xf32>
    %cst_207 = arith.constant 0.353553385 : f32
    %365 = vector.broadcast %cst_207 : f32 to vector<32x32xf32>
    %366 = arith.mulf %364, %365 : vector<32x32xf32>
    %367 = arith.addf %366, %33 : vector<32x32xf32>
    %cst_208 = arith.constant dense<0xFF800000> : vector<32xf32>
    %368 = vector.multi_reduction <maximumf>, %367, %cst_208 [1] : vector<32x32xf32> to vector<32xf32>
    %369 = vector.shape_cast %368 : vector<32xf32> to vector<32x1xf32>
    %370 = vector.broadcast %369 : vector<32x1xf32> to vector<32x32xf32>
    %371 = arith.subf %367, %370 : vector<32x32xf32>
    %372 = math.exp %371 : vector<32x32xf32>
    %cst_209 = arith.constant dense<0.000000e+00> : vector<32xf32>
    %373 = vector.multi_reduction <add>, %372, %cst_209 [1] : vector<32x32xf32> to vector<32xf32>
    %374 = vector.shape_cast %373 : vector<32xf32> to vector<32x1xf32>
    %375 = tpu.reciprocal %374 {approx = true} : vector<32x1xf32> -> vector<32x1xf32>
    %376 = vector.broadcast %375 : vector<32x1xf32> to vector<32x32xf32>
    %377 = arith.mulf %372, %376 : vector<32x32xf32>
    %cst_210 = arith.constant dense<0.000000e+00> : vector<32x8xf32>
    %378 = tpu.matmul %377, %363, %cst_210 {dimension_numbers = #tpu.dot_dimension_numbers<[1], [0], [0], [1], [0, 0, 1, 1], [], []>} : vector<32x32xf32>, vector<32x8xf32>, vector<32x8xf32> -> vector<32x8xf32>
    %c5_211 = arith.constant 5 : index
    %c0_212 = arith.constant 0 : index
    %c0_213 = arith.constant 0 : index
    %379 = vector.load %arg8[%c5_211, %c0_212, %c0_213] : memref<8x8x32xf32, #tpu.memory_space<vmem>>, vector<1x8x32xf32>
    %380 = vector.shape_cast %379 : vector<1x8x32xf32> to vector<8x32xf32>
    %cst_214 = arith.constant dense<0.000000e+00> : vector<32x32xf32>
    %381 = tpu.matmul %378, %380, %cst_214 {dimension_numbers = #tpu.dot_dimension_numbers<[1], [0], [0], [1], [0, 0, 1, 1], [], []>} : vector<32x8xf32>, vector<8x32xf32>, vector<32x32xf32> -> vector<32x32xf32>
    %382 = arith.addf %342, %381 : vector<32x32xf32>
    %c14 = arith.constant 14 : index
    %c0_215 = arith.constant 0 : index
    %c0_216 = arith.constant 0 : index
    %383 = vector.load %arg6[%c14, %c0_215, %c0_216] : memref<24x32x8xf32, #tpu.memory_space<vmem>>, vector<1x32x8xf32>
    %384 = vector.shape_cast %383 : vector<1x32x8xf32> to vector<32x8xf32>
    %cst_217 = arith.constant dense<0.000000e+00> : vector<32x8xf32>
    %385 = tpu.matmul %301, %384, %cst_217 {dimension_numbers = #tpu.dot_dimension_numbers<[1], [0], [0], [1], [0, 0, 1, 1], [], []>} : vector<32x32xf32>, vector<32x8xf32>, vector<32x8xf32> -> vector<32x8xf32>
    %c14_218 = arith.constant 14 : index
    %c0_219 = arith.constant 0 : index
    %c0_220 = arith.constant 0 : index
    %386 = vector.load %arg7[%c14_218, %c0_219, %c0_220] : memref<24x1x8xf32, #tpu.memory_space<vmem>>, vector<1x1x8xf32>
    %387 = vector.shape_cast %386 : vector<1x1x8xf32> to vector<1x8xf32>
    %388 = vector.broadcast %387 : vector<1x8xf32> to vector<32x8xf32>
    %389 = arith.addf %385, %388 : vector<32x8xf32>
    %c18 = arith.constant 18 : index
    %c0_221 = arith.constant 0 : index
    %c0_222 = arith.constant 0 : index
    %390 = vector.load %arg6[%c18, %c0_221, %c0_222] : memref<24x32x8xf32, #tpu.memory_space<vmem>>, vector<1x32x8xf32>
    %391 = vector.shape_cast %390 : vector<1x32x8xf32> to vector<32x8xf32>
    %cst_223 = arith.constant dense<0.000000e+00> : vector<32x8xf32>
    %392 = tpu.matmul %301, %391, %cst_223 {dimension_numbers = #tpu.dot_dimension_numbers<[1], [0], [0], [1], [0, 0, 1, 1], [], []>} : vector<32x32xf32>, vector<32x8xf32>, vector<32x8xf32> -> vector<32x8xf32>
    %c18_224 = arith.constant 18 : index
    %c0_225 = arith.constant 0 : index
    %c0_226 = arith.constant 0 : index
    %393 = vector.load %arg7[%c18_224, %c0_225, %c0_226] : memref<24x1x8xf32, #tpu.memory_space<vmem>>, vector<1x1x8xf32>
    %394 = vector.shape_cast %393 : vector<1x1x8xf32> to vector<1x8xf32>
    %395 = vector.broadcast %394 : vector<1x8xf32> to vector<32x8xf32>
    %396 = arith.addf %392, %395 : vector<32x8xf32>
    %c22 = arith.constant 22 : index
    %c0_227 = arith.constant 0 : index
    %c0_228 = arith.constant 0 : index
    %397 = vector.load %arg6[%c22, %c0_227, %c0_228] : memref<24x32x8xf32, #tpu.memory_space<vmem>>, vector<1x32x8xf32>
    %398 = vector.shape_cast %397 : vector<1x32x8xf32> to vector<32x8xf32>
    %cst_229 = arith.constant dense<0.000000e+00> : vector<32x8xf32>
    %399 = tpu.matmul %301, %398, %cst_229 {dimension_numbers = #tpu.dot_dimension_numbers<[1], [0], [0], [1], [0, 0, 1, 1], [], []>} : vector<32x32xf32>, vector<32x8xf32>, vector<32x8xf32> -> vector<32x8xf32>
    %c22_230 = arith.constant 22 : index
    %c0_231 = arith.constant 0 : index
    %c0_232 = arith.constant 0 : index
    %400 = vector.load %arg7[%c22_230, %c0_231, %c0_232] : memref<24x1x8xf32, #tpu.memory_space<vmem>>, vector<1x1x8xf32>
    %401 = vector.shape_cast %400 : vector<1x1x8xf32> to vector<1x8xf32>
    %402 = vector.broadcast %401 : vector<1x8xf32> to vector<32x8xf32>
    %403 = arith.addf %399, %402 : vector<32x8xf32>
    %cst_233 = arith.constant dense<0.000000e+00> : vector<32x32xf32>
    %404 = tpu.matmul %389, %396, %cst_233 {dimension_numbers = #tpu.dot_dimension_numbers<[1], [1], [0], [0], [0, 0, 1, 0], [], []>} : vector<32x8xf32>, vector<32x8xf32>, vector<32x32xf32> -> vector<32x32xf32>
    %cst_234 = arith.constant 0.353553385 : f32
    %405 = vector.broadcast %cst_234 : f32 to vector<32x32xf32>
    %406 = arith.mulf %404, %405 : vector<32x32xf32>
    %407 = arith.addf %406, %33 : vector<32x32xf32>
    %cst_235 = arith.constant dense<0xFF800000> : vector<32xf32>
    %408 = vector.multi_reduction <maximumf>, %407, %cst_235 [1] : vector<32x32xf32> to vector<32xf32>
    %409 = vector.shape_cast %408 : vector<32xf32> to vector<32x1xf32>
    %410 = vector.broadcast %409 : vector<32x1xf32> to vector<32x32xf32>
    %411 = arith.subf %407, %410 : vector<32x32xf32>
    %412 = math.exp %411 : vector<32x32xf32>
    %cst_236 = arith.constant dense<0.000000e+00> : vector<32xf32>
    %413 = vector.multi_reduction <add>, %412, %cst_236 [1] : vector<32x32xf32> to vector<32xf32>
    %414 = vector.shape_cast %413 : vector<32xf32> to vector<32x1xf32>
    %415 = tpu.reciprocal %414 {approx = true} : vector<32x1xf32> -> vector<32x1xf32>
    %416 = vector.broadcast %415 : vector<32x1xf32> to vector<32x32xf32>
    %417 = arith.mulf %412, %416 : vector<32x32xf32>
    %cst_237 = arith.constant dense<0.000000e+00> : vector<32x8xf32>
    %418 = tpu.matmul %417, %403, %cst_237 {dimension_numbers = #tpu.dot_dimension_numbers<[1], [0], [0], [1], [0, 0, 1, 1], [], []>} : vector<32x32xf32>, vector<32x8xf32>, vector<32x8xf32> -> vector<32x8xf32>
    %c6_238 = arith.constant 6 : index
    %c0_239 = arith.constant 0 : index
    %c0_240 = arith.constant 0 : index
    %419 = vector.load %arg8[%c6_238, %c0_239, %c0_240] : memref<8x8x32xf32, #tpu.memory_space<vmem>>, vector<1x8x32xf32>
    %420 = vector.shape_cast %419 : vector<1x8x32xf32> to vector<8x32xf32>
    %cst_241 = arith.constant dense<0.000000e+00> : vector<32x32xf32>
    %421 = tpu.matmul %418, %420, %cst_241 {dimension_numbers = #tpu.dot_dimension_numbers<[1], [0], [0], [1], [0, 0, 1, 1], [], []>} : vector<32x8xf32>, vector<8x32xf32>, vector<32x32xf32> -> vector<32x32xf32>
    %422 = arith.addf %382, %421 : vector<32x32xf32>
    %c15 = arith.constant 15 : index
    %c0_242 = arith.constant 0 : index
    %c0_243 = arith.constant 0 : index
    %423 = vector.load %arg6[%c15, %c0_242, %c0_243] : memref<24x32x8xf32, #tpu.memory_space<vmem>>, vector<1x32x8xf32>
    %424 = vector.shape_cast %423 : vector<1x32x8xf32> to vector<32x8xf32>
    %cst_244 = arith.constant dense<0.000000e+00> : vector<32x8xf32>
    %425 = tpu.matmul %301, %424, %cst_244 {dimension_numbers = #tpu.dot_dimension_numbers<[1], [0], [0], [1], [0, 0, 1, 1], [], []>} : vector<32x32xf32>, vector<32x8xf32>, vector<32x8xf32> -> vector<32x8xf32>
    %c15_245 = arith.constant 15 : index
    %c0_246 = arith.constant 0 : index
    %c0_247 = arith.constant 0 : index
    %426 = vector.load %arg7[%c15_245, %c0_246, %c0_247] : memref<24x1x8xf32, #tpu.memory_space<vmem>>, vector<1x1x8xf32>
    %427 = vector.shape_cast %426 : vector<1x1x8xf32> to vector<1x8xf32>
    %428 = vector.broadcast %427 : vector<1x8xf32> to vector<32x8xf32>
    %429 = arith.addf %425, %428 : vector<32x8xf32>
    %c19 = arith.constant 19 : index
    %c0_248 = arith.constant 0 : index
    %c0_249 = arith.constant 0 : index
    %430 = vector.load %arg6[%c19, %c0_248, %c0_249] : memref<24x32x8xf32, #tpu.memory_space<vmem>>, vector<1x32x8xf32>
    %431 = vector.shape_cast %430 : vector<1x32x8xf32> to vector<32x8xf32>
    %cst_250 = arith.constant dense<0.000000e+00> : vector<32x8xf32>
    %432 = tpu.matmul %301, %431, %cst_250 {dimension_numbers = #tpu.dot_dimension_numbers<[1], [0], [0], [1], [0, 0, 1, 1], [], []>} : vector<32x32xf32>, vector<32x8xf32>, vector<32x8xf32> -> vector<32x8xf32>
    %c19_251 = arith.constant 19 : index
    %c0_252 = arith.constant 0 : index
    %c0_253 = arith.constant 0 : index
    %433 = vector.load %arg7[%c19_251, %c0_252, %c0_253] : memref<24x1x8xf32, #tpu.memory_space<vmem>>, vector<1x1x8xf32>
    %434 = vector.shape_cast %433 : vector<1x1x8xf32> to vector<1x8xf32>
    %435 = vector.broadcast %434 : vector<1x8xf32> to vector<32x8xf32>
    %436 = arith.addf %432, %435 : vector<32x8xf32>
    %c23 = arith.constant 23 : index
    %c0_254 = arith.constant 0 : index
    %c0_255 = arith.constant 0 : index
    %437 = vector.load %arg6[%c23, %c0_254, %c0_255] : memref<24x32x8xf32, #tpu.memory_space<vmem>>, vector<1x32x8xf32>
    %438 = vector.shape_cast %437 : vector<1x32x8xf32> to vector<32x8xf32>
    %cst_256 = arith.constant dense<0.000000e+00> : vector<32x8xf32>
    %439 = tpu.matmul %301, %438, %cst_256 {dimension_numbers = #tpu.dot_dimension_numbers<[1], [0], [0], [1], [0, 0, 1, 1], [], []>} : vector<32x32xf32>, vector<32x8xf32>, vector<32x8xf32> -> vector<32x8xf32>
    %c23_257 = arith.constant 23 : index
    %c0_258 = arith.constant 0 : index
    %c0_259 = arith.constant 0 : index
    %440 = vector.load %arg7[%c23_257, %c0_258, %c0_259] : memref<24x1x8xf32, #tpu.memory_space<vmem>>, vector<1x1x8xf32>
    %441 = vector.shape_cast %440 : vector<1x1x8xf32> to vector<1x8xf32>
    %442 = vector.broadcast %441 : vector<1x8xf32> to vector<32x8xf32>
    %443 = arith.addf %439, %442 : vector<32x8xf32>
    %cst_260 = arith.constant dense<0.000000e+00> : vector<32x32xf32>
    %444 = tpu.matmul %429, %436, %cst_260 {dimension_numbers = #tpu.dot_dimension_numbers<[1], [1], [0], [0], [0, 0, 1, 0], [], []>} : vector<32x8xf32>, vector<32x8xf32>, vector<32x32xf32> -> vector<32x32xf32>
    %cst_261 = arith.constant 0.353553385 : f32
    %445 = vector.broadcast %cst_261 : f32 to vector<32x32xf32>
    %446 = arith.mulf %444, %445 : vector<32x32xf32>
    %447 = arith.addf %446, %33 : vector<32x32xf32>
    %cst_262 = arith.constant dense<0xFF800000> : vector<32xf32>
    %448 = vector.multi_reduction <maximumf>, %447, %cst_262 [1] : vector<32x32xf32> to vector<32xf32>
    %449 = vector.shape_cast %448 : vector<32xf32> to vector<32x1xf32>
    %450 = vector.broadcast %449 : vector<32x1xf32> to vector<32x32xf32>
    %451 = arith.subf %447, %450 : vector<32x32xf32>
    %452 = math.exp %451 : vector<32x32xf32>
    %cst_263 = arith.constant dense<0.000000e+00> : vector<32xf32>
    %453 = vector.multi_reduction <add>, %452, %cst_263 [1] : vector<32x32xf32> to vector<32xf32>
    %454 = vector.shape_cast %453 : vector<32xf32> to vector<32x1xf32>
    %455 = tpu.reciprocal %454 {approx = true} : vector<32x1xf32> -> vector<32x1xf32>
    %456 = vector.broadcast %455 : vector<32x1xf32> to vector<32x32xf32>
    %457 = arith.mulf %452, %456 : vector<32x32xf32>
    %cst_264 = arith.constant dense<0.000000e+00> : vector<32x8xf32>
    %458 = tpu.matmul %457, %443, %cst_264 {dimension_numbers = #tpu.dot_dimension_numbers<[1], [0], [0], [1], [0, 0, 1, 1], [], []>} : vector<32x32xf32>, vector<32x8xf32>, vector<32x8xf32> -> vector<32x8xf32>
    %c7_265 = arith.constant 7 : index
    %c0_266 = arith.constant 0 : index
    %c0_267 = arith.constant 0 : index
    %459 = vector.load %arg8[%c7_265, %c0_266, %c0_267] : memref<8x8x32xf32, #tpu.memory_space<vmem>>, vector<1x8x32xf32>
    %460 = vector.shape_cast %459 : vector<1x8x32xf32> to vector<8x32xf32>
    %cst_268 = arith.constant dense<0.000000e+00> : vector<32x32xf32>
    %461 = tpu.matmul %458, %460, %cst_268 {dimension_numbers = #tpu.dot_dimension_numbers<[1], [0], [0], [1], [0, 0, 1, 1], [], []>} : vector<32x8xf32>, vector<8x32xf32>, vector<32x32xf32> -> vector<32x32xf32>
    %462 = arith.addf %422, %461 : vector<32x32xf32>
    %463 = arith.addf %275, %462 : vector<32x32xf32>
    %464 = vector.extract_strided_slice %277 {offsets = [4, 0], sizes = [1, 32], strides = [1, 1]} : vector<6x32xf32> to vector<1x32xf32>
    %465 = vector.broadcast %464 : vector<1x32xf32> to vector<32x32xf32>
    %466 = arith.addf %463, %465 : vector<32x32xf32>
    %467 = vector.extract_strided_slice %277 {offsets = [2, 0], sizes = [1, 32], strides = [1, 1]} : vector<6x32xf32> to vector<1x32xf32>
    %468 = vector.extract_strided_slice %277 {offsets = [3, 0], sizes = [1, 32], strides = [1, 1]} : vector<6x32xf32> to vector<1x32xf32>
    %cst_269 = arith.constant dense<0.000000e+00> : vector<32xf32>
    %469 = vector.multi_reduction <add>, %466, %cst_269 [1] : vector<32x32xf32> to vector<32xf32>
    %470 = vector.shape_cast %469 : vector<32xf32> to vector<32x1xf32>
    %cst_270 = arith.constant 3.200000e+01 : f32
    %471 = vector.broadcast %cst_270 : f32 to vector<32x1xf32>
    %472 = arith.divf %470, %471 : vector<32x1xf32>
    %473 = vector.broadcast %472 : vector<32x1xf32> to vector<32x32xf32>
    %474 = arith.subf %466, %473 : vector<32x32xf32>
    %475 = arith.mulf %474, %474 : vector<32x32xf32>
    %cst_271 = arith.constant dense<0.000000e+00> : vector<32xf32>
    %476 = vector.multi_reduction <add>, %475, %cst_271 [1] : vector<32x32xf32> to vector<32xf32>
    %477 = vector.shape_cast %476 : vector<32xf32> to vector<32x1xf32>
    %cst_272 = arith.constant 3.200000e+01 : f32
    %478 = vector.broadcast %cst_272 : f32 to vector<32x1xf32>
    %479 = arith.divf %477, %478 : vector<32x1xf32>
    %480 = vector.broadcast %472 : vector<32x1xf32> to vector<32x32xf32>
    %481 = arith.subf %466, %480 : vector<32x32xf32>
    %cst_273 = arith.constant 9.99999974E-6 : f32
    %482 = vector.broadcast %cst_273 : f32 to vector<32x1xf32>
    %483 = arith.addf %479, %482 : vector<32x1xf32>
    %484 = math.rsqrt %483 : vector<32x1xf32>
    %485 = vector.broadcast %484 : vector<32x1xf32> to vector<32x32xf32>
    %486 = arith.mulf %481, %485 : vector<32x32xf32>
    %487 = vector.broadcast %467 : vector<1x32xf32> to vector<32x32xf32>
    %488 = arith.mulf %486, %487 : vector<32x32xf32>
    %489 = vector.broadcast %468 : vector<1x32xf32> to vector<32x32xf32>
    %490 = arith.addf %488, %489 : vector<32x32xf32>
    %c1_274 = arith.constant 1 : index
    %c0_275 = arith.constant 0 : index
    %c0_276 = arith.constant 0 : index
    %491 = vector.load %arg9[%c1_274, %c0_275, %c0_276] : memref<2x32x128xf32, #tpu.memory_space<vmem>>, vector<1x32x128xf32>
    %492 = vector.shape_cast %491 : vector<1x32x128xf32> to vector<32x128xf32>
    %cst_277 = arith.constant dense<0.000000e+00> : vector<32x128xf32>
    %493 = tpu.matmul %490, %492, %cst_277 {dimension_numbers = #tpu.dot_dimension_numbers<[1], [0], [0], [1], [0, 0, 1, 1], [], []>} : vector<32x32xf32>, vector<32x128xf32>, vector<32x128xf32> -> vector<32x128xf32>
    %c1_278 = arith.constant 1 : index
    %c0_279 = arith.constant 0 : index
    %c0_280 = arith.constant 0 : index
    %494 = vector.load %arg10[%c1_278, %c0_279, %c0_280] : memref<2x1x128xf32, #tpu.memory_space<vmem>>, vector<1x1x128xf32>
    %495 = vector.shape_cast %494 : vector<1x1x128xf32> to vector<1x128xf32>
    %496 = vector.broadcast %495 : vector<1x128xf32> to vector<32x128xf32>
    %497 = arith.addf %493, %496 : vector<32x128xf32>
    %cst_281 = arith.constant 5.000000e-01 : f32
    %498 = vector.broadcast %cst_281 : f32 to vector<32x128xf32>
    %499 = arith.mulf %498, %497 : vector<32x128xf32>
    %cst_282 = arith.constant 4.471500e-02 : f32
    %500 = vector.broadcast %cst_282 : f32 to vector<32x128xf32>
    %501 = arith.mulf %500, %497 : vector<32x128xf32>
    %502 = arith.mulf %501, %497 : vector<32x128xf32>
    %503 = arith.mulf %502, %497 : vector<32x128xf32>
    %504 = arith.addf %497, %503 : vector<32x128xf32>
    %cst_283 = arith.constant 0.797884583 : f32
    %505 = vector.broadcast %cst_283 : f32 to vector<32x128xf32>
    %506 = arith.mulf %505, %504 : vector<32x128xf32>
    %507 = math.tanh %506 : vector<32x128xf32>
    %cst_284 = arith.constant 1.000000e+00 : f32
    %508 = vector.broadcast %cst_284 : f32 to vector<32x128xf32>
    %509 = arith.addf %508, %507 : vector<32x128xf32>
    %510 = arith.mulf %499, %509 : vector<32x128xf32>
    %c1_285 = arith.constant 1 : index
    %c0_286 = arith.constant 0 : index
    %c0_287 = arith.constant 0 : index
    %511 = vector.load %arg11[%c1_285, %c0_286, %c0_287] : memref<2x128x32xf32, #tpu.memory_space<vmem>>, vector<1x128x32xf32>
    %512 = vector.shape_cast %511 : vector<1x128x32xf32> to vector<128x32xf32>
    %cst_288 = arith.constant dense<0.000000e+00> : vector<32x32xf32>
    %513 = tpu.matmul %510, %512, %cst_288 {dimension_numbers = #tpu.dot_dimension_numbers<[1], [0], [0], [1], [0, 0, 1, 1], [], []>} : vector<32x128xf32>, vector<128x32xf32>, vector<32x32xf32> -> vector<32x32xf32>
    %514 = vector.extract_strided_slice %277 {offsets = [5, 0], sizes = [1, 32], strides = [1, 1]} : vector<6x32xf32> to vector<1x32xf32>
    %515 = vector.broadcast %514 : vector<1x32xf32> to vector<32x32xf32>
    %516 = arith.addf %513, %515 : vector<32x32xf32>
    %517 = arith.addf %466, %516 : vector<32x32xf32>
    %c0_289 = arith.constant 0 : index
    %c0_290 = arith.constant 0 : index
    %518 = vector.load %arg12[%c0_289, %c0_290] : memref<32x32xf32, #tpu.memory_space<vmem>>, vector<32x32xf32>
    tpu.vector_store %arg12[%c0_289, %c0_290], %517 {strides = array<i32>} : memref<32x32xf32, #tpu.memory_space<vmem>>, vector<32x32xf32>,
    return
  }
}

</mosaic_0001>

<llo_original>
// kernel: wstage_forward.1
$region0: #{wstage_forward.1}
  #allocation0 [shape = 'u32[]', space=smem, size = 0x4, offset = 0x4, fixed_abs, tag = 'smem constant byte address 0x4 - core index']
  #allocation1 [shape = 'u32[144,128]{1,0:T(1,128)}', space=vmem, size = 0x12000, scoped, tag = 'internal scratch']
  %s0 = inlined_call_operand.vmem [shape: f32[32,64], index: 0, kind: input, shape index: {}]
  %s1 = inlined_call_operand.vmem [shape: f32[64,32], index: 1, kind: input, shape index: {}]
  %s2 = inlined_call_operand.vmem [shape: f32[3,32], index: 2, kind: input, shape index: {}]
  %s3 = inlined_call_operand.vmem [shape: f32[32,32], index: 3, kind: input, shape index: {}]
  %s4 = inlined_call_operand.vmem [shape: f32[32,32], index: 4, kind: input, shape index: {}]
  %s5 = inlined_call_operand.vmem [shape: f32[2,6,32], index: 5, kind: input, shape index: {}]
  %s6 = inlined_call_operand.vmem [shape: f32[24,32,8], index: 6, kind: input, shape index: {}]
  %s7 = inlined_call_operand.vmem [shape: f32[24,1,8], index: 7, kind: input, shape index: {}]
  %s8 = inlined_call_operand.vmem [shape: f32[8,8,32], index: 8, kind: input, shape index: {}]
  %s9 = inlined_call_operand.vmem [shape: f32[2,32,128], index: 9, kind: input, shape index: {}]
  %s10 = inlined_call_operand.vmem [shape: f32[2,1,128], index: 10, kind: input, shape index: {}]
  %s11 = inlined_call_operand.vmem [shape: f32[2,128,32], index: 11, kind: input, shape index: {}]
  %s12 = inlined_call_operand.hbm [shape: f32[32,32], index: 12, kind: output, shape index: {}]
  %s13 = sld [smem:[#allocation0]]
  $region58: #{wstage_forward.1} parent=0
    _
  %s15 = ssub.s32 1, %s13
  %s16 = scalar_select 0, %s15, %s13
  $region1: #{wstage_forward.1} parent=0
    #allocation2 [shape = 'u8[16384]{0}', space=vmem, size = 0x4000, scoped, tag = 'output window, operand 0, single buffered']
    #allocation3 [shape = 's32[1]{0}', space=sflag, size = 0x4, scoped, tag = 'scoped memory for wstage_forward.1']
    %17 = vsyncpa [#allocation3], 0
    // Predicated region
    $region2: #{wstage_forward.1} parent=1 // pred_check
      _
    $region3: #{wstage_forward.1} parent=1 // pred_check_branch
      %19 = sbr.rel (0) target = $region5
    $region4: #{wstage_forward.1} parent=1 // pred_region
      _
    $region5: #{wstage_forward.1} parent=1 // pred_fallthru
      _
    // Predicated region
    $region6: #{wstage_forward.1} parent=1 // pred_check
      _
    $region7: #{wstage_forward.1} parent=1 // pred_check_branch
      %21 = sbr.rel (0) target = $region9
    $region8: #{wstage_forward.1} parent=1 // pred_region
      _
    $region9: #{wstage_forward.1} parent=1 // pred_fallthru
      _
    // Predicated region
    $region10: #{wstage_forward.1} parent=1 // pred_check
      _
    $region11: #{wstage_forward.1} parent=1 // pred_check_branch
      %23 = sbr.rel (0) target = $region13
    $region12: #{wstage_forward.1} parent=1 // pred_region
      _
    $region13: #{wstage_forward.1} parent=1 // pred_fallthru
      _
    // Predicated region
    $region14: #{wstage_forward.1} parent=1 // pred_check
      _
    $region15: #{wstage_forward.1} parent=1 // pred_check_branch
      %25 = sbr.rel (0) target = $region17
    $region16: #{wstage_forward.1} parent=1 // pred_region
      _
    $region17: #{wstage_forward.1} parent=1 // pred_fallthru
      _
    // Predicated region
    $region18: #{wstage_forward.1} parent=1 // pred_check
      _
    $region19: #{wstage_forward.1} parent=1 // pred_check_branch
      %27 = sbr.rel (0) target = $region21
    $region20: #{wstage_forward.1} parent=1 // pred_region
      _
    $region21: #{wstage_forward.1} parent=1 // pred_fallthru
      _
    // Predicated region
    $region22: #{wstage_forward.1} parent=1 // pred_check
      _
    $region23: #{wstage_forward.1} parent=1 // pred_check_branch
      %29 = sbr.rel (0) target = $region25
    $region24: #{wstage_forward.1} parent=1 // pred_region
      _
    $region25: #{wstage_forward.1} parent=1 // pred_fallthru
      _
    // Predicated region
    $region26: #{wstage_forward.1} parent=1 // pred_check
      _
    $region27: #{wstage_forward.1} parent=1 // pred_check_branch
      %31 = sbr.rel (0) target = $region29
    $region28: #{wstage_forward.1} parent=1 // pred_region
      _
    $region29: #{wstage_forward.1} parent=1 // pred_fallthru
      _
    // Predicated region
    $region30: #{wstage_forward.1} parent=1 // pred_check
      _
    $region31: #{wstage_forward.1} parent=1 // pred_check_branch
      %33 = sbr.rel (0) target = $region33
    $region32: #{wstage_forward.1} parent=1 // pred_region
      _
    $region33: #{wstage_forward.1} parent=1 // pred_fallthru
      _
    // Predicated region
    $region34: #{wstage_forward.1} parent=1 // pred_check
      _
    $region35: #{wstage_forward.1} parent=1 // pred_check_branch
      %35 = sbr.rel (0) target = $region37
    $region36: #{wstage_forward.1} parent=1 // pred_region
      _
    $region37: #{wstage_forward.1} parent=1 // pred_fallthru
      _
    // Predicated region
    $region38: #{wstage_forward.1} parent=1 // pred_check
      _
    $region39: #{wstage_forward.1} parent=1 // pred_check_branch
      %37 = sbr.rel (0) target = $region41
    $region40: #{wstage_forward.1} parent=1 // pred_region
      _
    $region41: #{wstage_forward.1} parent=1 // pred_fallthru
      _
    // Predicated region
    $region42: #{wstage_forward.1} parent=1 // pred_check
      _
    $region43: #{wstage_forward.1} parent=1 // pred_check_branch
      %39 = sbr.rel (0) target = $region45
    $region44: #{wstage_forward.1} parent=1 // pred_region
      _
    $region45: #{wstage_forward.1} parent=1 // pred_fallthru
      _
    // Predicated region
    $region46: #{wstage_forward.1} parent=1 // pred_check
      _
    $region47: #{wstage_forward.1} parent=1 // pred_check_branch
      %41 = sbr.rel (0) target = $region49
    $region48: #{wstage_forward.1} parent=1 // pred_region
      _
    $region49: #{wstage_forward.1} parent=1 // pred_fallthru
      _
    %v42 = vld [vmem:[%s2] sm:$0x7]
    %v43 = vld [vmem:[%s0] sm:$0xff]
    %v44 = vld [vmem:[%s0 + $0x8] sm:$0xff]
    %v45 = vld [vmem:[%s0 + $0x10] sm:$0xff]
    %v46 = vld [vmem:[%s0 + $0x18] sm:$0xff]
    %v47 = vld [vmem:[%s1] sm:$0xff]
    %v48 = vld [vmem:[%s1 + $0x8] sm:$0xff]
    %v49 = vld [vmem:[%s1 + $0x10] sm:$0xff]
    %v50 = vld [vmem:[%s1 + $0x18] sm:$0xff]
    %v51 = vld [vmem:[%s1 + $0x20] sm:$0xff]
    %v52 = vld [vmem:[%s1 + $0x28] sm:$0xff]
    %v53 = vld [vmem:[%s1 + $0x30] sm:$0xff]
    %v54 = vld [vmem:[%s1 + $0x38] sm:$0xff]
    %v55 = vlaneseq
    %v56 = vshrl.u32 %v55, 7
    %v57 = vsub.s32 0, %v56
    %v58 = vrot.slane %v42, %v57
    %vm59 = vcmask 523264
    %v61 = vsel %vm59, %v43, 0
    %v64 = vsel %vm59, %v44, 0
    %v67 = vsel %vm59, %v45, 0
    %v70 = vsel %vm59, %v46, 0
    %72 = vmatprep.subr.mxu0 0.0
    %73 = vmatpush1.msra.mxu0 0.0
    %74 = vmatprep.subr.mxu0 0.0
    %75 = vmatpush1.msra.mxu0 0.0
    %76 = vmatprep.subr.mxu0 0.0
    %77 = vmatpush1.msra.mxu0 0.0
    %78 = vmatprep.subr.mxu0 0.0
    %79 = vmatpush1.msra.mxu0 0.0
    %80 = vmatprep.subr.mxu0 0.0
    %81 = vmatpush1.msra.mxu0 0.0
    %82 = vmatprep.subr.mxu0 0.0
    %83 = vmatpush1.msra.mxu0 0.0
    %84 = vmatprep.subr.mxu0 0.0
    %85 = vmatpush1.msra.mxu0 0.0
    %86 = vmatprep.subr.mxu0 0.0
    %87 = vmatpush1.msra.mxu0 0.0
    %88 = vmatprep.subr.mxu0 0.0
    %89 = vmatpush1.msra.mxu0 %v54
    %90 = vmatprep.subr.mxu0 0.0
    %91 = vmatpush1.msra.mxu0 %v53
    %92 = vmatprep.subr.mxu0 0.0
    %93 = vmatpush1.msra.mxu0 %v52
    %94 = vmatprep.subr.mxu0 0.0
    %95 = vmatpush1.msra.mxu0 %v51
    %96 = vmatprep.subr.mxu0 0.0
    %97 = vmatpush1.msra.mxu0 %v50
    %98 = vmatprep.subr.mxu0 0.0
    %99 = vmatpush1.msra.mxu0 %v49
    %100 = vmatprep.subr.mxu0 0.0
    %101 = vmatpush1.msra.mxu0 %v48
    %102 = vmatprep.subr.mxu0 0.0
    %103 = vmatpush1.msra.mxu0 %v47
    %104 = vmatprep.subr.mxu0 0.0
    %105 = vmatpush2.msra.mxu0 0.0
    %106 = vmatprep.subr.mxu0 0.0
    %107 = vmatpush2.msra.mxu0 0.0
    %108 = vmatprep.subr.mxu0 0.0
    %109 = vmatpush2.msra.mxu0 0.0
    %110 = vmatprep.subr.mxu0 0.0
    %111 = vmatpush2.msra.mxu0 0.0
    %112 = vmatprep.subr.mxu0 0.0
    %113 = vmatpush2.msra.mxu0 0.0
    %114 = vmatprep.subr.mxu0 0.0
    %115 = vmatpush2.msra.mxu0 0.0
    %116 = vmatprep.subr.mxu0 0.0
    %117 = vmatpush2.msra.mxu0 0.0
    %118 = vmatprep.subr.mxu0 0.0
    %119 = vmatpush2.msra.mxu0 0.0
    %120 = vmatprep.subr.mxu0 0.0
    %121 = vmatpush2.msra.mxu0 0.0
    %122 = vmatprep.subr.mxu0 0.0
    %123 = vmatpush2.msra.mxu0 0.0
    %124 = vmatprep.subr.mxu0 0.0
    %125 = vmatpush2.msra.mxu0 0.0
    %126 = vmatprep.subr.mxu0 0.0
    %127 = vmatpush2.msra.mxu0 0.0
    %128 = vmatprep.subr.mxu0 0.0
    %129 = vmatpush2.msra.mxu0 0.0
    %130 = vmatprep.subr.mxu0 0.0
    %131 = vmatpush2.msra.mxu0 0.0
    %132 = vmatprep.subr.mxu0 0.0
    %133 = vmatpush2.msra.mxu0 0.0
    %134 = vmatprep.subr.mxu0 0.0
    %135 = vmatpush2.msra.mxu0 0.0
    %136 = vmatprep.mubr.f32.mxu0 0.0
    %137 = vmatmul.mubr.f32.gmra.mxu0 %v61
    %v138 = vpop.f32.mrf.mxu0
    %v139 = vadd.f32 %v58, %v138
    %v140 = vpop.f32.mrf.mxu0
    %141 = vmatprep.mubr.f32.mxu0 0.0
    %142 = vmatmul.mubr.f32.gmra.mxu0 %v64
    %v143 = vpop.f32.mrf.mxu0
    %v144 = vadd.f32 %v58, %v143
    %v145 = vpop.f32.mrf.mxu0
    %146 = vmatprep.mubr.f32.mxu0 0.0
    %147 = vmatmul.mubr.f32.gmra.mxu0 %v67
    %v148 = vpop.f32.mrf.mxu0
    %v149 = vadd.f32 %v58, %v148
    %v150 = vpop.f32.mrf.mxu0
    %151 = vmatprep.mubr.f32.mxu0 0.0
    %152 = vmatmul.mubr.f32.gmra.mxu0 %v70
    %v153 = vpop.f32.mrf.mxu0
    %v154 = vadd.f32 %v58, %v153
    %v155 = vpop.f32.mrf.mxu0
    %156 = vdwg.mxu0
    %vm157 = vcmask 261120
    %v158 = vsel %vm157, %v139, 0.0
    %159 = vadd.xlane.f32.xlu0 %v158
    %v160 = vpop.xlane.xlu0 %159
    %v161 = vsel %vm157, %v144, 0.0
    %162 = vadd.xlane.f32.xlu0 %v161
    %v163 = vpop.xlane.xlu0 %162
    %v164 = vsel %vm157, %v149, 0.0
    %165 = vadd.xlane.f32.xlu0 %v164
    %v166 = vpop.xlane.xlu0 %165
    %v167 = vsel %vm157, %v154, 0.0
    %168 = vadd.xlane.f32.xlu0 %v167
    %v169 = vpop.xlane.xlu0 %168
    %v170 = vrcp.pop 32.0
    %v171 = vmul.f32 %v160, %v170
    %v172 = vmul.f32 %v163, %v170
    %v173 = vmul.f32 %v166, %v170
    %v174 = vmul.f32 %v169, %v170
    %v175 = vsub.f32 %v139, %v171
    %v176 = vsub.f32 %v144, %v172
    %v177 = vsub.f32 %v149, %v173
    %v178 = vsub.f32 %v154, %v174
    %v179 = vmul.f32 %v175, %v175
    %v180 = vmul.f32 %v176, %v176
    %v181 = vmul.f32 %v177, %v177
    %v182 = vmul.f32 %v178, %v178
    %v183 = vsel %vm157, %v179, 0.0
    %184 = vadd.xlane.f32.xlu0 %v183
    %v185 = vpop.xlane.xlu0 %184
    %v186 = vsel %vm157, %v180, 0.0
    %187 = vadd.xlane.f32.xlu0 %v186
    %v188 = vpop.xlane.xlu0 %187
    %v189 = vsel %vm157, %v181, 0.0
    %190 = vadd.xlane.f32.xlu0 %v189
    %v191 = vpop.xlane.xlu0 %190
    %v192 = vsel %vm157, %v182, 0.0
    %193 = vadd.xlane.f32.xlu0 %v192
    %v194 = vpop.xlane.xlu0 %193
    %v195 = vmul.f32 %v185, %v170
    %v196 = vmul.f32 %v188, %v170
    %v197 = vmul.f32 %v191, %v170
    %v198 = vmul.f32 %v194, %v170
    %v199 = vadd.f32 %v195, 1e-05
    %v200 = vadd.f32 %v196, 1e-05
    %v201 = vadd.f32 %v197, 1e-05
    %v202 = vadd.f32 %v198, 1e-05
    %v203 = vrsqrt.pop %v199
    %v204 = vrsqrt.pop %v200
    %v205 = vrsqrt.pop %v201
    %v206 = vrsqrt.pop %v202
    %v207 = vmul.f32 %v175, %v203
    %v208 = vmul.f32 %v176, %v204
    %v209 = vmul.f32 %v177, %v205
    %v210 = vmul.f32 %v178, %v206
    %v211 = vlaneseq
    %v212 = vshrl.u32 %v211, 7
    %v213 = vsub.s32 1, %v212
    %v214 = vrot.slane %v42, %v213
    %v215 = vmul.f32 %v207, %v214
    %v216 = vmul.f32 %v208, %v214
    %v217 = vmul.f32 %v209, %v214
    %v218 = vmul.f32 %v210, %v214
    %v219 = vlaneseq
    %v220 = vshrl.u32 %v219, 7
    %v221 = vsub.s32 2, %v220
    %v222 = vrot.slane %v42, %v221
    %v223 = vadd.f32 %v215, %v222
    %v224 = vadd.f32 %v216, %v222
    %v225 = vadd.f32 %v217, %v222
    %v226 = vadd.f32 %v218, %v222
    %v227 = vld [vmem:[%s3] sm:$0xff]
    %v228 = vld [vmem:[%s3 + $0x8] sm:$0xff]
    %v229 = vld [vmem:[%s3 + $0x10] sm:$0xff]
    %v230 = vld [vmem:[%s3 + $0x18] sm:$0xff]
    %v231 = vadd.f32 %v223, %v227
    %v232 = vadd.f32 %v224, %v228
    %v233 = vadd.f32 %v225, %v229
    %v234 = vadd.f32 %v226, %v230
    %v235 = vld [vmem:[%s4] sm:$0xff]
    %v236 = vld [vmem:[%s4 + $0x8] sm:$0xff]
    %v237 = vld [vmem:[%s4 + $0x10] sm:$0xff]
    %v238 = vld [vmem:[%s4 + $0x18] sm:$0xff]
    %v239 = vld [vmem:[%s5] sm:$0x3f]
    %v240 = vsel %vm157, %v231, 0.0
    %241 = vadd.xlane.f32.xlu0 %v240
    %v242 = vpop.xlane.xlu0 %241
    %v243 = vsel %vm157, %v232, 0.0
    %244 = vadd.xlane.f32.xlu0 %v243
    %v245 = vpop.xlane.xlu0 %244
    %v246 = vsel %vm157, %v233, 0.0
    %247 = vadd.xlane.f32.xlu0 %v246
    %v248 = vpop.xlane.xlu0 %247
    %v249 = vsel %vm157, %v234, 0.0
    %250 = vadd.xlane.f32.xlu0 %v249
    %v251 = vpop.xlane.xlu0 %250
    %v252 = vmul.f32 %v242, %v170
    %v253 = vmul.f32 %v245, %v170
    %v254 = vmul.f32 %v248, %v170
    %v255 = vmul.f32 %v251, %v170
    %v256 = vsub.f32 %v231, %v252
    %v257 = vsub.f32 %v232, %v253
    %v258 = vsub.f32 %v233, %v254
    %v259 = vsub.f32 %v234, %v255
    %v260 = vmul.f32 %v256, %v256
    %v261 = vmul.f32 %v257, %v257
    %v262 = vmul.f32 %v258, %v258
    %v263 = vmul.f32 %v259, %v259
    %v264 = vsel %vm157, %v260, 0.0
    %265 = vadd.xlane.f32.xlu0 %v264
    %v266 = vpop.xlane.xlu0 %265
    %v267 = vsel %vm157, %v261, 0.0
    %268 = vadd.xlane.f32.xlu0 %v267
    %v269 = vpop.xlane.xlu0 %268
    %v270 = vsel %vm157, %v262, 0.0
    %271 = vadd.xlane.f32.xlu0 %v270
    %v272 = vpop.xlane.xlu0 %271
    %v273 = vsel %vm157, %v263, 0.0
    %274 = vadd.xlane.f32.xlu0 %v273
    %v275 = vpop.xlane.xlu0 %274
    %v276 = vmul.f32 %v266, %v170
    %v277 = vmul.f32 %v269, %v170
    %v278 = vmul.f32 %v272, %v170
    %v279 = vmul.f32 %v275, %v170
    %v280 = vadd.f32 %v276, 1e-05
    %v281 = vadd.f32 %v277, 1e-05
    %v282 = vadd.f32 %v278, 1e-05
    %v283 = vadd.f32 %v279, 1e-05
    %v284 = vrsqrt.pop %v280
    %v285 = vrsqrt.pop %v281
    %v286 = vrsqrt.pop %v282
    %v287 = vrsqrt.pop %v283
    %v288 = vmul.f32 %v256, %v284
    %v289 = vmul.f32 %v257, %v285
    %v290 = vmul.f32 %v258, %v286
    %v291 = vmul.f32 %v259, %v287
    %v292 = vlaneseq
    %v293 = vshrl.u32 %v292, 7
    %v294 = vsub.s32 0, %v293
    %v295 = vrot.slane %v239, %v294
    %v296 = vmul.f32 %v288, %v295
    %v297 = vmul.f32 %v289, %v295
    %v298 = vmul.f32 %v290, %v295
    %v299 = vmul.f32 %v291, %v295
    %v300 = vlaneseq
    %v301 = vshrl.u32 %v300, 7
    %v302 = vsub.s32 1, %v301
    %v303 = vrot.slane %v239, %v302
    %v304 = vadd.f32 %v296, %v303
    %v305 = vadd.f32 %v297, %v303
    %v306 = vadd.f32 %v298, %v303
    %v307 = vadd.f32 %v299, %v303
    %v308 = vld [vmem:[%s6] sm:$0xff]
    %v309 = vld [vmem:[%s6 + $0x8] sm:$0xff]
    %v310 = vld [vmem:[%s6 + $0x10] sm:$0xff]
    %v311 = vld [vmem:[%s6 + $0x18] sm:$0xff]
    %v312 = vld [vmem:[%s7] sm:$0x1]
    %v314 = vlaneseq
    %v315 = vshrl.u32 %v314, 7
    %v316 = vsub.s32 0, %v315
    %v317 = vrot.slane %v312, %v316
    %v320 = vsel %vm157, %v304, 0
    %v323 = vsel %vm157, %v305, 0
    %v326 = vsel %vm157, %v306, 0
    %v329 = vsel %vm157, %v307, 0
    %331 = vmatprep.subr.mxu0 0.0
    %332 = vmatpush1.msra.mxu0 0.0
    %333 = vmatprep.subr.mxu0 0.0
    %334 = vmatpush1.msra.mxu0 0.0
    %335 = vmatprep.subr.mxu0 0.0
    %336 = vmatpush1.msra.mxu0 0.0
    %337 = vmatprep.subr.mxu0 0.0
    %338 = vmatpush1.msra.mxu0 0.0
    %339 = vmatprep.subr.mxu0 0.0
    %340 = vmatpush1.msra.mxu0 0.0
    %341 = vmatprep.subr.mxu0 0.0
    %342 = vmatpush1.msra.mxu0 0.0
    %343 = vmatprep.subr.mxu0 0.0
    %344 = vmatpush1.msra.mxu0 0.0
    %345 = vmatprep.subr.mxu0 0.0
    %346 = vmatpush1.msra.mxu0 0.0
    %347 = vmatprep.subr.mxu0 0.0
    %348 = vmatpush1.msra.mxu0 0.0
    %349 = vmatprep.subr.mxu0 0.0
    %350 = vmatpush1.msra.mxu0 0.0
    %351 = vmatprep.subr.mxu0 0.0
    %352 = vmatpush1.msra.mxu0 0.0
    %353 = vmatprep.subr.mxu0 0.0
    %354 = vmatpush1.msra.mxu0 0.0
    %355 = vmatprep.subr.mxu0 0.0
    %356 = vmatpush1.msra.mxu0 %v311
    %357 = vmatprep.subr.mxu0 0.0
    %358 = vmatpush1.msra.mxu0 %v310
    %359 = vmatprep.subr.mxu0 0.0
    %360 = vmatpush1.msra.mxu0 %v309
    %361 = vmatprep.subr.mxu0 0.0
    %362 = vmatpush1.msra.mxu0 %v308
    %363 = vmatprep.subr.mxu0 0.0
    %364 = vmatpush2.msra.mxu0 0.0
    %365 = vmatprep.subr.mxu0 0.0
    %366 = vmatpush2.msra.mxu0 0.0
    %367 = vmatprep.subr.mxu0 0.0
    %368 = vmatpush2.msra.mxu0 0.0
    %369 = vmatprep.subr.mxu0 0.0
    %370 = vmatpush2.msra.mxu0 0.0
    %371 = vmatprep.subr.mxu0 0.0
    %372 = vmatpush2.msra.mxu0 0.0
    %373 = vmatprep.subr.mxu0 0.0
    %374 = vmatpush2.msra.mxu0 0.0
    %375 = vmatprep.subr.mxu0 0.0
    %376 = vmatpush2.msra.mxu0 0.0
    %377 = vmatprep.subr.mxu0 0.0
    %378 = vmatpush2.msra.mxu0 0.0
    %379 = vmatprep.subr.mxu0 0.0
    %380 = vmatpush2.msra.mxu0 0.0
    %381 = vmatprep.subr.mxu0 0.0
    %382 = vmatpush2.msra.mxu0 0.0
    %383 = vmatprep.subr.mxu0 0.0
    %384 = vmatpush2.msra.mxu0 0.0
    %385 = vmatprep.subr.mxu0 0.0
    %386 = vmatpush2.msra.mxu0 0.0
    %387 = vmatprep.subr.mxu0 0.0
    %388 = vmatpush2.msra.mxu0 0.0
    %389 = vmatprep.subr.mxu0 0.0
    %390 = vmatpush2.msra.mxu0 0.0
    %391 = vmatprep.subr.mxu0 0.0
    %392 = vmatpush2.msra.mxu0 0.0
    %393 = vmatprep.subr.mxu0 0.0
    %394 = vmatpush2.msra.mxu0 0.0
    %395 = vmatprep.mubr.f32.mxu0 0.0
    %396 = vmatmul.mubr.f32.gmra.mxu0 %v320
    %v397 = vpop.f32.mrf.mxu0
    %v398 = vadd.f32 %v317, %v397
    %v399 = vpop.f32.mrf.mxu0
    %400 = vmatprep.mubr.f32.mxu0 0.0
    %401 = vmatmul.mubr.f32.gmra.mxu0 %v323
    %v402 = vpop.f32.mrf.mxu0
    %v403 = vadd.f32 %v317, %v402
    %v404 = vpop.f32.mrf.mxu0
    %405 = vmatprep.mubr.f32.mxu0 0.0
    %406 = vmatmul.mubr.f32.gmra.mxu0 %v326
    %v407 = vpop.f32.mrf.mxu0
    %v408 = vadd.f32 %v317, %v407
    %v409 = vpop.f32.mrf.mxu0
    %410 = vmatprep.mubr.f32.mxu0 0.0
    %411 = vmatmul.mubr.f32.gmra.mxu0 %v329
    %v412 = vpop.f32.mrf.mxu0
    %v413 = vadd.f32 %v317, %v412
    %v414 = vpop.f32.mrf.mxu0
    %415 = vdwg.mxu0
    %s416 = scalar_lea.vmem %s6, 128
    %v417 = vld [vmem:[%s416] sm:$0xff]
    %v418 = vld [vmem:[%s416 + $0x8] sm:$0xff]
    %v419 = vld [vmem:[%s416 + $0x10] sm:$0xff]
    %v420 = vld [vmem:[%s416 + $0x18] sm:$0xff]
    %s421 = scalar_lea.vmem %s7, 4
    %v422 = vld [vmem:[%s421] sm:$0x1]
    %v424 = vlaneseq
    %v425 = vshrl.u32 %v424, 7
    %v426 = vsub.s32 0, %v425
    %v427 = vrot.slane %v422, %v426
    %429 = vmatprep.subr.mxu0 0.0
    %430 = vmatpush1.msra.mxu0 0.0
    %431 = vmatprep.subr.mxu0 0.0
    %432 = vmatpush1.msra.mxu0 0.0
    %433 = vmatprep.subr.mxu0 0.0
    %434 = vmatpush1.msra.mxu0 0.0
    %435 = vmatprep.subr.mxu0 0.0
    %436 = vmatpush1.msra.mxu0 0.0
    %437 = vmatprep.subr.mxu0 0.0
    %438 = vmatpush1.msra.mxu0 0.0
    %439 = vmatprep.subr.mxu0 0.0
    %440 = vmatpush1.msra.mxu0 0.0
    %441 = vmatprep.subr.mxu0 0.0
    %442 = vmatpush1.msra.mxu0 0.0
    %443 = vmatprep.subr.mxu0 0.0
    %444 = vmatpush1.msra.mxu0 0.0
    %445 = vmatprep.subr.mxu0 0.0
    %446 = vmatpush1.msra.mxu0 0.0
    %447 = vmatprep.subr.mxu0 0.0
    %448 = vmatpush1.msra.mxu0 0.0
    %449 = vmatprep.subr.mxu0 0.0
    %450 = vmatpush1.msra.mxu0 0.0
    %451 = vmatprep.subr.mxu0 0.0
    %452 = vmatpush1.msra.mxu0 0.0
    %453 = vmatprep.subr.mxu0 0.0
    %454 = vmatpush1.msra.mxu0 %v420
    %455 = vmatprep.subr.mxu0 0.0
    %456 = vmatpush1.msra.mxu0 %v419
    %457 = vmatprep.subr.mxu0 0.0
    %458 = vmatpush1.msra.mxu0 %v418
    %459 = vmatprep.subr.mxu0 0.0
    %460 = vmatpush1.msra.mxu0 %v417
    %461 = vmatprep.subr.mxu0 0.0
    %462 = vmatpush2.msra.mxu0 0.0
    %463 = vmatprep.subr.mxu0 0.0
    %464 = vmatpush2.msra.mxu0 0.0
    %465 = vmatprep.subr.mxu0 0.0
    %466 = vmatpush2.msra.mxu0 0.0
    %467 = vmatprep.subr.mxu0 0.0
    %468 = vmatpush2.msra.mxu0 0.0
    %469 = vmatprep.subr.mxu0 0.0
    %470 = vmatpush2.msra.mxu0 0.0
    %471 = vmatprep.subr.mxu0 0.0
    %472 = vmatpush2.msra.mxu0 0.0
    %473 = vmatprep.subr.mxu0 0.0
    %474 = vmatpush2.msra.mxu0 0.0
    %475 = vmatprep.subr.mxu0 0.0
    %476 = vmatpush2.msra.mxu0 0.0
    %477 = vmatprep.subr.mxu0 0.0
    %478 = vmatpush2.msra.mxu0 0.0
    %479 = vmatprep.subr.mxu0 0.0
    %480 = vmatpush2.msra.mxu0 0.0
    %481 = vmatprep.subr.mxu0 0.0
    %482 = vmatpush2.msra.mxu0 0.0
    %483 = vmatprep.subr.mxu0 0.0
    %484 = vmatpush2.msra.mxu0 0.0
    %485 = vmatprep.subr.mxu0 0.0
    %486 = vmatpush2.msra.mxu0 0.0
    %487 = vmatprep.subr.mxu0 0.0
    %488 = vmatpush2.msra.mxu0 0.0
    %489 = vmatprep.subr.mxu0 0.0
    %490 = vmatpush2.msra.mxu0 0.0
    %491 = vmatprep.subr.mxu0 0.0
    %492 = vmatpush2.msra.mxu0 0.0
    %493 = vmatprep.mubr.f32.mxu0 0.0
    %494 = vmatmul.mubr.f32.gmra.mxu0 %v320
    %v495 = vpop.f32.mrf.mxu0
    %v496 = vadd.f32 %v427, %v495
    %v497 = vpop.f32.mrf.mxu0
    %498 = vmatprep.mubr.f32.mxu0 0.0
    %499 = vmatmul.mubr.f32.gmra.mxu0 %v323
    %v500 = vpop.f32.mrf.mxu0
    %v501 = vadd.f32 %v427, %v500
    %v502 = vpop.f32.mrf.mxu0
    %503 = vmatprep.mubr.f32.mxu0 0.0
    %504 = vmatmul.mubr.f32.gmra.mxu0 %v326
    %v505 = vpop.f32.mrf.mxu0
    %v506 = vadd.f32 %v427, %v505
    %v507 = vpop.f32.mrf.mxu0
    %508 = vmatprep.mubr.f32.mxu0 0.0
    %509 = vmatmul.mubr.f32.gmra.mxu0 %v329
    %v510 = vpop.f32.mrf.mxu0
    %v511 = vadd.f32 %v427, %v510
    %v512 = vpop.f32.mrf.mxu0
    %513 = vdwg.mxu0
    %s514 = scalar_lea.vmem %s6, 256
    %v515 = vld [vmem:[%s514] sm:$0xff]
    %v516 = vld [vmem:[%s514 + $0x8] sm:$0xff]
    %v517 = vld [vmem:[%s514 + $0x10] sm:$0xff]
    %v518 = vld [vmem:[%s514 + $0x18] sm:$0xff]
    %s519 = scalar_lea.vmem %s7, 8
    %v520 = vld [vmem:[%s519] sm:$0x1]
    %v522 = vlaneseq
    %v523 = vshrl.u32 %v522, 7
    %v524 = vsub.s32 0, %v523
    %v525 = vrot.slane %v520, %v524
    %527 = vmatprep.subr.mxu0 0.0
    %528 = vmatpush1.msra.mxu0 0.0
    %529 = vmatprep.subr.mxu0 0.0
    %530 = vmatpush1.msra.mxu0 0.0
    %531 = vmatprep.subr.mxu0 0.0
    %532 = vmatpush1.msra.mxu0 0.0
    %533 = vmatprep.subr.mxu0 0.0
    %534 = vmatpush1.msra.mxu0 0.0
    %535 = vmatprep.subr.mxu0 0.0
    %536 = vmatpush1.msra.mxu0 0.0
    %537 = vmatprep.subr.mxu0 0.0
    %538 = vmatpush1.msra.mxu0 0.0
    %539 = vmatprep.subr.mxu0 0.0
    %540 = vmatpush1.msra.mxu0 0.0
    %541 = vmatprep.subr.mxu0 0.0
    %542 = vmatpush1.msra.mxu0 0.0
    %543 = vmatprep.subr.mxu0 0.0
    %544 = vmatpush1.msra.mxu0 0.0
    %545 = vmatprep.subr.mxu0 0.0
    %546 = vmatpush1.msra.mxu0 0.0
    %547 = vmatprep.subr.mxu0 0.0
    %548 = vmatpush1.msra.mxu0 0.0
    %549 = vmatprep.subr.mxu0 0.0
    %550 = vmatpush1.msra.mxu0 0.0
    %551 = vmatprep.subr.mxu0 0.0
    %552 = vmatpush1.msra.mxu0 %v518
    %553 = vmatprep.subr.mxu0 0.0
    %554 = vmatpush1.msra.mxu0 %v517
    %555 = vmatprep.subr.mxu0 0.0
    %556 = vmatpush1.msra.mxu0 %v516
    %557 = vmatprep.subr.mxu0 0.0
    %558 = vmatpush1.msra.mxu0 %v515
    %559 = vmatprep.subr.mxu0 0.0
    %560 = vmatpush2.msra.mxu0 0.0
    %561 = vmatprep.subr.mxu0 0.0
    %562 = vmatpush2.msra.mxu0 0.0
    %563 = vmatprep.subr.mxu0 0.0
    %564 = vmatpush2.msra.mxu0 0.0
    %565 = vmatprep.subr.mxu0 0.0
    %566 = vmatpush2.msra.mxu0 0.0
    %567 = vmatprep.subr.mxu0 0.0
    %568 = vmatpush2.msra.mxu0 0.0
    %569 = vmatprep.subr.mxu0 0.0
    %570 = vmatpush2.msra.mxu0 0.0
    %571 = vmatprep.subr.mxu0 0.0
    %572 = vmatpush2.msra.mxu0 0.0
    %573 = vmatprep.subr.mxu0 0.0
    %574 = vmatpush2.msra.mxu0 0.0
    %575 = vmatprep.subr.mxu0 0.0
    %576 = vmatpush2.msra.mxu0 0.0
    %577 = vmatprep.subr.mxu0 0.0
    %578 = vmatpush2.msra.mxu0 0.0
    %579 = vmatprep.subr.mxu0 0.0
    %580 = vmatpush2.msra.mxu0 0.0
    %581 = vmatprep.subr.mxu0 0.0
    %582 = vmatpush2.msra.mxu0 0.0
    %583 = vmatprep.subr.mxu0 0.0
    %584 = vmatpush2.msra.mxu0 0.0
    %585 = vmatprep.subr.mxu0 0.0
    %586 = vmatpush2.msra.mxu0 0.0
    %587 = vmatprep.subr.mxu0 0.0
    %588 = vmatpush2.msra.mxu0 0.0
    %589 = vmatprep.subr.mxu0 0.0
    %590 = vmatpush2.msra.mxu0 0.0
    %591 = vmatprep.mubr.f32.mxu0 0.0
    %592 = vmatmul.mubr.f32.gmra.mxu0 %v320
    %v593 = vpop.f32.mrf.mxu0
    %v594 = vadd.f32 %v525, %v593
    %v595 = vpop.f32.mrf.mxu0
    %596 = vmatprep.mubr.f32.mxu0 0.0
    %597 = vmatmul.mubr.f32.gmra.mxu0 %v323
    %v598 = vpop.f32.mrf.mxu0
    %v599 = vadd.f32 %v525, %v598
    %v600 = vpop.f32.mrf.mxu0
    %601 = vmatprep.mubr.f32.mxu0 0.0
    %602 = vmatmul.mubr.f32.gmra.mxu0 %v326
    %v603 = vpop.f32.mrf.mxu0
    %v604 = vadd.f32 %v525, %v603
    %v605 = vpop.f32.mrf.mxu0
    %606 = vmatprep.mubr.f32.mxu0 0.0
    %607 = vmatmul.mubr.f32.gmra.mxu0 %v329
    %v608 = vpop.f32.mrf.mxu0
    %v609 = vadd.f32 %v525, %v608
    %v610 = vpop.f32.mrf.mxu0
    %611 = vdwg.mxu0
    %vm612 = vcmask 64512
    %v614 = vsel %vm612, %v398, 0
    %v617 = vsel %vm612, %v403, 0
    %v620 = vsel %vm612, %v408, 0
    %v623 = vsel %vm612, %v413, 0
    %v626 = vsel %vm612, %v496, 0
    %v629 = vsel %vm612, %v501, 0
    %v632 = vsel %vm612, %v506, 0
    %v635 = vsel %vm612, %v511, 0
    %637 = vmatprep.subr.mxu0 0.0
    %638 = vmatpush1.xpose.msra.mxu0 0.0
    %639 = vmatprep.subr.mxu0 0.0
    %640 = vmatpush1.xpose.msra.mxu0 0.0
    %641 = vmatprep.subr.mxu0 0.0
    %642 = vmatpush1.xpose.msra.mxu0 0.0
    %643 = vmatprep.subr.mxu0 0.0
    %644 = vmatpush1.xpose.msra.mxu0 0.0
    %645 = vmatprep.subr.mxu0 0.0
    %646 = vmatpush1.xpose.msra.mxu0 0.0
    %647 = vmatprep.subr.mxu0 0.0
    %648 = vmatpush1.xpose.msra.mxu0 0.0
    %649 = vmatprep.subr.mxu0 0.0
    %650 = vmatpush1.xpose.msra.mxu0 0.0
    %651 = vmatprep.subr.mxu0 0.0
    %652 = vmatpush1.xpose.msra.mxu0 0.0
    %653 = vmatprep.subr.mxu0 0.0
    %654 = vmatpush1.xpose.msra.mxu0 0.0
    %655 = vmatprep.subr.mxu0 0.0
    %656 = vmatpush1.xpose.msra.mxu0 0.0
    %657 = vmatprep.subr.mxu0 0.0
    %658 = vmatpush1.xpose.msra.mxu0 0.0
    %659 = vmatprep.subr.mxu0 0.0
    %660 = vmatpush1.xpose.msra.mxu0 0.0
    %661 = vmatprep.subr.mxu0 0.0
    %662 = vmatpush1.xpose.msra.mxu0 %v635
    %663 = vmatprep.subr.mxu0 0.0
    %664 = vmatpush1.xpose.msra.mxu0 %v632
    %665 = vmatprep.subr.mxu0 0.0
    %666 = vmatpush1.xpose.msra.mxu0 %v629
    %667 = vmatprep.subr.mxu0 0.0
    %668 = vmatpush1.xpose.msra.mxu0 %v626
    %669 = vmatprep.subr.mxu0 0.0
    %670 = vmatpush2.xpose.msra.mxu0 0.0
    %671 = vmatprep.subr.mxu0 0.0
    %672 = vmatpush2.xpose.msra.mxu0 0.0
    %673 = vmatprep.subr.mxu0 0.0
    %674 = vmatpush2.xpose.msra.mxu0 0.0
    %675 = vmatprep.subr.mxu0 0.0
    %676 = vmatpush2.xpose.msra.mxu0 0.0
    %677 = vmatprep.subr.mxu0 0.0
    %678 = vmatpush2.xpose.msra.mxu0 0.0
    %679 = vmatprep.subr.mxu0 0.0
    %680 = vmatpush2.xpose.msra.mxu0 0.0
    %681 = vmatprep.subr.mxu0 0.0
    %682 = vmatpush2.xpose.msra.mxu0 0.0
    %683 = vmatprep.subr.mxu0 0.0
    %684 = vmatpush2.xpose.msra.mxu0 0.0
    %685 = vmatprep.subr.mxu0 0.0
    %686 = vmatpush2.xpose.msra.mxu0 0.0
    %687 = vmatprep.subr.mxu0 0.0
    %688 = vmatpush2.xpose.msra.mxu0 0.0
    %689 = vmatprep.subr.mxu0 0.0
    %690 = vmatpush2.xpose.msra.mxu0 0.0
    %691 = vmatprep.subr.mxu0 0.0
    %692 = vmatpush2.xpose.msra.mxu0 0.0
    %693 = vmatprep.subr.mxu0 0.0
    %694 = vmatpush2.xpose.msra.mxu0 0.0
    %695 = vmatprep.subr.mxu0 0.0
    %696 = vmatpush2.xpose.msra.mxu0 0.0
    %697 = vmatprep.subr.mxu0 0.0
    %698 = vmatpush2.xpose.msra.mxu0 0.0
    %699 = vmatprep.subr.mxu0 0.0
    %700 = vmatpush2.xpose.msra.mxu0 0.0
    %701 = vmatprep.mubr.f32.mxu0 0.0
    %702 = vmatmul.mubr.f32.gmra.mxu0 %v614
    %v703 = vpop.f32.mrf.mxu0
    %v704 = vadd.f32 0.0, %v703
    %v705 = vpop.f32.mrf.mxu0
    %706 = vmatprep.mubr.f32.mxu0 0.0
    %707 = vmatmul.mubr.f32.gmra.mxu0 %v617
    %v708 = vpop.f32.mrf.mxu0
    %v709 = vadd.f32 0.0, %v708
    %v710 = vpop.f32.mrf.mxu0
    %711 = vmatprep.mubr.f32.mxu0 0.0
    %712 = vmatmul.mubr.f32.gmra.mxu0 %v620
    %v713 = vpop.f32.mrf.mxu0
    %v714 = vadd.f32 0.0, %v713
    %v715 = vpop.f32.mrf.mxu0
    %716 = vmatprep.mubr.f32.mxu0 0.0
    %717 = vmatmul.mubr.f32.gmra.mxu0 %v623
    %v718 = vpop.f32.mrf.mxu0
    %v719 = vadd.f32 0.0, %v718
    %v720 = vpop.f32.mrf.mxu0
    %721 = vdwg.mxu0
    %v722 = vmul.f32 %v704, 0.35355338
    %v723 = vmul.f32 %v709, 0.35355338
    %v724 = vmul.f32 %v714, 0.35355338
    %v725 = vmul.f32 %v719, 0.35355338
    %v726 = vadd.f32 %v722, %v235
    %v727 = vadd.f32 %v723, %v236
    %v728 = vadd.f32 %v724, %v237
    %v729 = vadd.f32 %v725, %v238
    %v730 = vsel %vm157, %v726, -inf
    %731 = vmax.xlane.f32.xlu0 %v730
    %v732 = vpop.xlane.xlu0 %731
    %v733 = vsel %vm157, %v727, -inf
    %734 = vmax.xlane.f32.xlu0 %v733
    %v735 = vpop.xlane.xlu0 %734
    %v736 = vsel %vm157, %v728, -inf
    %737 = vmax.xlane.f32.xlu0 %v736
    %v738 = vpop.xlane.xlu0 %737
    %v739 = vsel %vm157, %v729, -inf
    %740 = vmax.xlane.f32.xlu0 %v739
    %v741 = vpop.xlane.xlu0 %740
    %v742 = vsub.f32 %v726, %v732
    %v743 = vsub.f32 %v727, %v735
    %v744 = vsub.f32 %v728, %v738
    %v745 = vsub.f32 %v729, %v741
    %v746 = vmul.f32 %v742, 1.442695
    %v747 = vpow.pop %v746
    %v748 = vmul.f32 %v743, 1.442695
    %v749 = vpow.pop %v748
    %v750 = vmul.f32 %v744, 1.442695
    %v751 = vpow.pop %v750
    %v752 = vmul.f32 %v745, 1.442695
    %v753 = vpow.pop %v752
    %v754 = vsel %vm157, %v747, 0.0
    %755 = vadd.xlane.f32.xlu0 %v754
    %v756 = vpop.xlane.xlu0 %755
    %v757 = vsel %vm157, %v749, 0.0
    %758 = vadd.xlane.f32.xlu0 %v757
    %v759 = vpop.xlane.xlu0 %758
    %v760 = vsel %vm157, %v751, 0.0
    %761 = vadd.xlane.f32.xlu0 %v760
    %v762 = vpop.xlane.xlu0 %761
    %v763 = vsel %vm157, %v753, 0.0
    %764 = vadd.xlane.f32.xlu0 %v763
    %v765 = vpop.xlane.xlu0 %764
    %v766 = vrcp.pop %v756
    %v767 = vrcp.pop %v759
    %v768 = vrcp.pop %v762
    %v769 = vrcp.pop %v765
    %v770 = vmul.f32 %v747, %v766
    %v771 = vmul.f32 %v749, %v767
    %v772 = vmul.f32 %v751, %v768
    %v773 = vmul.f32 %v753, %v769
    %v775 = vsel %vm157, %v770, 0
    %v778 = vsel %vm157, %v771, 0
    %v781 = vsel %vm157, %v772, 0
    %v784 = vsel %vm157, %v773, 0
    %786 = vmatprep.subr.mxu0 0.0
    %787 = vmatpush1.msra.mxu0 0.0
    %788 = vmatprep.subr.mxu0 0.0
    %789 = vmatpush1.msra.mxu0 0.0
    %790 = vmatprep.subr.mxu0 0.0
    %791 = vmatpush1.msra.mxu0 0.0
    %792 = vmatprep.subr.mxu0 0.0
    %793 = vmatpush1.msra.mxu0 0.0
    %794 = vmatprep.subr.mxu0 0.0
    %795 = vmatpush1.msra.mxu0 0.0
    %796 = vmatprep.subr.mxu0 0.0
    %797 = vmatpush1.msra.mxu0 0.0
    %798 = vmatprep.subr.mxu0 0.0
    %799 = vmatpush1.msra.mxu0 0.0
    %800 = vmatprep.subr.mxu0 0.0
    %801 = vmatpush1.msra.mxu0 0.0
    %802 = vmatprep.subr.mxu0 0.0
    %803 = vmatpush1.msra.mxu0 0.0
    %804 = vmatprep.subr.mxu0 0.0
    %805 = vmatpush1.msra.mxu0 0.0
    %806 = vmatprep.subr.mxu0 0.0
    %807 = vmatpush1.msra.mxu0 0.0
    %808 = vmatprep.subr.mxu0 0.0
    %809 = vmatpush1.msra.mxu0 0.0
    %810 = vmatprep.subr.mxu0 0.0
    %811 = vmatpush1.msra.mxu0 %v609
    %812 = vmatprep.subr.mxu0 0.0
    %813 = vmatpush1.msra.mxu0 %v604
    %814 = vmatprep.subr.mxu0 0.0
    %815 = vmatpush1.msra.mxu0 %v599
    %816 = vmatprep.subr.mxu0 0.0
    %817 = vmatpush1.msra.mxu0 %v594
    %818 = vmatprep.subr.mxu0 0.0
    %819 = vmatpush2.msra.mxu0 0.0
    %820 = vmatprep.subr.mxu0 0.0
    %821 = vmatpush2.msra.mxu0 0.0
    %822 = vmatprep.subr.mxu0 0.0
    %823 = vmatpush2.msra.mxu0 0.0
    %824 = vmatprep.subr.mxu0 0.0
    %825 = vmatpush2.msra.mxu0 0.0
    %826 = vmatprep.subr.mxu0 0.0
    %827 = vmatpush2.msra.mxu0 0.0
    %828 = vmatprep.subr.mxu0 0.0
    %829 = vmatpush2.msra.mxu0 0.0
    %830 = vmatprep.subr.mxu0 0.0
    %831 = vmatpush2.msra.mxu0 0.0
    %832 = vmatprep.subr.mxu0 0.0
    %833 = vmatpush2.msra.mxu0 0.0
    %834 = vmatprep.subr.mxu0 0.0
    %835 = vmatpush2.msra.mxu0 0.0
    %836 = vmatprep.subr.mxu0 0.0
    %837 = vmatpush2.msra.mxu0 0.0
    %838 = vmatprep.subr.mxu0 0.0
    %839 = vmatpush2.msra.mxu0 0.0
    %840 = vmatprep.subr.mxu0 0.0
    %841 = vmatpush2.msra.mxu0 0.0
    %842 = vmatprep.subr.mxu0 0.0
    %843 = vmatpush2.msra.mxu0 0.0
    %844 = vmatprep.subr.mxu0 0.0
    %845 = vmatpush2.msra.mxu0 0.0
    %846 = vmatprep.subr.mxu0 0.0
    %847 = vmatpush2.msra.mxu0 0.0
    %848 = vmatprep.subr.mxu0 0.0
    %849 = vmatpush2.msra.mxu0 0.0
    %850 = vmatprep.mubr.f32.mxu0 0.0
    %851 = vmatmul.mubr.f32.gmra.mxu0 %v775
    %v852 = vpop.f32.mrf.mxu0
    %v853 = vadd.f32 0.0, %v852
    %v854 = vpop.f32.mrf.mxu0
    %855 = vmatprep.mubr.f32.mxu0 0.0
    %856 = vmatmul.mubr.f32.gmra.mxu0 %v778
    %v857 = vpop.f32.mrf.mxu0
    %v858 = vadd.f32 0.0, %v857
    %v859 = vpop.f32.mrf.mxu0
    %860 = vmatprep.mubr.f32.mxu0 0.0
    %861 = vmatmul.mubr.f32.gmra.mxu0 %v781
    %v862 = vpop.f32.mrf.mxu0
    %v863 = vadd.f32 0.0, %v862
    %v864 = vpop.f32.mrf.mxu0
    %865 = vmatprep.mubr.f32.mxu0 0.0
    %866 = vmatmul.mubr.f32.gmra.mxu0 %v784
    %v867 = vpop.f32.mrf.mxu0
    %v868 = vadd.f32 0.0, %v867
    %v869 = vpop.f32.mrf.mxu0
    %870 = vdwg.mxu0
    %v871 = vld [vmem:[%s8] sm:$0xff]
    %s872 = scalar_lea.vmem %s6, 32
    %v873 = vld [vmem:[%s872] sm:$0xff]
    %v874 = vld [vmem:[%s872 + $0x8] sm:$0xff]
    %v875 = vld [vmem:[%s872 + $0x10] sm:$0xff]
    %v876 = vld [vmem:[%s872 + $0x18] sm:$0xff]
    %s877 = scalar_lea.vmem %s7, 1
    %v878 = vld [vmem:[%s877] sm:$0x1]
    %v880 = vlaneseq
    %v881 = vshrl.u32 %v880, 7
    %v882 = vsub.s32 0, %v881
    %v883 = vrot.slane %v878, %v882
    %885 = vmatprep.subr.mxu0 0.0
    %886 = vmatpush1.msra.mxu0 0.0
    %887 = vmatprep.subr.mxu0 0.0
    %888 = vmatpush1.msra.mxu0 0.0
    %889 = vmatprep.subr.mxu0 0.0
    %890 = vmatpush1.msra.mxu0 0.0
    %891 = vmatprep.subr.mxu0 0.0
    %892 = vmatpush1.msra.mxu0 0.0
    %893 = vmatprep.subr.mxu0 0.0
    %894 = vmatpush1.msra.mxu0 0.0
    %895 = vmatprep.subr.mxu0 0.0
    %896 = vmatpush1.msra.mxu0 0.0
    %897 = vmatprep.subr.mxu0 0.0
    %898 = vmatpush1.msra.mxu0 0.0
    %899 = vmatprep.subr.mxu0 0.0
    %900 = vmatpush1.msra.mxu0 0.0
    %901 = vmatprep.subr.mxu0 0.0
    %902 = vmatpush1.msra.mxu0 0.0
    %903 = vmatprep.subr.mxu0 0.0
    %904 = vmatpush1.msra.mxu0 0.0
    %905 = vmatprep.subr.mxu0 0.0
    %906 = vmatpush1.msra.mxu0 0.0
    %907 = vmatprep.subr.mxu0 0.0
    %908 = vmatpush1.msra.mxu0 0.0
    %909 = vmatprep.subr.mxu0 0.0
    %910 = vmatpush1.msra.mxu0 %v876
    %911 = vmatprep.subr.mxu0 0.0
    %912 = vmatpush1.msra.mxu0 %v875
    %913 = vmatprep.subr.mxu0 0.0
    %914 = vmatpush1.msra.mxu0 %v874
    %915 = vmatprep.subr.mxu0 0.0
    %916 = vmatpush1.msra.mxu0 %v873
    %917 = vmatprep.subr.mxu0 0.0
    %918 = vmatpush2.msra.mxu0 0.0
    %919 = vmatprep.subr.mxu0 0.0
    %920 = vmatpush2.msra.mxu0 0.0
    %921 = vmatprep.subr.mxu0 0.0
    %922 = vmatpush2.msra.mxu0 0.0
    %923 = vmatprep.subr.mxu0 0.0
    %924 = vmatpush2.msra.mxu0 0.0
    %925 = vmatprep.subr.mxu0 0.0
    %926 = vmatpush2.msra.mxu0 0.0
    %927 = vmatprep.subr.mxu0 0.0
    %928 = vmatpush2.msra.mxu0 0.0
    %929 = vmatprep.subr.mxu0 0.0
    %930 = vmatpush2.msra.mxu0 0.0
    %931 = vmatprep.subr.mxu0 0.0
    %932 = vmatpush2.msra.mxu0 0.0
    %933 = vmatprep.subr.mxu0 0.0
    %934 = vmatpush2.msra.mxu0 0.0
    %935 = vmatprep.subr.mxu0 0.0
    %936 = vmatpush2.msra.mxu0 0.0
    %937 = vmatprep.subr.mxu0 0.0
    %938 = vmatpush2.msra.mxu0 0.0
    %939 = vmatprep.subr.mxu0 0.0
    %940 = vmatpush2.msra.mxu0 0.0
    %941 = vmatprep.subr.mxu0 0.0
    %942 = vmatpush2.msra.mxu0 0.0
    %943 = vmatprep.subr.mxu0 0.0
    %944 = vmatpush2.msra.mxu0 0.0
    %945 = vmatprep.subr.mxu0 0.0
    %946 = vmatpush2.msra.mxu0 0.0
    %947 = vmatprep.subr.mxu0 0.0
    %948 = vmatpush2.msra.mxu0 0.0
    %949 = vmatprep.mubr.f32.mxu0 0.0
    %950 = vmatmul.mubr.f32.gmra.mxu0 %v320
    %v951 = vpop.f32.mrf.mxu0
    %v952 = vadd.f32 %v883, %v951
    %v953 = vpop.f32.mrf.mxu0
    %954 = vmatprep.mubr.f32.mxu0 0.0
    %955 = vmatmul.mubr.f32.gmra.mxu0 %v323
    %v956 = vpop.f32.mrf.mxu0
    %v957 = vadd.f32 %v883, %v956
    %v958 = vpop.f32.mrf.mxu0
    %959 = vmatprep.mubr.f32.mxu0 0.0
    %960 = vmatmul.mubr.f32.gmra.mxu0 %v326
    %v961 = vpop.f32.mrf.mxu0
    %v962 = vadd.f32 %v883, %v961
    %v963 = vpop.f32.mrf.mxu0
    %964 = vmatprep.mubr.f32.mxu0 0.0
    %965 = vmatmul.mubr.f32.gmra.mxu0 %v329
    %v966 = vpop.f32.mrf.mxu0
    %v967 = vadd.f32 %v883, %v966
    %v968 = vpop.f32.mrf.mxu0
    %969 = vdwg.mxu0
    %s970 = scalar_lea.vmem %s6, 160
    %v971 = vld [vmem:[%s970] sm:$0xff]
    %v972 = vld [vmem:[%s970 + $0x8] sm:$0xff]
    %v973 = vld [vmem:[%s970 + $0x10] sm:$0xff]
    %v974 = vld [vmem:[%s970 + $0x18] sm:$0xff]
    %s975 = scalar_lea.vmem %s7, 5
    %v976 = vld [vmem:[%s975] sm:$0x1]
    %v978 = vlaneseq
    %v979 = vshrl.u32 %v978, 7
    %v980 = vsub.s32 0, %v979
    %v981 = vrot.slane %v976, %v980
    %983 = vmatprep.subr.mxu0 0.0
    %984 = vmatpush1.msra.mxu0 0.0
    %985 = vmatprep.subr.mxu0 0.0
    %986 = vmatpush1.msra.mxu0 0.0
    %987 = vmatprep.subr.mxu0 0.0
    %988 = vmatpush1.msra.mxu0 0.0
    %989 = vmatprep.subr.mxu0 0.0
    %990 = vmatpush1.msra.mxu0 0.0
    %991 = vmatprep.subr.mxu0 0.0
    %992 = vmatpush1.msra.mxu0 0.0
    %993 = vmatprep.subr.mxu0 0.0
    %994 = vmatpush1.msra.mxu0 0.0
    %995 = vmatprep.subr.mxu0 0.0
    %996 = vmatpush1.msra.mxu0 0.0
    %997 = vmatprep.subr.mxu0 0.0
    %998 = vmatpush1.msra.mxu0 0.0
    %999 = vmatprep.subr.mxu0 0.0
    %1000 = vmatpush1.msra.mxu0 0.0
    %1001 = vmatprep.subr.mxu0 0.0
    %1002 = vmatpush1.msra.mxu0 0.0
    %1003 = vmatprep.subr.mxu0 0.0
    %1004 = vmatpush1.msra.mxu0 0.0
    %1005 = vmatprep.subr.mxu0 0.0
    %1006 = vmatpush1.msra.mxu0 0.0
    %1007 = vmatprep.subr.mxu0 0.0
    %1008 = vmatpush1.msra.mxu0 %v974
    %1009 = vmatprep.subr.mxu0 0.0
    %1010 = vmatpush1.msra.mxu0 %v973
    %1011 = vmatprep.subr.mxu0 0.0
    %1012 = vmatpush1.msra.mxu0 %v972
    %1013 = vmatprep.subr.mxu0 0.0
    %1014 = vmatpush1.msra.mxu0 %v971
    %1015 = vmatprep.subr.mxu0 0.0
    %1016 = vmatpush2.msra.mxu0 0.0
    %1017 = vmatprep.subr.mxu0 0.0
    %1018 = vmatpush2.msra.mxu0 0.0
    %1019 = vmatprep.subr.mxu0 0.0
    %1020 = vmatpush2.msra.mxu0 0.0
    %1021 = vmatprep.subr.mxu0 0.0
    %1022 = vmatpush2.msra.mxu0 0.0
    %1023 = vmatprep.subr.mxu0 0.0
    %1024 = vmatpush2.msra.mxu0 0.0
    %1025 = vmatprep.subr.mxu0 0.0
    %1026 = vmatpush2.msra.mxu0 0.0
    %1027 = vmatprep.subr.mxu0 0.0
    %1028 = vmatpush2.msra.mxu0 0.0
    %1029 = vmatprep.subr.mxu0 0.0
    %1030 = vmatpush2.msra.mxu0 0.0
    %1031 = vmatprep.subr.mxu0 0.0
    %1032 = vmatpush2.msra.mxu0 0.0
    %1033 = vmatprep.subr.mxu0 0.0
    %1034 = vmatpush2.msra.mxu0 0.0
    %1035 = vmatprep.subr.mxu0 0.0
    %1036 = vmatpush2.msra.mxu0 0.0
    %1037 = vmatprep.subr.mxu0 0.0
    %1038 = vmatpush2.msra.mxu0 0.0
    %1039 = vmatprep.subr.mxu0 0.0
    %1040 = vmatpush2.msra.mxu0 0.0
    %1041 = vmatprep.subr.mxu0 0.0
    %1042 = vmatpush2.msra.mxu0 0.0
    %1043 = vmatprep.subr.mxu0 0.0
    %1044 = vmatpush2.msra.mxu0 0.0
    %1045 = vmatprep.subr.mxu0 0.0
    %1046 = vmatpush2.msra.mxu0 0.0
    %1047 = vmatprep.mubr.f32.mxu0 0.0
    %1048 = vmatmul.mubr.f32.gmra.mxu0 %v320
    %v1049 = vpop.f32.mrf.mxu0
    %v1050 = vadd.f32 %v981, %v1049
    %v1051 = vpop.f32.mrf.mxu0
    %1052 = vmatprep.mubr.f32.mxu0 0.0
    %1053 = vmatmul.mubr.f32.gmra.mxu0 %v323
    %v1054 = vpop.f32.mrf.mxu0
    %v1055 = vadd.f32 %v981, %v1054
    %v1056 = vpop.f32.mrf.mxu0
    %1057 = vmatprep.mubr.f32.mxu0 0.0
    %1058 = vmatmul.mubr.f32.gmra.mxu0 %v326
    %v1059 = vpop.f32.mrf.mxu0
    %v1060 = vadd.f32 %v981, %v1059
    %v1061 = vpop.f32.mrf.mxu0
    %1062 = vmatprep.mubr.f32.mxu0 0.0
    %1063 = vmatmul.mubr.f32.gmra.mxu0 %v329
    %v1064 = vpop.f32.mrf.mxu0
    %v1065 = vadd.f32 %v981, %v1064
    %v1066 = vpop.f32.mrf.mxu0
    %1067 = vdwg.mxu0
    %s1068 = scalar_lea.vmem %s6, 288
    %v1069 = vld [vmem:[%s1068] sm:$0xff]
    %v1070 = vld [vmem:[%s1068 + $0x8] sm:$0xff]
    %v1071 = vld [vmem:[%s1068 + $0x10] sm:$0xff]
    %v1072 = vld [vmem:[%s1068 + $0x18] sm:$0xff]
    %s1073 = scalar_lea.vmem %s7, 9
    %v1074 = vld [vmem:[%s1073] sm:$0x1]
    %v1076 = vlaneseq
    %v1077 = vshrl.u32 %v1076, 7
    %v1078 = vsub.s32 0, %v1077
    %v1079 = vrot.slane %v1074, %v1078
    %1081 = vmatprep.subr.mxu0 0.0
    %1082 = vmatpush1.msra.mxu0 0.0
    %1083 = vmatprep.subr.mxu0 0.0
    %1084 = vmatpush1.msra.mxu0 0.0
    %1085 = vmatprep.subr.mxu0 0.0
    %1086 = vmatpush1.msra.mxu0 0.0
    %1087 = vmatprep.subr.mxu0 0.0
    %1088 = vmatpush1.msra.mxu0 0.0
    %1089 = vmatprep.subr.mxu0 0.0
    %1090 = vmatpush1.msra.mxu0 0.0
    %1091 = vmatprep.subr.mxu0 0.0
    %1092 = vmatpush1.msra.mxu0 0.0
    %1093 = vmatprep.subr.mxu0 0.0
    %1094 = vmatpush1.msra.mxu0 0.0
    %1095 = vmatprep.subr.mxu0 0.0
    %1096 = vmatpush1.msra.mxu0 0.0
    %1097 = vmatprep.subr.mxu0 0.0
    %1098 = vmatpush1.msra.mxu0 0.0
    %1099 = vmatprep.subr.mxu0 0.0
    %1100 = vmatpush1.msra.mxu0 0.0
    %1101 = vmatprep.subr.mxu0 0.0
    %1102 = vmatpush1.msra.mxu0 0.0
    %1103 = vmatprep.subr.mxu0 0.0
    %1104 = vmatpush1.msra.mxu0 0.0
    %1105 = vmatprep.subr.mxu0 0.0
    %1106 = vmatpush1.msra.mxu0 %v1072
    %1107 = vmatprep.subr.mxu0 0.0
    %1108 = vmatpush1.msra.mxu0 %v1071
    %1109 = vmatprep.subr.mxu0 0.0
    %1110 = vmatpush1.msra.mxu0 %v1070
    %1111 = vmatprep.subr.mxu0 0.0
    %1112 = vmatpush1.msra.mxu0 %v1069
    %1113 = vmatprep.subr.mxu0 0.0
    %1114 = vmatpush2.msra.mxu0 0.0
    %1115 = vmatprep.subr.mxu0 0.0
    %1116 = vmatpush2.msra.mxu0 0.0
    %1117 = vmatprep.subr.mxu0 0.0
    %1118 = vmatpush2.msra.mxu0 0.0
    %1119 = vmatprep.subr.mxu0 0.0
    %1120 = vmatpush2.msra.mxu0 0.0
    %1121 = vmatprep.subr.mxu0 0.0
    %1122 = vmatpush2.msra.mxu0 0.0
    %1123 = vmatprep.subr.mxu0 0.0
    %1124 = vmatpush2.msra.mxu0 0.0
    %1125 = vmatprep.subr.mxu0 0.0
    %1126 = vmatpush2.msra.mxu0 0.0
    %1127 = vmatprep.subr.mxu0 0.0
    %1128 = vmatpush2.msra.mxu0 0.0
    %1129 = vmatprep.subr.mxu0 0.0
    %1130 = vmatpush2.msra.mxu0 0.0
    %1131 = vmatprep.subr.mxu0 0.0
    %1132 = vmatpush2.msra.mxu0 0.0
    %1133 = vmatprep.subr.mxu0 0.0
    %1134 = vmatpush2.msra.mxu0 0.0
    %1135 = vmatprep.subr.mxu0 0.0
    %1136 = vmatpush2.msra.mxu0 0.0
    %1137 = vmatprep.subr.mxu0 0.0
    %1138 = vmatpush2.msra.mxu0 0.0
    %1139 = vmatprep.subr.mxu0 0.0
    %1140 = vmatpush2.msra.mxu0 0.0
    %1141 = vmatprep.subr.mxu0 0.0
    %1142 = vmatpush2.msra.mxu0 0.0
    %1143 = vmatprep.subr.mxu0 0.0
    %1144 = vmatpush2.msra.mxu0 0.0
    %1145 = vmatprep.mubr.f32.mxu0 0.0
    %1146 = vmatmul.mubr.f32.gmra.mxu0 %v320
    %v1147 = vpop.f32.mrf.mxu0
    %v1148 = vadd.f32 %v1079, %v1147
    %v1149 = vpop.f32.mrf.mxu0
    %1150 = vmatprep.mubr.f32.mxu0 0.0
    %1151 = vmatmul.mubr.f32.gmra.mxu0 %v323
    %v1152 = vpop.f32.mrf.mxu0
    %v1153 = vadd.f32 %v1079, %v1152
    %v1154 = vpop.f32.mrf.mxu0
    %1155 = vmatprep.mubr.f32.mxu0 0.0
    %1156 = vmatmul.mubr.f32.gmra.mxu0 %v326
    %v1157 = vpop.f32.mrf.mxu0
    %v1158 = vadd.f32 %v1079, %v1157
    %v1159 = vpop.f32.mrf.mxu0
    %1160 = vmatprep.mubr.f32.mxu0 0.0
    %1161 = vmatmul.mubr.f32.gmra.mxu0 %v329
    %v1162 = vpop.f32.mrf.mxu0
    %v1163 = vadd.f32 %v1079, %v1162
    %v1164 = vpop.f32.mrf.mxu0
    %1165 = vdwg.mxu0
    %v1167 = vsel %vm612, %v952, 0
    %v1170 = vsel %vm612, %v957, 0
    %v1173 = vsel %vm612, %v962, 0
    %v1176 = vsel %vm612, %v967, 0
    %v1179 = vsel %vm612, %v1050, 0
    %v1182 = vsel %vm612, %v1055, 0
    %v1185 = vsel %vm612, %v1060, 0
    %v1188 = vsel %vm612, %v1065, 0
    %1190 = vmatprep.subr.mxu0 0.0
    %1191 = vmatpush1.xpose.msra.mxu0 0.0
    %1192 = vmatprep.subr.mxu0 0.0
    %1193 = vmatpush1.xpose.msra.mxu0 0.0
    %1194 = vmatprep.subr.mxu0 0.0
    %1195 = vmatpush1.xpose.msra.mxu0 0.0
    %1196 = vmatprep.subr.mxu0 0.0
    %1197 = vmatpush1.xpose.msra.mxu0 0.0
    %1198 = vmatprep.subr.mxu0 0.0
    %1199 = vmatpush1.xpose.msra.mxu0 0.0
    %1200 = vmatprep.subr.mxu0 0.0
    %1201 = vmatpush1.xpose.msra.mxu0 0.0
    %1202 = vmatprep.subr.mxu0 0.0
    %1203 = vmatpush1.xpose.msra.mxu0 0.0
    %1204 = vmatprep.subr.mxu0 0.0
    %1205 = vmatpush1.xpose.msra.mxu0 0.0
    %1206 = vmatprep.subr.mxu0 0.0
    %1207 = vmatpush1.xpose.msra.mxu0 0.0
    %1208 = vmatprep.subr.mxu0 0.0
    %1209 = vmatpush1.xpose.msra.mxu0 0.0
    %1210 = vmatprep.subr.mxu0 0.0
    %1211 = vmatpush1.xpose.msra.mxu0 0.0
    %1212 = vmatprep.subr.mxu0 0.0
    %1213 = vmatpush1.xpose.msra.mxu0 0.0
    %1214 = vmatprep.subr.mxu0 0.0
    %1215 = vmatpush1.xpose.msra.mxu0 %v1188
    %1216 = vmatprep.subr.mxu0 0.0
    %1217 = vmatpush1.xpose.msra.mxu0 %v1185
    %1218 = vmatprep.subr.mxu0 0.0
    %1219 = vmatpush1.xpose.msra.mxu0 %v1182
    %1220 = vmatprep.subr.mxu0 0.0
    %1221 = vmatpush1.xpose.msra.mxu0 %v1179
    %1222 = vmatprep.subr.mxu0 0.0
    %1223 = vmatpush2.xpose.msra.mxu0 0.0
    %1224 = vmatprep.subr.mxu0 0.0
    %1225 = vmatpush2.xpose.msra.mxu0 0.0
    %1226 = vmatprep.subr.mxu0 0.0
    %1227 = vmatpush2.xpose.msra.mxu0 0.0
    %1228 = vmatprep.subr.mxu0 0.0
    %1229 = vmatpush2.xpose.msra.mxu0 0.0
    %1230 = vmatprep.subr.mxu0 0.0
    %1231 = vmatpush2.xpose.msra.mxu0 0.0
    %1232 = vmatprep.subr.mxu0 0.0
    %1233 = vmatpush2.xpose.msra.mxu0 0.0
    %1234 = vmatprep.subr.mxu0 0.0
    %1235 = vmatpush2.xpose.msra.mxu0 0.0
    %1236 = vmatprep.subr.mxu0 0.0
    %1237 = vmatpush2.xpose.msra.mxu0 0.0
    %1238 = vmatprep.subr.mxu0 0.0
    %1239 = vmatpush2.xpose.msra.mxu0 0.0
    %1240 = vmatprep.subr.mxu0 0.0
    %1241 = vmatpush2.xpose.msra.mxu0 0.0
    %1242 = vmatprep.subr.mxu0 0.0
    %1243 = vmatpush2.xpose.msra.mxu0 0.0
    %1244 = vmatprep.subr.mxu0 0.0
    %1245 = vmatpush2.xpose.msra.mxu0 0.0
    %1246 = vmatprep.subr.mxu0 0.0
    %1247 = vmatpush2.xpose.msra.mxu0 0.0
    %1248 = vmatprep.subr.mxu0 0.0
    %1249 = vmatpush2.xpose.msra.mxu0 0.0
    %1250 = vmatprep.subr.mxu0 0.0
    %1251 = vmatpush2.xpose.msra.mxu0 0.0
    %1252 = vmatprep.subr.mxu0 0.0
    %1253 = vmatpush2.xpose.msra.mxu0 0.0
    %1254 = vmatprep.mubr.f32.mxu0 0.0
    %1255 = vmatmul.mubr.f32.gmra.mxu0 %v1167
    %v1256 = vpop.f32.mrf.mxu0
    %v1257 = vadd.f32 0.0, %v1256
    %v1258 = vpop.f32.mrf.mxu0
    %1259 = vmatprep.mubr.f32.mxu0 0.0
    %1260 = vmatmul.mubr.f32.gmra.mxu0 %v1170
    %v1261 = vpop.f32.mrf.mxu0
    %v1262 = vadd.f32 0.0, %v1261
    %v1263 = vpop.f32.mrf.mxu0
    %1264 = vmatprep.mubr.f32.mxu0 0.0
    %1265 = vmatmul.mubr.f32.gmra.mxu0 %v1173
    %v1266 = vpop.f32.mrf.mxu0
    %v1267 = vadd.f32 0.0, %v1266
    %v1268 = vpop.f32.mrf.mxu0
    %1269 = vmatprep.mubr.f32.mxu0 0.0
    %1270 = vmatmul.mubr.f32.gmra.mxu0 %v1176
    %v1271 = vpop.f32.mrf.mxu0
    %v1272 = vadd.f32 0.0, %v1271
    %v1273 = vpop.f32.mrf.mxu0
    %1274 = vdwg.mxu0
    %v1275 = vmul.f32 %v1257, 0.35355338
    %v1276 = vmul.f32 %v1262, 0.35355338
    %v1277 = vmul.f32 %v1267, 0.35355338
    %v1278 = vmul.f32 %v1272, 0.35355338
    %v1279 = vadd.f32 %v1275, %v235
    %v1280 = vadd.f32 %v1276, %v236
    %v1281 = vadd.f32 %v1277, %v237
    %v1282 = vadd.f32 %v1278, %v238
    %v1283 = vsel %vm157, %v1279, -inf
    %1284 = vmax.xlane.f32.xlu0 %v1283
    %v1285 = vpop.xlane.xlu0 %1284
    %v1286 = vsel %vm157, %v1280, -inf
    %1287 = vmax.xlane.f32.xlu0 %v1286
    %v1288 = vpop.xlane.xlu0 %1287
    %v1289 = vsel %vm157, %v1281, -inf
    %1290 = vmax.xlane.f32.xlu0 %v1289
    %v1291 = vpop.xlane.xlu0 %1290
    %v1292 = vsel %vm157, %v1282, -inf
    %1293 = vmax.xlane.f32.xlu0 %v1292
    %v1294 = vpop.xlane.xlu0 %1293
    %v1295 = vsub.f32 %v1279, %v1285
    %v1296 = vsub.f32 %v1280, %v1288
    %v1297 = vsub.f32 %v1281, %v1291
    %v1298 = vsub.f32 %v1282, %v1294
    %v1299 = vmul.f32 %v1295, 1.442695
    %v1300 = vpow.pop %v1299
    %v1301 = vmul.f32 %v1296, 1.442695
    %v1302 = vpow.pop %v1301
    %v1303 = vmul.f32 %v1297, 1.442695
    %v1304 = vpow.pop %v1303
    %v1305 = vmul.f32 %v1298, 1.442695
    %v1306 = vpow.pop %v1305
    %v1307 = vsel %vm157, %v1300, 0.0
    %1308 = vadd.xlane.f32.xlu0 %v1307
    %v1309 = vpop.xlane.xlu0 %1308
    %v1310 = vsel %vm157, %v1302, 0.0
    %1311 = vadd.xlane.f32.xlu0 %v1310
    %v1312 = vpop.xlane.xlu0 %1311
    %v1313 = vsel %vm157, %v1304, 0.0
    %1314 = vadd.xlane.f32.xlu0 %v1313
    %v1315 = vpop.xlane.xlu0 %1314
    %v1316 = vsel %vm157, %v1306, 0.0
    %1317 = vadd.xlane.f32.xlu0 %v1316
    %v1318 = vpop.xlane.xlu0 %1317
    %v1319 = vrcp.pop %v1309
    %v1320 = vrcp.pop %v1312
    %v1321 = vrcp.pop %v1315
    %v1322 = vrcp.pop %v1318
    %v1323 = vmul.f32 %v1300, %v1319
    %v1324 = vmul.f32 %v1302, %v1320
    %v1325 = vmul.f32 %v1304, %v1321
    %v1326 = vmul.f32 %v1306, %v1322
    %v1328 = vsel %vm157, %v1323, 0
    %v1331 = vsel %vm157, %v1324, 0
    %v1334 = vsel %vm157, %v1325, 0
    %v1337 = vsel %vm157, %v1326, 0
    %1339 = vmatprep.subr.mxu0 0.0
    %1340 = vmatpush1.msra.mxu0 0.0
    %1341 = vmatprep.subr.mxu0 0.0
    %1342 = vmatpush1.msra.mxu0 0.0
    %1343 = vmatprep.subr.mxu0 0.0
    %1344 = vmatpush1.msra.mxu0 0.0
    %1345 = vmatprep.subr.mxu0 0.0
    %1346 = vmatpush1.msra.mxu0 0.0
    %1347 = vmatprep.subr.mxu0 0.0
    %1348 = vmatpush1.msra.mxu0 0.0
    %1349 = vmatprep.subr.mxu0 0.0
    %1350 = vmatpush1.msra.mxu0 0.0
    %1351 = vmatprep.subr.mxu0 0.0
    %1352 = vmatpush1.msra.mxu0 0.0
    %1353 = vmatprep.subr.mxu0 0.0
    %1354 = vmatpush1.msra.mxu0 0.0
    %1355 = vmatprep.subr.mxu0 0.0
    %1356 = vmatpush1.msra.mxu0 0.0
    %1357 = vmatprep.subr.mxu0 0.0
    %1358 = vmatpush1.msra.mxu0 0.0
    %1359 = vmatprep.subr.mxu0 0.0
    %1360 = vmatpush1.msra.mxu0 0.0
    %1361 = vmatprep.subr.mxu0 0.0
    %1362 = vmatpush1.msra.mxu0 0.0
    %1363 = vmatprep.subr.mxu0 0.0
    %1364 = vmatpush1.msra.mxu0 %v1163
    %1365 = vmatprep.subr.mxu0 0.0
    %1366 = vmatpush1.msra.mxu0 %v1158
    %1367 = vmatprep.subr.mxu0 0.0
    %1368 = vmatpush1.msra.mxu0 %v1153
    %1369 = vmatprep.subr.mxu0 0.0
    %1370 = vmatpush1.msra.mxu0 %v1148
    %1371 = vmatprep.subr.mxu0 0.0
    %1372 = vmatpush2.msra.mxu0 0.0
    %1373 = vmatprep.subr.mxu0 0.0
    %1374 = vmatpush2.msra.mxu0 0.0
    %1375 = vmatprep.subr.mxu0 0.0
    %1376 = vmatpush2.msra.mxu0 0.0
    %1377 = vmatprep.subr.mxu0 0.0
    %1378 = vmatpush2.msra.mxu0 0.0
    %1379 = vmatprep.subr.mxu0 0.0
    %1380 = vmatpush2.msra.mxu0 0.0
    %1381 = vmatprep.subr.mxu0 0.0
    %1382 = vmatpush2.msra.mxu0 0.0
    %1383 = vmatprep.subr.mxu0 0.0
    %1384 = vmatpush2.msra.mxu0 0.0
    %1385 = vmatprep.subr.mxu0 0.0
    %1386 = vmatpush2.msra.mxu0 0.0
    %1387 = vmatprep.subr.mxu0 0.0
    %1388 = vmatpush2.msra.mxu0 0.0
    %1389 = vmatprep.subr.mxu0 0.0
    %1390 = vmatpush2.msra.mxu0 0.0
    %1391 = vmatprep.subr.mxu0 0.0
    %1392 = vmatpush2.msra.mxu0 0.0
    %1393 = vmatprep.subr.mxu0 0.0
    %1394 = vmatpush2.msra.mxu0 0.0
    %1395 = vmatprep.subr.mxu0 0.0
    %1396 = vmatpush2.msra.mxu0 0.0
    %1397 = vmatprep.subr.mxu0 0.0
    %1398 = vmatpush2.msra.mxu0 0.0
    %1399 = vmatprep.subr.mxu0 0.0
    %1400 = vmatpush2.msra.mxu0 0.0
    %1401 = vmatprep.subr.mxu0 0.0
    %1402 = vmatpush2.msra.mxu0 0.0
    %1403 = vmatprep.mubr.f32.mxu0 0.0
    %1404 = vmatmul.mubr.f32.gmra.mxu0 %v1328
    %v1405 = vpop.f32.mrf.mxu0
    %v1406 = vadd.f32 0.0, %v1405
    %v1407 = vpop.f32.mrf.mxu0
    %1408 = vmatprep.mubr.f32.mxu0 0.0
    %1409 = vmatmul.mubr.f32.gmra.mxu0 %v1331
    %v1410 = vpop.f32.mrf.mxu0
    %v1411 = vadd.f32 0.0, %v1410
    %v1412 = vpop.f32.mrf.mxu0
    %1413 = vmatprep.mubr.f32.mxu0 0.0
    %1414 = vmatmul.mubr.f32.gmra.mxu0 %v1334
    %v1415 = vpop.f32.mrf.mxu0
    %v1416 = vadd.f32 0.0, %v1415
    %v1417 = vpop.f32.mrf.mxu0
    %1418 = vmatprep.mubr.f32.mxu0 0.0
    %1419 = vmatmul.mubr.f32.gmra.mxu0 %v1337
    %v1420 = vpop.f32.mrf.mxu0
    %v1421 = vadd.f32 0.0, %v1420
    %v1422 = vpop.f32.mrf.mxu0
    %1423 = vdwg.mxu0
    %s1424 = scalar_lea.vmem %s8, 8
    %v1425 = vld [vmem:[%s1424] sm:$0xff]
    %v1427 = vsel %vm612, %v1406, 0
    %v1430 = vsel %vm612, %v1411, 0
    %v1433 = vsel %vm612, %v1416, 0
    %v1436 = vsel %vm612, %v1421, 0
    %1438 = vmatprep.subr.mxu0 0.0
    %1439 = vmatpush1.msra.mxu0 0.0
    %1440 = vmatprep.subr.mxu0 0.0
    %1441 = vmatpush1.msra.mxu0 0.0
    %1442 = vmatprep.subr.mxu0 0.0
    %1443 = vmatpush1.msra.mxu0 0.0
    %1444 = vmatprep.subr.mxu0 0.0
    %1445 = vmatpush1.msra.mxu0 0.0
    %1446 = vmatprep.subr.mxu0 0.0
    %1447 = vmatpush1.msra.mxu0 0.0
    %1448 = vmatprep.subr.mxu0 0.0
    %1449 = vmatpush1.msra.mxu0 0.0
    %1450 = vmatprep.subr.mxu0 0.0
    %1451 = vmatpush1.msra.mxu0 0.0
    %1452 = vmatprep.subr.mxu0 0.0
    %1453 = vmatpush1.msra.mxu0 0.0
    %1454 = vmatprep.subr.mxu0 0.0
    %1455 = vmatpush1.msra.mxu0 0.0
    %1456 = vmatprep.subr.mxu0 0.0
    %1457 = vmatpush1.msra.mxu0 0.0
    %1458 = vmatprep.subr.mxu0 0.0
    %1459 = vmatpush1.msra.mxu0 0.0
    %1460 = vmatprep.subr.mxu0 0.0
    %1461 = vmatpush1.msra.mxu0 0.0
    %1462 = vmatprep.subr.mxu0 0.0
    %1463 = vmatpush1.msra.mxu0 0.0
    %1464 = vmatprep.subr.mxu0 0.0
    %1465 = vmatpush1.msra.mxu0 0.0
    %1466 = vmatprep.subr.mxu0 0.0
    %1467 = vmatpush1.msra.mxu0 0.0
    %1468 = vmatprep.subr.mxu0 0.0
    %1469 = vmatpush1.msra.mxu0 %v1425
    %1470 = vmatprep.subr.mxu0 0.0
    %1471 = vmatpush2.msra.mxu0 0.0
    %1472 = vmatprep.subr.mxu0 0.0
    %1473 = vmatpush2.msra.mxu0 0.0
    %1474 = vmatprep.subr.mxu0 0.0
    %1475 = vmatpush2.msra.mxu0 0.0
    %1476 = vmatprep.subr.mxu0 0.0
    %1477 = vmatpush2.msra.mxu0 0.0
    %1478 = vmatprep.subr.mxu0 0.0
    %1479 = vmatpush2.msra.mxu0 0.0
    %1480 = vmatprep.subr.mxu0 0.0
    %1481 = vmatpush2.msra.mxu0 0.0
    %1482 = vmatprep.subr.mxu0 0.0
    %1483 = vmatpush2.msra.mxu0 0.0
    %1484 = vmatprep.subr.mxu0 0.0
    %1485 = vmatpush2.msra.mxu0 0.0
    %1486 = vmatprep.subr.mxu0 0.0
    %1487 = vmatpush2.msra.mxu0 0.0
    %1488 = vmatprep.subr.mxu0 0.0
    %1489 = vmatpush2.msra.mxu0 0.0
    %1490 = vmatprep.subr.mxu0 0.0
    %1491 = vmatpush2.msra.mxu0 0.0
    %1492 = vmatprep.subr.mxu0 0.0
    %1493 = vmatpush2.msra.mxu0 0.0
    %1494 = vmatprep.subr.mxu0 0.0
    %1495 = vmatpush2.msra.mxu0 0.0
    %1496 = vmatprep.subr.mxu0 0.0
    %1497 = vmatpush2.msra.mxu0 0.0
    %1498 = vmatprep.subr.mxu0 0.0
    %1499 = vmatpush2.msra.mxu0 0.0
    %1500 = vmatprep.subr.mxu0 0.0
    %1501 = vmatpush2.msra.mxu0 0.0
    %1502 = vmatprep.mubr.f32.mxu0 0.0
    %1503 = vmatmul.mubr.f32.gmra.mxu0 %v1427
    %v1504 = vpop.f32.mrf.mxu0
    %v1505 = vadd.f32 0.0, %v1504
    %v1506 = vpop.f32.mrf.mxu0
    %1507 = vmatprep.mubr.f32.mxu0 0.0
    %1508 = vmatmul.mubr.f32.gmra.mxu0 %v1430
    %v1509 = vpop.f32.mrf.mxu0
    %v1510 = vadd.f32 0.0, %v1509
    %v1511 = vpop.f32.mrf.mxu0
    %1512 = vmatprep.mubr.f32.mxu0 0.0
    %1513 = vmatmul.mubr.f32.gmra.mxu0 %v1433
    %v1514 = vpop.f32.mrf.mxu0
    %v1515 = vadd.f32 0.0, %v1514
    %v1516 = vpop.f32.mrf.mxu0
    %1517 = vmatprep.mubr.f32.mxu0 0.0
    %1518 = vmatmul.mubr.f32.gmra.mxu0 %v1436
    %v1519 = vpop.f32.mrf.mxu0
    %v1520 = vadd.f32 0.0, %v1519
    %v1521 = vpop.f32.mrf.mxu0
    %1522 = vdwg.mxu0
    %v1524 = vsel %vm612, %v853, 0
    %v1527 = vsel %vm612, %v858, 0
    %v1530 = vsel %vm612, %v863, 0
    %v1533 = vsel %vm612, %v868, 0
    %1535 = vmatprep.subr.mxu0 0.0
    %1536 = vmatpush1.msra.mxu0 0.0
    %1537 = vmatprep.subr.mxu0 0.0
    %1538 = vmatpush1.msra.mxu0 0.0
    %1539 = vmatprep.subr.mxu0 0.0
    %1540 = vmatpush1.msra.mxu0 0.0
    %1541 = vmatprep.subr.mxu0 0.0
    %1542 = vmatpush1.msra.mxu0 0.0
    %1543 = vmatprep.subr.mxu0 0.0
    %1544 = vmatpush1.msra.mxu0 0.0
    %1545 = vmatprep.subr.mxu0 0.0
    %1546 = vmatpush1.msra.mxu0 0.0
    %1547 = vmatprep.subr.mxu0 0.0
    %1548 = vmatpush1.msra.mxu0 0.0
    %1549 = vmatprep.subr.mxu0 0.0
    %1550 = vmatpush1.msra.mxu0 0.0
    %1551 = vmatprep.subr.mxu0 0.0
    %1552 = vmatpush1.msra.mxu0 0.0
    %1553 = vmatprep.subr.mxu0 0.0
    %1554 = vmatpush1.msra.mxu0 0.0
    %1555 = vmatprep.subr.mxu0 0.0
    %1556 = vmatpush1.msra.mxu0 0.0
    %1557 = vmatprep.subr.mxu0 0.0
    %1558 = vmatpush1.msra.mxu0 0.0
    %1559 = vmatprep.subr.mxu0 0.0
    %1560 = vmatpush1.msra.mxu0 0.0
    %1561 = vmatprep.subr.mxu0 0.0
    %1562 = vmatpush1.msra.mxu0 0.0
    %1563 = vmatprep.subr.mxu0 0.0
    %1564 = vmatpush1.msra.mxu0 0.0
    %1565 = vmatprep.subr.mxu0 0.0
    %1566 = vmatpush1.msra.mxu0 %v871
    %1567 = vmatprep.subr.mxu0 0.0
    %1568 = vmatpush2.msra.mxu0 0.0
    %1569 = vmatprep.subr.mxu0 0.0
    %1570 = vmatpush2.msra.mxu0 0.0
    %1571 = vmatprep.subr.mxu0 0.0
    %1572 = vmatpush2.msra.mxu0 0.0
    %1573 = vmatprep.subr.mxu0 0.0
    %1574 = vmatpush2.msra.mxu0 0.0
    %1575 = vmatprep.subr.mxu0 0.0
    %1576 = vmatpush2.msra.mxu0 0.0
    %1577 = vmatprep.subr.mxu0 0.0
    %1578 = vmatpush2.msra.mxu0 0.0
    %1579 = vmatprep.subr.mxu0 0.0
    %1580 = vmatpush2.msra.mxu0 0.0
    %1581 = vmatprep.subr.mxu0 0.0
    %1582 = vmatpush2.msra.mxu0 0.0
    %1583 = vmatprep.subr.mxu0 0.0
    %1584 = vmatpush2.msra.mxu0 0.0
    %1585 = vmatprep.subr.mxu0 0.0
    %1586 = vmatpush2.msra.mxu0 0.0
    %1587 = vmatprep.subr.mxu0 0.0
    %1588 = vmatpush2.msra.mxu0 0.0
    %1589 = vmatprep.subr.mxu0 0.0
    %1590 = vmatpush2.msra.mxu0 0.0
    %1591 = vmatprep.subr.mxu0 0.0
    %1592 = vmatpush2.msra.mxu0 0.0
    %1593 = vmatprep.subr.mxu0 0.0
    %1594 = vmatpush2.msra.mxu0 0.0
    %1595 = vmatprep.subr.mxu0 0.0
    %1596 = vmatpush2.msra.mxu0 0.0
    %1597 = vmatprep.subr.mxu0 0.0
    %1598 = vmatpush2.msra.mxu0 0.0
    %1599 = vmatprep.mubr.f32.mxu0 0.0
    %1600 = vmatmul.mubr.f32.gmra.mxu0 %v1524
    %v1601 = vpop.f32.mrf.mxu0
    %v1602 = vadd.f32 %v1505, %v1601
    %v1603 = vpop.f32.mrf.mxu0
    %1604 = vmatprep.mubr.f32.mxu0 0.0
    %1605 = vmatmul.mubr.f32.gmra.mxu0 %v1527
    %v1606 = vpop.f32.mrf.mxu0
    %v1607 = vadd.f32 %v1510, %v1606
    %v1608 = vpop.f32.mrf.mxu0
    %1609 = vmatprep.mubr.f32.mxu0 0.0
    %1610 = vmatmul.mubr.f32.gmra.mxu0 %v1530
    %v1611 = vpop.f32.mrf.mxu0
    %v1612 = vadd.f32 %v1515, %v1611
    %v1613 = vpop.f32.mrf.mxu0
    %1614 = vmatprep.mubr.f32.mxu0 0.0
    %1615 = vmatmul.mubr.f32.gmra.mxu0 %v1533
    %v1616 = vpop.f32.mrf.mxu0
    %v1617 = vadd.f32 %v1520, %v1616
    %v1618 = vpop.f32.mrf.mxu0
    %1619 = vdwg.mxu0
    %s1620 = scalar_lea.vmem %s6, 64
    %v1621 = vld [vmem:[%s1620] sm:$0xff]
    %v1622 = vld [vmem:[%s1620 + $0x8] sm:$0xff]
    %v1623 = vld [vmem:[%s1620 + $0x10] sm:$0xff]
    %v1624 = vld [vmem:[%s1620 + $0x18] sm:$0xff]
    %s1625 = scalar_lea.vmem %s7, 2
    %v1626 = vld [vmem:[%s1625] sm:$0x1]
    %v1628 = vlaneseq
    %v1629 = vshrl.u32 %v1628, 7
    %v1630 = vsub.s32 0, %v1629
    %v1631 = vrot.slane %v1626, %v1630
    %1633 = vmatprep.subr.mxu0 0.0
    %1634 = vmatpush1.msra.mxu0 0.0
    %1635 = vmatprep.subr.mxu0 0.0
    %1636 = vmatpush1.msra.mxu0 0.0
    %1637 = vmatprep.subr.mxu0 0.0
    %1638 = vmatpush1.msra.mxu0 0.0
    %1639 = vmatprep.subr.mxu0 0.0
    %1640 = vmatpush1.msra.mxu0 0.0
    %1641 = vmatprep.subr.mxu0 0.0
    %1642 = vmatpush1.msra.mxu0 0.0
    %1643 = vmatprep.subr.mxu0 0.0
    %1644 = vmatpush1.msra.mxu0 0.0
    %1645 = vmatprep.subr.mxu0 0.0
    %1646 = vmatpush1.msra.mxu0 0.0
    %1647 = vmatprep.subr.mxu0 0.0
    %1648 = vmatpush1.msra.mxu0 0.0
    %1649 = vmatprep.subr.mxu0 0.0
    %1650 = vmatpush1.msra.mxu0 0.0
    %1651 = vmatprep.subr.mxu0 0.0
    %1652 = vmatpush1.msra.mxu0 0.0
    %1653 = vmatprep.subr.mxu0 0.0
    %1654 = vmatpush1.msra.mxu0 0.0
    %1655 = vmatprep.subr.mxu0 0.0
    %1656 = vmatpush1.msra.mxu0 0.0
    %1657 = vmatprep.subr.mxu0 0.0
    %1658 = vmatpush1.msra.mxu0 %v1624
    %1659 = vmatprep.subr.mxu0 0.0
    %1660 = vmatpush1.msra.mxu0 %v1623
    %1661 = vmatprep.subr.mxu0 0.0
    %1662 = vmatpush1.msra.mxu0 %v1622
    %1663 = vmatprep.subr.mxu0 0.0
    %1664 = vmatpush1.msra.mxu0 %v1621
    %1665 = vmatprep.subr.mxu0 0.0
    %1666 = vmatpush2.msra.mxu0 0.0
    %1667 = vmatprep.subr.mxu0 0.0
    %1668 = vmatpush2.msra.mxu0 0.0
    %1669 = vmatprep.subr.mxu0 0.0
    %1670 = vmatpush2.msra.mxu0 0.0
    %1671 = vmatprep.subr.mxu0 0.0
    %1672 = vmatpush2.msra.mxu0 0.0
    %1673 = vmatprep.subr.mxu0 0.0
    %1674 = vmatpush2.msra.mxu0 0.0
    %1675 = vmatprep.subr.mxu0 0.0
    %1676 = vmatpush2.msra.mxu0 0.0
    %1677 = vmatprep.subr.mxu0 0.0
    %1678 = vmatpush2.msra.mxu0 0.0
    %1679 = vmatprep.subr.mxu0 0.0
    %1680 = vmatpush2.msra.mxu0 0.0
    %1681 = vmatprep.subr.mxu0 0.0
    %1682 = vmatpush2.msra.mxu0 0.0
    %1683 = vmatprep.subr.mxu0 0.0
    %1684 = vmatpush2.msra.mxu0 0.0
    %1685 = vmatprep.subr.mxu0 0.0
    %1686 = vmatpush2.msra.mxu0 0.0
    %1687 = vmatprep.subr.mxu0 0.0
    %1688 = vmatpush2.msra.mxu0 0.0
    %1689 = vmatprep.subr.mxu0 0.0
    %1690 = vmatpush2.msra.mxu0 0.0
    %1691 = vmatprep.subr.mxu0 0.0
    %1692 = vmatpush2.msra.mxu0 0.0
    %1693 = vmatprep.subr.mxu0 0.0
    %1694 = vmatpush2.msra.mxu0 0.0
    %1695 = vmatprep.subr.mxu0 0.0
    %1696 = vmatpush2.msra.mxu0 0.0
    %1697 = vmatprep.mubr.f32.mxu0 0.0
    %1698 = vmatmul.mubr.f32.gmra.mxu0 %v320
    %v1699 = vpop.f32.mrf.mxu0
    %v1700 = vadd.f32 %v1631, %v1699
    %v1701 = vpop.f32.mrf.mxu0
    %1702 = vmatprep.mubr.f32.mxu0 0.0
    %1703 = vmatmul.mubr.f32.gmra.mxu0 %v323
    %v1704 = vpop.f32.mrf.mxu0
    %v1705 = vadd.f32 %v1631, %v1704
    %v1706 = vpop.f32.mrf.mxu0
    %1707 = vmatprep.mubr.f32.mxu0 0.0
    %1708 = vmatmul.mubr.f32.gmra.mxu0 %v326
    %v1709 = vpop.f32.mrf.mxu0
    %v1710 = vadd.f32 %v1631, %v1709
    %v1711 = vpop.f32.mrf.mxu0
    %1712 = vmatprep.mubr.f32.mxu0 0.0
    %1713 = vmatmul.mubr.f32.gmra.mxu0 %v329
    %v1714 = vpop.f32.mrf.mxu0
    %v1715 = vadd.f32 %v1631, %v1714
    %v1716 = vpop.f32.mrf.mxu0
    %1717 = vdwg.mxu0
    %s1718 = scalar_lea.vmem %s6, 192
    %v1719 = vld [vmem:[%s1718] sm:$0xff]
    %v1720 = vld [vmem:[%s1718 + $0x8] sm:$0xff]
    %v1721 = vld [vmem:[%s1718 + $0x10] sm:$0xff]
    %v1722 = vld [vmem:[%s1718 + $0x18] sm:$0xff]
    %s1723 = scalar_lea.vmem %s7, 6
    %v1724 = vld [vmem:[%s1723] sm:$0x1]
    %v1726 = vlaneseq
    %v1727 = vshrl.u32 %v1726, 7
    %v1728 = vsub.s32 0, %v1727
    %v1729 = vrot.slane %v1724, %v1728
    %1731 = vmatprep.subr.mxu0 0.0
    %1732 = vmatpush1.msra.mxu0 0.0
    %1733 = vmatprep.subr.mxu0 0.0
    %1734 = vmatpush1.msra.mxu0 0.0
    %1735 = vmatprep.subr.mxu0 0.0
    %1736 = vmatpush1.msra.mxu0 0.0
    %1737 = vmatprep.subr.mxu0 0.0
    %1738 = vmatpush1.msra.mxu0 0.0
    %1739 = vmatprep.subr.mxu0 0.0
    %1740 = vmatpush1.msra.mxu0 0.0
    %1741 = vmatprep.subr.mxu0 0.0
    %1742 = vmatpush1.msra.mxu0 0.0
    %1743 = vmatprep.subr.mxu0 0.0
    %1744 = vmatpush1.msra.mxu0 0.0
    %1745 = vmatprep.subr.mxu0 0.0
    %1746 = vmatpush1.msra.mxu0 0.0
    %1747 = vmatprep.subr.mxu0 0.0
    %1748 = vmatpush1.msra.mxu0 0.0
    %1749 = vmatprep.subr.mxu0 0.0
    %1750 = vmatpush1.msra.mxu0 0.0
    %1751 = vmatprep.subr.mxu0 0.0
    %1752 = vmatpush1.msra.mxu0 0.0
    %1753 = vmatprep.subr.mxu0 0.0
    %1754 = vmatpush1.msra.mxu0 0.0
    %1755 = vmatprep.subr.mxu0 0.0
    %1756 = vmatpush1.msra.mxu0 %v1722
    %1757 = vmatprep.subr.mxu0 0.0
    %1758 = vmatpush1.msra.mxu0 %v1721
    %1759 = vmatprep.subr.mxu0 0.0
    %1760 = vmatpush1.msra.mxu0 %v1720
    %1761 = vmatprep.subr.mxu0 0.0
    %1762 = vmatpush1.msra.mxu0 %v1719
    %1763 = vmatprep.subr.mxu0 0.0
    %1764 = vmatpush2.msra.mxu0 0.0
    %1765 = vmatprep.subr.mxu0 0.0
    %1766 = vmatpush2.msra.mxu0 0.0
    %1767 = vmatprep.subr.mxu0 0.0
    %1768 = vmatpush2.msra.mxu0 0.0
    %1769 = vmatprep.subr.mxu0 0.0
    %1770 = vmatpush2.msra.mxu0 0.0
    %1771 = vmatprep.subr.mxu0 0.0
    %1772 = vmatpush2.msra.mxu0 0.0
    %1773 = vmatprep.subr.mxu0 0.0
    %1774 = vmatpush2.msra.mxu0 0.0
    %1775 = vmatprep.subr.mxu0 0.0
    %1776 = vmatpush2.msra.mxu0 0.0
    %1777 = vmatprep.subr.mxu0 0.0
    %1778 = vmatpush2.msra.mxu0 0.0
    %1779 = vmatprep.subr.mxu0 0.0
    %1780 = vmatpush2.msra.mxu0 0.0
    %1781 = vmatprep.subr.mxu0 0.0
    %1782 = vmatpush2.msra.mxu0 0.0
    %1783 = vmatprep.subr.mxu0 0.0
    %1784 = vmatpush2.msra.mxu0 0.0
    %1785 = vmatprep.subr.mxu0 0.0
    %1786 = vmatpush2.msra.mxu0 0.0
    %1787 = vmatprep.subr.mxu0 0.0
    %1788 = vmatpush2.msra.mxu0 0.0
    %1789 = vmatprep.subr.mxu0 0.0
    %1790 = vmatpush2.msra.mxu0 0.0
    %1791 = vmatprep.subr.mxu0 0.0
    %1792 = vmatpush2.msra.mxu0 0.0
    %1793 = vmatprep.subr.mxu0 0.0
    %1794 = vmatpush2.msra.mxu0 0.0
    %1795 = vmatprep.mubr.f32.mxu0 0.0
    %1796 = vmatmul.mubr.f32.gmra.mxu0 %v320
    %v1797 = vpop.f32.mrf.mxu0
    %v1798 = vadd.f32 %v1729, %v1797
    %v1799 = vpop.f32.mrf.mxu0
    %1800 = vmatprep.mubr.f32.mxu0 0.0
    %1801 = vmatmul.mubr.f32.gmra.mxu0 %v323
    %v1802 = vpop.f32.mrf.mxu0
    %v1803 = vadd.f32 %v1729, %v1802
    %v1804 = vpop.f32.mrf.mxu0
    %1805 = vmatprep.mubr.f32.mxu0 0.0
    %1806 = vmatmul.mubr.f32.gmra.mxu0 %v326
    %v1807 = vpop.f32.mrf.mxu0
    %v1808 = vadd.f32 %v1729, %v1807
    %v1809 = vpop.f32.mrf.mxu0
    %1810 = vmatprep.mubr.f32.mxu0 0.0
    %1811 = vmatmul.mubr.f32.gmra.mxu0 %v329
    %v1812 = vpop.f32.mrf.mxu0
    %v1813 = vadd.f32 %v1729, %v1812
    %v1814 = vpop.f32.mrf.mxu0
    %1815 = vdwg.mxu0
    %s1816 = scalar_lea.vmem %s6, 320
    %v1817 = vld [vmem:[%s1816] sm:$0xff]
    %v1818 = vld [vmem:[%s1816 + $0x8] sm:$0xff]
    %v1819 = vld [vmem:[%s1816 + $0x10] sm:$0xff]
    %v1820 = vld [vmem:[%s1816 + $0x18] sm:$0xff]
    %s1821 = scalar_lea.vmem %s7, 10
    %v1822 = vld [vmem:[%s1821] sm:$0x1]
    %v1824 = vlaneseq
    %v1825 = vshrl.u32 %v1824, 7
    %v1826 = vsub.s32 0, %v1825
    %v1827 = vrot.slane %v1822, %v1826
    %1829 = vmatprep.subr.mxu0 0.0
    %1830 = vmatpush1.msra.mxu0 0.0
    %1831 = vmatprep.subr.mxu0 0.0
    %1832 = vmatpush1.msra.mxu0 0.0
    %1833 = vmatprep.subr.mxu0 0.0
    %1834 = vmatpush1.msra.mxu0 0.0
    %1835 = vmatprep.subr.mxu0 0.0
    %1836 = vmatpush1.msra.mxu0 0.0
    %1837 = vmatprep.subr.mxu0 0.0
    %1838 = vmatpush1.msra.mxu0 0.0
    %1839 = vmatprep.subr.mxu0 0.0
    %1840 = vmatpush1.msra.mxu0 0.0
    %1841 = vmatprep.subr.mxu0 0.0
    %1842 = vmatpush1.msra.mxu0 0.0
    %1843 = vmatprep.subr.mxu0 0.0
    %1844 = vmatpush1.msra.mxu0 0.0
    %1845 = vmatprep.subr.mxu0 0.0
    %1846 = vmatpush1.msra.mxu0 0.0
    %1847 = vmatprep.subr.mxu0 0.0
    %1848 = vmatpush1.msra.mxu0 0.0
    %1849 = vmatprep.subr.mxu0 0.0
    %1850 = vmatpush1.msra.mxu0 0.0
    %1851 = vmatprep.subr.mxu0 0.0
    %1852 = vmatpush1.msra.mxu0 0.0
    %1853 = vmatprep.subr.mxu0 0.0
    %1854 = vmatpush1.msra.mxu0 %v1820
    %1855 = vmatprep.subr.mxu0 0.0
    %1856 = vmatpush1.msra.mxu0 %v1819
    %1857 = vmatprep.subr.mxu0 0.0
    %1858 = vmatpush1.msra.mxu0 %v1818
    %1859 = vmatprep.subr.mxu0 0.0
    %1860 = vmatpush1.msra.mxu0 %v1817
    %1861 = vmatprep.subr.mxu0 0.0
    %1862 = vmatpush2.msra.mxu0 0.0
    %1863 = vmatprep.subr.mxu0 0.0
    %1864 = vmatpush2.msra.mxu0 0.0
    %1865 = vmatprep.subr.mxu0 0.0
    %1866 = vmatpush2.msra.mxu0 0.0
    %1867 = vmatprep.subr.mxu0 0.0
    %1868 = vmatpush2.msra.mxu0 0.0
    %1869 = vmatprep.subr.mxu0 0.0
    %1870 = vmatpush2.msra.mxu0 0.0
    %1871 = vmatprep.subr.mxu0 0.0
    %1872 = vmatpush2.msra.mxu0 0.0
    %1873 = vmatprep.subr.mxu0 0.0
    %1874 = vmatpush2.msra.mxu0 0.0
    %1875 = vmatprep.subr.mxu0 0.0
    %1876 = vmatpush2.msra.mxu0 0.0
    %1877 = vmatprep.subr.mxu0 0.0
    %1878 = vmatpush2.msra.mxu0 0.0
    %1879 = vmatprep.subr.mxu0 0.0
    %1880 = vmatpush2.msra.mxu0 0.0
    %1881 = vmatprep.subr.mxu0 0.0
    %1882 = vmatpush2.msra.mxu0 0.0
    %1883 = vmatprep.subr.mxu0 0.0
    %1884 = vmatpush2.msra.mxu0 0.0
    %1885 = vmatprep.subr.mxu0 0.0
    %1886 = vmatpush2.msra.mxu0 0.0
    %1887 = vmatprep.subr.mxu0 0.0
    %1888 = vmatpush2.msra.mxu0 0.0
    %1889 = vmatprep.subr.mxu0 0.0
    %1890 = vmatpush2.msra.mxu0 0.0
    %1891 = vmatprep.subr.mxu0 0.0
    %1892 = vmatpush2.msra.mxu0 0.0
    %1893 = vmatprep.mubr.f32.mxu0 0.0
    %1894 = vmatmul.mubr.f32.gmra.mxu0 %v320
    %v1895 = vpop.f32.mrf.mxu0
    %v1896 = vadd.f32 %v1827, %v1895
    %v1897 = vpop.f32.mrf.mxu0
    %1898 = vmatprep.mubr.f32.mxu0 0.0
    %1899 = vmatmul.mubr.f32.gmra.mxu0 %v323
    %v1900 = vpop.f32.mrf.mxu0
    %v1901 = vadd.f32 %v1827, %v1900
    %v1902 = vpop.f32.mrf.mxu0
    %1903 = vmatprep.mubr.f32.mxu0 0.0
    %1904 = vmatmul.mubr.f32.gmra.mxu0 %v326
    %v1905 = vpop.f32.mrf.mxu0
    %v1906 = vadd.f32 %v1827, %v1905
    %v1907 = vpop.f32.mrf.mxu0
    %1908 = vmatprep.mubr.f32.mxu0 0.0
    %1909 = vmatmul.mubr.f32.gmra.mxu0 %v329
    %v1910 = vpop.f32.mrf.mxu0
    %v1911 = vadd.f32 %v1827, %v1910
    %v1912 = vpop.f32.mrf.mxu0
    %1913 = vdwg.mxu0
    %v1915 = vsel %vm612, %v1700, 0
    %v1918 = vsel %vm612, %v1705, 0
    %v1921 = vsel %vm612, %v1710, 0
    %v1924 = vsel %vm612, %v1715, 0
    %v1927 = vsel %vm612, %v1798, 0
    %v1930 = vsel %vm612, %v1803, 0
    %v1933 = vsel %vm612, %v1808, 0
    %v1936 = vsel %vm612, %v1813, 0
    %1938 = vmatprep.subr.mxu0 0.0
    %1939 = vmatpush1.xpose.msra.mxu0 0.0
    %1940 = vmatprep.subr.mxu0 0.0
    %1941 = vmatpush1.xpose.msra.mxu0 0.0
    %1942 = vmatprep.subr.mxu0 0.0
    %1943 = vmatpush1.xpose.msra.mxu0 0.0
    %1944 = vmatprep.subr.mxu0 0.0
    %1945 = vmatpush1.xpose.msra.mxu0 0.0
    %1946 = vmatprep.subr.mxu0 0.0
    %1947 = vmatpush1.xpose.msra.mxu0 0.0
    %1948 = vmatprep.subr.mxu0 0.0
    %1949 = vmatpush1.xpose.msra.mxu0 0.0
    %1950 = vmatprep.subr.mxu0 0.0
    %1951 = vmatpush1.xpose.msra.mxu0 0.0
    %1952 = vmatprep.subr.mxu0 0.0
    %1953 = vmatpush1.xpose.msra.mxu0 0.0
    %1954 = vmatprep.subr.mxu0 0.0
    %1955 = vmatpush1.xpose.msra.mxu0 0.0
    %1956 = vmatprep.subr.mxu0 0.0
    %1957 = vmatpush1.xpose.msra.mxu0 0.0
    %1958 = vmatprep.subr.mxu0 0.0
    %1959 = vmatpush1.xpose.msra.mxu0 0.0
    %1960 = vmatprep.subr.mxu0 0.0
    %1961 = vmatpush1.xpose.msra.mxu0 0.0
    %1962 = vmatprep.subr.mxu0 0.0
    %1963 = vmatpush1.xpose.msra.mxu0 %v1936
    %1964 = vmatprep.subr.mxu0 0.0
    %1965 = vmatpush1.xpose.msra.mxu0 %v1933
    %1966 = vmatprep.subr.mxu0 0.0
    %1967 = vmatpush1.xpose.msra.mxu0 %v1930
    %1968 = vmatprep.subr.mxu0 0.0
    %1969 = vmatpush1.xpose.msra.mxu0 %v1927
    %1970 = vmatprep.subr.mxu0 0.0
    %1971 = vmatpush2.xpose.msra.mxu0 0.0
    %1972 = vmatprep.subr.mxu0 0.0
    %1973 = vmatpush2.xpose.msra.mxu0 0.0
    %1974 = vmatprep.subr.mxu0 0.0
    %1975 = vmatpush2.xpose.msra.mxu0 0.0
    %1976 = vmatprep.subr.mxu0 0.0
    %1977 = vmatpush2.xpose.msra.mxu0 0.0
    %1978 = vmatprep.subr.mxu0 0.0
    %1979 = vmatpush2.xpose.msra.mxu0 0.0
    %1980 = vmatprep.subr.mxu0 0.0
    %1981 = vmatpush2.xpose.msra.mxu0 0.0
    %1982 = vmatprep.subr.mxu0 0.0
    %1983 = vmatpush2.xpose.msra.mxu0 0.0
    %1984 = vmatprep.subr.mxu0 0.0
    %1985 = vmatpush2.xpose.msra.mxu0 0.0
    %1986 = vmatprep.subr.mxu0 0.0
    %1987 = vmatpush2.xpose.msra.mxu0 0.0
    %1988 = vmatprep.subr.mxu0 0.0
    %1989 = vmatpush2.xpose.msra.mxu0 0.0
    %1990 = vmatprep.subr.mxu0 0.0
    %1991 = vmatpush2.xpose.msra.mxu0 0.0
    %1992 = vmatprep.subr.mxu0 0.0
    %1993 = vmatpush2.xpose.msra.mxu0 0.0
    %1994 = vmatprep.subr.mxu0 0.0
    %1995 = vmatpush2.xpose.msra.mxu0 0.0
    %1996 = vmatprep.subr.mxu0 0.0
    %1997 = vmatpush2.xpose.msra.mxu0 0.0
    %1998 = vmatprep.subr.mxu0 0.0
    %1999 = vmatpush2.xpose.msra.mxu0 0.0
    %2000 = vmatprep.subr.mxu0 0.0
    %2001 = vmatpush2.xpose.msra.mxu0 0.0
    %2002 = vmatprep.mubr.f32.mxu0 0.0
    %2003 = vmatmul.mubr.f32.gmra.mxu0 %v1915
    %v2004 = vpop.f32.mrf.mxu0
    %v2005 = vadd.f32 0.0, %v2004
    %v2006 = vpop.f32.mrf.mxu0
    %2007 = vmatprep.mubr.f32.mxu0 0.0
    %2008 = vmatmul.mubr.f32.gmra.mxu0 %v1918
    %v2009 = vpop.f32.mrf.mxu0
    %v2010 = vadd.f32 0.0, %v2009
    %v2011 = vpop.f32.mrf.mxu0
    %2012 = vmatprep.mubr.f32.mxu0 0.0
    %2013 = vmatmul.mubr.f32.gmra.mxu0 %v1921
    %v2014 = vpop.f32.mrf.mxu0
    %v2015 = vadd.f32 0.0, %v2014
    %v2016 = vpop.f32.mrf.mxu0
    %2017 = vmatprep.mubr.f32.mxu0 0.0
    %2018 = vmatmul.mubr.f32.gmra.mxu0 %v1924
    %v2019 = vpop.f32.mrf.mxu0
    %v2020 = vadd.f32 0.0, %v2019
    %v2021 = vpop.f32.mrf.mxu0
    %2022 = vdwg.mxu0
    %v2023 = vmul.f32 %v2005, 0.35355338
    %v2024 = vmul.f32 %v2010, 0.35355338
    %v2025 = vmul.f32 %v2015, 0.35355338
    %v2026 = vmul.f32 %v2020, 0.35355338
    %v2027 = vadd.f32 %v2023, %v235
    %v2028 = vadd.f32 %v2024, %v236
    %v2029 = vadd.f32 %v2025, %v237
    %v2030 = vadd.f32 %v2026, %v238
    %v2031 = vsel %vm157, %v2027, -inf
    %2032 = vmax.xlane.f32.xlu0 %v2031
    %v2033 = vpop.xlane.xlu0 %2032
    %v2034 = vsel %vm157, %v2028, -inf
    %2035 = vmax.xlane.f32.xlu0 %v2034
    %v2036 = vpop.xlane.xlu0 %2035
    %v2037 = vsel %vm157, %v2029, -inf
    %2038 = vmax.xlane.f32.xlu0 %v2037
    %v2039 = vpop.xlane.xlu0 %2038
    %v2040 = vsel %vm157, %v2030, -inf
    %2041 = vmax.xlane.f32.xlu0 %v2040
    %v2042 = vpop.xlane.xlu0 %2041
    %v2043 = vsub.f32 %v2027, %v2033
    %v2044 = vsub.f32 %v2028, %v2036
    %v2045 = vsub.f32 %v2029, %v2039
    %v2046 = vsub.f32 %v2030, %v2042
    %v2047 = vmul.f32 %v2043, 1.442695
    %v2048 = vpow.pop %v2047
    %v2049 = vmul.f32 %v2044, 1.442695
    %v2050 = vpow.pop %v2049
    %v2051 = vmul.f32 %v2045, 1.442695
    %v2052 = vpow.pop %v2051
    %v2053 = vmul.f32 %v2046, 1.442695
    %v2054 = vpow.pop %v2053
    %v2055 = vsel %vm157, %v2048, 0.0
    %2056 = vadd.xlane.f32.xlu0 %v2055
    %v2057 = vpop.xlane.xlu0 %2056
    %v2058 = vsel %vm157, %v2050, 0.0
    %2059 = vadd.xlane.f32.xlu0 %v2058
    %v2060 = vpop.xlane.xlu0 %2059
    %v2061 = vsel %vm157, %v2052, 0.0
    %2062 = vadd.xlane.f32.xlu0 %v2061
    %v2063 = vpop.xlane.xlu0 %2062
    %v2064 = vsel %vm157, %v2054, 0.0
    %2065 = vadd.xlane.f32.xlu0 %v2064
    %v2066 = vpop.xlane.xlu0 %2065
    %v2067 = vrcp.pop %v2057
    %v2068 = vrcp.pop %v2060
    %v2069 = vrcp.pop %v2063
    %v2070 = vrcp.pop %v2066
    %v2071 = vmul.f32 %v2048, %v2067
    %v2072 = vmul.f32 %v2050, %v2068
    %v2073 = vmul.f32 %v2052, %v2069
    %v2074 = vmul.f32 %v2054, %v2070
    %v2076 = vsel %vm157, %v2071, 0
    %v2079 = vsel %vm157, %v2072, 0
    %v2082 = vsel %vm157, %v2073, 0
    %v2085 = vsel %vm157, %v2074, 0
    %2087 = vmatprep.subr.mxu0 0.0
    %2088 = vmatpush1.msra.mxu0 0.0
    %2089 = vmatprep.subr.mxu0 0.0
    %2090 = vmatpush1.msra.mxu0 0.0
    %2091 = vmatprep.subr.mxu0 0.0
    %2092 = vmatpush1.msra.mxu0 0.0
    %2093 = vmatprep.subr.mxu0 0.0
    %2094 = vmatpush1.msra.mxu0 0.0
    %2095 = vmatprep.subr.mxu0 0.0
    %2096 = vmatpush1.msra.mxu0 0.0
    %2097 = vmatprep.subr.mxu0 0.0
    %2098 = vmatpush1.msra.mxu0 0.0
    %2099 = vmatprep.subr.mxu0 0.0
    %2100 = vmatpush1.msra.mxu0 0.0
    %2101 = vmatprep.subr.mxu0 0.0
    %2102 = vmatpush1.msra.mxu0 0.0
    %2103 = vmatprep.subr.mxu0 0.0
    %2104 = vmatpush1.msra.mxu0 0.0
    %2105 = vmatprep.subr.mxu0 0.0
    %2106 = vmatpush1.msra.mxu0 0.0
    %2107 = vmatprep.subr.mxu0 0.0
    %2108 = vmatpush1.msra.mxu0 0.0
    %2109 = vmatprep.subr.mxu0 0.0
    %2110 = vmatpush1.msra.mxu0 0.0
    %2111 = vmatprep.subr.mxu0 0.0
    %2112 = vmatpush1.msra.mxu0 %v1911
    %2113 = vmatprep.subr.mxu0 0.0
    %2114 = vmatpush1.msra.mxu0 %v1906
    %2115 = vmatprep.subr.mxu0 0.0
    %2116 = vmatpush1.msra.mxu0 %v1901
    %2117 = vmatprep.subr.mxu0 0.0
    %2118 = vmatpush1.msra.mxu0 %v1896
    %2119 = vmatprep.subr.mxu0 0.0
    %2120 = vmatpush2.msra.mxu0 0.0
    %2121 = vmatprep.subr.mxu0 0.0
    %2122 = vmatpush2.msra.mxu0 0.0
    %2123 = vmatprep.subr.mxu0 0.0
    %2124 = vmatpush2.msra.mxu0 0.0
    %2125 = vmatprep.subr.mxu0 0.0
    %2126 = vmatpush2.msra.mxu0 0.0
    %2127 = vmatprep.subr.mxu0 0.0
    %2128 = vmatpush2.msra.mxu0 0.0
    %2129 = vmatprep.subr.mxu0 0.0
    %2130 = vmatpush2.msra.mxu0 0.0
    %2131 = vmatprep.subr.mxu0 0.0
    %2132 = vmatpush2.msra.mxu0 0.0
    %2133 = vmatprep.subr.mxu0 0.0
    %2134 = vmatpush2.msra.mxu0 0.0
    %2135 = vmatprep.subr.mxu0 0.0
    %2136 = vmatpush2.msra.mxu0 0.0
    %2137 = vmatprep.subr.mxu0 0.0
    %2138 = vmatpush2.msra.mxu0 0.0
    %2139 = vmatprep.subr.mxu0 0.0
    %2140 = vmatpush2.msra.mxu0 0.0
    %2141 = vmatprep.subr.mxu0 0.0
    %2142 = vmatpush2.msra.mxu0 0.0
    %2143 = vmatprep.subr.mxu0 0.0
    %2144 = vmatpush2.msra.mxu0 0.0
    %2145 = vmatprep.subr.mxu0 0.0
    %2146 = vmatpush2.msra.mxu0 0.0
    %2147 = vmatprep.subr.mxu0 0.0
    %2148 = vmatpush2.msra.mxu0 0.0
    %2149 = vmatprep.subr.mxu0 0.0
    %2150 = vmatpush2.msra.mxu0 0.0
    %2151 = vmatprep.mubr.f32.mxu0 0.0
    %2152 = vmatmul.mubr.f32.gmra.mxu0 %v2076
    %v2153 = vpop.f32.mrf.mxu0
    %v2154 = vadd.f32 0.0, %v2153
    %v2155 = vpop.f32.mrf.mxu0
    %2156 = vmatprep.mubr.f32.mxu0 0.0
    %2157 = vmatmul.mubr.f32.gmra.mxu0 %v2079
    %v2158 = vpop.f32.mrf.mxu0
    %v2159 = vadd.f32 0.0, %v2158
    %v2160 = vpop.f32.mrf.mxu0
    %2161 = vmatprep.mubr.f32.mxu0 0.0
    %2162 = vmatmul.mubr.f32.gmra.mxu0 %v2082
    %v2163 = vpop.f32.mrf.mxu0
    %v2164 = vadd.f32 0.0, %v2163
    %v2165 = vpop.f32.mrf.mxu0
    %2166 = vmatprep.mubr.f32.mxu0 0.0
    %2167 = vmatmul.mubr.f32.gmra.mxu0 %v2085
    %v2168 = vpop.f32.mrf.mxu0
    %v2169 = vadd.f32 0.0, %v2168
    %v2170 = vpop.f32.mrf.mxu0
    %2171 = vdwg.mxu0
    %s2172 = scalar_lea.vmem %s8, 16
    %v2173 = vld [vmem:[%s2172] sm:$0xff]
    %v2175 = vsel %vm612, %v2154, 0
    %v2178 = vsel %vm612, %v2159, 0
    %v2181 = vsel %vm612, %v2164, 0
    %v2184 = vsel %vm612, %v2169, 0
    %2186 = vmatprep.subr.mxu0 0.0
    %2187 = vmatpush1.msra.mxu0 0.0
    %2188 = vmatprep.subr.mxu0 0.0
    %2189 = vmatpush1.msra.mxu0 0.0
    %2190 = vmatprep.subr.mxu0 0.0
    %2191 = vmatpush1.msra.mxu0 0.0
    %2192 = vmatprep.subr.mxu0 0.0
    %2193 = vmatpush1.msra.mxu0 0.0
    %2194 = vmatprep.subr.mxu0 0.0
    %2195 = vmatpush1.msra.mxu0 0.0
    %2196 = vmatprep.subr.mxu0 0.0
    %2197 = vmatpush1.msra.mxu0 0.0
    %2198 = vmatprep.subr.mxu0 0.0
    %2199 = vmatpush1.msra.mxu0 0.0
    %2200 = vmatprep.subr.mxu0 0.0
    %2201 = vmatpush1.msra.mxu0 0.0
    %2202 = vmatprep.subr.mxu0 0.0
    %2203 = vmatpush1.msra.mxu0 0.0
    %2204 = vmatprep.subr.mxu0 0.0
    %2205 = vmatpush1.msra.mxu0 0.0
    %2206 = vmatprep.subr.mxu0 0.0
    %2207 = vmatpush1.msra.mxu0 0.0
    %2208 = vmatprep.subr.mxu0 0.0
    %2209 = vmatpush1.msra.mxu0 0.0
    %2210 = vmatprep.subr.mxu0 0.0
    %2211 = vmatpush1.msra.mxu0 0.0
    %2212 = vmatprep.subr.mxu0 0.0
    %2213 = vmatpush1.msra.mxu0 0.0
    %2214 = vmatprep.subr.mxu0 0.0
    %2215 = vmatpush1.msra.mxu0 0.0
    %2216 = vmatprep.subr.mxu0 0.0
    %2217 = vmatpush1.msra.mxu0 %v2173
    %2218 = vmatprep.subr.mxu0 0.0
    %2219 = vmatpush2.msra.mxu0 0.0
    %2220 = vmatprep.subr.mxu0 0.0
    %2221 = vmatpush2.msra.mxu0 0.0
    %2222 = vmatprep.subr.mxu0 0.0
    %2223 = vmatpush2.msra.mxu0 0.0
    %2224 = vmatprep.subr.mxu0 0.0
    %2225 = vmatpush2.msra.mxu0 0.0
    %2226 = vmatprep.subr.mxu0 0.0
    %2227 = vmatpush2.msra.mxu0 0.0
    %2228 = vmatprep.subr.mxu0 0.0
    %2229 = vmatpush2.msra.mxu0 0.0
    %2230 = vmatprep.subr.mxu0 0.0
    %2231 = vmatpush2.msra.mxu0 0.0
    %2232 = vmatprep.subr.mxu0 0.0
    %2233 = vmatpush2.msra.mxu0 0.0
    %2234 = vmatprep.subr.mxu0 0.0
    %2235 = vmatpush2.msra.mxu0 0.0
    %2236 = vmatprep.subr.mxu0 0.0
    %2237 = vmatpush2.msra.mxu0 0.0
    %2238 = vmatprep.subr.mxu0 0.0
    %2239 = vmatpush2.msra.mxu0 0.0
    %2240 = vmatprep.subr.mxu0 0.0
    %2241 = vmatpush2.msra.mxu0 0.0
    %2242 = vmatprep.subr.mxu0 0.0
    %2243 = vmatpush2.msra.mxu0 0.0
    %2244 = vmatprep.subr.mxu0 0.0
    %2245 = vmatpush2.msra.mxu0 0.0
    %2246 = vmatprep.subr.mxu0 0.0
    %2247 = vmatpush2.msra.mxu0 0.0
    %2248 = vmatprep.subr.mxu0 0.0
    %2249 = vmatpush2.msra.mxu0 0.0
    %2250 = vmatprep.mubr.f32.mxu0 0.0
    %2251 = vmatmul.mubr.f32.gmra.mxu0 %v2175
    %v2252 = vpop.f32.mrf.mxu0
    %v2253 = vadd.f32 0.0, %v2252
    %v2254 = vpop.f32.mrf.mxu0
    %2255 = vmatprep.mubr.f32.mxu0 0.0
    %2256 = vmatmul.mubr.f32.gmra.mxu0 %v2178
    %v2257 = vpop.f32.mrf.mxu0
    %v2258 = vadd.f32 0.0, %v2257
    %v2259 = vpop.f32.mrf.mxu0
    %2260 = vmatprep.mubr.f32.mxu0 0.0
    %2261 = vmatmul.mubr.f32.gmra.mxu0 %v2181
    %v2262 = vpop.f32.mrf.mxu0
    %v2263 = vadd.f32 0.0, %v2262
    %v2264 = vpop.f32.mrf.mxu0
    %2265 = vmatprep.mubr.f32.mxu0 0.0
    %2266 = vmatmul.mubr.f32.gmra.mxu0 %v2184
    %v2267 = vpop.f32.mrf.mxu0
    %v2268 = vadd.f32 0.0, %v2267
    %v2269 = vpop.f32.mrf.mxu0
    %2270 = vdwg.mxu0
    %v2271 = vadd.f32 %v1602, %v2253
    %v2272 = vadd.f32 %v1607, %v2258
    %v2273 = vadd.f32 %v1612, %v2263
    %v2274 = vadd.f32 %v1617, %v2268
    %s2275 = scalar_lea.vmem %s6, 96
    %v2276 = vld [vmem:[%s2275] sm:$0xff]
    %v2277 = vld [vmem:[%s2275 + $0x8] sm:$0xff]
    %v2278 = vld [vmem:[%s2275 + $0x10] sm:$0xff]
    %v2279 = vld [vmem:[%s2275 + $0x18] sm:$0xff]
    %s2280 = scalar_lea.vmem %s7, 3
    %v2281 = vld [vmem:[%s2280] sm:$0x1]
    %v2283 = vlaneseq
    %v2284 = vshrl.u32 %v2283, 7
    %v2285 = vsub.s32 0, %v2284
    %v2286 = vrot.slane %v2281, %v2285
    %2288 = vmatprep.subr.mxu0 0.0
    %2289 = vmatpush1.msra.mxu0 0.0
    %2290 = vmatprep.subr.mxu0 0.0
    %2291 = vmatpush1.msra.mxu0 0.0
    %2292 = vmatprep.subr.mxu0 0.0
    %2293 = vmatpush1.msra.mxu0 0.0
    %2294 = vmatprep.subr.mxu0 0.0
    %2295 = vmatpush1.msra.mxu0 0.0
    %2296 = vmatprep.subr.mxu0 0.0
    %2297 = vmatpush1.msra.mxu0 0.0
    %2298 = vmatprep.subr.mxu0 0.0
    %2299 = vmatpush1.msra.mxu0 0.0
    %2300 = vmatprep.subr.mxu0 0.0
    %2301 = vmatpush1.msra.mxu0 0.0
    %2302 = vmatprep.subr.mxu0 0.0
    %2303 = vmatpush1.msra.mxu0 0.0
    %2304 = vmatprep.subr.mxu0 0.0
    %2305 = vmatpush1.msra.mxu0 0.0
    %2306 = vmatprep.subr.mxu0 0.0
    %2307 = vmatpush1.msra.mxu0 0.0
    %2308 = vmatprep.subr.mxu0 0.0
    %2309 = vmatpush1.msra.mxu0 0.0
    %2310 = vmatprep.subr.mxu0 0.0
    %2311 = vmatpush1.msra.mxu0 0.0
    %2312 = vmatprep.subr.mxu0 0.0
    %2313 = vmatpush1.msra.mxu0 %v2279
    %2314 = vmatprep.subr.mxu0 0.0
    %2315 = vmatpush1.msra.mxu0 %v2278
    %2316 = vmatprep.subr.mxu0 0.0
    %2317 = vmatpush1.msra.mxu0 %v2277
    %2318 = vmatprep.subr.mxu0 0.0
    %2319 = vmatpush1.msra.mxu0 %v2276
    %2320 = vmatprep.subr.mxu0 0.0
    %2321 = vmatpush2.msra.mxu0 0.0
    %2322 = vmatprep.subr.mxu0 0.0
    %2323 = vmatpush2.msra.mxu0 0.0
    %2324 = vmatprep.subr.mxu0 0.0
    %2325 = vmatpush2.msra.mxu0 0.0
    %2326 = vmatprep.subr.mxu0 0.0
    %2327 = vmatpush2.msra.mxu0 0.0
    %2328 = vmatprep.subr.mxu0 0.0
    %2329 = vmatpush2.msra.mxu0 0.0
    %2330 = vmatprep.subr.mxu0 0.0
    %2331 = vmatpush2.msra.mxu0 0.0
    %2332 = vmatprep.subr.mxu0 0.0
    %2333 = vmatpush2.msra.mxu0 0.0
    %2334 = vmatprep.subr.mxu0 0.0
    %2335 = vmatpush2.msra.mxu0 0.0
    %2336 = vmatprep.subr.mxu0 0.0
    %2337 = vmatpush2.msra.mxu0 0.0
    %2338 = vmatprep.subr.mxu0 0.0
    %2339 = vmatpush2.msra.mxu0 0.0
    %2340 = vmatprep.subr.mxu0 0.0
    %2341 = vmatpush2.msra.mxu0 0.0
    %2342 = vmatprep.subr.mxu0 0.0
    %2343 = vmatpush2.msra.mxu0 0.0
    %2344 = vmatprep.subr.mxu0 0.0
    %2345 = vmatpush2.msra.mxu0 0.0
    %2346 = vmatprep.subr.mxu0 0.0
    %2347 = vmatpush2.msra.mxu0 0.0
    %2348 = vmatprep.subr.mxu0 0.0
    %2349 = vmatpush2.msra.mxu0 0.0
    %2350 = vmatprep.subr.mxu0 0.0
    %2351 = vmatpush2.msra.mxu0 0.0
    %2352 = vmatprep.mubr.f32.mxu0 0.0
    %2353 = vmatmul.mubr.f32.gmra.mxu0 %v320
    %v2354 = vpop.f32.mrf.mxu0
    %v2355 = vadd.f32 %v2286, %v2354
    %v2356 = vpop.f32.mrf.mxu0
    %2357 = vmatprep.mubr.f32.mxu0 0.0
    %2358 = vmatmul.mubr.f32.gmra.mxu0 %v323
    %v2359 = vpop.f32.mrf.mxu0
    %v2360 = vadd.f32 %v2286, %v2359
    %v2361 = vpop.f32.mrf.mxu0
    %2362 = vmatprep.mubr.f32.mxu0 0.0
    %2363 = vmatmul.mubr.f32.gmra.mxu0 %v326
    %v2364 = vpop.f32.mrf.mxu0
    %v2365 = vadd.f32 %v2286, %v2364
    %v2366 = vpop.f32.mrf.mxu0
    %2367 = vmatprep.mubr.f32.mxu0 0.0
    %2368 = vmatmul.mubr.f32.gmra.mxu0 %v329
    %v2369 = vpop.f32.mrf.mxu0
    %v2370 = vadd.f32 %v2286, %v2369
    %v2371 = vpop.f32.mrf.mxu0
    %2372 = vdwg.mxu0
    %s2373 = scalar_lea.vmem %s6, 224
    %v2374 = vld [vmem:[%s2373] sm:$0xff]
    %v2375 = vld [vmem:[%s2373 + $0x8] sm:$0xff]
    %v2376 = vld [vmem:[%s2373 + $0x10] sm:$0xff]
    %v2377 = vld [vmem:[%s2373 + $0x18] sm:$0xff]
    %s2378 = scalar_lea.vmem %s7, 7
    %v2379 = vld [vmem:[%s2378] sm:$0x1]
    %v2381 = vlaneseq
    %v2382 = vshrl.u32 %v2381, 7
    %v2383 = vsub.s32 0, %v2382
    %v2384 = vrot.slane %v2379, %v2383
    %2386 = vmatprep.subr.mxu0 0.0
    %2387 = vmatpush1.msra.mxu0 0.0
    %2388 = vmatprep.subr.mxu0 0.0
    %2389 = vmatpush1.msra.mxu0 0.0
    %2390 = vmatprep.subr.mxu0 0.0
    %2391 = vmatpush1.msra.mxu0 0.0
    %2392 = vmatprep.subr.mxu0 0.0
    %2393 = vmatpush1.msra.mxu0 0.0
    %2394 = vmatprep.subr.mxu0 0.0
    %2395 = vmatpush1.msra.mxu0 0.0
    %2396 = vmatprep.subr.mxu0 0.0
    %2397 = vmatpush1.msra.mxu0 0.0
    %2398 = vmatprep.subr.mxu0 0.0
    %2399 = vmatpush1.msra.mxu0 0.0
    %2400 = vmatprep.subr.mxu0 0.0
    %2401 = vmatpush1.msra.mxu0 0.0
    %2402 = vmatprep.subr.mxu0 0.0
    %2403 = vmatpush1.msra.mxu0 0.0
    %2404 = vmatprep.subr.mxu0 0.0
    %2405 = vmatpush1.msra.mxu0 0.0
    %2406 = vmatprep.subr.mxu0 0.0
    %2407 = vmatpush1.msra.mxu0 0.0
    %2408 = vmatprep.subr.mxu0 0.0
    %2409 = vmatpush1.msra.mxu0 0.0
    %2410 = vmatprep.subr.mxu0 0.0
    %2411 = vmatpush1.msra.mxu0 %v2377
    %2412 = vmatprep.subr.mxu0 0.0
    %2413 = vmatpush1.msra.mxu0 %v2376
    %2414 = vmatprep.subr.mxu0 0.0
    %2415 = vmatpush1.msra.mxu0 %v2375
    %2416 = vmatprep.subr.mxu0 0.0
    %2417 = vmatpush1.msra.mxu0 %v2374
    %2418 = vmatprep.subr.mxu0 0.0
    %2419 = vmatpush2.msra.mxu0 0.0
    %2420 = vmatprep.subr.mxu0 0.0
    %2421 = vmatpush2.msra.mxu0 0.0
    %2422 = vmatprep.subr.mxu0 0.0
    %2423 = vmatpush2.msra.mxu0 0.0
    %2424 = vmatprep.subr.mxu0 0.0
    %2425 = vmatpush2.msra.mxu0 0.0
    %2426 = vmatprep.subr.mxu0 0.0
    %2427 = vmatpush2.msra.mxu0 0.0
    %2428 = vmatprep.subr.mxu0 0.0
    %2429 = vmatpush2.msra.mxu0 0.0
    %2430 = vmatprep.subr.mxu0 0.0
    %2431 = vmatpush2.msra.mxu0 0.0
    %2432 = vmatprep.subr.mxu0 0.0
    %2433 = vmatpush2.msra.mxu0 0.0
    %2434 = vmatprep.subr.mxu0 0.0
    %2435 = vmatpush2.msra.mxu0 0.0
    %2436 = vmatprep.subr.mxu0 0.0
    %2437 = vmatpush2.msra.mxu0 0.0
    %2438 = vmatprep.subr.mxu0 0.0
    %2439 = vmatpush2.msra.mxu0 0.0
    %2440 = vmatprep.subr.mxu0 0.0
    %2441 = vmatpush2.msra.mxu0 0.0
    %2442 = vmatprep.subr.mxu0 0.0
    %2443 = vmatpush2.msra.mxu0 0.0
    %2444 = vmatprep.subr.mxu0 0.0
    %2445 = vmatpush2.msra.mxu0 0.0
    %2446 = vmatprep.subr.mxu0 0.0
    %2447 = vmatpush2.msra.mxu0 0.0
    %2448 = vmatprep.subr.mxu0 0.0
    %2449 = vmatpush2.msra.mxu0 0.0
    %2450 = vmatprep.mubr.f32.mxu0 0.0
    %2451 = vmatmul.mubr.f32.gmra.mxu0 %v320
    %v2452 = vpop.f32.mrf.mxu0
    %v2453 = vadd.f32 %v2384, %v2452
    %v2454 = vpop.f32.mrf.mxu0
    %2455 = vmatprep.mubr.f32.mxu0 0.0
    %2456 = vmatmul.mubr.f32.gmra.mxu0 %v323
    %v2457 = vpop.f32.mrf.mxu0
    %v2458 = vadd.f32 %v2384, %v2457
    %v2459 = vpop.f32.mrf.mxu0
    %2460 = vmatprep.mubr.f32.mxu0 0.0
    %2461 = vmatmul.mubr.f32.gmra.mxu0 %v326
    %v2462 = vpop.f32.mrf.mxu0
    %v2463 = vadd.f32 %v2384, %v2462
    %v2464 = vpop.f32.mrf.mxu0
    %2465 = vmatprep.mubr.f32.mxu0 0.0
    %2466 = vmatmul.mubr.f32.gmra.mxu0 %v329
    %v2467 = vpop.f32.mrf.mxu0
    %v2468 = vadd.f32 %v2384, %v2467
    %v2469 = vpop.f32.mrf.mxu0
    %2470 = vdwg.mxu0
    %s2471 = scalar_lea.vmem %s6, 352
    %v2472 = vld [vmem:[%s2471] sm:$0xff]
    %v2473 = vld [vmem:[%s2471 + $0x8] sm:$0xff]
    %v2474 = vld [vmem:[%s2471 + $0x10] sm:$0xff]
    %v2475 = vld [vmem:[%s2471 + $0x18] sm:$0xff]
    %s2476 = scalar_lea.vmem %s7, 11
    %v2477 = vld [vmem:[%s2476] sm:$0x1]
    %v2479 = vlaneseq
    %v2480 = vshrl.u32 %v2479, 7
    %v2481 = vsub.s32 0, %v2480
    %v2482 = vrot.slane %v2477, %v2481
    %2484 = vmatprep.subr.mxu0 0.0
    %2485 = vmatpush1.msra.mxu0 0.0
    %2486 = vmatprep.subr.mxu0 0.0
    %2487 = vmatpush1.msra.mxu0 0.0
    %2488 = vmatprep.subr.mxu0 0.0
    %2489 = vmatpush1.msra.mxu0 0.0
    %2490 = vmatprep.subr.mxu0 0.0
    %2491 = vmatpush1.msra.mxu0 0.0
    %2492 = vmatprep.subr.mxu0 0.0
    %2493 = vmatpush1.msra.mxu0 0.0
    %2494 = vmatprep.subr.mxu0 0.0
    %2495 = vmatpush1.msra.mxu0 0.0
    %2496 = vmatprep.subr.mxu0 0.0
    %2497 = vmatpush1.msra.mxu0 0.0
    %2498 = vmatprep.subr.mxu0 0.0
    %2499 = vmatpush1.msra.mxu0 0.0
    %2500 = vmatprep.subr.mxu0 0.0
    %2501 = vmatpush1.msra.mxu0 0.0
    %2502 = vmatprep.subr.mxu0 0.0
    %2503 = vmatpush1.msra.mxu0 0.0
    %2504 = vmatprep.subr.mxu0 0.0
    %2505 = vmatpush1.msra.mxu0 0.0
    %2506 = vmatprep.subr.mxu0 0.0
    %2507 = vmatpush1.msra.mxu0 0.0
    %2508 = vmatprep.subr.mxu0 0.0
    %2509 = vmatpush1.msra.mxu0 %v2475
    %2510 = vmatprep.subr.mxu0 0.0
    %2511 = vmatpush1.msra.mxu0 %v2474
    %2512 = vmatprep.subr.mxu0 0.0
    %2513 = vmatpush1.msra.mxu0 %v2473
    %2514 = vmatprep.subr.mxu0 0.0
    %2515 = vmatpush1.msra.mxu0 %v2472
    %2516 = vmatprep.subr.mxu0 0.0
    %2517 = vmatpush2.msra.mxu0 0.0
    %2518 = vmatprep.subr.mxu0 0.0
    %2519 = vmatpush2.msra.mxu0 0.0
    %2520 = vmatprep.subr.mxu0 0.0
    %2521 = vmatpush2.msra.mxu0 0.0
    %2522 = vmatprep.subr.mxu0 0.0
    %2523 = vmatpush2.msra.mxu0 0.0
    %2524 = vmatprep.subr.mxu0 0.0
    %2525 = vmatpush2.msra.mxu0 0.0
    %2526 = vmatprep.subr.mxu0 0.0
    %2527 = vmatpush2.msra.mxu0 0.0
    %2528 = vmatprep.subr.mxu0 0.0
    %2529 = vmatpush2.msra.mxu0 0.0
    %2530 = vmatprep.subr.mxu0 0.0
    %2531 = vmatpush2.msra.mxu0 0.0
    %2532 = vmatprep.subr.mxu0 0.0
    %2533 = vmatpush2.msra.mxu0 0.0
    %2534 = vmatprep.subr.mxu0 0.0
    %2535 = vmatpush2.msra.mxu0 0.0
    %2536 = vmatprep.subr.mxu0 0.0
    %2537 = vmatpush2.msra.mxu0 0.0
    %2538 = vmatprep.subr.mxu0 0.0
    %2539 = vmatpush2.msra.mxu0 0.0
    %2540 = vmatprep.subr.mxu0 0.0
    %2541 = vmatpush2.msra.mxu0 0.0
    %2542 = vmatprep.subr.mxu0 0.0
    %2543 = vmatpush2.msra.mxu0 0.0
    %2544 = vmatprep.subr.mxu0 0.0
    %2545 = vmatpush2.msra.mxu0 0.0
    %2546 = vmatprep.subr.mxu0 0.0
    %2547 = vmatpush2.msra.mxu0 0.0
    %2548 = vmatprep.mubr.f32.mxu0 0.0
    %2549 = vmatmul.mubr.f32.gmra.mxu0 %v320
    %v2550 = vpop.f32.mrf.mxu0
    %v2551 = vadd.f32 %v2482, %v2550
    %v2552 = vpop.f32.mrf.mxu0
    %2553 = vmatprep.mubr.f32.mxu0 0.0
    %2554 = vmatmul.mubr.f32.gmra.mxu0 %v323
    %v2555 = vpop.f32.mrf.mxu0
    %v2556 = vadd.f32 %v2482, %v2555
    %v2557 = vpop.f32.mrf.mxu0
    %2558 = vmatprep.mubr.f32.mxu0 0.0
    %2559 = vmatmul.mubr.f32.gmra.mxu0 %v326
    %v2560 = vpop.f32.mrf.mxu0
    %v2561 = vadd.f32 %v2482, %v2560
    %v2562 = vpop.f32.mrf.mxu0
    %2563 = vmatprep.mubr.f32.mxu0 0.0
    %2564 = vmatmul.mubr.f32.gmra.mxu0 %v329
    %v2565 = vpop.f32.mrf.mxu0
    %v2566 = vadd.f32 %v2482, %v2565
    %v2567 = vpop.f32.mrf.mxu0
    %2568 = vdwg.mxu0
    %v2570 = vsel %vm612, %v2355, 0
    %v2573 = vsel %vm612, %v2360, 0
    %v2576 = vsel %vm612, %v2365, 0
    %v2579 = vsel %vm612, %v2370, 0
    %v2582 = vsel %vm612, %v2453, 0
    %v2585 = vsel %vm612, %v2458, 0
    %v2588 = vsel %vm612, %v2463, 0
    %v2591 = vsel %vm612, %v2468, 0
    %2593 = vmatprep.subr.mxu0 0.0
    %2594 = vmatpush1.xpose.msra.mxu0 0.0
    %2595 = vmatprep.subr.mxu0 0.0
    %2596 = vmatpush1.xpose.msra.mxu0 0.0
    %2597 = vmatprep.subr.mxu0 0.0
    %2598 = vmatpush1.xpose.msra.mxu0 0.0
    %2599 = vmatprep.subr.mxu0 0.0
    %2600 = vmatpush1.xpose.msra.mxu0 0.0
    %2601 = vmatprep.subr.mxu0 0.0
    %2602 = vmatpush1.xpose.msra.mxu0 0.0
    %2603 = vmatprep.subr.mxu0 0.0
    %2604 = vmatpush1.xpose.msra.mxu0 0.0
    %2605 = vmatprep.subr.mxu0 0.0
    %2606 = vmatpush1.xpose.msra.mxu0 0.0
    %2607 = vmatprep.subr.mxu0 0.0
    %2608 = vmatpush1.xpose.msra.mxu0 0.0
    %2609 = vmatprep.subr.mxu0 0.0
    %2610 = vmatpush1.xpose.msra.mxu0 0.0
    %2611 = vmatprep.subr.mxu0 0.0
    %2612 = vmatpush1.xpose.msra.mxu0 0.0
    %2613 = vmatprep.subr.mxu0 0.0
    %2614 = vmatpush1.xpose.msra.mxu0 0.0
    %2615 = vmatprep.subr.mxu0 0.0
    %2616 = vmatpush1.xpose.msra.mxu0 0.0
    %2617 = vmatprep.subr.mxu0 0.0
    %2618 = vmatpush1.xpose.msra.mxu0 %v2591
    %2619 = vmatprep.subr.mxu0 0.0
    %2620 = vmatpush1.xpose.msra.mxu0 %v2588
    %2621 = vmatprep.subr.mxu0 0.0
    %2622 = vmatpush1.xpose.msra.mxu0 %v2585
    %2623 = vmatprep.subr.mxu0 0.0
    %2624 = vmatpush1.xpose.msra.mxu0 %v2582
    %2625 = vmatprep.subr.mxu0 0.0
    %2626 = vmatpush2.xpose.msra.mxu0 0.0
    %2627 = vmatprep.subr.mxu0 0.0
    %2628 = vmatpush2.xpose.msra.mxu0 0.0
    %2629 = vmatprep.subr.mxu0 0.0
    %2630 = vmatpush2.xpose.msra.mxu0 0.0
    %2631 = vmatprep.subr.mxu0 0.0
    %2632 = vmatpush2.xpose.msra.mxu0 0.0
    %2633 = vmatprep.subr.mxu0 0.0
    %2634 = vmatpush2.xpose.msra.mxu0 0.0
    %2635 = vmatprep.subr.mxu0 0.0
    %2636 = vmatpush2.xpose.msra.mxu0 0.0
    %2637 = vmatprep.subr.mxu0 0.0
    %2638 = vmatpush2.xpose.msra.mxu0 0.0
    %2639 = vmatprep.subr.mxu0 0.0
    %2640 = vmatpush2.xpose.msra.mxu0 0.0
    %2641 = vmatprep.subr.mxu0 0.0
    %2642 = vmatpush2.xpose.msra.mxu0 0.0
    %2643 = vmatprep.subr.mxu0 0.0
    %2644 = vmatpush2.xpose.msra.mxu0 0.0
    %2645 = vmatprep.subr.mxu0 0.0
    %2646 = vmatpush2.xpose.msra.mxu0 0.0
    %2647 = vmatprep.subr.mxu0 0.0
    %2648 = vmatpush2.xpose.msra.mxu0 0.0
    %2649 = vmatprep.subr.mxu0 0.0
    %2650 = vmatpush2.xpose.msra.mxu0 0.0
    %2651 = vmatprep.subr.mxu0 0.0
    %2652 = vmatpush2.xpose.msra.mxu0 0.0
    %2653 = vmatprep.subr.mxu0 0.0
    %2654 = vmatpush2.xpose.msra.mxu0 0.0
    %2655 = vmatprep.subr.mxu0 0.0
    %2656 = vmatpush2.xpose.msra.mxu0 0.0
    %2657 = vmatprep.mubr.f32.mxu0 0.0
    %2658 = vmatmul.mubr.f32.gmra.mxu0 %v2570
    %v2659 = vpop.f32.mrf.mxu0
    %v2660 = vadd.f32 0.0, %v2659
    %v2661 = vpop.f32.mrf.mxu0
    %2662 = vmatprep.mubr.f32.mxu0 0.0
    %2663 = vmatmul.mubr.f32.gmra.mxu0 %v2573
    %v2664 = vpop.f32.mrf.mxu0
    %v2665 = vadd.f32 0.0, %v2664
    %v2666 = vpop.f32.mrf.mxu0
    %2667 = vmatprep.mubr.f32.mxu0 0.0
    %2668 = vmatmul.mubr.f32.gmra.mxu0 %v2576
    %v2669 = vpop.f32.mrf.mxu0
    %v2670 = vadd.f32 0.0, %v2669
    %v2671 = vpop.f32.mrf.mxu0
    %2672 = vmatprep.mubr.f32.mxu0 0.0
    %2673 = vmatmul.mubr.f32.gmra.mxu0 %v2579
    %v2674 = vpop.f32.mrf.mxu0
    %v2675 = vadd.f32 0.0, %v2674
    %v2676 = vpop.f32.mrf.mxu0
    %2677 = vdwg.mxu0
    %v2678 = vmul.f32 %v2660, 0.35355338
    %v2679 = vmul.f32 %v2665, 0.35355338
    %v2680 = vmul.f32 %v2670, 0.35355338
    %v2681 = vmul.f32 %v2675, 0.35355338
    %v2682 = vadd.f32 %v2678, %v235
    %v2683 = vadd.f32 %v2679, %v236
    %v2684 = vadd.f32 %v2680, %v237
    %v2685 = vadd.f32 %v2681, %v238
    %v2686 = vsel %vm157, %v2682, -inf
    %2687 = vmax.xlane.f32.xlu0 %v2686
    %v2688 = vpop.xlane.xlu0 %2687
    %v2689 = vsel %vm157, %v2683, -inf
    %2690 = vmax.xlane.f32.xlu0 %v2689
    %v2691 = vpop.xlane.xlu0 %2690
    %v2692 = vsel %vm157, %v2684, -inf
    %2693 = vmax.xlane.f32.xlu0 %v2692
    %v2694 = vpop.xlane.xlu0 %2693
    %v2695 = vsel %vm157, %v2685, -inf
    %2696 = vmax.xlane.f32.xlu0 %v2695
    %v2697 = vpop.xlane.xlu0 %2696
    %v2698 = vsub.f32 %v2682, %v2688
    %v2699 = vsub.f32 %v2683, %v2691
    %v2700 = vsub.f32 %v2684, %v2694
    %v2701 = vsub.f32 %v2685, %v2697
    %v2702 = vmul.f32 %v2698, 1.442695
    %v2703 = vpow.pop %v2702
    %v2704 = vmul.f32 %v2699, 1.442695
    %v2705 = vpow.pop %v2704
    %v2706 = vmul.f32 %v2700, 1.442695
    %v2707 = vpow.pop %v2706
    %v2708 = vmul.f32 %v2701, 1.442695
    %v2709 = vpow.pop %v2708
    %v2710 = vsel %vm157, %v2703, 0.0
    %2711 = vadd.xlane.f32.xlu0 %v2710
    %v2712 = vpop.xlane.xlu0 %2711
    %v2713 = vsel %vm157, %v2705, 0.0
    %2714 = vadd.xlane.f32.xlu0 %v2713
    %v2715 = vpop.xlane.xlu0 %2714
    %v2716 = vsel %vm157, %v2707, 0.0
    %2717 = vadd.xlane.f32.xlu0 %v2716
    %v2718 = vpop.xlane.xlu0 %2717
    %v2719 = vsel %vm157, %v2709, 0.0
    %2720 = vadd.xlane.f32.xlu0 %v2719
    %v2721 = vpop.xlane.xlu0 %2720
    %v2722 = vrcp.pop %v2712
    %v2723 = vrcp.pop %v2715
    %v2724 = vrcp.pop %v2718
    %v2725 = vrcp.pop %v2721
    %v2726 = vmul.f32 %v2703, %v2722
    %v2727 = vmul.f32 %v2705, %v2723
    %v2728 = vmul.f32 %v2707, %v2724
    %v2729 = vmul.f32 %v2709, %v2725
    %v2731 = vsel %vm157, %v2726, 0
    %v2734 = vsel %vm157, %v2727, 0
    %v2737 = vsel %vm157, %v2728, 0
    %v2740 = vsel %vm157, %v2729, 0
    %2742 = vmatprep.subr.mxu0 0.0
    %2743 = vmatpush1.msra.mxu0 0.0
    %2744 = vmatprep.subr.mxu0 0.0
    %2745 = vmatpush1.msra.mxu0 0.0
    %2746 = vmatprep.subr.mxu0 0.0
    %2747 = vmatpush1.msra.mxu0 0.0
    %2748 = vmatprep.subr.mxu0 0.0
    %2749 = vmatpush1.msra.mxu0 0.0
    %2750 = vmatprep.subr.mxu0 0.0
    %2751 = vmatpush1.msra.mxu0 0.0
    %2752 = vmatprep.subr.mxu0 0.0
    %2753 = vmatpush1.msra.mxu0 0.0
    %2754 = vmatprep.subr.mxu0 0.0
    %2755 = vmatpush1.msra.mxu0 0.0
    %2756 = vmatprep.subr.mxu0 0.0
    %2757 = vmatpush1.msra.mxu0 0.0
    %2758 = vmatprep.subr.mxu0 0.0
    %2759 = vmatpush1.msra.mxu0 0.0
    %2760 = vmatprep.subr.mxu0 0.0
    %2761 = vmatpush1.msra.mxu0 0.0
    %2762 = vmatprep.subr.mxu0 0.0
    %2763 = vmatpush1.msra.mxu0 0.0
    %2764 = vmatprep.subr.mxu0 0.0
    %2765 = vmatpush1.msra.mxu0 0.0
    %2766 = vmatprep.subr.mxu0 0.0
    %2767 = vmatpush1.msra.mxu0 %v2566
    %2768 = vmatprep.subr.mxu0 0.0
    %2769 = vmatpush1.msra.mxu0 %v2561
    %2770 = vmatprep.subr.mxu0 0.0
    %2771 = vmatpush1.msra.mxu0 %v2556
    %2772 = vmatprep.subr.mxu0 0.0
    %2773 = vmatpush1.msra.mxu0 %v2551
    %2774 = vmatprep.subr.mxu0 0.0
    %2775 = vmatpush2.msra.mxu0 0.0
    %2776 = vmatprep.subr.mxu0 0.0
    %2777 = vmatpush2.msra.mxu0 0.0
    %2778 = vmatprep.subr.mxu0 0.0
    %2779 = vmatpush2.msra.mxu0 0.0
    %2780 = vmatprep.subr.mxu0 0.0
    %2781 = vmatpush2.msra.mxu0 0.0
    %2782 = vmatprep.subr.mxu0 0.0
    %2783 = vmatpush2.msra.mxu0 0.0
    %2784 = vmatprep.subr.mxu0 0.0
    %2785 = vmatpush2.msra.mxu0 0.0
    %2786 = vmatprep.subr.mxu0 0.0
    %2787 = vmatpush2.msra.mxu0 0.0
    %2788 = vmatprep.subr.mxu0 0.0
    %2789 = vmatpush2.msra.mxu0 0.0
    %2790 = vmatprep.subr.mxu0 0.0
    %2791 = vmatpush2.msra.mxu0 0.0
    %2792 = vmatprep.subr.mxu0 0.0
    %2793 = vmatpush2.msra.mxu0 0.0
    %2794 = vmatprep.subr.mxu0 0.0
    %2795 = vmatpush2.msra.mxu0 0.0
    %2796 = vmatprep.subr.mxu0 0.0
    %2797 = vmatpush2.msra.mxu0 0.0
    %2798 = vmatprep.subr.mxu0 0.0
    %2799 = vmatpush2.msra.mxu0 0.0
    %2800 = vmatprep.subr.mxu0 0.0
    %2801 = vmatpush2.msra.mxu0 0.0
    %2802 = vmatprep.subr.mxu0 0.0
    %2803 = vmatpush2.msra.mxu0 0.0
    %2804 = vmatprep.subr.mxu0 0.0
    %2805 = vmatpush2.msra.mxu0 0.0
    %2806 = vmatprep.mubr.f32.mxu0 0.0
    %2807 = vmatmul.mubr.f32.gmra.mxu0 %v2731
    %v2808 = vpop.f32.mrf.mxu0
    %v2809 = vadd.f32 0.0, %v2808
    %v2810 = vpop.f32.mrf.mxu0
    %2811 = vmatprep.mubr.f32.mxu0 0.0
    %2812 = vmatmul.mubr.f32.gmra.mxu0 %v2734
    %v2813 = vpop.f32.mrf.mxu0
    %v2814 = vadd.f32 0.0, %v2813
    %v2815 = vpop.f32.mrf.mxu0
    %2816 = vmatprep.mubr.f32.mxu0 0.0
    %2817 = vmatmul.mubr.f32.gmra.mxu0 %v2737
    %v2818 = vpop.f32.mrf.mxu0
    %v2819 = vadd.f32 0.0, %v2818
    %v2820 = vpop.f32.mrf.mxu0
    %2821 = vmatprep.mubr.f32.mxu0 0.0
    %2822 = vmatmul.mubr.f32.gmra.mxu0 %v2740
    %v2823 = vpop.f32.mrf.mxu0
    %v2824 = vadd.f32 0.0, %v2823
    %v2825 = vpop.f32.mrf.mxu0
    %2826 = vdwg.mxu0
    %s2827 = scalar_lea.vmem %s8, 24
    %v2828 = vld [vmem:[%s2827] sm:$0xff]
    %v2830 = vsel %vm612, %v2809, 0
    %v2833 = vsel %vm612, %v2814, 0
    %v2836 = vsel %vm612, %v2819, 0
    %v2839 = vsel %vm612, %v2824, 0
    %2841 = vmatprep.subr.mxu0 0.0
    %2842 = vmatpush1.msra.mxu0 0.0
    %2843 = vmatprep.subr.mxu0 0.0
    %2844 = vmatpush1.msra.mxu0 0.0
    %2845 = vmatprep.subr.mxu0 0.0
    %2846 = vmatpush1.msra.mxu0 0.0
    %2847 = vmatprep.subr.mxu0 0.0
    %2848 = vmatpush1.msra.mxu0 0.0
    %2849 = vmatprep.subr.mxu0 0.0
    %2850 = vmatpush1.msra.mxu0 0.0
    %2851 = vmatprep.subr.mxu0 0.0
    %2852 = vmatpush1.msra.mxu0 0.0
    %2853 = vmatprep.subr.mxu0 0.0
    %2854 = vmatpush1.msra.mxu0 0.0
    %2855 = vmatprep.subr.mxu0 0.0
    %2856 = vmatpush1.msra.mxu0 0.0
    %2857 = vmatprep.subr.mxu0 0.0
    %2858 = vmatpush1.msra.mxu0 0.0
    %2859 = vmatprep.subr.mxu0 0.0
    %2860 = vmatpush1.msra.mxu0 0.0
    %2861 = vmatprep.subr.mxu0 0.0
    %2862 = vmatpush1.msra.mxu0 0.0
    %2863 = vmatprep.subr.mxu0 0.0
    %2864 = vmatpush1.msra.mxu0 0.0
    %2865 = vmatprep.subr.mxu0 0.0
    %2866 = vmatpush1.msra.mxu0 0.0
    %2867 = vmatprep.subr.mxu0 0.0
    %2868 = vmatpush1.msra.mxu0 0.0
    %2869 = vmatprep.subr.mxu0 0.0
    %2870 = vmatpush1.msra.mxu0 0.0
    %2871 = vmatprep.subr.mxu0 0.0
    %2872 = vmatpush1.msra.mxu0 %v2828
    %2873 = vmatprep.subr.mxu0 0.0
    %2874 = vmatpush2.msra.mxu0 0.0
    %2875 = vmatprep.subr.mxu0 0.0
    %2876 = vmatpush2.msra.mxu0 0.0
    %2877 = vmatprep.subr.mxu0 0.0
    %2878 = vmatpush2.msra.mxu0 0.0
    %2879 = vmatprep.subr.mxu0 0.0
    %2880 = vmatpush2.msra.mxu0 0.0
    %2881 = vmatprep.subr.mxu0 0.0
    %2882 = vmatpush2.msra.mxu0 0.0
    %2883 = vmatprep.subr.mxu0 0.0
    %2884 = vmatpush2.msra.mxu0 0.0
    %2885 = vmatprep.subr.mxu0 0.0
    %2886 = vmatpush2.msra.mxu0 0.0
    %2887 = vmatprep.subr.mxu0 0.0
    %2888 = vmatpush2.msra.mxu0 0.0
    %2889 = vmatprep.subr.mxu0 0.0
    %2890 = vmatpush2.msra.mxu0 0.0
    %2891 = vmatprep.subr.mxu0 0.0
    %2892 = vmatpush2.msra.mxu0 0.0
    %2893 = vmatprep.subr.mxu0 0.0
    %2894 = vmatpush2.msra.mxu0 0.0
    %2895 = vmatprep.subr.mxu0 0.0
    %2896 = vmatpush2.msra.mxu0 0.0
    %2897 = vmatprep.subr.mxu0 0.0
    %2898 = vmatpush2.msra.mxu0 0.0
    %2899 = vmatprep.subr.mxu0 0.0
    %2900 = vmatpush2.msra.mxu0 0.0
    %2901 = vmatprep.subr.mxu0 0.0
    %2902 = vmatpush2.msra.mxu0 0.0
    %2903 = vmatprep.subr.mxu0 0.0
    %2904 = vmatpush2.msra.mxu0 0.0
    %2905 = vmatprep.mubr.f32.mxu0 0.0
    %2906 = vmatmul.mubr.f32.gmra.mxu0 %v2830
    %v2907 = vpop.f32.mrf.mxu0
    %v2908 = vadd.f32 0.0, %v2907
    %v2909 = vpop.f32.mrf.mxu0
    %2910 = vmatprep.mubr.f32.mxu0 0.0
    %2911 = vmatmul.mubr.f32.gmra.mxu0 %v2833
    %v2912 = vpop.f32.mrf.mxu0
    %v2913 = vadd.f32 0.0, %v2912
    %v2914 = vpop.f32.mrf.mxu0
    %2915 = vmatprep.mubr.f32.mxu0 0.0
    %2916 = vmatmul.mubr.f32.gmra.mxu0 %v2836
    %v2917 = vpop.f32.mrf.mxu0
    %v2918 = vadd.f32 0.0, %v2917
    %v2919 = vpop.f32.mrf.mxu0
    %2920 = vmatprep.mubr.f32.mxu0 0.0
    %2921 = vmatmul.mubr.f32.gmra.mxu0 %v2839
    %v2922 = vpop.f32.mrf.mxu0
    %v2923 = vadd.f32 0.0, %v2922
    %v2924 = vpop.f32.mrf.mxu0
    %2925 = vdwg.mxu0
    %v2926 = vadd.f32 %v2271, %v2908
    %v2927 = vadd.f32 %v2272, %v2913
    %v2928 = vadd.f32 %v2273, %v2918
    %v2929 = vadd.f32 %v2274, %v2923
    %v2930 = vadd.f32 %v231, %v2926
    %v2931 = vadd.f32 %v232, %v2927
    %v2932 = vadd.f32 %v233, %v2928
    %v2933 = vadd.f32 %v234, %v2929
    %v2934 = vlaneseq
    %v2935 = vshrl.u32 %v2934, 7
    %v2936 = vsub.s32 4, %v2935
    %v2937 = vrot.slane %v239, %v2936
    %v2938 = vadd.f32 %v2930, %v2937
    %v2939 = vadd.f32 %v2931, %v2937
    %v2940 = vadd.f32 %v2932, %v2937
    %v2941 = vadd.f32 %v2933, %v2937
    %v2942 = vsel %vm157, %v2938, 0.0
    %2943 = vadd.xlane.f32.xlu0 %v2942
    %v2944 = vpop.xlane.xlu0 %2943
    %v2945 = vsel %vm157, %v2939, 0.0
    %2946 = vadd.xlane.f32.xlu0 %v2945
    %v2947 = vpop.xlane.xlu0 %2946
    %v2948 = vsel %vm157, %v2940, 0.0
    %2949 = vadd.xlane.f32.xlu0 %v2948
    %v2950 = vpop.xlane.xlu0 %2949
    %v2951 = vsel %vm157, %v2941, 0.0
    %2952 = vadd.xlane.f32.xlu0 %v2951
    %v2953 = vpop.xlane.xlu0 %2952
    %v2954 = vmul.f32 %v2944, %v170
    %v2955 = vmul.f32 %v2947, %v170
    %v2956 = vmul.f32 %v2950, %v170
    %v2957 = vmul.f32 %v2953, %v170
    %v2958 = vsub.f32 %v2938, %v2954
    %v2959 = vsub.f32 %v2939, %v2955
    %v2960 = vsub.f32 %v2940, %v2956
    %v2961 = vsub.f32 %v2941, %v2957
    %v2962 = vmul.f32 %v2958, %v2958
    %v2963 = vmul.f32 %v2959, %v2959
    %v2964 = vmul.f32 %v2960, %v2960
    %v2965 = vmul.f32 %v2961, %v2961
    %v2966 = vsel %vm157, %v2962, 0.0
    %2967 = vadd.xlane.f32.xlu0 %v2966
    %v2968 = vpop.xlane.xlu0 %2967
    %v2969 = vsel %vm157, %v2963, 0.0
    %2970 = vadd.xlane.f32.xlu0 %v2969
    %v2971 = vpop.xlane.xlu0 %2970
    %v2972 = vsel %vm157, %v2964, 0.0
    %2973 = vadd.xlane.f32.xlu0 %v2972
    %v2974 = vpop.xlane.xlu0 %2973
    %v2975 = vsel %vm157, %v2965, 0.0
    %2976 = vadd.xlane.f32.xlu0 %v2975
    %v2977 = vpop.xlane.xlu0 %2976
    %v2978 = vmul.f32 %v2968, %v170
    %v2979 = vmul.f32 %v2971, %v170
    %v2980 = vmul.f32 %v2974, %v170
    %v2981 = vmul.f32 %v2977, %v170
    %v2982 = vadd.f32 %v2978, 1e-05
    %v2983 = vadd.f32 %v2979, 1e-05
    %v2984 = vadd.f32 %v2980, 1e-05
    %v2985 = vadd.f32 %v2981, 1e-05
    %v2986 = vrsqrt.pop %v2982
    %v2987 = vrsqrt.pop %v2983
    %v2988 = vrsqrt.pop %v2984
    %v2989 = vrsqrt.pop %v2985
    %v2990 = vmul.f32 %v2958, %v2986
    %v2991 = vmul.f32 %v2959, %v2987
    %v2992 = vmul.f32 %v2960, %v2988
    %v2993 = vmul.f32 %v2961, %v2989
    %v2994 = vlaneseq
    %v2995 = vshrl.u32 %v2994, 7
    %v2996 = vsub.s32 2, %v2995
    %v2997 = vrot.slane %v239, %v2996
    %v2998 = vmul.f32 %v2990, %v2997
    %v2999 = vmul.f32 %v2991, %v2997
    %v3000 = vmul.f32 %v2992, %v2997
    %v3001 = vmul.f32 %v2993, %v2997
    %v3002 = vlaneseq
    %v3003 = vshrl.u32 %v3002, 7
    %v3004 = vsub.s32 3, %v3003
    %v3005 = vrot.slane %v239, %v3004
    %v3006 = vadd.f32 %v2998, %v3005
    %v3007 = vadd.f32 %v2999, %v3005
    %v3008 = vadd.f32 %v3000, %v3005
    %v3009 = vadd.f32 %v3001, %v3005
    %v3010 = vld [vmem:[%s9] sm:$0xff]
    %v3011 = vld [vmem:[%s9 + $0x8] sm:$0xff]
    %v3012 = vld [vmem:[%s9 + $0x10] sm:$0xff]
    %v3013 = vld [vmem:[%s9 + $0x18] sm:$0xff]
    %v3014 = vld [vmem:[%s10] sm:$0x1]
    %v3016 = vlaneseq
    %v3017 = vshrl.u32 %v3016, 7
    %v3018 = vsub.s32 0, %v3017
    %v3019 = vrot.slane %v3014, %v3018
    %v3022 = vsel %vm157, %v3006, 0
    %v3025 = vsel %vm157, %v3007, 0
    %v3028 = vsel %vm157, %v3008, 0
    %v3031 = vsel %vm157, %v3009, 0
    %3033 = vmatprep.subr.mxu0 0.0
    %3034 = vmatpush1.msra.mxu0 0.0
    %3035 = vmatprep.subr.mxu0 0.0
    %3036 = vmatpush1.msra.mxu0 0.0
    %3037 = vmatprep.subr.mxu0 0.0
    %3038 = vmatpush1.msra.mxu0 0.0
    %3039 = vmatprep.subr.mxu0 0.0
    %3040 = vmatpush1.msra.mxu0 0.0
    %3041 = vmatprep.subr.mxu0 0.0
    %3042 = vmatpush1.msra.mxu0 0.0
    %3043 = vmatprep.subr.mxu0 0.0
    %3044 = vmatpush1.msra.mxu0 0.0
    %3045 = vmatprep.subr.mxu0 0.0
    %3046 = vmatpush1.msra.mxu0 0.0
    %3047 = vmatprep.subr.mxu0 0.0
    %3048 = vmatpush1.msra.mxu0 0.0
    %3049 = vmatprep.subr.mxu0 0.0
    %3050 = vmatpush1.msra.mxu0 0.0
    %3051 = vmatprep.subr.mxu0 0.0
    %3052 = vmatpush1.msra.mxu0 0.0
    %3053 = vmatprep.subr.mxu0 0.0
    %3054 = vmatpush1.msra.mxu0 0.0
    %3055 = vmatprep.subr.mxu0 0.0
    %3056 = vmatpush1.msra.mxu0 0.0
    %3057 = vmatprep.subr.mxu0 0.0
    %3058 = vmatpush1.msra.mxu0 %v3013
    %3059 = vmatprep.subr.mxu0 0.0
    %3060 = vmatpush1.msra.mxu0 %v3012
    %3061 = vmatprep.subr.mxu0 0.0
    %3062 = vmatpush1.msra.mxu0 %v3011
    %3063 = vmatprep.subr.mxu0 0.0
    %3064 = vmatpush1.msra.mxu0 %v3010
    %3065 = vmatprep.subr.mxu0 0.0
    %3066 = vmatpush2.msra.mxu0 0.0
    %3067 = vmatprep.subr.mxu0 0.0
    %3068 = vmatpush2.msra.mxu0 0.0
    %3069 = vmatprep.subr.mxu0 0.0
    %3070 = vmatpush2.msra.mxu0 0.0
    %3071 = vmatprep.subr.mxu0 0.0
    %3072 = vmatpush2.msra.mxu0 0.0
    %3073 = vmatprep.subr.mxu0 0.0
    %3074 = vmatpush2.msra.mxu0 0.0
    %3075 = vmatprep.subr.mxu0 0.0
    %3076 = vmatpush2.msra.mxu0 0.0
    %3077 = vmatprep.subr.mxu0 0.0
    %3078 = vmatpush2.msra.mxu0 0.0
    %3079 = vmatprep.subr.mxu0 0.0
    %3080 = vmatpush2.msra.mxu0 0.0
    %3081 = vmatprep.subr.mxu0 0.0
    %3082 = vmatpush2.msra.mxu0 0.0
    %3083 = vmatprep.subr.mxu0 0.0
    %3084 = vmatpush2.msra.mxu0 0.0
    %3085 = vmatprep.subr.mxu0 0.0
    %3086 = vmatpush2.msra.mxu0 0.0
    %3087 = vmatprep.subr.mxu0 0.0
    %3088 = vmatpush2.msra.mxu0 0.0
    %3089 = vmatprep.subr.mxu0 0.0
    %3090 = vmatpush2.msra.mxu0 0.0
    %3091 = vmatprep.subr.mxu0 0.0
    %3092 = vmatpush2.msra.mxu0 0.0
    %3093 = vmatprep.subr.mxu0 0.0
    %3094 = vmatpush2.msra.mxu0 0.0
    %3095 = vmatprep.subr.mxu0 0.0
    %3096 = vmatpush2.msra.mxu0 0.0
    %3097 = vmatprep.mubr.f32.mxu0 0.0
    %3098 = vmatmul.mubr.f32.gmra.mxu0 %v3022
    %v3099 = vpop.f32.mrf.mxu0
    %v3100 = vadd.f32 %v3019, %v3099
    %v3101 = vpop.f32.mrf.mxu0
    %3102 = vmatprep.mubr.f32.mxu0 0.0
    %3103 = vmatmul.mubr.f32.gmra.mxu0 %v3025
    %v3104 = vpop.f32.mrf.mxu0
    %v3105 = vadd.f32 %v3019, %v3104
    %v3106 = vpop.f32.mrf.mxu0
    %3107 = vmatprep.mubr.f32.mxu0 0.0
    %3108 = vmatmul.mubr.f32.gmra.mxu0 %v3028
    %v3109 = vpop.f32.mrf.mxu0
    %v3110 = vadd.f32 %v3019, %v3109
    %v3111 = vpop.f32.mrf.mxu0
    %3112 = vmatprep.mubr.f32.mxu0 0.0
    %3113 = vmatmul.mubr.f32.gmra.mxu0 %v3031
    %v3114 = vpop.f32.mrf.mxu0
    %v3115 = vadd.f32 %v3019, %v3114
    %v3116 = vpop.f32.mrf.mxu0
    %3117 = vdwg.mxu0
    %v3118 = vmul.f32 %v3100, 0.5
    %v3119 = vmul.f32 %v3105, 0.5
    %v3120 = vmul.f32 %v3110, 0.5
    %v3121 = vmul.f32 %v3115, 0.5
    %v3122 = vmul.f32 %v3100, 0.044715
    %v3123 = vmul.f32 %v3105, 0.044715
    %v3124 = vmul.f32 %v3110, 0.044715
    %v3125 = vmul.f32 %v3115, 0.044715
    %v3126 = vmul.f32 %v3122, %v3100
    %v3127 = vmul.f32 %v3123, %v3105
    %v3128 = vmul.f32 %v3124, %v3110
    %v3129 = vmul.f32 %v3125, %v3115
    %v3130 = vmul.f32 %v3126, %v3100
    %v3131 = vmul.f32 %v3127, %v3105
    %v3132 = vmul.f32 %v3128, %v3110
    %v3133 = vmul.f32 %v3129, %v3115
    %v3134 = vadd.f32 %v3100, %v3130
    %v3135 = vadd.f32 %v3105, %v3131
    %v3136 = vadd.f32 %v3110, %v3132
    %v3137 = vadd.f32 %v3115, %v3133
    %v3138 = vmul.f32 %v3134, 0.7978846
    %v3139 = vmul.f32 %v3135, 0.7978846
    %v3140 = vmul.f32 %v3136, 0.7978846
    %v3141 = vmul.f32 %v3137, 0.7978846
    %v3142 = vtanh.pop %v3138
    %v3143 = vtanh.pop %v3139
    %v3144 = vtanh.pop %v3140
    %v3145 = vtanh.pop %v3141
    %v3146 = vadd.f32 %v3142, 1.0
    %v3147 = vadd.f32 %v3143, 1.0
    %v3148 = vadd.f32 %v3144, 1.0
    %v3149 = vadd.f32 %v3145, 1.0
    %v3150 = vmul.f32 %v3118, %v3146
    %v3151 = vmul.f32 %v3119, %v3147
    %v3152 = vmul.f32 %v3120, %v3148
    %v3153 = vmul.f32 %v3121, %v3149
    %v3154 = vld [vmem:[%s11] sm:$0xff]
    %v3155 = vld [vmem:[%s11 + $0x8] sm:$0xff]
    %v3156 = vld [vmem:[%s11 + $0x10] sm:$0xff]
    %v3157 = vld [vmem:[%s11 + $0x18] sm:$0xff]
    %v3158 = vld [vmem:[%s11 + $0x20] sm:$0xff]
    %v3159 = vld [vmem:[%s11 + $0x28] sm:$0xff]
    %v3160 = vld [vmem:[%s11 + $0x30] sm:$0xff]
    %v3161 = vld [vmem:[%s11 + $0x38] sm:$0xff]
    %v3162 = vld [vmem:[%s11 + $0x40] sm:$0xff]
    %v3163 = vld [vmem:[%s11 + $0x48] sm:$0xff]
    %v3164 = vld [vmem:[%s11 + $0x50] sm:$0xff]
    %v3165 = vld [vmem:[%s11 + $0x58] sm:$0xff]
    %v3166 = vld [vmem:[%s11 + $0x60] sm:$0xff]
    %v3167 = vld [vmem:[%s11 + $0x68] sm:$0xff]
    %v3168 = vld [vmem:[%s11 + $0x70] sm:$0xff]
    %v3169 = vld [vmem:[%s11 + $0x78] sm:$0xff]
    %v3170 = vlaneseq
    %v3171 = vshrl.u32 %v3170, 7
    %v3172 = vsub.s32 5, %v3171
    %v3173 = vrot.slane %v239, %v3172
    %3174 = vmatprep.subr.mxu0 0.0
    %3175 = vmatpush1.msra.mxu0 %v3169
    %3176 = vmatprep.subr.mxu0 0.0
    %3177 = vmatpush1.msra.mxu0 %v3168
    %3178 = vmatprep.subr.mxu0 0.0
    %3179 = vmatpush1.msra.mxu0 %v3167
    %3180 = vmatprep.subr.mxu0 0.0
    %3181 = vmatpush1.msra.mxu0 %v3166
    %3182 = vmatprep.subr.mxu0 0.0
    %3183 = vmatpush1.msra.mxu0 %v3165
    %3184 = vmatprep.subr.mxu0 0.0
    %3185 = vmatpush1.msra.mxu0 %v3164
    %3186 = vmatprep.subr.mxu0 0.0
    %3187 = vmatpush1.msra.mxu0 %v3163
    %3188 = vmatprep.subr.mxu0 0.0
    %3189 = vmatpush1.msra.mxu0 %v3162
    %3190 = vmatprep.subr.mxu0 0.0
    %3191 = vmatpush1.msra.mxu0 %v3161
    %3192 = vmatprep.subr.mxu0 0.0
    %3193 = vmatpush1.msra.mxu0 %v3160
    %3194 = vmatprep.subr.mxu0 0.0
    %3195 = vmatpush1.msra.mxu0 %v3159
    %3196 = vmatprep.subr.mxu0 0.0
    %3197 = vmatpush1.msra.mxu0 %v3158
    %3198 = vmatprep.subr.mxu0 0.0
    %3199 = vmatpush1.msra.mxu0 %v3157
    %3200 = vmatprep.subr.mxu0 0.0
    %3201 = vmatpush1.msra.mxu0 %v3156
    %3202 = vmatprep.subr.mxu0 0.0
    %3203 = vmatpush1.msra.mxu0 %v3155
    %3204 = vmatprep.subr.mxu0 0.0
    %3205 = vmatpush1.msra.mxu0 %v3154
    %3206 = vmatprep.subr.mxu0 0.0
    %3207 = vmatpush2.msra.mxu0 0.0
    %3208 = vmatprep.subr.mxu0 0.0
    %3209 = vmatpush2.msra.mxu0 0.0
    %3210 = vmatprep.subr.mxu0 0.0
    %3211 = vmatpush2.msra.mxu0 0.0
    %3212 = vmatprep.subr.mxu0 0.0
    %3213 = vmatpush2.msra.mxu0 0.0
    %3214 = vmatprep.subr.mxu0 0.0
    %3215 = vmatpush2.msra.mxu0 0.0
    %3216 = vmatprep.subr.mxu0 0.0
    %3217 = vmatpush2.msra.mxu0 0.0
    %3218 = vmatprep.subr.mxu0 0.0
    %3219 = vmatpush2.msra.mxu0 0.0
    %3220 = vmatprep.subr.mxu0 0.0
    %3221 = vmatpush2.msra.mxu0 0.0
    %3222 = vmatprep.subr.mxu0 0.0
    %3223 = vmatpush2.msra.mxu0 0.0
    %3224 = vmatprep.subr.mxu0 0.0
    %3225 = vmatpush2.msra.mxu0 0.0
    %3226 = vmatprep.subr.mxu0 0.0
    %3227 = vmatpush2.msra.mxu0 0.0
    %3228 = vmatprep.subr.mxu0 0.0
    %3229 = vmatpush2.msra.mxu0 0.0
    %3230 = vmatprep.subr.mxu0 0.0
    %3231 = vmatpush2.msra.mxu0 0.0
    %3232 = vmatprep.subr.mxu0 0.0
    %3233 = vmatpush2.msra.mxu0 0.0
    %3234 = vmatprep.subr.mxu0 0.0
    %3235 = vmatpush2.msra.mxu0 0.0
    %3236 = vmatprep.subr.mxu0 0.0
    %3237 = vmatpush2.msra.mxu0 0.0
    %3238 = vmatprep.mubr.f32.mxu0 0.0
    %3239 = vmatmul.mubr.f32.gmra.mxu0 %v3150
    %v3240 = vpop.f32.mrf.mxu0
    %v3241 = vadd.f32 %v3173, %v3240
    %v3242 = vpop.f32.mrf.mxu0
    %3243 = vmatprep.mubr.f32.mxu0 0.0
    %3244 = vmatmul.mubr.f32.gmra.mxu0 %v3151
    %v3245 = vpop.f32.mrf.mxu0
    %v3246 = vadd.f32 %v3173, %v3245
    %v3247 = vpop.f32.mrf.mxu0
    %3248 = vmatprep.mubr.f32.mxu0 0.0
    %3249 = vmatmul.mubr.f32.gmra.mxu0 %v3152
    %v3250 = vpop.f32.mrf.mxu0
    %v3251 = vadd.f32 %v3173, %v3250
    %v3252 = vpop.f32.mrf.mxu0
    %3253 = vmatprep.mubr.f32.mxu0 0.0
    %3254 = vmatmul.mubr.f32.gmra.mxu0 %v3153
    %v3255 = vpop.f32.mrf.mxu0
    %v3256 = vadd.f32 %v3173, %v3255
    %v3257 = vpop.f32.mrf.mxu0
    %3258 = vdwg.mxu0
    %v3259 = vadd.f32 %v2938, %v3241
    %v3260 = vadd.f32 %v2939, %v3246
    %v3261 = vadd.f32 %v2940, %v3251
    %v3262 = vadd.f32 %v2941, %v3256
    %s3263 = scalar_lea.vmem %s5, 8
    %v3264 = vld [vmem:[%s3263] sm:$0x3f]
    %v3265 = vsel %vm157, %v3259, 0.0
    %3266 = vadd.xlane.f32.xlu0 %v3265
    %v3267 = vpop.xlane.xlu0 %3266
    %v3268 = vsel %vm157, %v3260, 0.0
    %3269 = vadd.xlane.f32.xlu0 %v3268
    %v3270 = vpop.xlane.xlu0 %3269
    %v3271 = vsel %vm157, %v3261, 0.0
    %3272 = vadd.xlane.f32.xlu0 %v3271
    %v3273 = vpop.xlane.xlu0 %3272
    %v3274 = vsel %vm157, %v3262, 0.0
    %3275 = vadd.xlane.f32.xlu0 %v3274
    %v3276 = vpop.xlane.xlu0 %3275
    %v3277 = vmul.f32 %v3267, %v170
    %v3278 = vmul.f32 %v3270, %v170
    %v3279 = vmul.f32 %v3273, %v170
    %v3280 = vmul.f32 %v3276, %v170
    %v3281 = vsub.f32 %v3259, %v3277
    %v3282 = vsub.f32 %v3260, %v3278
    %v3283 = vsub.f32 %v3261, %v3279
    %v3284 = vsub.f32 %v3262, %v3280
    %v3285 = vmul.f32 %v3281, %v3281
    %v3286 = vmul.f32 %v3282, %v3282
    %v3287 = vmul.f32 %v3283, %v3283
    %v3288 = vmul.f32 %v3284, %v3284
    %v3289 = vsel %vm157, %v3285, 0.0
    %3290 = vadd.xlane.f32.xlu0 %v3289
    %v3291 = vpop.xlane.xlu0 %3290
    %v3292 = vsel %vm157, %v3286, 0.0
    %3293 = vadd.xlane.f32.xlu0 %v3292
    %v3294 = vpop.xlane.xlu0 %3293
    %v3295 = vsel %vm157, %v3287, 0.0
    %3296 = vadd.xlane.f32.xlu0 %v3295
    %v3297 = vpop.xlane.xlu0 %3296
    %v3298 = vsel %vm157, %v3288, 0.0
    %3299 = vadd.xlane.f32.xlu0 %v3298
    %v3300 = vpop.xlane.xlu0 %3299
    %v3301 = vmul.f32 %v3291, %v170
    %v3302 = vmul.f32 %v3294, %v170
    %v3303 = vmul.f32 %v3297, %v170
    %v3304 = vmul.f32 %v3300, %v170
    %v3305 = vadd.f32 %v3301, 1e-05
    %v3306 = vadd.f32 %v3302, 1e-05
    %v3307 = vadd.f32 %v3303, 1e-05
    %v3308 = vadd.f32 %v3304, 1e-05
    %v3309 = vrsqrt.pop %v3305
    %v3310 = vrsqrt.pop %v3306
    %v3311 = vrsqrt.pop %v3307
    %v3312 = vrsqrt.pop %v3308
    %v3313 = vmul.f32 %v3281, %v3309
    %v3314 = vmul.f32 %v3282, %v3310
    %v3315 = vmul.f32 %v3283, %v3311
    %v3316 = vmul.f32 %v3284, %v3312
    %v3317 = vlaneseq
    %v3318 = vshrl.u32 %v3317, 7
    %v3319 = vsub.s32 0, %v3318
    %v3320 = vrot.slane %v3264, %v3319
    %v3321 = vmul.f32 %v3313, %v3320
    %v3322 = vmul.f32 %v3314, %v3320
    %v3323 = vmul.f32 %v3315, %v3320
    %v3324 = vmul.f32 %v3316, %v3320
    %v3325 = vlaneseq
    %v3326 = vshrl.u32 %v3325, 7
    %v3327 = vsub.s32 1, %v3326
    %v3328 = vrot.slane %v3264, %v3327
    %v3329 = vadd.f32 %v3321, %v3328
    %v3330 = vadd.f32 %v3322, %v3328
    %v3331 = vadd.f32 %v3323, %v3328
    %v3332 = vadd.f32 %v3324, %v3328
    %s3333 = scalar_lea.vmem %s6, 384
    %v3334 = vld [vmem:[%s3333] sm:$0xff]
    %v3335 = vld [vmem:[%s3333 + $0x8] sm:$0xff]
    %v3336 = vld [vmem:[%s3333 + $0x10] sm:$0xff]
    %v3337 = vld [vmem:[%s3333 + $0x18] sm:$0xff]
    %s3338 = scalar_lea.vmem %s7, 12
    %v3339 = vld [vmem:[%s3338] sm:$0x1]
    %v3341 = vlaneseq
    %v3342 = vshrl.u32 %v3341, 7
    %v3343 = vsub.s32 0, %v3342
    %v3344 = vrot.slane %v3339, %v3343
    %v3347 = vsel %vm157, %v3329, 0
    %v3350 = vsel %vm157, %v3330, 0
    %v3353 = vsel %vm157, %v3331, 0
    %v3356 = vsel %vm157, %v3332, 0
    %3358 = vmatprep.subr.mxu0 0.0
    %3359 = vmatpush1.msra.mxu0 0.0
    %3360 = vmatprep.subr.mxu0 0.0
    %3361 = vmatpush1.msra.mxu0 0.0
    %3362 = vmatprep.subr.mxu0 0.0
    %3363 = vmatpush1.msra.mxu0 0.0
    %3364 = vmatprep.subr.mxu0 0.0
    %3365 = vmatpush1.msra.mxu0 0.0
    %3366 = vmatprep.subr.mxu0 0.0
    %3367 = vmatpush1.msra.mxu0 0.0
    %3368 = vmatprep.subr.mxu0 0.0
    %3369 = vmatpush1.msra.mxu0 0.0
    %3370 = vmatprep.subr.mxu0 0.0
    %3371 = vmatpush1.msra.mxu0 0.0
    %3372 = vmatprep.subr.mxu0 0.0
    %3373 = vmatpush1.msra.mxu0 0.0
    %3374 = vmatprep.subr.mxu0 0.0
    %3375 = vmatpush1.msra.mxu0 0.0
    %3376 = vmatprep.subr.mxu0 0.0
    %3377 = vmatpush1.msra.mxu0 0.0
    %3378 = vmatprep.subr.mxu0 0.0
    %3379 = vmatpush1.msra.mxu0 0.0
    %3380 = vmatprep.subr.mxu0 0.0
    %3381 = vmatpush1.msra.mxu0 0.0
    %3382 = vmatprep.subr.mxu0 0.0
    %3383 = vmatpush1.msra.mxu0 %v3337
    %3384 = vmatprep.subr.mxu0 0.0
    %3385 = vmatpush1.msra.mxu0 %v3336
    %3386 = vmatprep.subr.mxu0 0.0
    %3387 = vmatpush1.msra.mxu0 %v3335
    %3388 = vmatprep.subr.mxu0 0.0
    %3389 = vmatpush1.msra.mxu0 %v3334
    %3390 = vmatprep.subr.mxu0 0.0
    %3391 = vmatpush2.msra.mxu0 0.0
    %3392 = vmatprep.subr.mxu0 0.0
    %3393 = vmatpush2.msra.mxu0 0.0
    %3394 = vmatprep.subr.mxu0 0.0
    %3395 = vmatpush2.msra.mxu0 0.0
    %3396 = vmatprep.subr.mxu0 0.0
    %3397 = vmatpush2.msra.mxu0 0.0
    %3398 = vmatprep.subr.mxu0 0.0
    %3399 = vmatpush2.msra.mxu0 0.0
    %3400 = vmatprep.subr.mxu0 0.0
    %3401 = vmatpush2.msra.mxu0 0.0
    %3402 = vmatprep.subr.mxu0 0.0
    %3403 = vmatpush2.msra.mxu0 0.0
    %3404 = vmatprep.subr.mxu0 0.0
    %3405 = vmatpush2.msra.mxu0 0.0
    %3406 = vmatprep.subr.mxu0 0.0
    %3407 = vmatpush2.msra.mxu0 0.0
    %3408 = vmatprep.subr.mxu0 0.0
    %3409 = vmatpush2.msra.mxu0 0.0
    %3410 = vmatprep.subr.mxu0 0.0
    %3411 = vmatpush2.msra.mxu0 0.0
    %3412 = vmatprep.subr.mxu0 0.0
    %3413 = vmatpush2.msra.mxu0 0.0
    %3414 = vmatprep.subr.mxu0 0.0
    %3415 = vmatpush2.msra.mxu0 0.0
    %3416 = vmatprep.subr.mxu0 0.0
    %3417 = vmatpush2.msra.mxu0 0.0
    %3418 = vmatprep.subr.mxu0 0.0
    %3419 = vmatpush2.msra.mxu0 0.0
    %3420 = vmatprep.subr.mxu0 0.0
    %3421 = vmatpush2.msra.mxu0 0.0
    %3422 = vmatprep.mubr.f32.mxu0 0.0
    %3423 = vmatmul.mubr.f32.gmra.mxu0 %v3347
    %v3424 = vpop.f32.mrf.mxu0
    %v3425 = vadd.f32 %v3344, %v3424
    %v3426 = vpop.f32.mrf.mxu0
    %3427 = vmatprep.mubr.f32.mxu0 0.0
    %3428 = vmatmul.mubr.f32.gmra.mxu0 %v3350
    %v3429 = vpop.f32.mrf.mxu0
    %v3430 = vadd.f32 %v3344, %v3429
    %v3431 = vpop.f32.mrf.mxu0
    %3432 = vmatprep.mubr.f32.mxu0 0.0
    %3433 = vmatmul.mubr.f32.gmra.mxu0 %v3353
    %v3434 = vpop.f32.mrf.mxu0
    %v3435 = vadd.f32 %v3344, %v3434
    %v3436 = vpop.f32.mrf.mxu0
    %3437 = vmatprep.mubr.f32.mxu0 0.0
    %3438 = vmatmul.mubr.f32.gmra.mxu0 %v3356
    %v3439 = vpop.f32.mrf.mxu0
    %v3440 = vadd.f32 %v3344, %v3439
    %v3441 = vpop.f32.mrf.mxu0
    %3442 = vdwg.mxu0
    %s3443 = scalar_lea.vmem %s6, 512
    %v3444 = vld [vmem:[%s3443] sm:$0xff]
    %v3445 = vld [vmem:[%s3443 + $0x8] sm:$0xff]
    %v3446 = vld [vmem:[%s3443 + $0x10] sm:$0xff]
    %v3447 = vld [vmem:[%s3443 + $0x18] sm:$0xff]
    %s3448 = scalar_lea.vmem %s7, 16
    %v3449 = vld [vmem:[%s3448] sm:$0x1]
    %v3451 = vlaneseq
    %v3452 = vshrl.u32 %v3451, 7
    %v3453 = vsub.s32 0, %v3452
    %v3454 = vrot.slane %v3449, %v3453
    %3456 = vmatprep.subr.mxu0 0.0
    %3457 = vmatpush1.msra.mxu0 0.0
    %3458 = vmatprep.subr.mxu0 0.0
    %3459 = vmatpush1.msra.mxu0 0.0
    %3460 = vmatprep.subr.mxu0 0.0
    %3461 = vmatpush1.msra.mxu0 0.0
    %3462 = vmatprep.subr.mxu0 0.0
    %3463 = vmatpush1.msra.mxu0 0.0
    %3464 = vmatprep.subr.mxu0 0.0
    %3465 = vmatpush1.msra.mxu0 0.0
    %3466 = vmatprep.subr.mxu0 0.0
    %3467 = vmatpush1.msra.mxu0 0.0
    %3468 = vmatprep.subr.mxu0 0.0
    %3469 = vmatpush1.msra.mxu0 0.0
    %3470 = vmatprep.subr.mxu0 0.0
    %3471 = vmatpush1.msra.mxu0 0.0
    %3472 = vmatprep.subr.mxu0 0.0
    %3473 = vmatpush1.msra.mxu0 0.0
    %3474 = vmatprep.subr.mxu0 0.0
    %3475 = vmatpush1.msra.mxu0 0.0
    %3476 = vmatprep.subr.mxu0 0.0
    %3477 = vmatpush1.msra.mxu0 0.0
    %3478 = vmatprep.subr.mxu0 0.0
    %3479 = vmatpush1.msra.mxu0 0.0
    %3480 = vmatprep.subr.mxu0 0.0
    %3481 = vmatpush1.msra.mxu0 %v3447
    %3482 = vmatprep.subr.mxu0 0.0
    %3483 = vmatpush1.msra.mxu0 %v3446
    %3484 = vmatprep.subr.mxu0 0.0
    %3485 = vmatpush1.msra.mxu0 %v3445
    %3486 = vmatprep.subr.mxu0 0.0
    %3487 = vmatpush1.msra.mxu0 %v3444
    %3488 = vmatprep.subr.mxu0 0.0
    %3489 = vmatpush2.msra.mxu0 0.0
    %3490 = vmatprep.subr.mxu0 0.0
    %3491 = vmatpush2.msra.mxu0 0.0
    %3492 = vmatprep.subr.mxu0 0.0
    %3493 = vmatpush2.msra.mxu0 0.0
    %3494 = vmatprep.subr.mxu0 0.0
    %3495 = vmatpush2.msra.mxu0 0.0
    %3496 = vmatprep.subr.mxu0 0.0
    %3497 = vmatpush2.msra.mxu0 0.0
    %3498 = vmatprep.subr.mxu0 0.0
    %3499 = vmatpush2.msra.mxu0 0.0
    %3500 = vmatprep.subr.mxu0 0.0
    %3501 = vmatpush2.msra.mxu0 0.0
    %3502 = vmatprep.subr.mxu0 0.0
    %3503 = vmatpush2.msra.mxu0 0.0
    %3504 = vmatprep.subr.mxu0 0.0
    %3505 = vmatpush2.msra.mxu0 0.0
    %3506 = vmatprep.subr.mxu0 0.0
    %3507 = vmatpush2.msra.mxu0 0.0
    %3508 = vmatprep.subr.mxu0 0.0
    %3509 = vmatpush2.msra.mxu0 0.0
    %3510 = vmatprep.subr.mxu0 0.0
    %3511 = vmatpush2.msra.mxu0 0.0
    %3512 = vmatprep.subr.mxu0 0.0
    %3513 = vmatpush2.msra.mxu0 0.0
    %3514 = vmatprep.subr.mxu0 0.0
    %3515 = vmatpush2.msra.mxu0 0.0
    %3516 = vmatprep.subr.mxu0 0.0
    %3517 = vmatpush2.msra.mxu0 0.0
    %3518 = vmatprep.subr.mxu0 0.0
    %3519 = vmatpush2.msra.mxu0 0.0
    %3520 = vmatprep.mubr.f32.mxu0 0.0
    %3521 = vmatmul.mubr.f32.gmra.mxu0 %v3347
    %v3522 = vpop.f32.mrf.mxu0
    %v3523 = vadd.f32 %v3454, %v3522
    %v3524 = vpop.f32.mrf.mxu0
    %3525 = vmatprep.mubr.f32.mxu0 0.0
    %3526 = vmatmul.mubr.f32.gmra.mxu0 %v3350
    %v3527 = vpop.f32.mrf.mxu0
    %v3528 = vadd.f32 %v3454, %v3527
    %v3529 = vpop.f32.mrf.mxu0
    %3530 = vmatprep.mubr.f32.mxu0 0.0
    %3531 = vmatmul.mubr.f32.gmra.mxu0 %v3353
    %v3532 = vpop.f32.mrf.mxu0
    %v3533 = vadd.f32 %v3454, %v3532
    %v3534 = vpop.f32.mrf.mxu0
    %3535 = vmatprep.mubr.f32.mxu0 0.0
    %3536 = vmatmul.mubr.f32.gmra.mxu0 %v3356
    %v3537 = vpop.f32.mrf.mxu0
    %v3538 = vadd.f32 %v3454, %v3537
    %v3539 = vpop.f32.mrf.mxu0
    %3540 = vdwg.mxu0
    %s3541 = scalar_lea.vmem %s6, 640
    %v3542 = vld [vmem:[%s3541] sm:$0xff]
    %v3543 = vld [vmem:[%s3541 + $0x8] sm:$0xff]
    %v3544 = vld [vmem:[%s3541 + $0x10] sm:$0xff]
    %v3545 = vld [vmem:[%s3541 + $0x18] sm:$0xff]
    %s3546 = scalar_lea.vmem %s7, 20
    %v3547 = vld [vmem:[%s3546] sm:$0x1]
    %v3549 = vlaneseq
    %v3550 = vshrl.u32 %v3549, 7
    %v3551 = vsub.s32 0, %v3550
    %v3552 = vrot.slane %v3547, %v3551
    %3554 = vmatprep.subr.mxu0 0.0
    %3555 = vmatpush1.msra.mxu0 0.0
    %3556 = vmatprep.subr.mxu0 0.0
    %3557 = vmatpush1.msra.mxu0 0.0
    %3558 = vmatprep.subr.mxu0 0.0
    %3559 = vmatpush1.msra.mxu0 0.0
    %3560 = vmatprep.subr.mxu0 0.0
    %3561 = vmatpush1.msra.mxu0 0.0
    %3562 = vmatprep.subr.mxu0 0.0
    %3563 = vmatpush1.msra.mxu0 0.0
    %3564 = vmatprep.subr.mxu0 0.0
    %3565 = vmatpush1.msra.mxu0 0.0
    %3566 = vmatprep.subr.mxu0 0.0
    %3567 = vmatpush1.msra.mxu0 0.0
    %3568 = vmatprep.subr.mxu0 0.0
    %3569 = vmatpush1.msra.mxu0 0.0
    %3570 = vmatprep.subr.mxu0 0.0
    %3571 = vmatpush1.msra.mxu0 0.0
    %3572 = vmatprep.subr.mxu0 0.0
    %3573 = vmatpush1.msra.mxu0 0.0
    %3574 = vmatprep.subr.mxu0 0.0
    %3575 = vmatpush1.msra.mxu0 0.0
    %3576 = vmatprep.subr.mxu0 0.0
    %3577 = vmatpush1.msra.mxu0 0.0
    %3578 = vmatprep.subr.mxu0 0.0
    %3579 = vmatpush1.msra.mxu0 %v3545
    %3580 = vmatprep.subr.mxu0 0.0
    %3581 = vmatpush1.msra.mxu0 %v3544
    %3582 = vmatprep.subr.mxu0 0.0
    %3583 = vmatpush1.msra.mxu0 %v3543
    %3584 = vmatprep.subr.mxu0 0.0
    %3585 = vmatpush1.msra.mxu0 %v3542
    %3586 = vmatprep.subr.mxu0 0.0
    %3587 = vmatpush2.msra.mxu0 0.0
    %3588 = vmatprep.subr.mxu0 0.0
    %3589 = vmatpush2.msra.mxu0 0.0
    %3590 = vmatprep.subr.mxu0 0.0
    %3591 = vmatpush2.msra.mxu0 0.0
    %3592 = vmatprep.subr.mxu0 0.0
    %3593 = vmatpush2.msra.mxu0 0.0
    %3594 = vmatprep.subr.mxu0 0.0
    %3595 = vmatpush2.msra.mxu0 0.0
    %3596 = vmatprep.subr.mxu0 0.0
    %3597 = vmatpush2.msra.mxu0 0.0
    %3598 = vmatprep.subr.mxu0 0.0
    %3599 = vmatpush2.msra.mxu0 0.0
    %3600 = vmatprep.subr.mxu0 0.0
    %3601 = vmatpush2.msra.mxu0 0.0
    %3602 = vmatprep.subr.mxu0 0.0
    %3603 = vmatpush2.msra.mxu0 0.0
    %3604 = vmatprep.subr.mxu0 0.0
    %3605 = vmatpush2.msra.mxu0 0.0
    %3606 = vmatprep.subr.mxu0 0.0
    %3607 = vmatpush2.msra.mxu0 0.0
    %3608 = vmatprep.subr.mxu0 0.0
    %3609 = vmatpush2.msra.mxu0 0.0
    %3610 = vmatprep.subr.mxu0 0.0
    %3611 = vmatpush2.msra.mxu0 0.0
    %3612 = vmatprep.subr.mxu0 0.0
    %3613 = vmatpush2.msra.mxu0 0.0
    %3614 = vmatprep.subr.mxu0 0.0
    %3615 = vmatpush2.msra.mxu0 0.0
    %3616 = vmatprep.subr.mxu0 0.0
    %3617 = vmatpush2.msra.mxu0 0.0
    %3618 = vmatprep.mubr.f32.mxu0 0.0
    %3619 = vmatmul.mubr.f32.gmra.mxu0 %v3347
    %v3620 = vpop.f32.mrf.mxu0
    %v3621 = vadd.f32 %v3552, %v3620
    %v3622 = vpop.f32.mrf.mxu0
    %3623 = vmatprep.mubr.f32.mxu0 0.0
    %3624 = vmatmul.mubr.f32.gmra.mxu0 %v3350
    %v3625 = vpop.f32.mrf.mxu0
    %v3626 = vadd.f32 %v3552, %v3625
    %v3627 = vpop.f32.mrf.mxu0
    %3628 = vmatprep.mubr.f32.mxu0 0.0
    %3629 = vmatmul.mubr.f32.gmra.mxu0 %v3353
    %v3630 = vpop.f32.mrf.mxu0
    %v3631 = vadd.f32 %v3552, %v3630
    %v3632 = vpop.f32.mrf.mxu0
    %3633 = vmatprep.mubr.f32.mxu0 0.0
    %3634 = vmatmul.mubr.f32.gmra.mxu0 %v3356
    %v3635 = vpop.f32.mrf.mxu0
    %v3636 = vadd.f32 %v3552, %v3635
    %v3637 = vpop.f32.mrf.mxu0
    %3638 = vdwg.mxu0
    %v3640 = vsel %vm612, %v3425, 0
    %v3643 = vsel %vm612, %v3430, 0
    %v3646 = vsel %vm612, %v3435, 0
    %v3649 = vsel %vm612, %v3440, 0
    %v3652 = vsel %vm612, %v3523, 0
    %v3655 = vsel %vm612, %v3528, 0
    %v3658 = vsel %vm612, %v3533, 0
    %v3661 = vsel %vm612, %v3538, 0
    %3663 = vmatprep.subr.mxu0 0.0
    %3664 = vmatpush1.xpose.msra.mxu0 0.0
    %3665 = vmatprep.subr.mxu0 0.0
    %3666 = vmatpush1.xpose.msra.mxu0 0.0
    %3667 = vmatprep.subr.mxu0 0.0
    %3668 = vmatpush1.xpose.msra.mxu0 0.0
    %3669 = vmatprep.subr.mxu0 0.0
    %3670 = vmatpush1.xpose.msra.mxu0 0.0
    %3671 = vmatprep.subr.mxu0 0.0
    %3672 = vmatpush1.xpose.msra.mxu0 0.0
    %3673 = vmatprep.subr.mxu0 0.0
    %3674 = vmatpush1.xpose.msra.mxu0 0.0
    %3675 = vmatprep.subr.mxu0 0.0
    %3676 = vmatpush1.xpose.msra.mxu0 0.0
    %3677 = vmatprep.subr.mxu0 0.0
    %3678 = vmatpush1.xpose.msra.mxu0 0.0
    %3679 = vmatprep.subr.mxu0 0.0
    %3680 = vmatpush1.xpose.msra.mxu0 0.0
    %3681 = vmatprep.subr.mxu0 0.0
    %3682 = vmatpush1.xpose.msra.mxu0 0.0
    %3683 = vmatprep.subr.mxu0 0.0
    %3684 = vmatpush1.xpose.msra.mxu0 0.0
    %3685 = vmatprep.subr.mxu0 0.0
    %3686 = vmatpush1.xpose.msra.mxu0 0.0
    %3687 = vmatprep.subr.mxu0 0.0
    %3688 = vmatpush1.xpose.msra.mxu0 %v3661
    %3689 = vmatprep.subr.mxu0 0.0
    %3690 = vmatpush1.xpose.msra.mxu0 %v3658
    %3691 = vmatprep.subr.mxu0 0.0
    %3692 = vmatpush1.xpose.msra.mxu0 %v3655
    %3693 = vmatprep.subr.mxu0 0.0
    %3694 = vmatpush1.xpose.msra.mxu0 %v3652
    %3695 = vmatprep.subr.mxu0 0.0
    %3696 = vmatpush2.xpose.msra.mxu0 0.0
    %3697 = vmatprep.subr.mxu0 0.0
    %3698 = vmatpush2.xpose.msra.mxu0 0.0
    %3699 = vmatprep.subr.mxu0 0.0
    %3700 = vmatpush2.xpose.msra.mxu0 0.0
    %3701 = vmatprep.subr.mxu0 0.0
    %3702 = vmatpush2.xpose.msra.mxu0 0.0
    %3703 = vmatprep.subr.mxu0 0.0
    %3704 = vmatpush2.xpose.msra.mxu0 0.0
    %3705 = vmatprep.subr.mxu0 0.0
    %3706 = vmatpush2.xpose.msra.mxu0 0.0
    %3707 = vmatprep.subr.mxu0 0.0
    %3708 = vmatpush2.xpose.msra.mxu0 0.0
    %3709 = vmatprep.subr.mxu0 0.0
    %3710 = vmatpush2.xpose.msra.mxu0 0.0
    %3711 = vmatprep.subr.mxu0 0.0
    %3712 = vmatpush2.xpose.msra.mxu0 0.0
    %3713 = vmatprep.subr.mxu0 0.0
    %3714 = vmatpush2.xpose.msra.mxu0 0.0
    %3715 = vmatprep.subr.mxu0 0.0
    %3716 = vmatpush2.xpose.msra.mxu0 0.0
    %3717 = vmatprep.subr.mxu0 0.0
    %3718 = vmatpush2.xpose.msra.mxu0 0.0
    %3719 = vmatprep.subr.mxu0 0.0
    %3720 = vmatpush2.xpose.msra.mxu0 0.0
    %3721 = vmatprep.subr.mxu0 0.0
    %3722 = vmatpush2.xpose.msra.mxu0 0.0
    %3723 = vmatprep.subr.mxu0 0.0
    %3724 = vmatpush2.xpose.msra.mxu0 0.0
    %3725 = vmatprep.subr.mxu0 0.0
    %3726 = vmatpush2.xpose.msra.mxu0 0.0
    %3727 = vmatprep.mubr.f32.mxu0 0.0
    %3728 = vmatmul.mubr.f32.gmra.mxu0 %v3640
    %v3729 = vpop.f32.mrf.mxu0
    %v3730 = vadd.f32 0.0, %v3729
    %v3731 = vpop.f32.mrf.mxu0
    %3732 = vmatprep.mubr.f32.mxu0 0.0
    %3733 = vmatmul.mubr.f32.gmra.mxu0 %v3643
    %v3734 = vpop.f32.mrf.mxu0
    %v3735 = vadd.f32 0.0, %v3734
    %v3736 = vpop.f32.mrf.mxu0
    %3737 = vmatprep.mubr.f32.mxu0 0.0
    %3738 = vmatmul.mubr.f32.gmra.mxu0 %v3646
    %v3739 = vpop.f32.mrf.mxu0
    %v3740 = vadd.f32 0.0, %v3739
    %v3741 = vpop.f32.mrf.mxu0
    %3742 = vmatprep.mubr.f32.mxu0 0.0
    %3743 = vmatmul.mubr.f32.gmra.mxu0 %v3649
    %v3744 = vpop.f32.mrf.mxu0
    %v3745 = vadd.f32 0.0, %v3744
    %v3746 = vpop.f32.mrf.mxu0
    %3747 = vdwg.mxu0
    %v3748 = vmul.f32 %v3730, 0.35355338
    %v3749 = vmul.f32 %v3735, 0.35355338
    %v3750 = vmul.f32 %v3740, 0.35355338
    %v3751 = vmul.f32 %v3745, 0.35355338
    %v3752 = vadd.f32 %v3748, %v235
    %v3753 = vadd.f32 %v3749, %v236
    %v3754 = vadd.f32 %v3750, %v237
    %v3755 = vadd.f32 %v3751, %v238
    %v3756 = vsel %vm157, %v3752, -inf
    %3757 = vmax.xlane.f32.xlu0 %v3756
    %v3758 = vpop.xlane.xlu0 %3757
    %v3759 = vsel %vm157, %v3753, -inf
    %3760 = vmax.xlane.f32.xlu0 %v3759
    %v3761 = vpop.xlane.xlu0 %3760
    %v3762 = vsel %vm157, %v3754, -inf
    %3763 = vmax.xlane.f32.xlu0 %v3762
    %v3764 = vpop.xlane.xlu0 %3763
    %v3765 = vsel %vm157, %v3755, -inf
    %3766 = vmax.xlane.f32.xlu0 %v3765
    %v3767 = vpop.xlane.xlu0 %3766
    %v3768 = vsub.f32 %v3752, %v3758
    %v3769 = vsub.f32 %v3753, %v3761
    %v3770 = vsub.f32 %v3754, %v3764
    %v3771 = vsub.f32 %v3755, %v3767
    %v3772 = vmul.f32 %v3768, 1.442695
    %v3773 = vpow.pop %v3772
    %v3774 = vmul.f32 %v3769, 1.442695
    %v3775 = vpow.pop %v3774
    %v3776 = vmul.f32 %v3770, 1.442695
    %v3777 = vpow.pop %v3776
    %v3778 = vmul.f32 %v3771, 1.442695
    %v3779 = vpow.pop %v3778
    %v3780 = vsel %vm157, %v3773, 0.0
    %3781 = vadd.xlane.f32.xlu0 %v3780
    %v3782 = vpop.xlane.xlu0 %3781
    %v3783 = vsel %vm157, %v3775, 0.0
    %3784 = vadd.xlane.f32.xlu0 %v3783
    %v3785 = vpop.xlane.xlu0 %3784
    %v3786 = vsel %vm157, %v3777, 0.0
    %3787 = vadd.xlane.f32.xlu0 %v3786
    %v3788 = vpop.xlane.xlu0 %3787
    %v3789 = vsel %vm157, %v3779, 0.0
    %3790 = vadd.xlane.f32.xlu0 %v3789
    %v3791 = vpop.xlane.xlu0 %3790
    %v3792 = vrcp.pop %v3782
    %v3793 = vrcp.pop %v3785
    %v3794 = vrcp.pop %v3788
    %v3795 = vrcp.pop %v3791
    %v3796 = vmul.f32 %v3773, %v3792
    %v3797 = vmul.f32 %v3775, %v3793
    %v3798 = vmul.f32 %v3777, %v3794
    %v3799 = vmul.f32 %v3779, %v3795
    %v3801 = vsel %vm157, %v3796, 0
    %v3804 = vsel %vm157, %v3797, 0
    %v3807 = vsel %vm157, %v3798, 0
    %v3810 = vsel %vm157, %v3799, 0
    %3812 = vmatprep.subr.mxu0 0.0
    %3813 = vmatpush1.msra.mxu0 0.0
    %3814 = vmatprep.subr.mxu0 0.0
    %3815 = vmatpush1.msra.mxu0 0.0
    %3816 = vmatprep.subr.mxu0 0.0
    %3817 = vmatpush1.msra.mxu0 0.0
    %3818 = vmatprep.subr.mxu0 0.0
    %3819 = vmatpush1.msra.mxu0 0.0
    %3820 = vmatprep.subr.mxu0 0.0
    %3821 = vmatpush1.msra.mxu0 0.0
    %3822 = vmatprep.subr.mxu0 0.0
    %3823 = vmatpush1.msra.mxu0 0.0
    %3824 = vmatprep.subr.mxu0 0.0
    %3825 = vmatpush1.msra.mxu0 0.0
    %3826 = vmatprep.subr.mxu0 0.0
    %3827 = vmatpush1.msra.mxu0 0.0
    %3828 = vmatprep.subr.mxu0 0.0
    %3829 = vmatpush1.msra.mxu0 0.0
    %3830 = vmatprep.subr.mxu0 0.0
    %3831 = vmatpush1.msra.mxu0 0.0
    %3832 = vmatprep.subr.mxu0 0.0
    %3833 = vmatpush1.msra.mxu0 0.0
    %3834 = vmatprep.subr.mxu0 0.0
    %3835 = vmatpush1.msra.mxu0 0.0
    %3836 = vmatprep.subr.mxu0 0.0
    %3837 = vmatpush1.msra.mxu0 %v3636
    %3838 = vmatprep.subr.mxu0 0.0
    %3839 = vmatpush1.msra.mxu0 %v3631
    %3840 = vmatprep.subr.mxu0 0.0
    %3841 = vmatpush1.msra.mxu0 %v3626
    %3842 = vmatprep.subr.mxu0 0.0
    %3843 = vmatpush1.msra.mxu0 %v3621
    %3844 = vmatprep.subr.mxu0 0.0
    %3845 = vmatpush2.msra.mxu0 0.0
    %3846 = vmatprep.subr.mxu0 0.0
    %3847 = vmatpush2.msra.mxu0 0.0
    %3848 = vmatprep.subr.mxu0 0.0
    %3849 = vmatpush2.msra.mxu0 0.0
    %3850 = vmatprep.subr.mxu0 0.0
    %3851 = vmatpush2.msra.mxu0 0.0
    %3852 = vmatprep.subr.mxu0 0.0
    %3853 = vmatpush2.msra.mxu0 0.0
    %3854 = vmatprep.subr.mxu0 0.0
    %3855 = vmatpush2.msra.mxu0 0.0
    %3856 = vmatprep.subr.mxu0 0.0
    %3857 = vmatpush2.msra.mxu0 0.0
    %3858 = vmatprep.subr.mxu0 0.0
    %3859 = vmatpush2.msra.mxu0 0.0
    %3860 = vmatprep.subr.mxu0 0.0
    %3861 = vmatpush2.msra.mxu0 0.0
    %3862 = vmatprep.subr.mxu0 0.0
    %3863 = vmatpush2.msra.mxu0 0.0
    %3864 = vmatprep.subr.mxu0 0.0
    %3865 = vmatpush2.msra.mxu0 0.0
    %3866 = vmatprep.subr.mxu0 0.0
    %3867 = vmatpush2.msra.mxu0 0.0
    %3868 = vmatprep.subr.mxu0 0.0
    %3869 = vmatpush2.msra.mxu0 0.0
    %3870 = vmatprep.subr.mxu0 0.0
    %3871 = vmatpush2.msra.mxu0 0.0
    %3872 = vmatprep.subr.mxu0 0.0
    %3873 = vmatpush2.msra.mxu0 0.0
    %3874 = vmatprep.subr.mxu0 0.0
    %3875 = vmatpush2.msra.mxu0 0.0
    %3876 = vmatprep.mubr.f32.mxu0 0.0
    %3877 = vmatmul.mubr.f32.gmra.mxu0 %v3801
    %v3878 = vpop.f32.mrf.mxu0
    %v3879 = vadd.f32 0.0, %v3878
    %v3880 = vpop.f32.mrf.mxu0
    %3881 = vmatprep.mubr.f32.mxu0 0.0
    %3882 = vmatmul.mubr.f32.gmra.mxu0 %v3804
    %v3883 = vpop.f32.mrf.mxu0
    %v3884 = vadd.f32 0.0, %v3883
    %v3885 = vpop.f32.mrf.mxu0
    %3886 = vmatprep.mubr.f32.mxu0 0.0
    %3887 = vmatmul.mubr.f32.gmra.mxu0 %v3807
    %v3888 = vpop.f32.mrf.mxu0
    %v3889 = vadd.f32 0.0, %v3888
    %v3890 = vpop.f32.mrf.mxu0
    %3891 = vmatprep.mubr.f32.mxu0 0.0
    %3892 = vmatmul.mubr.f32.gmra.mxu0 %v3810
    %v3893 = vpop.f32.mrf.mxu0
    %v3894 = vadd.f32 0.0, %v3893
    %v3895 = vpop.f32.mrf.mxu0
    %3896 = vdwg.mxu0
    %s3897 = scalar_lea.vmem %s8, 32
    %v3898 = vld [vmem:[%s3897] sm:$0xff]
    %s3899 = scalar_lea.vmem %s6, 416
    %v3900 = vld [vmem:[%s3899] sm:$0xff]
    %v3901 = vld [vmem:[%s3899 + $0x8] sm:$0xff]
    %v3902 = vld [vmem:[%s3899 + $0x10] sm:$0xff]
    %v3903 = vld [vmem:[%s3899 + $0x18] sm:$0xff]
    %s3904 = scalar_lea.vmem %s7, 13
    %v3905 = vld [vmem:[%s3904] sm:$0x1]
    %v3907 = vlaneseq
    %v3908 = vshrl.u32 %v3907, 7
    %v3909 = vsub.s32 0, %v3908
    %v3910 = vrot.slane %v3905, %v3909
    %3912 = vmatprep.subr.mxu0 0.0
    %3913 = vmatpush1.msra.mxu0 0.0
    %3914 = vmatprep.subr.mxu0 0.0
    %3915 = vmatpush1.msra.mxu0 0.0
    %3916 = vmatprep.subr.mxu0 0.0
    %3917 = vmatpush1.msra.mxu0 0.0
    %3918 = vmatprep.subr.mxu0 0.0
    %3919 = vmatpush1.msra.mxu0 0.0
    %3920 = vmatprep.subr.mxu0 0.0
    %3921 = vmatpush1.msra.mxu0 0.0
    %3922 = vmatprep.subr.mxu0 0.0
    %3923 = vmatpush1.msra.mxu0 0.0
    %3924 = vmatprep.subr.mxu0 0.0
    %3925 = vmatpush1.msra.mxu0 0.0
    %3926 = vmatprep.subr.mxu0 0.0
    %3927 = vmatpush1.msra.mxu0 0.0
    %3928 = vmatprep.subr.mxu0 0.0
    %3929 = vmatpush1.msra.mxu0 0.0
    %3930 = vmatprep.subr.mxu0 0.0
    %3931 = vmatpush1.msra.mxu0 0.0
    %3932 = vmatprep.subr.mxu0 0.0
    %3933 = vmatpush1.msra.mxu0 0.0
    %3934 = vmatprep.subr.mxu0 0.0
    %3935 = vmatpush1.msra.mxu0 0.0
    %3936 = vmatprep.subr.mxu0 0.0
    %3937 = vmatpush1.msra.mxu0 %v3903
    %3938 = vmatprep.subr.mxu0 0.0
    %3939 = vmatpush1.msra.mxu0 %v3902
    %3940 = vmatprep.subr.mxu0 0.0
    %3941 = vmatpush1.msra.mxu0 %v3901
    %3942 = vmatprep.subr.mxu0 0.0
    %3943 = vmatpush1.msra.mxu0 %v3900
    %3944 = vmatprep.subr.mxu0 0.0
    %3945 = vmatpush2.msra.mxu0 0.0
    %3946 = vmatprep.subr.mxu0 0.0
    %3947 = vmatpush2.msra.mxu0 0.0
    %3948 = vmatprep.subr.mxu0 0.0
    %3949 = vmatpush2.msra.mxu0 0.0
    %3950 = vmatprep.subr.mxu0 0.0
    %3951 = vmatpush2.msra.mxu0 0.0
    %3952 = vmatprep.subr.mxu0 0.0
    %3953 = vmatpush2.msra.mxu0 0.0
    %3954 = vmatprep.subr.mxu0 0.0
    %3955 = vmatpush2.msra.mxu0 0.0
    %3956 = vmatprep.subr.mxu0 0.0
    %3957 = vmatpush2.msra.mxu0 0.0
    %3958 = vmatprep.subr.mxu0 0.0
    %3959 = vmatpush2.msra.mxu0 0.0
    %3960 = vmatprep.subr.mxu0 0.0
    %3961 = vmatpush2.msra.mxu0 0.0
    %3962 = vmatprep.subr.mxu0 0.0
    %3963 = vmatpush2.msra.mxu0 0.0
    %3964 = vmatprep.subr.mxu0 0.0
    %3965 = vmatpush2.msra.mxu0 0.0
    %3966 = vmatprep.subr.mxu0 0.0
    %3967 = vmatpush2.msra.mxu0 0.0
    %3968 = vmatprep.subr.mxu0 0.0
    %3969 = vmatpush2.msra.mxu0 0.0
    %3970 = vmatprep.subr.mxu0 0.0
    %3971 = vmatpush2.msra.mxu0 0.0
    %3972 = vmatprep.subr.mxu0 0.0
    %3973 = vmatpush2.msra.mxu0 0.0
    %3974 = vmatprep.subr.mxu0 0.0
    %3975 = vmatpush2.msra.mxu0 0.0
    %3976 = vmatprep.mubr.f32.mxu0 0.0
    %3977 = vmatmul.mubr.f32.gmra.mxu0 %v3347
    %v3978 = vpop.f32.mrf.mxu0
    %v3979 = vadd.f32 %v3910, %v3978
    %v3980 = vpop.f32.mrf.mxu0
    %3981 = vmatprep.mubr.f32.mxu0 0.0
    %3982 = vmatmul.mubr.f32.gmra.mxu0 %v3350
    %v3983 = vpop.f32.mrf.mxu0
    %v3984 = vadd.f32 %v3910, %v3983
    %v3985 = vpop.f32.mrf.mxu0
    %3986 = vmatprep.mubr.f32.mxu0 0.0
    %3987 = vmatmul.mubr.f32.gmra.mxu0 %v3353
    %v3988 = vpop.f32.mrf.mxu0
    %v3989 = vadd.f32 %v3910, %v3988
    %v3990 = vpop.f32.mrf.mxu0
    %3991 = vmatprep.mubr.f32.mxu0 0.0
    %3992 = vmatmul.mubr.f32.gmra.mxu0 %v3356
    %v3993 = vpop.f32.mrf.mxu0
    %v3994 = vadd.f32 %v3910, %v3993
    %v3995 = vpop.f32.mrf.mxu0
    %3996 = vdwg.mxu0
    %s3997 = scalar_lea.vmem %s6, 544
    %v3998 = vld [vmem:[%s3997] sm:$0xff]
    %v3999 = vld [vmem:[%s3997 + $0x8] sm:$0xff]
    %v4000 = vld [vmem:[%s3997 + $0x10] sm:$0xff]
    %v4001 = vld [vmem:[%s3997 + $0x18] sm:$0xff]
    %s4002 = scalar_lea.vmem %s7, 17
    %v4003 = vld [vmem:[%s4002] sm:$0x1]
    %v4005 = vlaneseq
    %v4006 = vshrl.u32 %v4005, 7
    %v4007 = vsub.s32 0, %v4006
    %v4008 = vrot.slane %v4003, %v4007
    %4010 = vmatprep.subr.mxu0 0.0
    %4011 = vmatpush1.msra.mxu0 0.0
    %4012 = vmatprep.subr.mxu0 0.0
    %4013 = vmatpush1.msra.mxu0 0.0
    %4014 = vmatprep.subr.mxu0 0.0
    %4015 = vmatpush1.msra.mxu0 0.0
    %4016 = vmatprep.subr.mxu0 0.0
    %4017 = vmatpush1.msra.mxu0 0.0
    %4018 = vmatprep.subr.mxu0 0.0
    %4019 = vmatpush1.msra.mxu0 0.0
    %4020 = vmatprep.subr.mxu0 0.0
    %4021 = vmatpush1.msra.mxu0 0.0
    %4022 = vmatprep.subr.mxu0 0.0
    %4023 = vmatpush1.msra.mxu0 0.0
    %4024 = vmatprep.subr.mxu0 0.0
    %4025 = vmatpush1.msra.mxu0 0.0
    %4026 = vmatprep.subr.mxu0 0.0
    %4027 = vmatpush1.msra.mxu0 0.0
    %4028 = vmatprep.subr.mxu0 0.0
    %4029 = vmatpush1.msra.mxu0 0.0
    %4030 = vmatprep.subr.mxu0 0.0
    %4031 = vmatpush1.msra.mxu0 0.0
    %4032 = vmatprep.subr.mxu0 0.0
    %4033 = vmatpush1.msra.mxu0 0.0
    %4034 = vmatprep.subr.mxu0 0.0
    %4035 = vmatpush1.msra.mxu0 %v4001
    %4036 = vmatprep.subr.mxu0 0.0
    %4037 = vmatpush1.msra.mxu0 %v4000
    %4038 = vmatprep.subr.mxu0 0.0
    %4039 = vmatpush1.msra.mxu0 %v3999
    %4040 = vmatprep.subr.mxu0 0.0
    %4041 = vmatpush1.msra.mxu0 %v3998
    %4042 = vmatprep.subr.mxu0 0.0
    %4043 = vmatpush2.msra.mxu0 0.0
    %4044 = vmatprep.subr.mxu0 0.0
    %4045 = vmatpush2.msra.mxu0 0.0
    %4046 = vmatprep.subr.mxu0 0.0
    %4047 = vmatpush2.msra.mxu0 0.0
    %4048 = vmatprep.subr.mxu0 0.0
    %4049 = vmatpush2.msra.mxu0 0.0
    %4050 = vmatprep.subr.mxu0 0.0
    %4051 = vmatpush2.msra.mxu0 0.0
    %4052 = vmatprep.subr.mxu0 0.0
    %4053 = vmatpush2.msra.mxu0 0.0
    %4054 = vmatprep.subr.mxu0 0.0
    %4055 = vmatpush2.msra.mxu0 0.0
    %4056 = vmatprep.subr.mxu0 0.0
    %4057 = vmatpush2.msra.mxu0 0.0
    %4058 = vmatprep.subr.mxu0 0.0
    %4059 = vmatpush2.msra.mxu0 0.0
    %4060 = vmatprep.subr.mxu0 0.0
    %4061 = vmatpush2.msra.mxu0 0.0
    %4062 = vmatprep.subr.mxu0 0.0
    %4063 = vmatpush2.msra.mxu0 0.0
    %4064 = vmatprep.subr.mxu0 0.0
    %4065 = vmatpush2.msra.mxu0 0.0
    %4066 = vmatprep.subr.mxu0 0.0
    %4067 = vmatpush2.msra.mxu0 0.0
    %4068 = vmatprep.subr.mxu0 0.0
    %4069 = vmatpush2.msra.mxu0 0.0
    %4070 = vmatprep.subr.mxu0 0.0
    %4071 = vmatpush2.msra.mxu0 0.0
    %4072 = vmatprep.subr.mxu0 0.0
    %4073 = vmatpush2.msra.mxu0 0.0
    %4074 = vmatprep.mubr.f32.mxu0 0.0
    %4075 = vmatmul.mubr.f32.gmra.mxu0 %v3347
    %v4076 = vpop.f32.mrf.mxu0
    %v4077 = vadd.f32 %v4008, %v4076
    %v4078 = vpop.f32.mrf.mxu0
    %4079 = vmatprep.mubr.f32.mxu0 0.0
    %4080 = vmatmul.mubr.f32.gmra.mxu0 %v3350
    %v4081 = vpop.f32.mrf.mxu0
    %v4082 = vadd.f32 %v4008, %v4081
    %v4083 = vpop.f32.mrf.mxu0
    %4084 = vmatprep.mubr.f32.mxu0 0.0
    %4085 = vmatmul.mubr.f32.gmra.mxu0 %v3353
    %v4086 = vpop.f32.mrf.mxu0
    %v4087 = vadd.f32 %v4008, %v4086
    %v4088 = vpop.f32.mrf.mxu0
    %4089 = vmatprep.mubr.f32.mxu0 0.0
    %4090 = vmatmul.mubr.f32.gmra.mxu0 %v3356
    %v4091 = vpop.f32.mrf.mxu0
    %v4092 = vadd.f32 %v4008, %v4091
    %v4093 = vpop.f32.mrf.mxu0
    %4094 = vdwg.mxu0
    %s4095 = scalar_lea.vmem %s6, 672
    %v4096 = vld [vmem:[%s4095] sm:$0xff]
    %v4097 = vld [vmem:[%s4095 + $0x8] sm:$0xff]
    %v4098 = vld [vmem:[%s4095 + $0x10] sm:$0xff]
    %v4099 = vld [vmem:[%s4095 + $0x18] sm:$0xff]
    %s4100 = scalar_lea.vmem %s7, 21
    %v4101 = vld [vmem:[%s4100] sm:$0x1]
    %v4103 = vlaneseq
    %v4104 = vshrl.u32 %v4103, 7
    %v4105 = vsub.s32 0, %v4104
    %v4106 = vrot.slane %v4101, %v4105
    %4108 = vmatprep.subr.mxu0 0.0
    %4109 = vmatpush1.msra.mxu0 0.0
    %4110 = vmatprep.subr.mxu0 0.0
    %4111 = vmatpush1.msra.mxu0 0.0
    %4112 = vmatprep.subr.mxu0 0.0
    %4113 = vmatpush1.msra.mxu0 0.0
    %4114 = vmatprep.subr.mxu0 0.0
    %4115 = vmatpush1.msra.mxu0 0.0
    %4116 = vmatprep.subr.mxu0 0.0
    %4117 = vmatpush1.msra.mxu0 0.0
    %4118 = vmatprep.subr.mxu0 0.0
    %4119 = vmatpush1.msra.mxu0 0.0
    %4120 = vmatprep.subr.mxu0 0.0
    %4121 = vmatpush1.msra.mxu0 0.0
    %4122 = vmatprep.subr.mxu0 0.0
    %4123 = vmatpush1.msra.mxu0 0.0
    %4124 = vmatprep.subr.mxu0 0.0
    %4125 = vmatpush1.msra.mxu0 0.0
    %4126 = vmatprep.subr.mxu0 0.0
    %4127 = vmatpush1.msra.mxu0 0.0
    %4128 = vmatprep.subr.mxu0 0.0
    %4129 = vmatpush1.msra.mxu0 0.0
    %4130 = vmatprep.subr.mxu0 0.0
    %4131 = vmatpush1.msra.mxu0 0.0
    %4132 = vmatprep.subr.mxu0 0.0
    %4133 = vmatpush1.msra.mxu0 %v4099
    %4134 = vmatprep.subr.mxu0 0.0
    %4135 = vmatpush1.msra.mxu0 %v4098
    %4136 = vmatprep.subr.mxu0 0.0
    %4137 = vmatpush1.msra.mxu0 %v4097
    %4138 = vmatprep.subr.mxu0 0.0
    %4139 = vmatpush1.msra.mxu0 %v4096
    %4140 = vmatprep.subr.mxu0 0.0
    %4141 = vmatpush2.msra.mxu0 0.0
    %4142 = vmatprep.subr.mxu0 0.0
    %4143 = vmatpush2.msra.mxu0 0.0
    %4144 = vmatprep.subr.mxu0 0.0
    %4145 = vmatpush2.msra.mxu0 0.0
    %4146 = vmatprep.subr.mxu0 0.0
    %4147 = vmatpush2.msra.mxu0 0.0
    %4148 = vmatprep.subr.mxu0 0.0
    %4149 = vmatpush2.msra.mxu0 0.0
    %4150 = vmatprep.subr.mxu0 0.0
    %4151 = vmatpush2.msra.mxu0 0.0
    %4152 = vmatprep.subr.mxu0 0.0
    %4153 = vmatpush2.msra.mxu0 0.0
    %4154 = vmatprep.subr.mxu0 0.0
    %4155 = vmatpush2.msra.mxu0 0.0
    %4156 = vmatprep.subr.mxu0 0.0
    %4157 = vmatpush2.msra.mxu0 0.0
    %4158 = vmatprep.subr.mxu0 0.0
    %4159 = vmatpush2.msra.mxu0 0.0
    %4160 = vmatprep.subr.mxu0 0.0
    %4161 = vmatpush2.msra.mxu0 0.0
    %4162 = vmatprep.subr.mxu0 0.0
    %4163 = vmatpush2.msra.mxu0 0.0
    %4164 = vmatprep.subr.mxu0 0.0
    %4165 = vmatpush2.msra.mxu0 0.0
    %4166 = vmatprep.subr.mxu0 0.0
    %4167 = vmatpush2.msra.mxu0 0.0
    %4168 = vmatprep.subr.mxu0 0.0
    %4169 = vmatpush2.msra.mxu0 0.0
    %4170 = vmatprep.subr.mxu0 0.0
    %4171 = vmatpush2.msra.mxu0 0.0
    %4172 = vmatprep.mubr.f32.mxu0 0.0
    %4173 = vmatmul.mubr.f32.gmra.mxu0 %v3347
    %v4174 = vpop.f32.mrf.mxu0
    %v4175 = vadd.f32 %v4106, %v4174
    %v4176 = vpop.f32.mrf.mxu0
    %4177 = vmatprep.mubr.f32.mxu0 0.0
    %4178 = vmatmul.mubr.f32.gmra.mxu0 %v3350
    %v4179 = vpop.f32.mrf.mxu0
    %v4180 = vadd.f32 %v4106, %v4179
    %v4181 = vpop.f32.mrf.mxu0
    %4182 = vmatprep.mubr.f32.mxu0 0.0
    %4183 = vmatmul.mubr.f32.gmra.mxu0 %v3353
    %v4184 = vpop.f32.mrf.mxu0
    %v4185 = vadd.f32 %v4106, %v4184
    %v4186 = vpop.f32.mrf.mxu0
    %4187 = vmatprep.mubr.f32.mxu0 0.0
    %4188 = vmatmul.mubr.f32.gmra.mxu0 %v3356
    %v4189 = vpop.f32.mrf.mxu0
    %v4190 = vadd.f32 %v4106, %v4189
    %v4191 = vpop.f32.mrf.mxu0
    %4192 = vdwg.mxu0
    %v4194 = vsel %vm612, %v3979, 0
    %v4197 = vsel %vm612, %v3984, 0
    %v4200 = vsel %vm612, %v3989, 0
    %v4203 = vsel %vm612, %v3994, 0
    %v4206 = vsel %vm612, %v4077, 0
    %v4209 = vsel %vm612, %v4082, 0
    %v4212 = vsel %vm612, %v4087, 0
    %v4215 = vsel %vm612, %v4092, 0
    %4217 = vmatprep.subr.mxu0 0.0
    %4218 = vmatpush1.xpose.msra.mxu0 0.0
    %4219 = vmatprep.subr.mxu0 0.0
    %4220 = vmatpush1.xpose.msra.mxu0 0.0
    %4221 = vmatprep.subr.mxu0 0.0
    %4222 = vmatpush1.xpose.msra.mxu0 0.0
    %4223 = vmatprep.subr.mxu0 0.0
    %4224 = vmatpush1.xpose.msra.mxu0 0.0
    %4225 = vmatprep.subr.mxu0 0.0
    %4226 = vmatpush1.xpose.msra.mxu0 0.0
    %4227 = vmatprep.subr.mxu0 0.0
    %4228 = vmatpush1.xpose.msra.mxu0 0.0
    %4229 = vmatprep.subr.mxu0 0.0
    %4230 = vmatpush1.xpose.msra.mxu0 0.0
    %4231 = vmatprep.subr.mxu0 0.0
    %4232 = vmatpush1.xpose.msra.mxu0 0.0
    %4233 = vmatprep.subr.mxu0 0.0
    %4234 = vmatpush1.xpose.msra.mxu0 0.0
    %4235 = vmatprep.subr.mxu0 0.0
    %4236 = vmatpush1.xpose.msra.mxu0 0.0
    %4237 = vmatprep.subr.mxu0 0.0
    %4238 = vmatpush1.xpose.msra.mxu0 0.0
    %4239 = vmatprep.subr.mxu0 0.0
    %4240 = vmatpush1.xpose.msra.mxu0 0.0
    %4241 = vmatprep.subr.mxu0 0.0
    %4242 = vmatpush1.xpose.msra.mxu0 %v4215
    %4243 = vmatprep.subr.mxu0 0.0
    %4244 = vmatpush1.xpose.msra.mxu0 %v4212
    %4245 = vmatprep.subr.mxu0 0.0
    %4246 = vmatpush1.xpose.msra.mxu0 %v4209
    %4247 = vmatprep.subr.mxu0 0.0
    %4248 = vmatpush1.xpose.msra.mxu0 %v4206
    %4249 = vmatprep.subr.mxu0 0.0
    %4250 = vmatpush2.xpose.msra.mxu0 0.0
    %4251 = vmatprep.subr.mxu0 0.0
    %4252 = vmatpush2.xpose.msra.mxu0 0.0
    %4253 = vmatprep.subr.mxu0 0.0
    %4254 = vmatpush2.xpose.msra.mxu0 0.0
    %4255 = vmatprep.subr.mxu0 0.0
    %4256 = vmatpush2.xpose.msra.mxu0 0.0
    %4257 = vmatprep.subr.mxu0 0.0
    %4258 = vmatpush2.xpose.msra.mxu0 0.0
    %4259 = vmatprep.subr.mxu0 0.0
    %4260 = vmatpush2.xpose.msra.mxu0 0.0
    %4261 = vmatprep.subr.mxu0 0.0
    %4262 = vmatpush2.xpose.msra.mxu0 0.0
    %4263 = vmatprep.subr.mxu0 0.0
    %4264 = vmatpush2.xpose.msra.mxu0 0.0
    %4265 = vmatprep.subr.mxu0 0.0
    %4266 = vmatpush2.xpose.msra.mxu0 0.0
    %4267 = vmatprep.subr.mxu0 0.0
    %4268 = vmatpush2.xpose.msra.mxu0 0.0
    %4269 = vmatprep.subr.mxu0 0.0
    %4270 = vmatpush2.xpose.msra.mxu0 0.0
    %4271 = vmatprep.subr.mxu0 0.0
    %4272 = vmatpush2.xpose.msra.mxu0 0.0
    %4273 = vmatprep.subr.mxu0 0.0
    %4274 = vmatpush2.xpose.msra.mxu0 0.0
    %4275 = vmatprep.subr.mxu0 0.0
    %4276 = vmatpush2.xpose.msra.mxu0 0.0
    %4277 = vmatprep.subr.mxu0 0.0
    %4278 = vmatpush2.xpose.msra.mxu0 0.0
    %4279 = vmatprep.subr.mxu0 0.0
    %4280 = vmatpush2.xpose.msra.mxu0 0.0
    %4281 = vmatprep.mubr.f32.mxu0 0.0
    %4282 = vmatmul.mubr.f32.gmra.mxu0 %v4194
    %v4283 = vpop.f32.mrf.mxu0
    %v4284 = vadd.f32 0.0, %v4283
    %v4285 = vpop.f32.mrf.mxu0
    %4286 = vmatprep.mubr.f32.mxu0 0.0
    %4287 = vmatmul.mubr.f32.gmra.mxu0 %v4197
    %v4288 = vpop.f32.mrf.mxu0
    %v4289 = vadd.f32 0.0, %v4288
    %v4290 = vpop.f32.mrf.mxu0
    %4291 = vmatprep.mubr.f32.mxu0 0.0
    %4292 = vmatmul.mubr.f32.gmra.mxu0 %v4200
    %v4293 = vpop.f32.mrf.mxu0
    %v4294 = vadd.f32 0.0, %v4293
    %v4295 = vpop.f32.mrf.mxu0
    %4296 = vmatprep.mubr.f32.mxu0 0.0
    %4297 = vmatmul.mubr.f32.gmra.mxu0 %v4203
    %v4298 = vpop.f32.mrf.mxu0
    %v4299 = vadd.f32 0.0, %v4298
    %v4300 = vpop.f32.mrf.mxu0
    %4301 = vdwg.mxu0
    %v4302 = vmul.f32 %v4284, 0.35355338
    %v4303 = vmul.f32 %v4289, 0.35355338
    %v4304 = vmul.f32 %v4294, 0.35355338
    %v4305 = vmul.f32 %v4299, 0.35355338
    %v4306 = vadd.f32 %v4302, %v235
    %v4307 = vadd.f32 %v4303, %v236
    %v4308 = vadd.f32 %v4304, %v237
    %v4309 = vadd.f32 %v4305, %v238
    %v4310 = vsel %vm157, %v4306, -inf
    %4311 = vmax.xlane.f32.xlu0 %v4310
    %v4312 = vpop.xlane.xlu0 %4311
    %v4313 = vsel %vm157, %v4307, -inf
    %4314 = vmax.xlane.f32.xlu0 %v4313
    %v4315 = vpop.xlane.xlu0 %4314
    %v4316 = vsel %vm157, %v4308, -inf
    %4317 = vmax.xlane.f32.xlu0 %v4316
    %v4318 = vpop.xlane.xlu0 %4317
    %v4319 = vsel %vm157, %v4309, -inf
    %4320 = vmax.xlane.f32.xlu0 %v4319
    %v4321 = vpop.xlane.xlu0 %4320
    %v4322 = vsub.f32 %v4306, %v4312
    %v4323 = vsub.f32 %v4307, %v4315
    %v4324 = vsub.f32 %v4308, %v4318
    %v4325 = vsub.f32 %v4309, %v4321
    %v4326 = vmul.f32 %v4322, 1.442695
    %v4327 = vpow.pop %v4326
    %v4328 = vmul.f32 %v4323, 1.442695
    %v4329 = vpow.pop %v4328
    %v4330 = vmul.f32 %v4324, 1.442695
    %v4331 = vpow.pop %v4330
    %v4332 = vmul.f32 %v4325, 1.442695
    %v4333 = vpow.pop %v4332
    %v4334 = vsel %vm157, %v4327, 0.0
    %4335 = vadd.xlane.f32.xlu0 %v4334
    %v4336 = vpop.xlane.xlu0 %4335
    %v4337 = vsel %vm157, %v4329, 0.0
    %4338 = vadd.xlane.f32.xlu0 %v4337
    %v4339 = vpop.xlane.xlu0 %4338
    %v4340 = vsel %vm157, %v4331, 0.0
    %4341 = vadd.xlane.f32.xlu0 %v4340
    %v4342 = vpop.xlane.xlu0 %4341
    %v4343 = vsel %vm157, %v4333, 0.0
    %4344 = vadd.xlane.f32.xlu0 %v4343
    %v4345 = vpop.xlane.xlu0 %4344
    %v4346 = vrcp.pop %v4336
    %v4347 = vrcp.pop %v4339
    %v4348 = vrcp.pop %v4342
    %v4349 = vrcp.pop %v4345
    %v4350 = vmul.f32 %v4327, %v4346
    %v4351 = vmul.f32 %v4329, %v4347
    %v4352 = vmul.f32 %v4331, %v4348
    %v4353 = vmul.f32 %v4333, %v4349
    %v4355 = vsel %vm157, %v4350, 0
    %v4358 = vsel %vm157, %v4351, 0
    %v4361 = vsel %vm157, %v4352, 0
    %v4364 = vsel %vm157, %v4353, 0
    %4366 = vmatprep.subr.mxu0 0.0
    %4367 = vmatpush1.msra.mxu0 0.0
    %4368 = vmatprep.subr.mxu0 0.0
    %4369 = vmatpush1.msra.mxu0 0.0
    %4370 = vmatprep.subr.mxu0 0.0
    %4371 = vmatpush1.msra.mxu0 0.0
    %4372 = vmatprep.subr.mxu0 0.0
    %4373 = vmatpush1.msra.mxu0 0.0
    %4374 = vmatprep.subr.mxu0 0.0
    %4375 = vmatpush1.msra.mxu0 0.0
    %4376 = vmatprep.subr.mxu0 0.0
    %4377 = vmatpush1.msra.mxu0 0.0
    %4378 = vmatprep.subr.mxu0 0.0
    %4379 = vmatpush1.msra.mxu0 0.0
    %4380 = vmatprep.subr.mxu0 0.0
    %4381 = vmatpush1.msra.mxu0 0.0
    %4382 = vmatprep.subr.mxu0 0.0
    %4383 = vmatpush1.msra.mxu0 0.0
    %4384 = vmatprep.subr.mxu0 0.0
    %4385 = vmatpush1.msra.mxu0 0.0
    %4386 = vmatprep.subr.mxu0 0.0
    %4387 = vmatpush1.msra.mxu0 0.0
    %4388 = vmatprep.subr.mxu0 0.0
    %4389 = vmatpush1.msra.mxu0 0.0
    %4390 = vmatprep.subr.mxu0 0.0
    %4391 = vmatpush1.msra.mxu0 %v4190
    %4392 = vmatprep.subr.mxu0 0.0
    %4393 = vmatpush1.msra.mxu0 %v4185
    %4394 = vmatprep.subr.mxu0 0.0
    %4395 = vmatpush1.msra.mxu0 %v4180
    %4396 = vmatprep.subr.mxu0 0.0
    %4397 = vmatpush1.msra.mxu0 %v4175
    %4398 = vmatprep.subr.mxu0 0.0
    %4399 = vmatpush2.msra.mxu0 0.0
    %4400 = vmatprep.subr.mxu0 0.0
    %4401 = vmatpush2.msra.mxu0 0.0
    %4402 = vmatprep.subr.mxu0 0.0
    %4403 = vmatpush2.msra.mxu0 0.0
    %4404 = vmatprep.subr.mxu0 0.0
    %4405 = vmatpush2.msra.mxu0 0.0
    %4406 = vmatprep.subr.mxu0 0.0
    %4407 = vmatpush2.msra.mxu0 0.0
    %4408 = vmatprep.subr.mxu0 0.0
    %4409 = vmatpush2.msra.mxu0 0.0
    %4410 = vmatprep.subr.mxu0 0.0
    %4411 = vmatpush2.msra.mxu0 0.0
    %4412 = vmatprep.subr.mxu0 0.0
    %4413 = vmatpush2.msra.mxu0 0.0
    %4414 = vmatprep.subr.mxu0 0.0
    %4415 = vmatpush2.msra.mxu0 0.0
    %4416 = vmatprep.subr.mxu0 0.0
    %4417 = vmatpush2.msra.mxu0 0.0
    %4418 = vmatprep.subr.mxu0 0.0
    %4419 = vmatpush2.msra.mxu0 0.0
    %4420 = vmatprep.subr.mxu0 0.0
    %4421 = vmatpush2.msra.mxu0 0.0
    %4422 = vmatprep.subr.mxu0 0.0
    %4423 = vmatpush2.msra.mxu0 0.0
    %4424 = vmatprep.subr.mxu0 0.0
    %4425 = vmatpush2.msra.mxu0 0.0
    %4426 = vmatprep.subr.mxu0 0.0
    %4427 = vmatpush2.msra.mxu0 0.0
    %4428 = vmatprep.subr.mxu0 0.0
    %4429 = vmatpush2.msra.mxu0 0.0
    %4430 = vmatprep.mubr.f32.mxu0 0.0
    %4431 = vmatmul.mubr.f32.gmra.mxu0 %v4355
    %v4432 = vpop.f32.mrf.mxu0
    %v4433 = vadd.f32 0.0, %v4432
    %v4434 = vpop.f32.mrf.mxu0
    %4435 = vmatprep.mubr.f32.mxu0 0.0
    %4436 = vmatmul.mubr.f32.gmra.mxu0 %v4358
    %v4437 = vpop.f32.mrf.mxu0
    %v4438 = vadd.f32 0.0, %v4437
    %v4439 = vpop.f32.mrf.mxu0
    %4440 = vmatprep.mubr.f32.mxu0 0.0
    %4441 = vmatmul.mubr.f32.gmra.mxu0 %v4361
    %v4442 = vpop.f32.mrf.mxu0
    %v4443 = vadd.f32 0.0, %v4442
    %v4444 = vpop.f32.mrf.mxu0
    %4445 = vmatprep.mubr.f32.mxu0 0.0
    %4446 = vmatmul.mubr.f32.gmra.mxu0 %v4364
    %v4447 = vpop.f32.mrf.mxu0
    %v4448 = vadd.f32 0.0, %v4447
    %v4449 = vpop.f32.mrf.mxu0
    %4450 = vdwg.mxu0
    %s4451 = scalar_lea.vmem %s8, 40
    %v4452 = vld [vmem:[%s4451] sm:$0xff]
    %v4454 = vsel %vm612, %v4433, 0
    %v4457 = vsel %vm612, %v4438, 0
    %v4460 = vsel %vm612, %v4443, 0
    %v4463 = vsel %vm612, %v4448, 0
    %4465 = vmatprep.subr.mxu0 0.0
    %4466 = vmatpush1.msra.mxu0 0.0
    %4467 = vmatprep.subr.mxu0 0.0
    %4468 = vmatpush1.msra.mxu0 0.0
    %4469 = vmatprep.subr.mxu0 0.0
    %4470 = vmatpush1.msra.mxu0 0.0
    %4471 = vmatprep.subr.mxu0 0.0
    %4472 = vmatpush1.msra.mxu0 0.0
    %4473 = vmatprep.subr.mxu0 0.0
    %4474 = vmatpush1.msra.mxu0 0.0
    %4475 = vmatprep.subr.mxu0 0.0
    %4476 = vmatpush1.msra.mxu0 0.0
    %4477 = vmatprep.subr.mxu0 0.0
    %4478 = vmatpush1.msra.mxu0 0.0
    %4479 = vmatprep.subr.mxu0 0.0
    %4480 = vmatpush1.msra.mxu0 0.0
    %4481 = vmatprep.subr.mxu0 0.0
    %4482 = vmatpush1.msra.mxu0 0.0
    %4483 = vmatprep.subr.mxu0 0.0
    %4484 = vmatpush1.msra.mxu0 0.0
    %4485 = vmatprep.subr.mxu0 0.0
    %4486 = vmatpush1.msra.mxu0 0.0
    %4487 = vmatprep.subr.mxu0 0.0
    %4488 = vmatpush1.msra.mxu0 0.0
    %4489 = vmatprep.subr.mxu0 0.0
    %4490 = vmatpush1.msra.mxu0 0.0
    %4491 = vmatprep.subr.mxu0 0.0
    %4492 = vmatpush1.msra.mxu0 0.0
    %4493 = vmatprep.subr.mxu0 0.0
    %4494 = vmatpush1.msra.mxu0 0.0
    %4495 = vmatprep.subr.mxu0 0.0
    %4496 = vmatpush1.msra.mxu0 %v4452
    %4497 = vmatprep.subr.mxu0 0.0
    %4498 = vmatpush2.msra.mxu0 0.0
    %4499 = vmatprep.subr.mxu0 0.0
    %4500 = vmatpush2.msra.mxu0 0.0
    %4501 = vmatprep.subr.mxu0 0.0
    %4502 = vmatpush2.msra.mxu0 0.0
    %4503 = vmatprep.subr.mxu0 0.0
    %4504 = vmatpush2.msra.mxu0 0.0
    %4505 = vmatprep.subr.mxu0 0.0
    %4506 = vmatpush2.msra.mxu0 0.0
    %4507 = vmatprep.subr.mxu0 0.0
    %4508 = vmatpush2.msra.mxu0 0.0
    %4509 = vmatprep.subr.mxu0 0.0
    %4510 = vmatpush2.msra.mxu0 0.0
    %4511 = vmatprep.subr.mxu0 0.0
    %4512 = vmatpush2.msra.mxu0 0.0
    %4513 = vmatprep.subr.mxu0 0.0
    %4514 = vmatpush2.msra.mxu0 0.0
    %4515 = vmatprep.subr.mxu0 0.0
    %4516 = vmatpush2.msra.mxu0 0.0
    %4517 = vmatprep.subr.mxu0 0.0
    %4518 = vmatpush2.msra.mxu0 0.0
    %4519 = vmatprep.subr.mxu0 0.0
    %4520 = vmatpush2.msra.mxu0 0.0
    %4521 = vmatprep.subr.mxu0 0.0
    %4522 = vmatpush2.msra.mxu0 0.0
    %4523 = vmatprep.subr.mxu0 0.0
    %4524 = vmatpush2.msra.mxu0 0.0
    %4525 = vmatprep.subr.mxu0 0.0
    %4526 = vmatpush2.msra.mxu0 0.0
    %4527 = vmatprep.subr.mxu0 0.0
    %4528 = vmatpush2.msra.mxu0 0.0
    %4529 = vmatprep.mubr.f32.mxu0 0.0
    %4530 = vmatmul.mubr.f32.gmra.mxu0 %v4454
    %v4531 = vpop.f32.mrf.mxu0
    %v4532 = vadd.f32 0.0, %v4531
    %v4533 = vpop.f32.mrf.mxu0
    %4534 = vmatprep.mubr.f32.mxu0 0.0
    %4535 = vmatmul.mubr.f32.gmra.mxu0 %v4457
    %v4536 = vpop.f32.mrf.mxu0
    %v4537 = vadd.f32 0.0, %v4536
    %v4538 = vpop.f32.mrf.mxu0
    %4539 = vmatprep.mubr.f32.mxu0 0.0
    %4540 = vmatmul.mubr.f32.gmra.mxu0 %v4460
    %v4541 = vpop.f32.mrf.mxu0
    %v4542 = vadd.f32 0.0, %v4541
    %v4543 = vpop.f32.mrf.mxu0
    %4544 = vmatprep.mubr.f32.mxu0 0.0
    %4545 = vmatmul.mubr.f32.gmra.mxu0 %v4463
    %v4546 = vpop.f32.mrf.mxu0
    %v4547 = vadd.f32 0.0, %v4546
    %v4548 = vpop.f32.mrf.mxu0
    %4549 = vdwg.mxu0
    %v4551 = vsel %vm612, %v3879, 0
    %v4554 = vsel %vm612, %v3884, 0
    %v4557 = vsel %vm612, %v3889, 0
    %v4560 = vsel %vm612, %v3894, 0
    %4562 = vmatprep.subr.mxu0 0.0
    %4563 = vmatpush1.msra.mxu0 0.0
    %4564 = vmatprep.subr.mxu0 0.0
    %4565 = vmatpush1.msra.mxu0 0.0
    %4566 = vmatprep.subr.mxu0 0.0
    %4567 = vmatpush1.msra.mxu0 0.0
    %4568 = vmatprep.subr.mxu0 0.0
    %4569 = vmatpush1.msra.mxu0 0.0
    %4570 = vmatprep.subr.mxu0 0.0
    %4571 = vmatpush1.msra.mxu0 0.0
    %4572 = vmatprep.subr.mxu0 0.0
    %4573 = vmatpush1.msra.mxu0 0.0
    %4574 = vmatprep.subr.mxu0 0.0
    %4575 = vmatpush1.msra.mxu0 0.0
    %4576 = vmatprep.subr.mxu0 0.0
    %4577 = vmatpush1.msra.mxu0 0.0
    %4578 = vmatprep.subr.mxu0 0.0
    %4579 = vmatpush1.msra.mxu0 0.0
    %4580 = vmatprep.subr.mxu0 0.0
    %4581 = vmatpush1.msra.mxu0 0.0
    %4582 = vmatprep.subr.mxu0 0.0
    %4583 = vmatpush1.msra.mxu0 0.0
    %4584 = vmatprep.subr.mxu0 0.0
    %4585 = vmatpush1.msra.mxu0 0.0
    %4586 = vmatprep.subr.mxu0 0.0
    %4587 = vmatpush1.msra.mxu0 0.0
    %4588 = vmatprep.subr.mxu0 0.0
    %4589 = vmatpush1.msra.mxu0 0.0
    %4590 = vmatprep.subr.mxu0 0.0
    %4591 = vmatpush1.msra.mxu0 0.0
    %4592 = vmatprep.subr.mxu0 0.0
    %4593 = vmatpush1.msra.mxu0 %v3898
    %4594 = vmatprep.subr.mxu0 0.0
    %4595 = vmatpush2.msra.mxu0 0.0
    %4596 = vmatprep.subr.mxu0 0.0
    %4597 = vmatpush2.msra.mxu0 0.0
    %4598 = vmatprep.subr.mxu0 0.0
    %4599 = vmatpush2.msra.mxu0 0.0
    %4600 = vmatprep.subr.mxu0 0.0
    %4601 = vmatpush2.msra.mxu0 0.0
    %4602 = vmatprep.subr.mxu0 0.0
    %4603 = vmatpush2.msra.mxu0 0.0
    %4604 = vmatprep.subr.mxu0 0.0
    %4605 = vmatpush2.msra.mxu0 0.0
    %4606 = vmatprep.subr.mxu0 0.0
    %4607 = vmatpush2.msra.mxu0 0.0
    %4608 = vmatprep.subr.mxu0 0.0
    %4609 = vmatpush2.msra.mxu0 0.0
    %4610 = vmatprep.subr.mxu0 0.0
    %4611 = vmatpush2.msra.mxu0 0.0
    %4612 = vmatprep.subr.mxu0 0.0
    %4613 = vmatpush2.msra.mxu0 0.0
    %4614 = vmatprep.subr.mxu0 0.0
    %4615 = vmatpush2.msra.mxu0 0.0
    %4616 = vmatprep.subr.mxu0 0.0
    %4617 = vmatpush2.msra.mxu0 0.0
    %4618 = vmatprep.subr.mxu0 0.0
    %4619 = vmatpush2.msra.mxu0 0.0
    %4620 = vmatprep.subr.mxu0 0.0
    %4621 = vmatpush2.msra.mxu0 0.0
    %4622 = vmatprep.subr.mxu0 0.0
    %4623 = vmatpush2.msra.mxu0 0.0
    %4624 = vmatprep.subr.mxu0 0.0
    %4625 = vmatpush2.msra.mxu0 0.0
    %4626 = vmatprep.mubr.f32.mxu0 0.0
    %4627 = vmatmul.mubr.f32.gmra.mxu0 %v4551
    %v4628 = vpop.f32.mrf.mxu0
    %v4629 = vadd.f32 %v4532, %v4628
    %v4630 = vpop.f32.mrf.mxu0
    %4631 = vmatprep.mubr.f32.mxu0 0.0
    %4632 = vmatmul.mubr.f32.gmra.mxu0 %v4554
    %v4633 = vpop.f32.mrf.mxu0
    %v4634 = vadd.f32 %v4537, %v4633
    %v4635 = vpop.f32.mrf.mxu0
    %4636 = vmatprep.mubr.f32.mxu0 0.0
    %4637 = vmatmul.mubr.f32.gmra.mxu0 %v4557
    %v4638 = vpop.f32.mrf.mxu0
    %v4639 = vadd.f32 %v4542, %v4638
    %v4640 = vpop.f32.mrf.mxu0
    %4641 = vmatprep.mubr.f32.mxu0 0.0
    %4642 = vmatmul.mubr.f32.gmra.mxu0 %v4560
    %v4643 = vpop.f32.mrf.mxu0
    %v4644 = vadd.f32 %v4547, %v4643
    %v4645 = vpop.f32.mrf.mxu0
    %4646 = vdwg.mxu0
    %s4647 = scalar_lea.vmem %s6, 448
    %v4648 = vld [vmem:[%s4647] sm:$0xff]
    %v4649 = vld [vmem:[%s4647 + $0x8] sm:$0xff]
    %v4650 = vld [vmem:[%s4647 + $0x10] sm:$0xff]
    %v4651 = vld [vmem:[%s4647 + $0x18] sm:$0xff]
    %s4652 = scalar_lea.vmem %s7, 14
    %v4653 = vld [vmem:[%s4652] sm:$0x1]
    %v4655 = vlaneseq
    %v4656 = vshrl.u32 %v4655, 7
    %v4657 = vsub.s32 0, %v4656
    %v4658 = vrot.slane %v4653, %v4657
    %4660 = vmatprep.subr.mxu0 0.0
    %4661 = vmatpush1.msra.mxu0 0.0
    %4662 = vmatprep.subr.mxu0 0.0
    %4663 = vmatpush1.msra.mxu0 0.0
    %4664 = vmatprep.subr.mxu0 0.0
    %4665 = vmatpush1.msra.mxu0 0.0
    %4666 = vmatprep.subr.mxu0 0.0
    %4667 = vmatpush1.msra.mxu0 0.0
    %4668 = vmatprep.subr.mxu0 0.0
    %4669 = vmatpush1.msra.mxu0 0.0
    %4670 = vmatprep.subr.mxu0 0.0
    %4671 = vmatpush1.msra.mxu0 0.0
    %4672 = vmatprep.subr.mxu0 0.0
    %4673 = vmatpush1.msra.mxu0 0.0
    %4674 = vmatprep.subr.mxu0 0.0
    %4675 = vmatpush1.msra.mxu0 0.0
    %4676 = vmatprep.subr.mxu0 0.0
    %4677 = vmatpush1.msra.mxu0 0.0
    %4678 = vmatprep.subr.mxu0 0.0
    %4679 = vmatpush1.msra.mxu0 0.0
    %4680 = vmatprep.subr.mxu0 0.0
    %4681 = vmatpush1.msra.mxu0 0.0
    %4682 = vmatprep.subr.mxu0 0.0
    %4683 = vmatpush1.msra.mxu0 0.0
    %4684 = vmatprep.subr.mxu0 0.0
    %4685 = vmatpush1.msra.mxu0 %v4651
    %4686 = vmatprep.subr.mxu0 0.0
    %4687 = vmatpush1.msra.mxu0 %v4650
    %4688 = vmatprep.subr.mxu0 0.0
    %4689 = vmatpush1.msra.mxu0 %v4649
    %4690 = vmatprep.subr.mxu0 0.0
    %4691 = vmatpush1.msra.mxu0 %v4648
    %4692 = vmatprep.subr.mxu0 0.0
    %4693 = vmatpush2.msra.mxu0 0.0
    %4694 = vmatprep.subr.mxu0 0.0
    %4695 = vmatpush2.msra.mxu0 0.0
    %4696 = vmatprep.subr.mxu0 0.0
    %4697 = vmatpush2.msra.mxu0 0.0
    %4698 = vmatprep.subr.mxu0 0.0
    %4699 = vmatpush2.msra.mxu0 0.0
    %4700 = vmatprep.subr.mxu0 0.0
    %4701 = vmatpush2.msra.mxu0 0.0
    %4702 = vmatprep.subr.mxu0 0.0
    %4703 = vmatpush2.msra.mxu0 0.0
    %4704 = vmatprep.subr.mxu0 0.0
    %4705 = vmatpush2.msra.mxu0 0.0
    %4706 = vmatprep.subr.mxu0 0.0
    %4707 = vmatpush2.msra.mxu0 0.0
    %4708 = vmatprep.subr.mxu0 0.0
    %4709 = vmatpush2.msra.mxu0 0.0
    %4710 = vmatprep.subr.mxu0 0.0
    %4711 = vmatpush2.msra.mxu0 0.0
    %4712 = vmatprep.subr.mxu0 0.0
    %4713 = vmatpush2.msra.mxu0 0.0
    %4714 = vmatprep.subr.mxu0 0.0
    %4715 = vmatpush2.msra.mxu0 0.0
    %4716 = vmatprep.subr.mxu0 0.0
    %4717 = vmatpush2.msra.mxu0 0.0
    %4718 = vmatprep.subr.mxu0 0.0
    %4719 = vmatpush2.msra.mxu0 0.0
    %4720 = vmatprep.subr.mxu0 0.0
    %4721 = vmatpush2.msra.mxu0 0.0
    %4722 = vmatprep.subr.mxu0 0.0
    %4723 = vmatpush2.msra.mxu0 0.0
    %4724 = vmatprep.mubr.f32.mxu0 0.0
    %4725 = vmatmul.mubr.f32.gmra.mxu0 %v3347
    %v4726 = vpop.f32.mrf.mxu0
    %v4727 = vadd.f32 %v4658, %v4726
    %v4728 = vpop.f32.mrf.mxu0
    %4729 = vmatprep.mubr.f32.mxu0 0.0
    %4730 = vmatmul.mubr.f32.gmra.mxu0 %v3350
    %v4731 = vpop.f32.mrf.mxu0
    %v4732 = vadd.f32 %v4658, %v4731
    %v4733 = vpop.f32.mrf.mxu0
    %4734 = vmatprep.mubr.f32.mxu0 0.0
    %4735 = vmatmul.mubr.f32.gmra.mxu0 %v3353
    %v4736 = vpop.f32.mrf.mxu0
    %v4737 = vadd.f32 %v4658, %v4736
    %v4738 = vpop.f32.mrf.mxu0
    %4739 = vmatprep.mubr.f32.mxu0 0.0
    %4740 = vmatmul.mubr.f32.gmra.mxu0 %v3356
    %v4741 = vpop.f32.mrf.mxu0
    %v4742 = vadd.f32 %v4658, %v4741
    %v4743 = vpop.f32.mrf.mxu0
    %4744 = vdwg.mxu0
    %s4745 = scalar_lea.vmem %s6, 576
    %v4746 = vld [vmem:[%s4745] sm:$0xff]
    %v4747 = vld [vmem:[%s4745 + $0x8] sm:$0xff]
    %v4748 = vld [vmem:[%s4745 + $0x10] sm:$0xff]
    %v4749 = vld [vmem:[%s4745 + $0x18] sm:$0xff]
    %s4750 = scalar_lea.vmem %s7, 18
    %v4751 = vld [vmem:[%s4750] sm:$0x1]
    %v4753 = vlaneseq
    %v4754 = vshrl.u32 %v4753, 7
    %v4755 = vsub.s32 0, %v4754
    %v4756 = vrot.slane %v4751, %v4755
    %4758 = vmatprep.subr.mxu0 0.0
    %4759 = vmatpush1.msra.mxu0 0.0
    %4760 = vmatprep.subr.mxu0 0.0
    %4761 = vmatpush1.msra.mxu0 0.0
    %4762 = vmatprep.subr.mxu0 0.0
    %4763 = vmatpush1.msra.mxu0 0.0
    %4764 = vmatprep.subr.mxu0 0.0
    %4765 = vmatpush1.msra.mxu0 0.0
    %4766 = vmatprep.subr.mxu0 0.0
    %4767 = vmatpush1.msra.mxu0 0.0
    %4768 = vmatprep.subr.mxu0 0.0
    %4769 = vmatpush1.msra.mxu0 0.0
    %4770 = vmatprep.subr.mxu0 0.0
    %4771 = vmatpush1.msra.mxu0 0.0
    %4772 = vmatprep.subr.mxu0 0.0
    %4773 = vmatpush1.msra.mxu0 0.0
    %4774 = vmatprep.subr.mxu0 0.0
    %4775 = vmatpush1.msra.mxu0 0.0
    %4776 = vmatprep.subr.mxu0 0.0
    %4777 = vmatpush1.msra.mxu0 0.0
    %4778 = vmatprep.subr.mxu0 0.0
    %4779 = vmatpush1.msra.mxu0 0.0
    %4780 = vmatprep.subr.mxu0 0.0
    %4781 = vmatpush1.msra.mxu0 0.0
    %4782 = vmatprep.subr.mxu0 0.0
    %4783 = vmatpush1.msra.mxu0 %v4749
    %4784 = vmatprep.subr.mxu0 0.0
    %4785 = vmatpush1.msra.mxu0 %v4748
    %4786 = vmatprep.subr.mxu0 0.0
    %4787 = vmatpush1.msra.mxu0 %v4747
    %4788 = vmatprep.subr.mxu0 0.0
    %4789 = vmatpush1.msra.mxu0 %v4746
    %4790 = vmatprep.subr.mxu0 0.0
    %4791 = vmatpush2.msra.mxu0 0.0
    %4792 = vmatprep.subr.mxu0 0.0
    %4793 = vmatpush2.msra.mxu0 0.0
    %4794 = vmatprep.subr.mxu0 0.0
    %4795 = vmatpush2.msra.mxu0 0.0
    %4796 = vmatprep.subr.mxu0 0.0
    %4797 = vmatpush2.msra.mxu0 0.0
    %4798 = vmatprep.subr.mxu0 0.0
    %4799 = vmatpush2.msra.mxu0 0.0
    %4800 = vmatprep.subr.mxu0 0.0
    %4801 = vmatpush2.msra.mxu0 0.0
    %4802 = vmatprep.subr.mxu0 0.0
    %4803 = vmatpush2.msra.mxu0 0.0
    %4804 = vmatprep.subr.mxu0 0.0
    %4805 = vmatpush2.msra.mxu0 0.0
    %4806 = vmatprep.subr.mxu0 0.0
    %4807 = vmatpush2.msra.mxu0 0.0
    %4808 = vmatprep.subr.mxu0 0.0
    %4809 = vmatpush2.msra.mxu0 0.0
    %4810 = vmatprep.subr.mxu0 0.0
    %4811 = vmatpush2.msra.mxu0 0.0
    %4812 = vmatprep.subr.mxu0 0.0
    %4813 = vmatpush2.msra.mxu0 0.0
    %4814 = vmatprep.subr.mxu0 0.0
    %4815 = vmatpush2.msra.mxu0 0.0
    %4816 = vmatprep.subr.mxu0 0.0
    %4817 = vmatpush2.msra.mxu0 0.0
    %4818 = vmatprep.subr.mxu0 0.0
    %4819 = vmatpush2.msra.mxu0 0.0
    %4820 = vmatprep.subr.mxu0 0.0
    %4821 = vmatpush2.msra.mxu0 0.0
    %4822 = vmatprep.mubr.f32.mxu0 0.0
    %4823 = vmatmul.mubr.f32.gmra.mxu0 %v3347
    %v4824 = vpop.f32.mrf.mxu0
    %v4825 = vadd.f32 %v4756, %v4824
    %v4826 = vpop.f32.mrf.mxu0
    %4827 = vmatprep.mubr.f32.mxu0 0.0
    %4828 = vmatmul.mubr.f32.gmra.mxu0 %v3350
    %v4829 = vpop.f32.mrf.mxu0
    %v4830 = vadd.f32 %v4756, %v4829
    %v4831 = vpop.f32.mrf.mxu0
    %4832 = vmatprep.mubr.f32.mxu0 0.0
    %4833 = vmatmul.mubr.f32.gmra.mxu0 %v3353
    %v4834 = vpop.f32.mrf.mxu0
    %v4835 = vadd.f32 %v4756, %v4834
    %v4836 = vpop.f32.mrf.mxu0
    %4837 = vmatprep.mubr.f32.mxu0 0.0
    %4838 = vmatmul.mubr.f32.gmra.mxu0 %v3356
    %v4839 = vpop.f32.mrf.mxu0
    %v4840 = vadd.f32 %v4756, %v4839
    %v4841 = vpop.f32.mrf.mxu0
    %4842 = vdwg.mxu0
    %s4843 = scalar_lea.vmem %s6, 704
    %v4844 = vld [vmem:[%s4843] sm:$0xff]
    %v4845 = vld [vmem:[%s4843 + $0x8] sm:$0xff]
    %v4846 = vld [vmem:[%s4843 + $0x10] sm:$0xff]
    %v4847 = vld [vmem:[%s4843 + $0x18] sm:$0xff]
    %s4848 = scalar_lea.vmem %s7, 22
    %v4849 = vld [vmem:[%s4848] sm:$0x1]
    %v4851 = vlaneseq
    %v4852 = vshrl.u32 %v4851, 7
    %v4853 = vsub.s32 0, %v4852
    %v4854 = vrot.slane %v4849, %v4853
    %4856 = vmatprep.subr.mxu0 0.0
    %4857 = vmatpush1.msra.mxu0 0.0
    %4858 = vmatprep.subr.mxu0 0.0
    %4859 = vmatpush1.msra.mxu0 0.0
    %4860 = vmatprep.subr.mxu0 0.0
    %4861 = vmatpush1.msra.mxu0 0.0
    %4862 = vmatprep.subr.mxu0 0.0
    %4863 = vmatpush1.msra.mxu0 0.0
    %4864 = vmatprep.subr.mxu0 0.0
    %4865 = vmatpush1.msra.mxu0 0.0
    %4866 = vmatprep.subr.mxu0 0.0
    %4867 = vmatpush1.msra.mxu0 0.0
    %4868 = vmatprep.subr.mxu0 0.0
    %4869 = vmatpush1.msra.mxu0 0.0
    %4870 = vmatprep.subr.mxu0 0.0
    %4871 = vmatpush1.msra.mxu0 0.0
    %4872 = vmatprep.subr.mxu0 0.0
    %4873 = vmatpush1.msra.mxu0 0.0
    %4874 = vmatprep.subr.mxu0 0.0
    %4875 = vmatpush1.msra.mxu0 0.0
    %4876 = vmatprep.subr.mxu0 0.0
    %4877 = vmatpush1.msra.mxu0 0.0
    %4878 = vmatprep.subr.mxu0 0.0
    %4879 = vmatpush1.msra.mxu0 0.0
    %4880 = vmatprep.subr.mxu0 0.0
    %4881 = vmatpush1.msra.mxu0 %v4847
    %4882 = vmatprep.subr.mxu0 0.0
    %4883 = vmatpush1.msra.mxu0 %v4846
    %4884 = vmatprep.subr.mxu0 0.0
    %4885 = vmatpush1.msra.mxu0 %v4845
    %4886 = vmatprep.subr.mxu0 0.0
    %4887 = vmatpush1.msra.mxu0 %v4844
    %4888 = vmatprep.subr.mxu0 0.0
    %4889 = vmatpush2.msra.mxu0 0.0
    %4890 = vmatprep.subr.mxu0 0.0
    %4891 = vmatpush2.msra.mxu0 0.0
    %4892 = vmatprep.subr.mxu0 0.0
    %4893 = vmatpush2.msra.mxu0 0.0
    %4894 = vmatprep.subr.mxu0 0.0
    %4895 = vmatpush2.msra.mxu0 0.0
    %4896 = vmatprep.subr.mxu0 0.0
    %4897 = vmatpush2.msra.mxu0 0.0
    %4898 = vmatprep.subr.mxu0 0.0
    %4899 = vmatpush2.msra.mxu0 0.0
    %4900 = vmatprep.subr.mxu0 0.0
    %4901 = vmatpush2.msra.mxu0 0.0
    %4902 = vmatprep.subr.mxu0 0.0
    %4903 = vmatpush2.msra.mxu0 0.0
    %4904 = vmatprep.subr.mxu0 0.0
    %4905 = vmatpush2.msra.mxu0 0.0
    %4906 = vmatprep.subr.mxu0 0.0
    %4907 = vmatpush2.msra.mxu0 0.0
    %4908 = vmatprep.subr.mxu0 0.0
    %4909 = vmatpush2.msra.mxu0 0.0
    %4910 = vmatprep.subr.mxu0 0.0
    %4911 = vmatpush2.msra.mxu0 0.0
    %4912 = vmatprep.subr.mxu0 0.0
    %4913 = vmatpush2.msra.mxu0 0.0
    %4914 = vmatprep.subr.mxu0 0.0
    %4915 = vmatpush2.msra.mxu0 0.0
    %4916 = vmatprep.subr.mxu0 0.0
    %4917 = vmatpush2.msra.mxu0 0.0
    %4918 = vmatprep.subr.mxu0 0.0
    %4919 = vmatpush2.msra.mxu0 0.0
    %4920 = vmatprep.mubr.f32.mxu0 0.0
    %4921 = vmatmul.mubr.f32.gmra.mxu0 %v3347
    %v4922 = vpop.f32.mrf.mxu0
    %v4923 = vadd.f32 %v4854, %v4922
    %v4924 = vpop.f32.mrf.mxu0
    %4925 = vmatprep.mubr.f32.mxu0 0.0
    %4926 = vmatmul.mubr.f32.gmra.mxu0 %v3350
    %v4927 = vpop.f32.mrf.mxu0
    %v4928 = vadd.f32 %v4854, %v4927
    %v4929 = vpop.f32.mrf.mxu0
    %4930 = vmatprep.mubr.f32.mxu0 0.0
    %4931 = vmatmul.mubr.f32.gmra.mxu0 %v3353
    %v4932 = vpop.f32.mrf.mxu0
    %v4933 = vadd.f32 %v4854, %v4932
    %v4934 = vpop.f32.mrf.mxu0
    %4935 = vmatprep.mubr.f32.mxu0 0.0
    %4936 = vmatmul.mubr.f32.gmra.mxu0 %v3356
    %v4937 = vpop.f32.mrf.mxu0
    %v4938 = vadd.f32 %v4854, %v4937
    %v4939 = vpop.f32.mrf.mxu0
    %4940 = vdwg.mxu0
    %v4942 = vsel %vm612, %v4727, 0
    %v4945 = vsel %vm612, %v4732, 0
    %v4948 = vsel %vm612, %v4737, 0
    %v4951 = vsel %vm612, %v4742, 0
    %v4954 = vsel %vm612, %v4825, 0
    %v4957 = vsel %vm612, %v4830, 0
    %v4960 = vsel %vm612, %v4835, 0
    %v4963 = vsel %vm612, %v4840, 0
    %4965 = vmatprep.subr.mxu0 0.0
    %4966 = vmatpush1.xpose.msra.mxu0 0.0
    %4967 = vmatprep.subr.mxu0 0.0
    %4968 = vmatpush1.xpose.msra.mxu0 0.0
    %4969 = vmatprep.subr.mxu0 0.0
    %4970 = vmatpush1.xpose.msra.mxu0 0.0
    %4971 = vmatprep.subr.mxu0 0.0
    %4972 = vmatpush1.xpose.msra.mxu0 0.0
    %4973 = vmatprep.subr.mxu0 0.0
    %4974 = vmatpush1.xpose.msra.mxu0 0.0
    %4975 = vmatprep.subr.mxu0 0.0
    %4976 = vmatpush1.xpose.msra.mxu0 0.0
    %4977 = vmatprep.subr.mxu0 0.0
    %4978 = vmatpush1.xpose.msra.mxu0 0.0
    %4979 = vmatprep.subr.mxu0 0.0
    %4980 = vmatpush1.xpose.msra.mxu0 0.0
    %4981 = vmatprep.subr.mxu0 0.0
    %4982 = vmatpush1.xpose.msra.mxu0 0.0
    %4983 = vmatprep.subr.mxu0 0.0
    %4984 = vmatpush1.xpose.msra.mxu0 0.0
    %4985 = vmatprep.subr.mxu0 0.0
    %4986 = vmatpush1.xpose.msra.mxu0 0.0
    %4987 = vmatprep.subr.mxu0 0.0
    %4988 = vmatpush1.xpose.msra.mxu0 0.0
    %4989 = vmatprep.subr.mxu0 0.0
    %4990 = vmatpush1.xpose.msra.mxu0 %v4963
    %4991 = vmatprep.subr.mxu0 0.0
    %4992 = vmatpush1.xpose.msra.mxu0 %v4960
    %4993 = vmatprep.subr.mxu0 0.0
    %4994 = vmatpush1.xpose.msra.mxu0 %v4957
    %4995 = vmatprep.subr.mxu0 0.0
    %4996 = vmatpush1.xpose.msra.mxu0 %v4954
    %4997 = vmatprep.subr.mxu0 0.0
    %4998 = vmatpush2.xpose.msra.mxu0 0.0
    %4999 = vmatprep.subr.mxu0 0.0
    %5000 = vmatpush2.xpose.msra.mxu0 0.0
    %5001 = vmatprep.subr.mxu0 0.0
    %5002 = vmatpush2.xpose.msra.mxu0 0.0
    %5003 = vmatprep.subr.mxu0 0.0
    %5004 = vmatpush2.xpose.msra.mxu0 0.0
    %5005 = vmatprep.subr.mxu0 0.0
    %5006 = vmatpush2.xpose.msra.mxu0 0.0
    %5007 = vmatprep.subr.mxu0 0.0
    %5008 = vmatpush2.xpose.msra.mxu0 0.0
    %5009 = vmatprep.subr.mxu0 0.0
    %5010 = vmatpush2.xpose.msra.mxu0 0.0
    %5011 = vmatprep.subr.mxu0 0.0
    %5012 = vmatpush2.xpose.msra.mxu0 0.0
    %5013 = vmatprep.subr.mxu0 0.0
    %5014 = vmatpush2.xpose.msra.mxu0 0.0
    %5015 = vmatprep.subr.mxu0 0.0
    %5016 = vmatpush2.xpose.msra.mxu0 0.0
    %5017 = vmatprep.subr.mxu0 0.0
    %5018 = vmatpush2.xpose.msra.mxu0 0.0
    %5019 = vmatprep.subr.mxu0 0.0
    %5020 = vmatpush2.xpose.msra.mxu0 0.0
    %5021 = vmatprep.subr.mxu0 0.0
    %5022 = vmatpush2.xpose.msra.mxu0 0.0
    %5023 = vmatprep.subr.mxu0 0.0
    %5024 = vmatpush2.xpose.msra.mxu0 0.0
    %5025 = vmatprep.subr.mxu0 0.0
    %5026 = vmatpush2.xpose.msra.mxu0 0.0
    %5027 = vmatprep.subr.mxu0 0.0
    %5028 = vmatpush2.xpose.msra.mxu0 0.0
    %5029 = vmatprep.mubr.f32.mxu0 0.0
    %5030 = vmatmul.mubr.f32.gmra.mxu0 %v4942
    %v5031 = vpop.f32.mrf.mxu0
    %v5032 = vadd.f32 0.0, %v5031
    %v5033 = vpop.f32.mrf.mxu0
    %5034 = vmatprep.mubr.f32.mxu0 0.0
    %5035 = vmatmul.mubr.f32.gmra.mxu0 %v4945
    %v5036 = vpop.f32.mrf.mxu0
    %v5037 = vadd.f32 0.0, %v5036
    %v5038 = vpop.f32.mrf.mxu0
    %5039 = vmatprep.mubr.f32.mxu0 0.0
    %5040 = vmatmul.mubr.f32.gmra.mxu0 %v4948
    %v5041 = vpop.f32.mrf.mxu0
    %v5042 = vadd.f32 0.0, %v5041
    %v5043 = vpop.f32.mrf.mxu0
    %5044 = vmatprep.mubr.f32.mxu0 0.0
    %5045 = vmatmul.mubr.f32.gmra.mxu0 %v4951
    %v5046 = vpop.f32.mrf.mxu0
    %v5047 = vadd.f32 0.0, %v5046
    %v5048 = vpop.f32.mrf.mxu0
    %5049 = vdwg.mxu0
    %v5050 = vmul.f32 %v5032, 0.35355338
    %v5051 = vmul.f32 %v5037, 0.35355338
    %v5052 = vmul.f32 %v5042, 0.35355338
    %v5053 = vmul.f32 %v5047, 0.35355338
    %v5054 = vadd.f32 %v5050, %v235
    %v5055 = vadd.f32 %v5051, %v236
    %v5056 = vadd.f32 %v5052, %v237
    %v5057 = vadd.f32 %v5053, %v238
    %v5058 = vsel %vm157, %v5054, -inf
    %5059 = vmax.xlane.f32.xlu0 %v5058
    %v5060 = vpop.xlane.xlu0 %5059
    %v5061 = vsel %vm157, %v5055, -inf
    %5062 = vmax.xlane.f32.xlu0 %v5061
    %v5063 = vpop.xlane.xlu0 %5062
    %v5064 = vsel %vm157, %v5056, -inf
    %5065 = vmax.xlane.f32.xlu0 %v5064
    %v5066 = vpop.xlane.xlu0 %5065
    %v5067 = vsel %vm157, %v5057, -inf
    %5068 = vmax.xlane.f32.xlu0 %v5067
    %v5069 = vpop.xlane.xlu0 %5068
    %v5070 = vsub.f32 %v5054, %v5060
    %v5071 = vsub.f32 %v5055, %v5063
    %v5072 = vsub.f32 %v5056, %v5066
    %v5073 = vsub.f32 %v5057, %v5069
    %v5074 = vmul.f32 %v5070, 1.442695
    %v5075 = vpow.pop %v5074
    %v5076 = vmul.f32 %v5071, 1.442695
    %v5077 = vpow.pop %v5076
    %v5078 = vmul.f32 %v5072, 1.442695
    %v5079 = vpow.pop %v5078
    %v5080 = vmul.f32 %v5073, 1.442695
    %v5081 = vpow.pop %v5080
    %v5082 = vsel %vm157, %v5075, 0.0
    %5083 = vadd.xlane.f32.xlu0 %v5082
    %v5084 = vpop.xlane.xlu0 %5083
    %v5085 = vsel %vm157, %v5077, 0.0
    %5086 = vadd.xlane.f32.xlu0 %v5085
    %v5087 = vpop.xlane.xlu0 %5086
    %v5088 = vsel %vm157, %v5079, 0.0
    %5089 = vadd.xlane.f32.xlu0 %v5088
    %v5090 = vpop.xlane.xlu0 %5089
    %v5091 = vsel %vm157, %v5081, 0.0
    %5092 = vadd.xlane.f32.xlu0 %v5091
    %v5093 = vpop.xlane.xlu0 %5092
    %v5094 = vrcp.pop %v5084
    %v5095 = vrcp.pop %v5087
    %v5096 = vrcp.pop %v5090
    %v5097 = vrcp.pop %v5093
    %v5098 = vmul.f32 %v5075, %v5094
    %v5099 = vmul.f32 %v5077, %v5095
    %v5100 = vmul.f32 %v5079, %v5096
    %v5101 = vmul.f32 %v5081, %v5097
    %v5103 = vsel %vm157, %v5098, 0
    %v5106 = vsel %vm157, %v5099, 0
    %v5109 = vsel %vm157, %v5100, 0
    %v5112 = vsel %vm157, %v5101, 0
    %5114 = vmatprep.subr.mxu0 0.0
    %5115 = vmatpush1.msra.mxu0 0.0
    %5116 = vmatprep.subr.mxu0 0.0
    %5117 = vmatpush1.msra.mxu0 0.0
    %5118 = vmatprep.subr.mxu0 0.0
    %5119 = vmatpush1.msra.mxu0 0.0
    %5120 = vmatprep.subr.mxu0 0.0
    %5121 = vmatpush1.msra.mxu0 0.0
    %5122 = vmatprep.subr.mxu0 0.0
    %5123 = vmatpush1.msra.mxu0 0.0
    %5124 = vmatprep.subr.mxu0 0.0
    %5125 = vmatpush1.msra.mxu0 0.0
    %5126 = vmatprep.subr.mxu0 0.0
    %5127 = vmatpush1.msra.mxu0 0.0
    %5128 = vmatprep.subr.mxu0 0.0
    %5129 = vmatpush1.msra.mxu0 0.0
    %5130 = vmatprep.subr.mxu0 0.0
    %5131 = vmatpush1.msra.mxu0 0.0
    %5132 = vmatprep.subr.mxu0 0.0
    %5133 = vmatpush1.msra.mxu0 0.0
    %5134 = vmatprep.subr.mxu0 0.0
    %5135 = vmatpush1.msra.mxu0 0.0
    %5136 = vmatprep.subr.mxu0 0.0
    %5137 = vmatpush1.msra.mxu0 0.0
    %5138 = vmatprep.subr.mxu0 0.0
    %5139 = vmatpush1.msra.mxu0 %v4938
    %5140 = vmatprep.subr.mxu0 0.0
    %5141 = vmatpush1.msra.mxu0 %v4933
    %5142 = vmatprep.subr.mxu0 0.0
    %5143 = vmatpush1.msra.mxu0 %v4928
    %5144 = vmatprep.subr.mxu0 0.0
    %5145 = vmatpush1.msra.mxu0 %v4923
    %5146 = vmatprep.subr.mxu0 0.0
    %5147 = vmatpush2.msra.mxu0 0.0
    %5148 = vmatprep.subr.mxu0 0.0
    %5149 = vmatpush2.msra.mxu0 0.0
    %5150 = vmatprep.subr.mxu0 0.0
    %5151 = vmatpush2.msra.mxu0 0.0
    %5152 = vmatprep.subr.mxu0 0.0
    %5153 = vmatpush2.msra.mxu0 0.0
    %5154 = vmatprep.subr.mxu0 0.0
    %5155 = vmatpush2.msra.mxu0 0.0
    %5156 = vmatprep.subr.mxu0 0.0
    %5157 = vmatpush2.msra.mxu0 0.0
    %5158 = vmatprep.subr.mxu0 0.0
    %5159 = vmatpush2.msra.mxu0 0.0
    %5160 = vmatprep.subr.mxu0 0.0
    %5161 = vmatpush2.msra.mxu0 0.0
    %5162 = vmatprep.subr.mxu0 0.0
    %5163 = vmatpush2.msra.mxu0 0.0
    %5164 = vmatprep.subr.mxu0 0.0
    %5165 = vmatpush2.msra.mxu0 0.0
    %5166 = vmatprep.subr.mxu0 0.0
    %5167 = vmatpush2.msra.mxu0 0.0
    %5168 = vmatprep.subr.mxu0 0.0
    %5169 = vmatpush2.msra.mxu0 0.0
    %5170 = vmatprep.subr.mxu0 0.0
    %5171 = vmatpush2.msra.mxu0 0.0
    %5172 = vmatprep.subr.mxu0 0.0
    %5173 = vmatpush2.msra.mxu0 0.0
    %5174 = vmatprep.subr.mxu0 0.0
    %5175 = vmatpush2.msra.mxu0 0.0
    %5176 = vmatprep.subr.mxu0 0.0
    %5177 = vmatpush2.msra.mxu0 0.0
    %5178 = vmatprep.mubr.f32.mxu0 0.0
    %5179 = vmatmul.mubr.f32.gmra.mxu0 %v5103
    %v5180 = vpop.f32.mrf.mxu0
    %v5181 = vadd.f32 0.0, %v5180
    %v5182 = vpop.f32.mrf.mxu0
    %5183 = vmatprep.mubr.f32.mxu0 0.0
    %5184 = vmatmul.mubr.f32.gmra.mxu0 %v5106
    %v5185 = vpop.f32.mrf.mxu0
    %v5186 = vadd.f32 0.0, %v5185
    %v5187 = vpop.f32.mrf.mxu0
    %5188 = vmatprep.mubr.f32.mxu0 0.0
    %5189 = vmatmul.mubr.f32.gmra.mxu0 %v5109
    %v5190 = vpop.f32.mrf.mxu0
    %v5191 = vadd.f32 0.0, %v5190
    %v5192 = vpop.f32.mrf.mxu0
    %5193 = vmatprep.mubr.f32.mxu0 0.0
    %5194 = vmatmul.mubr.f32.gmra.mxu0 %v5112
    %v5195 = vpop.f32.mrf.mxu0
    %v5196 = vadd.f32 0.0, %v5195
    %v5197 = vpop.f32.mrf.mxu0
    %5198 = vdwg.mxu0
    %s5199 = scalar_lea.vmem %s8, 48
    %v5200 = vld [vmem:[%s5199] sm:$0xff]
    %v5202 = vsel %vm612, %v5181, 0
    %v5205 = vsel %vm612, %v5186, 0
    %v5208 = vsel %vm612, %v5191, 0
    %v5211 = vsel %vm612, %v5196, 0
    %5213 = vmatprep.subr.mxu0 0.0
    %5214 = vmatpush1.msra.mxu0 0.0
    %5215 = vmatprep.subr.mxu0 0.0
    %5216 = vmatpush1.msra.mxu0 0.0
    %5217 = vmatprep.subr.mxu0 0.0
    %5218 = vmatpush1.msra.mxu0 0.0
    %5219 = vmatprep.subr.mxu0 0.0
    %5220 = vmatpush1.msra.mxu0 0.0
    %5221 = vmatprep.subr.mxu0 0.0
    %5222 = vmatpush1.msra.mxu0 0.0
    %5223 = vmatprep.subr.mxu0 0.0
    %5224 = vmatpush1.msra.mxu0 0.0
    %5225 = vmatprep.subr.mxu0 0.0
    %5226 = vmatpush1.msra.mxu0 0.0
    %5227 = vmatprep.subr.mxu0 0.0
    %5228 = vmatpush1.msra.mxu0 0.0
    %5229 = vmatprep.subr.mxu0 0.0
    %5230 = vmatpush1.msra.mxu0 0.0
    %5231 = vmatprep.subr.mxu0 0.0
    %5232 = vmatpush1.msra.mxu0 0.0
    %5233 = vmatprep.subr.mxu0 0.0
    %5234 = vmatpush1.msra.mxu0 0.0
    %5235 = vmatprep.subr.mxu0 0.0
    %5236 = vmatpush1.msra.mxu0 0.0
    %5237 = vmatprep.subr.mxu0 0.0
    %5238 = vmatpush1.msra.mxu0 0.0
    %5239 = vmatprep.subr.mxu0 0.0
    %5240 = vmatpush1.msra.mxu0 0.0
    %5241 = vmatprep.subr.mxu0 0.0
    %5242 = vmatpush1.msra.mxu0 0.0
    %5243 = vmatprep.subr.mxu0 0.0
    %5244 = vmatpush1.msra.mxu0 %v5200
    %5245 = vmatprep.subr.mxu0 0.0
    %5246 = vmatpush2.msra.mxu0 0.0
    %5247 = vmatprep.subr.mxu0 0.0
    %5248 = vmatpush2.msra.mxu0 0.0
    %5249 = vmatprep.subr.mxu0 0.0
    %5250 = vmatpush2.msra.mxu0 0.0
    %5251 = vmatprep.subr.mxu0 0.0
    %5252 = vmatpush2.msra.mxu0 0.0
    %5253 = vmatprep.subr.mxu0 0.0
    %5254 = vmatpush2.msra.mxu0 0.0
    %5255 = vmatprep.subr.mxu0 0.0
    %5256 = vmatpush2.msra.mxu0 0.0
    %5257 = vmatprep.subr.mxu0 0.0
    %5258 = vmatpush2.msra.mxu0 0.0
    %5259 = vmatprep.subr.mxu0 0.0
    %5260 = vmatpush2.msra.mxu0 0.0
    %5261 = vmatprep.subr.mxu0 0.0
    %5262 = vmatpush2.msra.mxu0 0.0
    %5263 = vmatprep.subr.mxu0 0.0
    %5264 = vmatpush2.msra.mxu0 0.0
    %5265 = vmatprep.subr.mxu0 0.0
    %5266 = vmatpush2.msra.mxu0 0.0
    %5267 = vmatprep.subr.mxu0 0.0
    %5268 = vmatpush2.msra.mxu0 0.0
    %5269 = vmatprep.subr.mxu0 0.0
    %5270 = vmatpush2.msra.mxu0 0.0
    %5271 = vmatprep.subr.mxu0 0.0
    %5272 = vmatpush2.msra.mxu0 0.0
    %5273 = vmatprep.subr.mxu0 0.0
    %5274 = vmatpush2.msra.mxu0 0.0
    %5275 = vmatprep.subr.mxu0 0.0
    %5276 = vmatpush2.msra.mxu0 0.0
    %5277 = vmatprep.mubr.f32.mxu0 0.0
    %5278 = vmatmul.mubr.f32.gmra.mxu0 %v5202
    %v5279 = vpop.f32.mrf.mxu0
    %v5280 = vadd.f32 0.0, %v5279
    %v5281 = vpop.f32.mrf.mxu0
    %5282 = vmatprep.mubr.f32.mxu0 0.0
    %5283 = vmatmul.mubr.f32.gmra.mxu0 %v5205
    %v5284 = vpop.f32.mrf.mxu0
    %v5285 = vadd.f32 0.0, %v5284
    %v5286 = vpop.f32.mrf.mxu0
    %5287 = vmatprep.mubr.f32.mxu0 0.0
    %5288 = vmatmul.mubr.f32.gmra.mxu0 %v5208
    %v5289 = vpop.f32.mrf.mxu0
    %v5290 = vadd.f32 0.0, %v5289
    %v5291 = vpop.f32.mrf.mxu0
    %5292 = vmatprep.mubr.f32.mxu0 0.0
    %5293 = vmatmul.mubr.f32.gmra.mxu0 %v5211
    %v5294 = vpop.f32.mrf.mxu0
    %v5295 = vadd.f32 0.0, %v5294
    %v5296 = vpop.f32.mrf.mxu0
    %5297 = vdwg.mxu0
    %v5298 = vadd.f32 %v4629, %v5280
    %v5299 = vadd.f32 %v4634, %v5285
    %v5300 = vadd.f32 %v4639, %v5290
    %v5301 = vadd.f32 %v4644, %v5295
    %s5302 = scalar_lea.vmem %s6, 480
    %v5303 = vld [vmem:[%s5302] sm:$0xff]
    %v5304 = vld [vmem:[%s5302 + $0x8] sm:$0xff]
    %v5305 = vld [vmem:[%s5302 + $0x10] sm:$0xff]
    %v5306 = vld [vmem:[%s5302 + $0x18] sm:$0xff]
    %s5307 = scalar_lea.vmem %s7, 15
    %v5308 = vld [vmem:[%s5307] sm:$0x1]
    %v5310 = vlaneseq
    %v5311 = vshrl.u32 %v5310, 7
    %v5312 = vsub.s32 0, %v5311
    %v5313 = vrot.slane %v5308, %v5312
    %5315 = vmatprep.subr.mxu0 0.0
    %5316 = vmatpush1.msra.mxu0 0.0
    %5317 = vmatprep.subr.mxu0 0.0
    %5318 = vmatpush1.msra.mxu0 0.0
    %5319 = vmatprep.subr.mxu0 0.0
    %5320 = vmatpush1.msra.mxu0 0.0
    %5321 = vmatprep.subr.mxu0 0.0
    %5322 = vmatpush1.msra.mxu0 0.0
    %5323 = vmatprep.subr.mxu0 0.0
    %5324 = vmatpush1.msra.mxu0 0.0
    %5325 = vmatprep.subr.mxu0 0.0
    %5326 = vmatpush1.msra.mxu0 0.0
    %5327 = vmatprep.subr.mxu0 0.0
    %5328 = vmatpush1.msra.mxu0 0.0
    %5329 = vmatprep.subr.mxu0 0.0
    %5330 = vmatpush1.msra.mxu0 0.0
    %5331 = vmatprep.subr.mxu0 0.0
    %5332 = vmatpush1.msra.mxu0 0.0
    %5333 = vmatprep.subr.mxu0 0.0
    %5334 = vmatpush1.msra.mxu0 0.0
    %5335 = vmatprep.subr.mxu0 0.0
    %5336 = vmatpush1.msra.mxu0 0.0
    %5337 = vmatprep.subr.mxu0 0.0
    %5338 = vmatpush1.msra.mxu0 0.0
    %5339 = vmatprep.subr.mxu0 0.0
    %5340 = vmatpush1.msra.mxu0 %v5306
    %5341 = vmatprep.subr.mxu0 0.0
    %5342 = vmatpush1.msra.mxu0 %v5305
    %5343 = vmatprep.subr.mxu0 0.0
    %5344 = vmatpush1.msra.mxu0 %v5304
    %5345 = vmatprep.subr.mxu0 0.0
    %5346 = vmatpush1.msra.mxu0 %v5303
    %5347 = vmatprep.subr.mxu0 0.0
    %5348 = vmatpush2.msra.mxu0 0.0
    %5349 = vmatprep.subr.mxu0 0.0
    %5350 = vmatpush2.msra.mxu0 0.0
    %5351 = vmatprep.subr.mxu0 0.0
    %5352 = vmatpush2.msra.mxu0 0.0
    %5353 = vmatprep.subr.mxu0 0.0
    %5354 = vmatpush2.msra.mxu0 0.0
    %5355 = vmatprep.subr.mxu0 0.0
    %5356 = vmatpush2.msra.mxu0 0.0
    %5357 = vmatprep.subr.mxu0 0.0
    %5358 = vmatpush2.msra.mxu0 0.0
    %5359 = vmatprep.subr.mxu0 0.0
    %5360 = vmatpush2.msra.mxu0 0.0
    %5361 = vmatprep.subr.mxu0 0.0
    %5362 = vmatpush2.msra.mxu0 0.0
    %5363 = vmatprep.subr.mxu0 0.0
    %5364 = vmatpush2.msra.mxu0 0.0
    %5365 = vmatprep.subr.mxu0 0.0
    %5366 = vmatpush2.msra.mxu0 0.0
    %5367 = vmatprep.subr.mxu0 0.0
    %5368 = vmatpush2.msra.mxu0 0.0
    %5369 = vmatprep.subr.mxu0 0.0
    %5370 = vmatpush2.msra.mxu0 0.0
    %5371 = vmatprep.subr.mxu0 0.0
    %5372 = vmatpush2.msra.mxu0 0.0
    %5373 = vmatprep.subr.mxu0 0.0
    %5374 = vmatpush2.msra.mxu0 0.0
    %5375 = vmatprep.subr.mxu0 0.0
    %5376 = vmatpush2.msra.mxu0 0.0
    %5377 = vmatprep.subr.mxu0 0.0
    %5378 = vmatpush2.msra.mxu0 0.0
    %5379 = vmatprep.mubr.f32.mxu0 0.0
    %5380 = vmatmul.mubr.f32.gmra.mxu0 %v3347
    %v5381 = vpop.f32.mrf.mxu0
    %v5382 = vadd.f32 %v5313, %v5381
    %v5383 = vpop.f32.mrf.mxu0
    %5384 = vmatprep.mubr.f32.mxu0 0.0
    %5385 = vmatmul.mubr.f32.gmra.mxu0 %v3350
    %v5386 = vpop.f32.mrf.mxu0
    %v5387 = vadd.f32 %v5313, %v5386
    %v5388 = vpop.f32.mrf.mxu0
    %5389 = vmatprep.mubr.f32.mxu0 0.0
    %5390 = vmatmul.mubr.f32.gmra.mxu0 %v3353
    %v5391 = vpop.f32.mrf.mxu0
    %v5392 = vadd.f32 %v5313, %v5391
    %v5393 = vpop.f32.mrf.mxu0
    %5394 = vmatprep.mubr.f32.mxu0 0.0
    %5395 = vmatmul.mubr.f32.gmra.mxu0 %v3356
    %v5396 = vpop.f32.mrf.mxu0
    %v5397 = vadd.f32 %v5313, %v5396
    %v5398 = vpop.f32.mrf.mxu0
    %5399 = vdwg.mxu0
    %s5400 = scalar_lea.vmem %s6, 608
    %v5401 = vld [vmem:[%s5400] sm:$0xff]
    %v5402 = vld [vmem:[%s5400 + $0x8] sm:$0xff]
    %v5403 = vld [vmem:[%s5400 + $0x10] sm:$0xff]
    %v5404 = vld [vmem:[%s5400 + $0x18] sm:$0xff]
    %s5405 = scalar_lea.vmem %s7, 19
    %v5406 = vld [vmem:[%s5405] sm:$0x1]
    %v5408 = vlaneseq
    %v5409 = vshrl.u32 %v5408, 7
    %v5410 = vsub.s32 0, %v5409
    %v5411 = vrot.slane %v5406, %v5410
    %5413 = vmatprep.subr.mxu0 0.0
    %5414 = vmatpush1.msra.mxu0 0.0
    %5415 = vmatprep.subr.mxu0 0.0
    %5416 = vmatpush1.msra.mxu0 0.0
    %5417 = vmatprep.subr.mxu0 0.0
    %5418 = vmatpush1.msra.mxu0 0.0
    %5419 = vmatprep.subr.mxu0 0.0
    %5420 = vmatpush1.msra.mxu0 0.0
    %5421 = vmatprep.subr.mxu0 0.0
    %5422 = vmatpush1.msra.mxu0 0.0
    %5423 = vmatprep.subr.mxu0 0.0
    %5424 = vmatpush1.msra.mxu0 0.0
    %5425 = vmatprep.subr.mxu0 0.0
    %5426 = vmatpush1.msra.mxu0 0.0
    %5427 = vmatprep.subr.mxu0 0.0
    %5428 = vmatpush1.msra.mxu0 0.0
    %5429 = vmatprep.subr.mxu0 0.0
    %5430 = vmatpush1.msra.mxu0 0.0
    %5431 = vmatprep.subr.mxu0 0.0
    %5432 = vmatpush1.msra.mxu0 0.0
    %5433 = vmatprep.subr.mxu0 0.0
    %5434 = vmatpush1.msra.mxu0 0.0
    %5435 = vmatprep.subr.mxu0 0.0
    %5436 = vmatpush1.msra.mxu0 0.0
    %5437 = vmatprep.subr.mxu0 0.0
    %5438 = vmatpush1.msra.mxu0 %v5404
    %5439 = vmatprep.subr.mxu0 0.0
    %5440 = vmatpush1.msra.mxu0 %v5403
    %5441 = vmatprep.subr.mxu0 0.0
    %5442 = vmatpush1.msra.mxu0 %v5402
    %5443 = vmatprep.subr.mxu0 0.0
    %5444 = vmatpush1.msra.mxu0 %v5401
    %5445 = vmatprep.subr.mxu0 0.0
    %5446 = vmatpush2.msra.mxu0 0.0
    %5447 = vmatprep.subr.mxu0 0.0
    %5448 = vmatpush2.msra.mxu0 0.0
    %5449 = vmatprep.subr.mxu0 0.0
    %5450 = vmatpush2.msra.mxu0 0.0
    %5451 = vmatprep.subr.mxu0 0.0
    %5452 = vmatpush2.msra.mxu0 0.0
    %5453 = vmatprep.subr.mxu0 0.0
    %5454 = vmatpush2.msra.mxu0 0.0
    %5455 = vmatprep.subr.mxu0 0.0
    %5456 = vmatpush2.msra.mxu0 0.0
    %5457 = vmatprep.subr.mxu0 0.0
    %5458 = vmatpush2.msra.mxu0 0.0
    %5459 = vmatprep.subr.mxu0 0.0
    %5460 = vmatpush2.msra.mxu0 0.0
    %5461 = vmatprep.subr.mxu0 0.0
    %5462 = vmatpush2.msra.mxu0 0.0
    %5463 = vmatprep.subr.mxu0 0.0
    %5464 = vmatpush2.msra.mxu0 0.0
    %5465 = vmatprep.subr.mxu0 0.0
    %5466 = vmatpush2.msra.mxu0 0.0
    %5467 = vmatprep.subr.mxu0 0.0
    %5468 = vmatpush2.msra.mxu0 0.0
    %5469 = vmatprep.subr.mxu0 0.0
    %5470 = vmatpush2.msra.mxu0 0.0
    %5471 = vmatprep.subr.mxu0 0.0
    %5472 = vmatpush2.msra.mxu0 0.0
    %5473 = vmatprep.subr.mxu0 0.0
    %5474 = vmatpush2.msra.mxu0 0.0
    %5475 = vmatprep.subr.mxu0 0.0
    %5476 = vmatpush2.msra.mxu0 0.0
    %5477 = vmatprep.mubr.f32.mxu0 0.0
    %5478 = vmatmul.mubr.f32.gmra.mxu0 %v3347
    %v5479 = vpop.f32.mrf.mxu0
    %v5480 = vadd.f32 %v5411, %v5479
    %v5481 = vpop.f32.mrf.mxu0
    %5482 = vmatprep.mubr.f32.mxu0 0.0
    %5483 = vmatmul.mubr.f32.gmra.mxu0 %v3350
    %v5484 = vpop.f32.mrf.mxu0
    %v5485 = vadd.f32 %v5411, %v5484
    %v5486 = vpop.f32.mrf.mxu0
    %5487 = vmatprep.mubr.f32.mxu0 0.0
    %5488 = vmatmul.mubr.f32.gmra.mxu0 %v3353
    %v5489 = vpop.f32.mrf.mxu0
    %v5490 = vadd.f32 %v5411, %v5489
    %v5491 = vpop.f32.mrf.mxu0
    %5492 = vmatprep.mubr.f32.mxu0 0.0
    %5493 = vmatmul.mubr.f32.gmra.mxu0 %v3356
    %v5494 = vpop.f32.mrf.mxu0
    %v5495 = vadd.f32 %v5411, %v5494
    %v5496 = vpop.f32.mrf.mxu0
    %5497 = vdwg.mxu0
    %s5498 = scalar_lea.vmem %s6, 736
    %v5499 = vld [vmem:[%s5498] sm:$0xff]
    %v5500 = vld [vmem:[%s5498 + $0x8] sm:$0xff]
    %v5501 = vld [vmem:[%s5498 + $0x10] sm:$0xff]
    %v5502 = vld [vmem:[%s5498 + $0x18] sm:$0xff]
    %s5503 = scalar_lea.vmem %s7, 23
    %v5504 = vld [vmem:[%s5503] sm:$0x1]
    %v5506 = vlaneseq
    %v5507 = vshrl.u32 %v5506, 7
    %v5508 = vsub.s32 0, %v5507
    %v5509 = vrot.slane %v5504, %v5508
    %5511 = vmatprep.subr.mxu0 0.0
    %5512 = vmatpush1.msra.mxu0 0.0
    %5513 = vmatprep.subr.mxu0 0.0
    %5514 = vmatpush1.msra.mxu0 0.0
    %5515 = vmatprep.subr.mxu0 0.0
    %5516 = vmatpush1.msra.mxu0 0.0
    %5517 = vmatprep.subr.mxu0 0.0
    %5518 = vmatpush1.msra.mxu0 0.0
    %5519 = vmatprep.subr.mxu0 0.0
    %5520 = vmatpush1.msra.mxu0 0.0
    %5521 = vmatprep.subr.mxu0 0.0
    %5522 = vmatpush1.msra.mxu0 0.0
    %5523 = vmatprep.subr.mxu0 0.0
    %5524 = vmatpush1.msra.mxu0 0.0
    %5525 = vmatprep.subr.mxu0 0.0
    %5526 = vmatpush1.msra.mxu0 0.0
    %5527 = vmatprep.subr.mxu0 0.0
    %5528 = vmatpush1.msra.mxu0 0.0
    %5529 = vmatprep.subr.mxu0 0.0
    %5530 = vmatpush1.msra.mxu0 0.0
    %5531 = vmatprep.subr.mxu0 0.0
    %5532 = vmatpush1.msra.mxu0 0.0
    %5533 = vmatprep.subr.mxu0 0.0
    %5534 = vmatpush1.msra.mxu0 0.0
    %5535 = vmatprep.subr.mxu0 0.0
    %5536 = vmatpush1.msra.mxu0 %v5502
    %5537 = vmatprep.subr.mxu0 0.0
    %5538 = vmatpush1.msra.mxu0 %v5501
    %5539 = vmatprep.subr.mxu0 0.0
    %5540 = vmatpush1.msra.mxu0 %v5500
    %5541 = vmatprep.subr.mxu0 0.0
    %5542 = vmatpush1.msra.mxu0 %v5499
    %5543 = vmatprep.subr.mxu0 0.0
    %5544 = vmatpush2.msra.mxu0 0.0
    %5545 = vmatprep.subr.mxu0 0.0
    %5546 = vmatpush2.msra.mxu0 0.0
    %5547 = vmatprep.subr.mxu0 0.0
    %5548 = vmatpush2.msra.mxu0 0.0
    %5549 = vmatprep.subr.mxu0 0.0
    %5550 = vmatpush2.msra.mxu0 0.0
    %5551 = vmatprep.subr.mxu0 0.0
    %5552 = vmatpush2.msra.mxu0 0.0
    %5553 = vmatprep.subr.mxu0 0.0
    %5554 = vmatpush2.msra.mxu0 0.0
    %5555 = vmatprep.subr.mxu0 0.0
    %5556 = vmatpush2.msra.mxu0 0.0
    %5557 = vmatprep.subr.mxu0 0.0
    %5558 = vmatpush2.msra.mxu0 0.0
    %5559 = vmatprep.subr.mxu0 0.0
    %5560 = vmatpush2.msra.mxu0 0.0
    %5561 = vmatprep.subr.mxu0 0.0
    %5562 = vmatpush2.msra.mxu0 0.0
    %5563 = vmatprep.subr.mxu0 0.0
    %5564 = vmatpush2.msra.mxu0 0.0
    %5565 = vmatprep.subr.mxu0 0.0
    %5566 = vmatpush2.msra.mxu0 0.0
    %5567 = vmatprep.subr.mxu0 0.0
    %5568 = vmatpush2.msra.mxu0 0.0
    %5569 = vmatprep.subr.mxu0 0.0
    %5570 = vmatpush2.msra.mxu0 0.0
    %5571 = vmatprep.subr.mxu0 0.0
    %5572 = vmatpush2.msra.mxu0 0.0
    %5573 = vmatprep.subr.mxu0 0.0
    %5574 = vmatpush2.msra.mxu0 0.0
    %5575 = vmatprep.mubr.f32.mxu0 0.0
    %5576 = vmatmul.mubr.f32.gmra.mxu0 %v3347
    %v5577 = vpop.f32.mrf.mxu0
    %v5578 = vadd.f32 %v5509, %v5577
    %v5579 = vpop.f32.mrf.mxu0
    %5580 = vmatprep.mubr.f32.mxu0 0.0
    %5581 = vmatmul.mubr.f32.gmra.mxu0 %v3350
    %v5582 = vpop.f32.mrf.mxu0
    %v5583 = vadd.f32 %v5509, %v5582
    %v5584 = vpop.f32.mrf.mxu0
    %5585 = vmatprep.mubr.f32.mxu0 0.0
    %5586 = vmatmul.mubr.f32.gmra.mxu0 %v3353
    %v5587 = vpop.f32.mrf.mxu0
    %v5588 = vadd.f32 %v5509, %v5587
    %v5589 = vpop.f32.mrf.mxu0
    %5590 = vmatprep.mubr.f32.mxu0 0.0
    %5591 = vmatmul.mubr.f32.gmra.mxu0 %v3356
    %v5592 = vpop.f32.mrf.mxu0
    %v5593 = vadd.f32 %v5509, %v5592
    %v5594 = vpop.f32.mrf.mxu0
    %5595 = vdwg.mxu0
    %v5597 = vsel %vm612, %v5382, 0
    %v5600 = vsel %vm612, %v5387, 0
    %v5603 = vsel %vm612, %v5392, 0
    %v5606 = vsel %vm612, %v5397, 0
    %v5609 = vsel %vm612, %v5480, 0
    %v5612 = vsel %vm612, %v5485, 0
    %v5615 = vsel %vm612, %v5490, 0
    %v5618 = vsel %vm612, %v5495, 0
    %5620 = vmatprep.subr.mxu0 0.0
    %5621 = vmatpush1.xpose.msra.mxu0 0.0
    %5622 = vmatprep.subr.mxu0 0.0
    %5623 = vmatpush1.xpose.msra.mxu0 0.0
    %5624 = vmatprep.subr.mxu0 0.0
    %5625 = vmatpush1.xpose.msra.mxu0 0.0
    %5626 = vmatprep.subr.mxu0 0.0
    %5627 = vmatpush1.xpose.msra.mxu0 0.0
    %5628 = vmatprep.subr.mxu0 0.0
    %5629 = vmatpush1.xpose.msra.mxu0 0.0
    %5630 = vmatprep.subr.mxu0 0.0
    %5631 = vmatpush1.xpose.msra.mxu0 0.0
    %5632 = vmatprep.subr.mxu0 0.0
    %5633 = vmatpush1.xpose.msra.mxu0 0.0
    %5634 = vmatprep.subr.mxu0 0.0
    %5635 = vmatpush1.xpose.msra.mxu0 0.0
    %5636 = vmatprep.subr.mxu0 0.0
    %5637 = vmatpush1.xpose.msra.mxu0 0.0
    %5638 = vmatprep.subr.mxu0 0.0
    %5639 = vmatpush1.xpose.msra.mxu0 0.0
    %5640 = vmatprep.subr.mxu0 0.0
    %5641 = vmatpush1.xpose.msra.mxu0 0.0
    %5642 = vmatprep.subr.mxu0 0.0
    %5643 = vmatpush1.xpose.msra.mxu0 0.0
    %5644 = vmatprep.subr.mxu0 0.0
    %5645 = vmatpush1.xpose.msra.mxu0 %v5618
    %5646 = vmatprep.subr.mxu0 0.0
    %5647 = vmatpush1.xpose.msra.mxu0 %v5615
    %5648 = vmatprep.subr.mxu0 0.0
    %5649 = vmatpush1.xpose.msra.mxu0 %v5612
    %5650 = vmatprep.subr.mxu0 0.0
    %5651 = vmatpush1.xpose.msra.mxu0 %v5609
    %5652 = vmatprep.subr.mxu0 0.0
    %5653 = vmatpush2.xpose.msra.mxu0 0.0
    %5654 = vmatprep.subr.mxu0 0.0
    %5655 = vmatpush2.xpose.msra.mxu0 0.0
    %5656 = vmatprep.subr.mxu0 0.0
    %5657 = vmatpush2.xpose.msra.mxu0 0.0
    %5658 = vmatprep.subr.mxu0 0.0
    %5659 = vmatpush2.xpose.msra.mxu0 0.0
    %5660 = vmatprep.subr.mxu0 0.0
    %5661 = vmatpush2.xpose.msra.mxu0 0.0
    %5662 = vmatprep.subr.mxu0 0.0
    %5663 = vmatpush2.xpose.msra.mxu0 0.0
    %5664 = vmatprep.subr.mxu0 0.0
    %5665 = vmatpush2.xpose.msra.mxu0 0.0
    %5666 = vmatprep.subr.mxu0 0.0
    %5667 = vmatpush2.xpose.msra.mxu0 0.0
    %5668 = vmatprep.subr.mxu0 0.0
    %5669 = vmatpush2.xpose.msra.mxu0 0.0
    %5670 = vmatprep.subr.mxu0 0.0
    %5671 = vmatpush2.xpose.msra.mxu0 0.0
    %5672 = vmatprep.subr.mxu0 0.0
    %5673 = vmatpush2.xpose.msra.mxu0 0.0
    %5674 = vmatprep.subr.mxu0 0.0
    %5675 = vmatpush2.xpose.msra.mxu0 0.0
    %5676 = vmatprep.subr.mxu0 0.0
    %5677 = vmatpush2.xpose.msra.mxu0 0.0
    %5678 = vmatprep.subr.mxu0 0.0
    %5679 = vmatpush2.xpose.msra.mxu0 0.0
    %5680 = vmatprep.subr.mxu0 0.0
    %5681 = vmatpush2.xpose.msra.mxu0 0.0
    %5682 = vmatprep.subr.mxu0 0.0
    %5683 = vmatpush2.xpose.msra.mxu0 0.0
    %5684 = vmatprep.mubr.f32.mxu0 0.0
    %5685 = vmatmul.mubr.f32.gmra.mxu0 %v5597
    %v5686 = vpop.f32.mrf.mxu0
    %v5687 = vadd.f32 0.0, %v5686
    %v5688 = vpop.f32.mrf.mxu0
    %5689 = vmatprep.mubr.f32.mxu0 0.0
    %5690 = vmatmul.mubr.f32.gmra.mxu0 %v5600
    %v5691 = vpop.f32.mrf.mxu0
    %v5692 = vadd.f32 0.0, %v5691
    %v5693 = vpop.f32.mrf.mxu0
    %5694 = vmatprep.mubr.f32.mxu0 0.0
    %5695 = vmatmul.mubr.f32.gmra.mxu0 %v5603
    %v5696 = vpop.f32.mrf.mxu0
    %v5697 = vadd.f32 0.0, %v5696
    %v5698 = vpop.f32.mrf.mxu0
    %5699 = vmatprep.mubr.f32.mxu0 0.0
    %5700 = vmatmul.mubr.f32.gmra.mxu0 %v5606
    %v5701 = vpop.f32.mrf.mxu0
    %v5702 = vadd.f32 0.0, %v5701
    %v5703 = vpop.f32.mrf.mxu0
    %5704 = vdwg.mxu0
    %v5705 = vmul.f32 %v5687, 0.35355338
    %v5706 = vmul.f32 %v5692, 0.35355338
    %v5707 = vmul.f32 %v5697, 0.35355338
    %v5708 = vmul.f32 %v5702, 0.35355338
    %v5709 = vadd.f32 %v5705, %v235
    %v5710 = vadd.f32 %v5706, %v236
    %v5711 = vadd.f32 %v5707, %v237
    %v5712 = vadd.f32 %v5708, %v238
    %v5713 = vsel %vm157, %v5709, -inf
    %5714 = vmax.xlane.f32.xlu0 %v5713
    %v5715 = vpop.xlane.xlu0 %5714
    %v5716 = vsel %vm157, %v5710, -inf
    %5717 = vmax.xlane.f32.xlu0 %v5716
    %v5718 = vpop.xlane.xlu0 %5717
    %v5719 = vsel %vm157, %v5711, -inf
    %5720 = vmax.xlane.f32.xlu0 %v5719
    %v5721 = vpop.xlane.xlu0 %5720
    %v5722 = vsel %vm157, %v5712, -inf
    %5723 = vmax.xlane.f32.xlu0 %v5722
    %v5724 = vpop.xlane.xlu0 %5723
    %v5725 = vsub.f32 %v5709, %v5715
    %v5726 = vsub.f32 %v5710, %v5718
    %v5727 = vsub.f32 %v5711, %v5721
    %v5728 = vsub.f32 %v5712, %v5724
    %v5729 = vmul.f32 %v5725, 1.442695
    %v5730 = vpow.pop %v5729
    %v5731 = vmul.f32 %v5726, 1.442695
    %v5732 = vpow.pop %v5731
    %v5733 = vmul.f32 %v5727, 1.442695
    %v5734 = vpow.pop %v5733
    %v5735 = vmul.f32 %v5728, 1.442695
    %v5736 = vpow.pop %v5735
    %v5737 = vsel %vm157, %v5730, 0.0
    %5738 = vadd.xlane.f32.xlu0 %v5737
    %v5739 = vpop.xlane.xlu0 %5738
    %v5740 = vsel %vm157, %v5732, 0.0
    %5741 = vadd.xlane.f32.xlu0 %v5740
    %v5742 = vpop.xlane.xlu0 %5741
    %v5743 = vsel %vm157, %v5734, 0.0
    %5744 = vadd.xlane.f32.xlu0 %v5743
    %v5745 = vpop.xlane.xlu0 %5744
    %v5746 = vsel %vm157, %v5736, 0.0
    %5747 = vadd.xlane.f32.xlu0 %v5746
    %v5748 = vpop.xlane.xlu0 %5747
    %v5749 = vrcp.pop %v5739
    %v5750 = vrcp.pop %v5742
    %v5751 = vrcp.pop %v5745
    %v5752 = vrcp.pop %v5748
    %v5753 = vmul.f32 %v5730, %v5749
    %v5754 = vmul.f32 %v5732, %v5750
    %v5755 = vmul.f32 %v5734, %v5751
    %v5756 = vmul.f32 %v5736, %v5752
    %v5758 = vsel %vm157, %v5753, 0
    %v5761 = vsel %vm157, %v5754, 0
    %v5764 = vsel %vm157, %v5755, 0
    %v5767 = vsel %vm157, %v5756, 0
    %5769 = vmatprep.subr.mxu0 0.0
    %5770 = vmatpush1.msra.mxu0 0.0
    %5771 = vmatprep.subr.mxu0 0.0
    %5772 = vmatpush1.msra.mxu0 0.0
    %5773 = vmatprep.subr.mxu0 0.0
    %5774 = vmatpush1.msra.mxu0 0.0
    %5775 = vmatprep.subr.mxu0 0.0
    %5776 = vmatpush1.msra.mxu0 0.0
    %5777 = vmatprep.subr.mxu0 0.0
    %5778 = vmatpush1.msra.mxu0 0.0
    %5779 = vmatprep.subr.mxu0 0.0
    %5780 = vmatpush1.msra.mxu0 0.0
    %5781 = vmatprep.subr.mxu0 0.0
    %5782 = vmatpush1.msra.mxu0 0.0
    %5783 = vmatprep.subr.mxu0 0.0
    %5784 = vmatpush1.msra.mxu0 0.0
    %5785 = vmatprep.subr.mxu0 0.0
    %5786 = vmatpush1.msra.mxu0 0.0
    %5787 = vmatprep.subr.mxu0 0.0
    %5788 = vmatpush1.msra.mxu0 0.0
    %5789 = vmatprep.subr.mxu0 0.0
    %5790 = vmatpush1.msra.mxu0 0.0
    %5791 = vmatprep.subr.mxu0 0.0
    %5792 = vmatpush1.msra.mxu0 0.0
    %5793 = vmatprep.subr.mxu0 0.0
    %5794 = vmatpush1.msra.mxu0 %v5593
    %5795 = vmatprep.subr.mxu0 0.0
    %5796 = vmatpush1.msra.mxu0 %v5588
    %5797 = vmatprep.subr.mxu0 0.0
    %5798 = vmatpush1.msra.mxu0 %v5583
    %5799 = vmatprep.subr.mxu0 0.0
    %5800 = vmatpush1.msra.mxu0 %v5578
    %5801 = vmatprep.subr.mxu0 0.0
    %5802 = vmatpush2.msra.mxu0 0.0
    %5803 = vmatprep.subr.mxu0 0.0
    %5804 = vmatpush2.msra.mxu0 0.0
    %5805 = vmatprep.subr.mxu0 0.0
    %5806 = vmatpush2.msra.mxu0 0.0
    %5807 = vmatprep.subr.mxu0 0.0
    %5808 = vmatpush2.msra.mxu0 0.0
    %5809 = vmatprep.subr.mxu0 0.0
    %5810 = vmatpush2.msra.mxu0 0.0
    %5811 = vmatprep.subr.mxu0 0.0
    %5812 = vmatpush2.msra.mxu0 0.0
    %5813 = vmatprep.subr.mxu0 0.0
    %5814 = vmatpush2.msra.mxu0 0.0
    %5815 = vmatprep.subr.mxu0 0.0
    %5816 = vmatpush2.msra.mxu0 0.0
    %5817 = vmatprep.subr.mxu0 0.0
    %5818 = vmatpush2.msra.mxu0 0.0
    %5819 = vmatprep.subr.mxu0 0.0
    %5820 = vmatpush2.msra.mxu0 0.0
    %5821 = vmatprep.subr.mxu0 0.0
    %5822 = vmatpush2.msra.mxu0 0.0
    %5823 = vmatprep.subr.mxu0 0.0
    %5824 = vmatpush2.msra.mxu0 0.0
    %5825 = vmatprep.subr.mxu0 0.0
    %5826 = vmatpush2.msra.mxu0 0.0
    %5827 = vmatprep.subr.mxu0 0.0
    %5828 = vmatpush2.msra.mxu0 0.0
    %5829 = vmatprep.subr.mxu0 0.0
    %5830 = vmatpush2.msra.mxu0 0.0
    %5831 = vmatprep.subr.mxu0 0.0
    %5832 = vmatpush2.msra.mxu0 0.0
    %5833 = vmatprep.mubr.f32.mxu0 0.0
    %5834 = vmatmul.mubr.f32.gmra.mxu0 %v5758
    %v5835 = vpop.f32.mrf.mxu0
    %v5836 = vadd.f32 0.0, %v5835
    %v5837 = vpop.f32.mrf.mxu0
    %5838 = vmatprep.mubr.f32.mxu0 0.0
    %5839 = vmatmul.mubr.f32.gmra.mxu0 %v5761
    %v5840 = vpop.f32.mrf.mxu0
    %v5841 = vadd.f32 0.0, %v5840
    %v5842 = vpop.f32.mrf.mxu0
    %5843 = vmatprep.mubr.f32.mxu0 0.0
    %5844 = vmatmul.mubr.f32.gmra.mxu0 %v5764
    %v5845 = vpop.f32.mrf.mxu0
    %v5846 = vadd.f32 0.0, %v5845
    %v5847 = vpop.f32.mrf.mxu0
    %5848 = vmatprep.mubr.f32.mxu0 0.0
    %5849 = vmatmul.mubr.f32.gmra.mxu0 %v5767
    %v5850 = vpop.f32.mrf.mxu0
    %v5851 = vadd.f32 0.0, %v5850
    %v5852 = vpop.f32.mrf.mxu0
    %5853 = vdwg.mxu0
    %s5854 = scalar_lea.vmem %s8, 56
    %v5855 = vld [vmem:[%s5854] sm:$0xff]
    %v5857 = vsel %vm612, %v5836, 0
    %v5860 = vsel %vm612, %v5841, 0
    %v5863 = vsel %vm612, %v5846, 0
    %v5866 = vsel %vm612, %v5851, 0
    %5868 = vmatprep.subr.mxu0 0.0
    %5869 = vmatpush1.msra.mxu0 0.0
    %5870 = vmatprep.subr.mxu0 0.0
    %5871 = vmatpush1.msra.mxu0 0.0
    %5872 = vmatprep.subr.mxu0 0.0
    %5873 = vmatpush1.msra.mxu0 0.0
    %5874 = vmatprep.subr.mxu0 0.0
    %5875 = vmatpush1.msra.mxu0 0.0
    %5876 = vmatprep.subr.mxu0 0.0
    %5877 = vmatpush1.msra.mxu0 0.0
    %5878 = vmatprep.subr.mxu0 0.0
    %5879 = vmatpush1.msra.mxu0 0.0
    %5880 = vmatprep.subr.mxu0 0.0
    %5881 = vmatpush1.msra.mxu0 0.0
    %5882 = vmatprep.subr.mxu0 0.0
    %5883 = vmatpush1.msra.mxu0 0.0
    %5884 = vmatprep.subr.mxu0 0.0
    %5885 = vmatpush1.msra.mxu0 0.0
    %5886 = vmatprep.subr.mxu0 0.0
    %5887 = vmatpush1.msra.mxu0 0.0
    %5888 = vmatprep.subr.mxu0 0.0
    %5889 = vmatpush1.msra.mxu0 0.0
    %5890 = vmatprep.subr.mxu0 0.0
    %5891 = vmatpush1.msra.mxu0 0.0
    %5892 = vmatprep.subr.mxu0 0.0
    %5893 = vmatpush1.msra.mxu0 0.0
    %5894 = vmatprep.subr.mxu0 0.0
    %5895 = vmatpush1.msra.mxu0 0.0
    %5896 = vmatprep.subr.mxu0 0.0
    %5897 = vmatpush1.msra.mxu0 0.0
    %5898 = vmatprep.subr.mxu0 0.0
    %5899 = vmatpush1.msra.mxu0 %v5855
    %5900 = vmatprep.subr.mxu0 0.0
    %5901 = vmatpush2.msra.mxu0 0.0
    %5902 = vmatprep.subr.mxu0 0.0
    %5903 = vmatpush2.msra.mxu0 0.0
    %5904 = vmatprep.subr.mxu0 0.0
    %5905 = vmatpush2.msra.mxu0 0.0
    %5906 = vmatprep.subr.mxu0 0.0
    %5907 = vmatpush2.msra.mxu0 0.0
    %5908 = vmatprep.subr.mxu0 0.0
    %5909 = vmatpush2.msra.mxu0 0.0
    %5910 = vmatprep.subr.mxu0 0.0
    %5911 = vmatpush2.msra.mxu0 0.0
    %5912 = vmatprep.subr.mxu0 0.0
    %5913 = vmatpush2.msra.mxu0 0.0
    %5914 = vmatprep.subr.mxu0 0.0
    %5915 = vmatpush2.msra.mxu0 0.0
    %5916 = vmatprep.subr.mxu0 0.0
    %5917 = vmatpush2.msra.mxu0 0.0
    %5918 = vmatprep.subr.mxu0 0.0
    %5919 = vmatpush2.msra.mxu0 0.0
    %5920 = vmatprep.subr.mxu0 0.0
    %5921 = vmatpush2.msra.mxu0 0.0
    %5922 = vmatprep.subr.mxu0 0.0
    %5923 = vmatpush2.msra.mxu0 0.0
    %5924 = vmatprep.subr.mxu0 0.0
    %5925 = vmatpush2.msra.mxu0 0.0
    %5926 = vmatprep.subr.mxu0 0.0
    %5927 = vmatpush2.msra.mxu0 0.0
    %5928 = vmatprep.subr.mxu0 0.0
    %5929 = vmatpush2.msra.mxu0 0.0
    %5930 = vmatprep.subr.mxu0 0.0
    %5931 = vmatpush2.msra.mxu0 0.0
    %5932 = vmatprep.mubr.f32.mxu0 0.0
    %5933 = vmatmul.mubr.f32.gmra.mxu0 %v5857
    %v5934 = vpop.f32.mrf.mxu0
    %v5935 = vadd.f32 0.0, %v5934
    %v5936 = vpop.f32.mrf.mxu0
    %5937 = vmatprep.mubr.f32.mxu0 0.0
    %5938 = vmatmul.mubr.f32.gmra.mxu0 %v5860
    %v5939 = vpop.f32.mrf.mxu0
    %v5940 = vadd.f32 0.0, %v5939
    %v5941 = vpop.f32.mrf.mxu0
    %5942 = vmatprep.mubr.f32.mxu0 0.0
    %5943 = vmatmul.mubr.f32.gmra.mxu0 %v5863
    %v5944 = vpop.f32.mrf.mxu0
    %v5945 = vadd.f32 0.0, %v5944
    %v5946 = vpop.f32.mrf.mxu0
    %5947 = vmatprep.mubr.f32.mxu0 0.0
    %5948 = vmatmul.mubr.f32.gmra.mxu0 %v5866
    %v5949 = vpop.f32.mrf.mxu0
    %v5950 = vadd.f32 0.0, %v5949
    %v5951 = vpop.f32.mrf.mxu0
    %5952 = vdwg.mxu0
    %v5953 = vadd.f32 %v5298, %v5935
    %v5954 = vadd.f32 %v5299, %v5940
    %v5955 = vadd.f32 %v5300, %v5945
    %v5956 = vadd.f32 %v5301, %v5950
    %v5957 = vadd.f32 %v3259, %v5953
    %v5958 = vadd.f32 %v3260, %v5954
    %v5959 = vadd.f32 %v3261, %v5955
    %v5960 = vadd.f32 %v3262, %v5956
    %v5961 = vlaneseq
    %v5962 = vshrl.u32 %v5961, 7
    %v5963 = vsub.s32 4, %v5962
    %v5964 = vrot.slane %v3264, %v5963
    %v5965 = vadd.f32 %v5957, %v5964
    %v5966 = vadd.f32 %v5958, %v5964
    %v5967 = vadd.f32 %v5959, %v5964
    %v5968 = vadd.f32 %v5960, %v5964
    %v5969 = vsel %vm157, %v5965, 0.0
    %5970 = vadd.xlane.f32.xlu0 %v5969
    %v5971 = vpop.xlane.xlu0 %5970
    %v5972 = vsel %vm157, %v5966, 0.0
    %5973 = vadd.xlane.f32.xlu0 %v5972
    %v5974 = vpop.xlane.xlu0 %5973
    %v5975 = vsel %vm157, %v5967, 0.0
    %5976 = vadd.xlane.f32.xlu0 %v5975
    %v5977 = vpop.xlane.xlu0 %5976
    %v5978 = vsel %vm157, %v5968, 0.0
    %5979 = vadd.xlane.f32.xlu0 %v5978
    %v5980 = vpop.xlane.xlu0 %5979
    %v5981 = vmul.f32 %v5971, %v170
    %v5982 = vmul.f32 %v5974, %v170
    %v5983 = vmul.f32 %v5977, %v170
    %v5984 = vmul.f32 %v5980, %v170
    %v5985 = vsub.f32 %v5965, %v5981
    %v5986 = vsub.f32 %v5966, %v5982
    %v5987 = vsub.f32 %v5967, %v5983
    %v5988 = vsub.f32 %v5968, %v5984
    %v5989 = vmul.f32 %v5985, %v5985
    %v5990 = vmul.f32 %v5986, %v5986
    %v5991 = vmul.f32 %v5987, %v5987
    %v5992 = vmul.f32 %v5988, %v5988
    %v5993 = vsel %vm157, %v5989, 0.0
    %5994 = vadd.xlane.f32.xlu0 %v5993
    %v5995 = vpop.xlane.xlu0 %5994
    %v5996 = vsel %vm157, %v5990, 0.0
    %5997 = vadd.xlane.f32.xlu0 %v5996
    %v5998 = vpop.xlane.xlu0 %5997
    %v5999 = vsel %vm157, %v5991, 0.0
    %6000 = vadd.xlane.f32.xlu0 %v5999
    %v6001 = vpop.xlane.xlu0 %6000
    %v6002 = vsel %vm157, %v5992, 0.0
    %6003 = vadd.xlane.f32.xlu0 %v6002
    %v6004 = vpop.xlane.xlu0 %6003
    %v6005 = vmul.f32 %v5995, %v170
    %v6006 = vmul.f32 %v5998, %v170
    %v6007 = vmul.f32 %v6001, %v170
    %v6008 = vmul.f32 %v6004, %v170
    %v6009 = vadd.f32 %v6005, 1e-05
    %v6010 = vadd.f32 %v6006, 1e-05
    %v6011 = vadd.f32 %v6007, 1e-05
    %v6012 = vadd.f32 %v6008, 1e-05
    %v6013 = vrsqrt.pop %v6009
    %v6014 = vrsqrt.pop %v6010
    %v6015 = vrsqrt.pop %v6011
    %v6016 = vrsqrt.pop %v6012
    %v6017 = vmul.f32 %v5985, %v6013
    %v6018 = vmul.f32 %v5986, %v6014
    %v6019 = vmul.f32 %v5987, %v6015
    %v6020 = vmul.f32 %v5988, %v6016
    %v6021 = vlaneseq
    %v6022 = vshrl.u32 %v6021, 7
    %v6023 = vsub.s32 2, %v6022
    %v6024 = vrot.slane %v3264, %v6023
    %v6025 = vmul.f32 %v6017, %v6024
    %v6026 = vmul.f32 %v6018, %v6024
    %v6027 = vmul.f32 %v6019, %v6024
    %v6028 = vmul.f32 %v6020, %v6024
    %v6029 = vlaneseq
    %v6030 = vshrl.u32 %v6029, 7
    %v6031 = vsub.s32 3, %v6030
    %v6032 = vrot.slane %v3264, %v6031
    %v6033 = vadd.f32 %v6025, %v6032
    %v6034 = vadd.f32 %v6026, %v6032
    %v6035 = vadd.f32 %v6027, %v6032
    %v6036 = vadd.f32 %v6028, %v6032
    %s6037 = scalar_lea.vmem %s9, 32
    %v6038 = vld [vmem:[%s6037] sm:$0xff]
    %v6039 = vld [vmem:[%s6037 + $0x8] sm:$0xff]
    %v6040 = vld [vmem:[%s6037 + $0x10] sm:$0xff]
    %v6041 = vld [vmem:[%s6037 + $0x18] sm:$0xff]
    %s6042 = scalar_lea.vmem %s10, 1
    %v6043 = vld [vmem:[%s6042] sm:$0x1]
    %v6045 = vlaneseq
    %v6046 = vshrl.u32 %v6045, 7
    %v6047 = vsub.s32 0, %v6046
    %v6048 = vrot.slane %v6043, %v6047
    %v6051 = vsel %vm157, %v6033, 0
    %v6054 = vsel %vm157, %v6034, 0
    %v6057 = vsel %vm157, %v6035, 0
    %v6060 = vsel %vm157, %v6036, 0
    %6062 = vmatprep.subr.mxu0 0.0
    %6063 = vmatpush1.msra.mxu0 0.0
    %6064 = vmatprep.subr.mxu0 0.0
    %6065 = vmatpush1.msra.mxu0 0.0
    %6066 = vmatprep.subr.mxu0 0.0
    %6067 = vmatpush1.msra.mxu0 0.0
    %6068 = vmatprep.subr.mxu0 0.0
    %6069 = vmatpush1.msra.mxu0 0.0
    %6070 = vmatprep.subr.mxu0 0.0
    %6071 = vmatpush1.msra.mxu0 0.0
    %6072 = vmatprep.subr.mxu0 0.0
    %6073 = vmatpush1.msra.mxu0 0.0
    %6074 = vmatprep.subr.mxu0 0.0
    %6075 = vmatpush1.msra.mxu0 0.0
    %6076 = vmatprep.subr.mxu0 0.0
    %6077 = vmatpush1.msra.mxu0 0.0
    %6078 = vmatprep.subr.mxu0 0.0
    %6079 = vmatpush1.msra.mxu0 0.0
    %6080 = vmatprep.subr.mxu0 0.0
    %6081 = vmatpush1.msra.mxu0 0.0
    %6082 = vmatprep.subr.mxu0 0.0
    %6083 = vmatpush1.msra.mxu0 0.0
    %6084 = vmatprep.subr.mxu0 0.0
    %6085 = vmatpush1.msra.mxu0 0.0
    %6086 = vmatprep.subr.mxu0 0.0
    %6087 = vmatpush1.msra.mxu0 %v6041
    %6088 = vmatprep.subr.mxu0 0.0
    %6089 = vmatpush1.msra.mxu0 %v6040
    %6090 = vmatprep.subr.mxu0 0.0
    %6091 = vmatpush1.msra.mxu0 %v6039
    %6092 = vmatprep.subr.mxu0 0.0
    %6093 = vmatpush1.msra.mxu0 %v6038
    %6094 = vmatprep.subr.mxu0 0.0
    %6095 = vmatpush2.msra.mxu0 0.0
    %6096 = vmatprep.subr.mxu0 0.0
    %6097 = vmatpush2.msra.mxu0 0.0
    %6098 = vmatprep.subr.mxu0 0.0
    %6099 = vmatpush2.msra.mxu0 0.0
    %6100 = vmatprep.subr.mxu0 0.0
    %6101 = vmatpush2.msra.mxu0 0.0
    %6102 = vmatprep.subr.mxu0 0.0
    %6103 = vmatpush2.msra.mxu0 0.0
    %6104 = vmatprep.subr.mxu0 0.0
    %6105 = vmatpush2.msra.mxu0 0.0
    %6106 = vmatprep.subr.mxu0 0.0
    %6107 = vmatpush2.msra.mxu0 0.0
    %6108 = vmatprep.subr.mxu0 0.0
    %6109 = vmatpush2.msra.mxu0 0.0
    %6110 = vmatprep.subr.mxu0 0.0
    %6111 = vmatpush2.msra.mxu0 0.0
    %6112 = vmatprep.subr.mxu0 0.0
    %6113 = vmatpush2.msra.mxu0 0.0
    %6114 = vmatprep.subr.mxu0 0.0
    %6115 = vmatpush2.msra.mxu0 0.0
    %6116 = vmatprep.subr.mxu0 0.0
    %6117 = vmatpush2.msra.mxu0 0.0
    %6118 = vmatprep.subr.mxu0 0.0
    %6119 = vmatpush2.msra.mxu0 0.0
    %6120 = vmatprep.subr.mxu0 0.0
    %6121 = vmatpush2.msra.mxu0 0.0
    %6122 = vmatprep.subr.mxu0 0.0
    %6123 = vmatpush2.msra.mxu0 0.0
    %6124 = vmatprep.subr.mxu0 0.0
    %6125 = vmatpush2.msra.mxu0 0.0
    %6126 = vmatprep.mubr.f32.mxu0 0.0
    %6127 = vmatmul.mubr.f32.gmra.mxu0 %v6051
    %v6128 = vpop.f32.mrf.mxu0
    %v6129 = vadd.f32 %v6048, %v6128
    %v6130 = vpop.f32.mrf.mxu0
    %6131 = vmatprep.mubr.f32.mxu0 0.0
    %6132 = vmatmul.mubr.f32.gmra.mxu0 %v6054
    %v6133 = vpop.f32.mrf.mxu0
    %v6134 = vadd.f32 %v6048, %v6133
    %v6135 = vpop.f32.mrf.mxu0
    %6136 = vmatprep.mubr.f32.mxu0 0.0
    %6137 = vmatmul.mubr.f32.gmra.mxu0 %v6057
    %v6138 = vpop.f32.mrf.mxu0
    %v6139 = vadd.f32 %v6048, %v6138
    %v6140 = vpop.f32.mrf.mxu0
    %6141 = vmatprep.mubr.f32.mxu0 0.0
    %6142 = vmatmul.mubr.f32.gmra.mxu0 %v6060
    %v6143 = vpop.f32.mrf.mxu0
    %v6144 = vadd.f32 %v6048, %v6143
    %v6145 = vpop.f32.mrf.mxu0
    %6146 = vdwg.mxu0
    %v6147 = vmul.f32 %v6129, 0.5
    %v6148 = vmul.f32 %v6134, 0.5
    %v6149 = vmul.f32 %v6139, 0.5
    %v6150 = vmul.f32 %v6144, 0.5
    %v6151 = vmul.f32 %v6129, 0.044715
    %v6152 = vmul.f32 %v6134, 0.044715
    %v6153 = vmul.f32 %v6139, 0.044715
    %v6154 = vmul.f32 %v6144, 0.044715
    %v6155 = vmul.f32 %v6151, %v6129
    %v6156 = vmul.f32 %v6152, %v6134
    %v6157 = vmul.f32 %v6153, %v6139
    %v6158 = vmul.f32 %v6154, %v6144
    %v6159 = vmul.f32 %v6155, %v6129
    %v6160 = vmul.f32 %v6156, %v6134
    %v6161 = vmul.f32 %v6157, %v6139
    %v6162 = vmul.f32 %v6158, %v6144
    %v6163 = vadd.f32 %v6129, %v6159
    %v6164 = vadd.f32 %v6134, %v6160
    %v6165 = vadd.f32 %v6139, %v6161
    %v6166 = vadd.f32 %v6144, %v6162
    %v6167 = vmul.f32 %v6163, 0.7978846
    %v6168 = vmul.f32 %v6164, 0.7978846
    %v6169 = vmul.f32 %v6165, 0.7978846
    %v6170 = vmul.f32 %v6166, 0.7978846
    %v6171 = vtanh.pop %v6167
    %v6172 = vtanh.pop %v6168
    %v6173 = vtanh.pop %v6169
    %v6174 = vtanh.pop %v6170
    %v6175 = vadd.f32 %v6171, 1.0
    %v6176 = vadd.f32 %v6172, 1.0
    %v6177 = vadd.f32 %v6173, 1.0
    %v6178 = vadd.f32 %v6174, 1.0
    %v6179 = vmul.f32 %v6147, %v6175
    %v6180 = vmul.f32 %v6148, %v6176
    %v6181 = vmul.f32 %v6149, %v6177
    %v6182 = vmul.f32 %v6150, %v6178
    %s6183 = scalar_lea.vmem %s11, 128
    %v6184 = vld [vmem:[%s6183] sm:$0xff]
    %v6185 = vld [vmem:[%s6183 + $0x8] sm:$0xff]
    %v6186 = vld [vmem:[%s6183 + $0x10] sm:$0xff]
    %v6187 = vld [vmem:[%s6183 + $0x18] sm:$0xff]
    %v6188 = vld [vmem:[%s6183 + $0x20] sm:$0xff]
    %v6189 = vld [vmem:[%s6183 + $0x28] sm:$0xff]
    %v6190 = vld [vmem:[%s6183 + $0x30] sm:$0xff]
    %v6191 = vld [vmem:[%s6183 + $0x38] sm:$0xff]
    %v6192 = vld [vmem:[%s6183 + $0x40] sm:$0xff]
    %v6193 = vld [vmem:[%s6183 + $0x48] sm:$0xff]
    %v6194 = vld [vmem:[%s6183 + $0x50] sm:$0xff]
    %v6195 = vld [vmem:[%s6183 + $0x58] sm:$0xff]
    %v6196 = vld [vmem:[%s6183 + $0x60] sm:$0xff]
    %v6197 = vld [vmem:[%s6183 + $0x68] sm:$0xff]
    %v6198 = vld [vmem:[%s6183 + $0x70] sm:$0xff]
    %v6199 = vld [vmem:[%s6183 + $0x78] sm:$0xff]
    %v6200 = vlaneseq
    %v6201 = vshrl.u32 %v6200, 7
    %v6202 = vsub.s32 5, %v6201
    %v6203 = vrot.slane %v3264, %v6202
    %6204 = vmatprep.subr.mxu0 0.0
    %6205 = vmatpush1.msra.mxu0 %v6199
    %6206 = vmatprep.subr.mxu0 0.0
    %6207 = vmatpush1.msra.mxu0 %v6198
    %6208 = vmatprep.subr.mxu0 0.0
    %6209 = vmatpush1.msra.mxu0 %v6197
    %6210 = vmatprep.subr.mxu0 0.0
    %6211 = vmatpush1.msra.mxu0 %v6196
    %6212 = vmatprep.subr.mxu0 0.0
    %6213 = vmatpush1.msra.mxu0 %v6195
    %6214 = vmatprep.subr.mxu0 0.0
    %6215 = vmatpush1.msra.mxu0 %v6194
    %6216 = vmatprep.subr.mxu0 0.0
    %6217 = vmatpush1.msra.mxu0 %v6193
    %6218 = vmatprep.subr.mxu0 0.0
    %6219 = vmatpush1.msra.mxu0 %v6192
    %6220 = vmatprep.subr.mxu0 0.0
    %6221 = vmatpush1.msra.mxu0 %v6191
    %6222 = vmatprep.subr.mxu0 0.0
    %6223 = vmatpush1.msra.mxu0 %v6190
    %6224 = vmatprep.subr.mxu0 0.0
    %6225 = vmatpush1.msra.mxu0 %v6189
    %6226 = vmatprep.subr.mxu0 0.0
    %6227 = vmatpush1.msra.mxu0 %v6188
    %6228 = vmatprep.subr.mxu0 0.0
    %6229 = vmatpush1.msra.mxu0 %v6187
    %6230 = vmatprep.subr.mxu0 0.0
    %6231 = vmatpush1.msra.mxu0 %v6186
    %6232 = vmatprep.subr.mxu0 0.0
    %6233 = vmatpush1.msra.mxu0 %v6185
    %6234 = vmatprep.subr.mxu0 0.0
    %6235 = vmatpush1.msra.mxu0 %v6184
    %6236 = vmatprep.subr.mxu0 0.0
    %6237 = vmatpush2.msra.mxu0 0.0
    %6238 = vmatprep.subr.mxu0 0.0
    %6239 = vmatpush2.msra.mxu0 0.0
    %6240 = vmatprep.subr.mxu0 0.0
    %6241 = vmatpush2.msra.mxu0 0.0
    %6242 = vmatprep.subr.mxu0 0.0
    %6243 = vmatpush2.msra.mxu0 0.0
    %6244 = vmatprep.subr.mxu0 0.0
    %6245 = vmatpush2.msra.mxu0 0.0
    %6246 = vmatprep.subr.mxu0 0.0
    %6247 = vmatpush2.msra.mxu0 0.0
    %6248 = vmatprep.subr.mxu0 0.0
    %6249 = vmatpush2.msra.mxu0 0.0
    %6250 = vmatprep.subr.mxu0 0.0
    %6251 = vmatpush2.msra.mxu0 0.0
    %6252 = vmatprep.subr.mxu0 0.0
    %6253 = vmatpush2.msra.mxu0 0.0
    %6254 = vmatprep.subr.mxu0 0.0
    %6255 = vmatpush2.msra.mxu0 0.0
    %6256 = vmatprep.subr.mxu0 0.0
    %6257 = vmatpush2.msra.mxu0 0.0
    %6258 = vmatprep.subr.mxu0 0.0
    %6259 = vmatpush2.msra.mxu0 0.0
    %6260 = vmatprep.subr.mxu0 0.0
    %6261 = vmatpush2.msra.mxu0 0.0
    %6262 = vmatprep.subr.mxu0 0.0
    %6263 = vmatpush2.msra.mxu0 0.0
    %6264 = vmatprep.subr.mxu0 0.0
    %6265 = vmatpush2.msra.mxu0 0.0
    %6266 = vmatprep.subr.mxu0 0.0
    %6267 = vmatpush2.msra.mxu0 0.0
    %6268 = vmatprep.mubr.f32.mxu0 0.0
    %6269 = vmatmul.mubr.f32.gmra.mxu0 %v6179
    %v6270 = vpop.f32.mrf.mxu0
    %v6271 = vadd.f32 %v6203, %v6270
    %v6272 = vpop.f32.mrf.mxu0
    %6273 = vmatprep.mubr.f32.mxu0 0.0
    %6274 = vmatmul.mubr.f32.gmra.mxu0 %v6180
    %v6275 = vpop.f32.mrf.mxu0
    %v6276 = vadd.f32 %v6203, %v6275
    %v6277 = vpop.f32.mrf.mxu0
    %6278 = vmatprep.mubr.f32.mxu0 0.0
    %6279 = vmatmul.mubr.f32.gmra.mxu0 %v6181
    %v6280 = vpop.f32.mrf.mxu0
    %v6281 = vadd.f32 %v6203, %v6280
    %v6282 = vpop.f32.mrf.mxu0
    %6283 = vmatprep.mubr.f32.mxu0 0.0
    %6284 = vmatmul.mubr.f32.gmra.mxu0 %v6182
    %v6285 = vpop.f32.mrf.mxu0
    %v6286 = vadd.f32 %v6203, %v6285
    %v6287 = vpop.f32.mrf.mxu0
    %6288 = vdwg.mxu0
    %v6289 = vadd.f32 %v5965, %v6271
    %v6290 = vadd.f32 %v5966, %v6276
    %v6291 = vadd.f32 %v5967, %v6281
    %v6292 = vadd.f32 %v5968, %v6286
    %6293 = vst.msk [vmem:[#allocation2] sm:$0xff] %vm157, %v6289
    %6294 = vst.msk [vmem:[#allocation2 + $0x8] sm:$0xff] %vm157, %v6290
    %6295 = vst.msk [vmem:[#allocation2 + $0x10] sm:$0xff] %vm157, %v6291
    %6296 = vst.msk [vmem:[#allocation2 + $0x18] sm:$0xff] %vm157, %v6292
    // Predicated region
    $region50: #{wstage_forward.1} parent=1 // pred_check
      _
    $region51: #{wstage_forward.1} parent=1 // pred_check_branch
      %6298 = sbr.rel (0) target = $region53
    $region52: #{wstage_forward.1} parent=1 // pred_region
      %s6300 = ssub.s32 512, 512
      %6301 = vsyncadd [#allocation3], %s6300
      %s6302 = sshll.u32 [#allocation2], 4
      %s6303 = int_to_ptr.vmem [resolvable:$true] %s6302
      %6308 = dma.vmem_to_hbm [thread:$0]  %s6303, 512, %s12, [#allocation3], 128, 128, 8
    $region53: #{wstage_forward.1} parent=1 // pred_fallthru
      _
    // Predicated region
    $region54: #{wstage_forward.1} parent=1 // pred_check
      _
    $region55: #{wstage_forward.1} parent=1 // pred_check_branch
      %6310 = sbr.rel (0) target = $region57
    $region56: #{wstage_forward.1} parent=1 // pred_region
      %6311 = dma.done [#allocation3], 512
    $region57: #{wstage_forward.1} parent=1 // pred_fallthru
      _
    %6312 = vsyncpa [#allocation3], 1

</llo_original>
